<compile_context>
chip_gen: v5e
topology: v5e:2x2
jax: 0.10.0
libtpu: 0.0.40
codegen_flags: <defaults>
</compile_context>

<pallas_src>
import functools

import jax
import jax.numpy as jnp
from jax.experimental import pallas as pl
from jax.experimental.pallas import tpu as pltpu


def _make_divisible(v, divisor, min_value=None):
    if min_value is None:
        min_value = divisor
    new_v = max(min_value, int(v + divisor / 2) // divisor * divisor)
    if new_v < 0.9 * v:
        new_v += divisor
    return new_v


def _relu6(x):
    return jnp.minimum(jnp.maximum(x, 0.0), 6.0)


_PAD_OFF = 8   # tile-aligned sublane offset for the in-VMEM halo buffer


# ------------------------ fused InvertedResidual kernel ------------------------

def _fused_block_kernel(*refs, has_expand, use_res):
    """Whole InvertedResidual block for one batch element, fully resident in VMEM."""
    if has_expand:
        (x_ref, we_ref, be_ref, wd_ref, bd_ref, wp_ref, bp_ref,
         o_ref, pad_ref) = refs
    else:
        (x_ref, wd_ref, bd_ref, wp_ref, bp_ref, o_ref, pad_ref) = refs
        we_ref = be_ref = None

    xb = x_ref[0].astype(jnp.float32)            # (H, W, Cin)
    H, W, Cin = xb.shape
    hid = wd_ref.shape[1]
    Cout = wp_ref.shape[1]

    # ---- expand: 1x1 conv (folded BN) + ReLU6, as an (H*W, Cin) @ (Cin, hid) matmul
    if has_expand:
        h = jnp.dot(xb.reshape(H * W, Cin), we_ref[...],
                    preferred_element_type=jnp.float32)
        h = _relu6(h + be_ref[...])
        h3 = h.reshape(H, W, hid)
    else:
        h3 = xb                                   # hid == Cin when expand_ratio == 1

    # ---- depthwise 3x3, pad=1, stride 1: halo built in VMEM scratch (no HBM pad)
    pad_ref[...] = jnp.zeros(pad_ref.shape, jnp.float32)
    pad_ref[1:H + 1, _PAD_OFF:_PAD_OFF + W, :] = h3     # tile-aligned store
    hp = pad_ref[...]                                   # (H+2, W+16, hid)

    wd = wd_ref[...]                                    # (9, hid)
    acc = jnp.zeros((H, W, hid), jnp.float32)
    for kh in range(3):                                 # static 3x3 tap loop
        for kw in range(3):
            tap = jax.lax.slice(
                hp,
                (kh, _PAD_OFF - 1 + kw, 0),
                (kh + H, _PAD_OFF - 1 + kw + W, hid))
            acc = acc + tap * wd[kh * 3 + kw]
    acc = _relu6(acc + bd_ref[...])

    # ---- project: 1x1 conv (folded BN), optional residual (input already in VMEM)
    y = jnp.dot(acc.reshape(H * W, hid), wp_ref[...],
                preferred_element_type=jnp.float32)
    y = y + bp_ref[...]
    if use_res:
        y = y + xb.reshape(H * W, Cin)                  # Cin == Cout when use_res
    o_ref[0] = y.reshape(H, W, Cout).astype(o_ref.dtype)


def _full_spec(shape):
    nd = len(shape)
    return pl.BlockSpec(shape, lambda n, _nd=nd: (0,) * _nd)


def inverted_residual(x, blk):
    """Run one InvertedResidual block with a single fused pallas_call. x: (N,H,W,Cin)."""
    N, H, W, Cin = x.shape
    has_expand = blk['expand'] is not None
    wd, bd = blk['dw']
    wp, bp = blk['project']
    hid = wd.shape[1]
    Cout = wp.shape[1]
    stride = blk['stride']

    in_specs = [pl.BlockSpec((1, H, W, Cin), lambda n: (n, 0, 0, 0))]
    args = [x]
    if has_expand:
        we, be = blk['expand']
        in_specs += [_full_spec(we.shape), _full_spec(be.shape)]
        args += [we, be]
    in_specs += [_full_spec(wd.shape), _full_spec(bd.shape),
                 _full_spec(wp.shape), _full_spec(bp.shape)]
    args += [wd, bd, wp, bp]

    kernel = functools.partial(_fused_block_kernel,
                               has_expand=has_expand, use_res=blk['use_res'])
    y = pl.pallas_call(
        kernel,
        out_shape=jax.ShapeDtypeStruct((N, H, W, Cout), jnp.float32),
        grid=(N,),
        in_specs=in_specs,
        out_specs=pl.BlockSpec((1, H, W, Cout), lambda n: (n, 0, 0, 0)),
        scratch_shapes=[pltpu.VMEM((H + 2, W + 2 * _PAD_OFF, hid), jnp.float32)],
        compiler_params=pltpu.CompilerParams(
            dimension_semantics=("parallel",)),
    )(*args)

    if stride > 1:
        # stride-s 3x3/pad-1 conv == stride-1 output subsampled (1x1 project commutes).
        y = y[:, ::stride, ::stride, :]
    return y


def branch_forward(x_nhwc, blocks):
    for blk in blocks:
        x_nhwc = inverted_residual(x_nhwc, blk)
    return x_nhwc


# --------------------------- parameter construction ----------------------------

def _fold_bn(key, cout):
    kg, kb, km, kv = jax.random.split(key, 4)
    gamma = jax.random.uniform(kg, (cout,), minval=0.5, maxval=1.5)
    beta = 0.1 * jax.random.normal(kb, (cout,))
    mean = 0.1 * jax.random.normal(km, (cout,))
    var = jax.random.uniform(kv, (cout,), minval=0.5, maxval=1.5)
    scale = gamma / jnp.sqrt(var + 1e-5)
    bias = beta - mean * scale
    return scale, bias


def _init_pw(key, cin, cout):
    kw, kbn = jax.random.split(key)
    w = 0.1 * jax.random.normal(kw, (cin, cout), dtype=jnp.float32)
    scale, bias = _fold_bn(kbn, cout)
    return ((w * scale[None, :]).astype(jnp.float32),
            bias.reshape(1, cout).astype(jnp.float32))


def _init_dw(key, c):
    kw, kbn = jax.random.split(key)
    w = 0.1 * jax.random.normal(kw, (3, 3, c), dtype=jnp.float32)
    scale, bias = _fold_bn(kbn, c)
    return ((w * scale[None, None, :]).reshape(9, c).astype(jnp.float32),
            bias.reshape(1, c).astype(jnp.float32))


def init_branch(key, input_channel, inverted_residual_setting,
                width_mult=1.0, round_nearest=8):
    blocks = []
    in_c = input_channel
    for t, c, n, s in inverted_residual_setting:
        out_c = _make_divisible(c * width_mult, round_nearest)
        for i in range(n):
            stride = s if i == 0 else 1
            hidden = int(round(in_c * t))
            key, k1, k2, k3 = jax.random.split(key, 4)
            blocks.append({
                'stride': stride,
                'use_res': (stride == 1 and in_c == out_c),
                'expand': _init_pw(k1, in_c, hidden) if t != 1 else None,
                'dw': _init_dw(k2, hidden),
                'project': _init_pw(k3, hidden, out_c),
            })
            in_c = out_c
    return blocks


# ----------------------------- pure-JAX reference ------------------------------

def _ref_pw(x, w, b, relu6, residual=None):
    y = jnp.einsum('nhwc,cd->nhwd', x, w,
                   precision=jax.lax.Precision.HIGHEST) + b.reshape(1, 1, 1, -1)
    if residual is not None:
        y = y + residual
    return _relu6(y) if relu6 else y


def _ref_dw(x, w9, b, stride):
    C = x.shape[-1]
    rhs = w9.reshape(3, 3, 1, C)
    y = jax.lax.conv_general_dilated(
        x, rhs, window_strides=(stride, stride), padding=((1, 1), (1, 1)),
        dimension_numbers=('NHWC', 'HWIO', 'NHWC'),
        feature_group_count=C, precision=jax.lax.Precision.HIGHEST)
    return _relu6(y + b.reshape(1, 1, 1, C))


def branch_reference(x_nhwc, blocks):
    for blk in blocks:
        inp = x_nhwc
        h = inp
        if blk['expand'] is not None:
            h = _ref_pw(h, *blk['expand'], True)
        h = _ref_dw(h, *blk['dw'], blk['stride'])
        if blk['use_res']:
            h = _ref_pw(h, *blk['project'], False, residual=inp)
        else:
            h = _ref_pw(h, *blk['project'], False)
        x_nhwc = h
    return x_nhwc


# ------------------------------------ main --------------------------------------

if __name__ == "__main__":
    key = jax.random.PRNGKey(0)
    kx, kp = jax.random.split(key)

    # MobileNetV2-style inverted_residual_setting: (t, c, n, s)
    setting = [
        [1, 16, 1, 1],   # expand_ratio=1 (no expand conv), stride 1
        [6, 24, 2, 2],   # expand_ratio=6; first block stride 2, second has residual
    ]
    input_channel = 8

    x_nchw = jax.random.normal(kx, (2, input_channel, 16, 16), dtype=jnp.float32)
    x_nhwc = jnp.transpose(x_nchw, (0, 2, 3, 1))   # NCHW (PyTorch) -> NHWC (kernel)

    blocks = init_branch(kp, input_channel, setting)

    fwd = jax.jit(functools.partial(branch_forward, blocks=blocks))
    out_nhwc = jax.block_until_ready(fwd(x_nhwc))
    out_nchw = jnp.transpose(out_nhwc, (0, 3, 1, 2))

    ref = branch_reference(x_nhwc, blocks)
    assert out_nchw.shape == (2, 24, 8, 8), out_nchw.shape
    assert bool(jnp.all(jnp.isfinite(out_nhwc)))
    assert bool(jnp.allclose(out_nhwc, ref, rtol=5e-2, atol=5e-2)), \
        float(jnp.max(jnp.abs(out_nhwc - ref)))
    print("KERNEL_OK")
</pallas_src>

<mosaic_0001>
module attributes {stable_mosaic.version = 11 : i64} {
  func.func @_fused_block_kernel(%arg0: i32, %arg1: memref<1x16x16x16xf32, #tpu.memory_space<vmem>>, %arg2: memref<16x96xf32, #tpu.memory_space<vmem>>, %arg3: memref<1x96xf32, #tpu.memory_space<vmem>>, %arg4: memref<9x96xf32, #tpu.memory_space<vmem>>, %arg5: memref<1x96xf32, #tpu.memory_space<vmem>>, %arg6: memref<96x24xf32, #tpu.memory_space<vmem>>, %arg7: memref<1x24xf32, #tpu.memory_space<vmem>>, %arg8: memref<1x16x16x24xf32, #tpu.memory_space<vmem>>, %arg9: memref<18x32x96xf32, #tpu.memory_space<vmem>>) attributes {dimension_semantics = [#tpu.dimension_semantics<parallel>], iteration_bounds = array<i64: 2>, scalar_prefetch = 0 : i64, scratch_operands = 1 : i64, tpu.core_type = #tpu.core_type<tc>, window_params = [{transform_indices = @transform_0, window_bounds = array<i64: 1, 16, 16, 16>}, {pipeline_mode = #tpu.pipeline_mode<synchronous>, transform_indices = @transform_1, window_bounds = array<i64: 16, 96>}, {pipeline_mode = #tpu.pipeline_mode<synchronous>, transform_indices = @transform_2, window_bounds = array<i64: 1, 96>}, {pipeline_mode = #tpu.pipeline_mode<synchronous>, transform_indices = @transform_3, window_bounds = array<i64: 9, 96>}, {pipeline_mode = #tpu.pipeline_mode<synchronous>, transform_indices = @transform_4, window_bounds = array<i64: 1, 96>}, {pipeline_mode = #tpu.pipeline_mode<synchronous>, transform_indices = @transform_5, window_bounds = array<i64: 96, 24>}, {pipeline_mode = #tpu.pipeline_mode<synchronous>, transform_indices = @transform_6, window_bounds = array<i64: 1, 24>}, {transform_indices = @transform_7, window_bounds = array<i64: 1, 16, 16, 24>}]} {
    %c0 = arith.constant 0 : index
    %c0_0 = arith.constant 0 : index
    %c0_1 = arith.constant 0 : index
    %c0_2 = arith.constant 0 : index
    %0 = vector.load %arg1[%c0, %c0_0, %c0_1, %c0_2] : memref<1x16x16x16xf32, #tpu.memory_space<vmem>>, vector<1x16x16x16xf32>
    %1 = vector.shape_cast %0 : vector<1x16x16x16xf32> to vector<16x16x16xf32>
    %2 = vector.shape_cast %1 : vector<16x16x16xf32> to vector<256x16xf32>
    %c0_3 = arith.constant 0 : index
    %c0_4 = arith.constant 0 : index
    %3 = vector.load %arg2[%c0_3, %c0_4] : memref<16x96xf32, #tpu.memory_space<vmem>>, vector<16x96xf32>
    %cst = arith.constant dense<0.000000e+00> : vector<256x96xf32>
    %4 = tpu.matmul %2, %3, %cst {dimension_numbers = #tpu.dot_dimension_numbers<[1], [0], [0], [1], [0, 0, 1, 1], [], []>} : vector<256x16xf32>, vector<16x96xf32>, vector<256x96xf32> -> vector<256x96xf32>
    %c0_5 = arith.constant 0 : index
    %c0_6 = arith.constant 0 : index
    %5 = vector.load %arg3[%c0_5, %c0_6] : memref<1x96xf32, #tpu.memory_space<vmem>>, vector<1x96xf32>
    %6 = vector.broadcast %5 : vector<1x96xf32> to vector<256x96xf32>
    %7 = arith.addf %4, %6 : vector<256x96xf32>
    %cst_7 = arith.constant 0.000000e+00 : f32
    %8 = vector.broadcast %cst_7 : f32 to vector<256x96xf32>
    %9 = arith.maximumf %7, %8 : vector<256x96xf32>
    %cst_8 = arith.constant 6.000000e+00 : f32
    %10 = vector.broadcast %cst_8 : f32 to vector<256x96xf32>
    %11 = arith.minimumf %9, %10 : vector<256x96xf32>
    %12 = vector.shape_cast %11 : vector<256x96xf32> to vector<16x16x96xf32>
    %cst_9 = arith.constant 0.000000e+00 : f32
    %13 = vector.broadcast %cst_9 : f32 to vector<18x32x96xf32>
    %c0_10 = arith.constant 0 : index
    %c0_11 = arith.constant 0 : index
    %c0_12 = arith.constant 0 : index
    %14 = vector.load %arg9[%c0_10, %c0_11, %c0_12] : memref<18x32x96xf32, #tpu.memory_space<vmem>>, vector<18x32x96xf32>
    tpu.vector_store %arg9[%c0_10, %c0_11, %c0_12], %13 {strides = array<i32>} : memref<18x32x96xf32, #tpu.memory_space<vmem>>, vector<18x32x96xf32>,
    %c1 = arith.constant 1 : index
    %c8 = arith.constant 8 : index
    %c0_13 = arith.constant 0 : index
    %15 = vector.load %arg9[%c1, %c8, %c0_13] : memref<18x32x96xf32, #tpu.memory_space<vmem>>, vector<16x16x96xf32>
    tpu.vector_store %arg9[%c1, %c8, %c0_13], %12 {strides = array<i32>} : memref<18x32x96xf32, #tpu.memory_space<vmem>>, vector<16x16x96xf32>,
    %c0_14 = arith.constant 0 : index
    %c0_15 = arith.constant 0 : index
    %c0_16 = arith.constant 0 : index
    %16 = vector.load %arg9[%c0_14, %c0_15, %c0_16] : memref<18x32x96xf32, #tpu.memory_space<vmem>>, vector<18x32x96xf32>
    %c0_17 = arith.constant 0 : index
    %c0_18 = arith.constant 0 : index
    %17 = vector.load %arg4[%c0_17, %c0_18] : memref<9x96xf32, #tpu.memory_space<vmem>>, vector<9x96xf32>
    %cst_19 = arith.constant 0.000000e+00 : f32
    %18 = vector.broadcast %cst_19 : f32 to vector<16x16x96xf32>
    %19 = vector.extract_strided_slice %16 {offsets = [0, 7, 0], sizes = [16, 16, 96], strides = [1, 1, 1]} : vector<18x32x96xf32> to vector<16x16x96xf32>
    %20 = vector.extract_strided_slice %17 {offsets = [0, 0], sizes = [1, 96], strides = [1, 1]} : vector<9x96xf32> to vector<1x96xf32>
    %21 = vector.shape_cast %20 : vector<1x96xf32> to vector<96xf32>
    %22 = vector.shape_cast %21 : vector<96xf32> to vector<1x1x96xf32>
    %23 = vector.broadcast %22 : vector<1x1x96xf32> to vector<16x16x96xf32>
    %24 = arith.mulf %19, %23 : vector<16x16x96xf32>
    %25 = arith.addf %18, %24 : vector<16x16x96xf32>
    %26 = vector.extract_strided_slice %16 {offsets = [0, 8, 0], sizes = [16, 16, 96], strides = [1, 1, 1]} : vector<18x32x96xf32> to vector<16x16x96xf32>
    %27 = vector.extract_strided_slice %17 {offsets = [1, 0], sizes = [1, 96], strides = [1, 1]} : vector<9x96xf32> to vector<1x96xf32>
    %28 = vector.shape_cast %27 : vector<1x96xf32> to vector<96xf32>
    %29 = vector.shape_cast %28 : vector<96xf32> to vector<1x1x96xf32>
    %30 = vector.broadcast %29 : vector<1x1x96xf32> to vector<16x16x96xf32>
    %31 = arith.mulf %26, %30 : vector<16x16x96xf32>
    %32 = arith.addf %25, %31 : vector<16x16x96xf32>
    %33 = vector.extract_strided_slice %16 {offsets = [0, 9, 0], sizes = [16, 16, 96], strides = [1, 1, 1]} : vector<18x32x96xf32> to vector<16x16x96xf32>
    %34 = vector.extract_strided_slice %17 {offsets = [2, 0], sizes = [1, 96], strides = [1, 1]} : vector<9x96xf32> to vector<1x96xf32>
    %35 = vector.shape_cast %34 : vector<1x96xf32> to vector<96xf32>
    %36 = vector.shape_cast %35 : vector<96xf32> to vector<1x1x96xf32>
    %37 = vector.broadcast %36 : vector<1x1x96xf32> to vector<16x16x96xf32>
    %38 = arith.mulf %33, %37 : vector<16x16x96xf32>
    %39 = arith.addf %32, %38 : vector<16x16x96xf32>
    %40 = vector.extract_strided_slice %16 {offsets = [1, 7, 0], sizes = [16, 16, 96], strides = [1, 1, 1]} : vector<18x32x96xf32> to vector<16x16x96xf32>
    %41 = vector.extract_strided_slice %17 {offsets = [3, 0], sizes = [1, 96], strides = [1, 1]} : vector<9x96xf32> to vector<1x96xf32>
    %42 = vector.shape_cast %41 : vector<1x96xf32> to vector<96xf32>
    %43 = vector.shape_cast %42 : vector<96xf32> to vector<1x1x96xf32>
    %44 = vector.broadcast %43 : vector<1x1x96xf32> to vector<16x16x96xf32>
    %45 = arith.mulf %40, %44 : vector<16x16x96xf32>
    %46 = arith.addf %39, %45 : vector<16x16x96xf32>
    %47 = vector.extract_strided_slice %16 {offsets = [1, 8, 0], sizes = [16, 16, 96], strides = [1, 1, 1]} : vector<18x32x96xf32> to vector<16x16x96xf32>
    %48 = vector.extract_strided_slice %17 {offsets = [4, 0], sizes = [1, 96], strides = [1, 1]} : vector<9x96xf32> to vector<1x96xf32>
    %49 = vector.shape_cast %48 : vector<1x96xf32> to vector<96xf32>
    %50 = vector.shape_cast %49 : vector<96xf32> to vector<1x1x96xf32>
    %51 = vector.broadcast %50 : vector<1x1x96xf32> to vector<16x16x96xf32>
    %52 = arith.mulf %47, %51 : vector<16x16x96xf32>
    %53 = arith.addf %46, %52 : vector<16x16x96xf32>
    %54 = vector.extract_strided_slice %16 {offsets = [1, 9, 0], sizes = [16, 16, 96], strides = [1, 1, 1]} : vector<18x32x96xf32> to vector<16x16x96xf32>
    %55 = vector.extract_strided_slice %17 {offsets = [5, 0], sizes = [1, 96], strides = [1, 1]} : vector<9x96xf32> to vector<1x96xf32>
    %56 = vector.shape_cast %55 : vector<1x96xf32> to vector<96xf32>
    %57 = vector.shape_cast %56 : vector<96xf32> to vector<1x1x96xf32>
    %58 = vector.broadcast %57 : vector<1x1x96xf32> to vector<16x16x96xf32>
    %59 = arith.mulf %54, %58 : vector<16x16x96xf32>
    %60 = arith.addf %53, %59 : vector<16x16x96xf32>
    %61 = vector.extract_strided_slice %16 {offsets = [2, 7, 0], sizes = [16, 16, 96], strides = [1, 1, 1]} : vector<18x32x96xf32> to vector<16x16x96xf32>
    %62 = vector.extract_strided_slice %17 {offsets = [6, 0], sizes = [1, 96], strides = [1, 1]} : vector<9x96xf32> to vector<1x96xf32>
    %63 = vector.shape_cast %62 : vector<1x96xf32> to vector<96xf32>
    %64 = vector.shape_cast %63 : vector<96xf32> to vector<1x1x96xf32>
    %65 = vector.broadcast %64 : vector<1x1x96xf32> to vector<16x16x96xf32>
    %66 = arith.mulf %61, %65 : vector<16x16x96xf32>
    %67 = arith.addf %60, %66 : vector<16x16x96xf32>
    %68 = vector.extract_strided_slice %16 {offsets = [2, 8, 0], sizes = [16, 16, 96], strides = [1, 1, 1]} : vector<18x32x96xf32> to vector<16x16x96xf32>
    %69 = vector.extract_strided_slice %17 {offsets = [7, 0], sizes = [1, 96], strides = [1, 1]} : vector<9x96xf32> to vector<1x96xf32>
    %70 = vector.shape_cast %69 : vector<1x96xf32> to vector<96xf32>
    %71 = vector.shape_cast %70 : vector<96xf32> to vector<1x1x96xf32>
    %72 = vector.broadcast %71 : vector<1x1x96xf32> to vector<16x16x96xf32>
    %73 = arith.mulf %68, %72 : vector<16x16x96xf32>
    %74 = arith.addf %67, %73 : vector<16x16x96xf32>
    %75 = vector.extract_strided_slice %16 {offsets = [2, 9, 0], sizes = [16, 16, 96], strides = [1, 1, 1]} : vector<18x32x96xf32> to vector<16x16x96xf32>
    %76 = vector.extract_strided_slice %17 {offsets = [8, 0], sizes = [1, 96], strides = [1, 1]} : vector<9x96xf32> to vector<1x96xf32>
    %77 = vector.shape_cast %76 : vector<1x96xf32> to vector<96xf32>
    %78 = vector.shape_cast %77 : vector<96xf32> to vector<1x1x96xf32>
    %79 = vector.broadcast %78 : vector<1x1x96xf32> to vector<16x16x96xf32>
    %80 = arith.mulf %75, %79 : vector<16x16x96xf32>
    %81 = arith.addf %74, %80 : vector<16x16x96xf32>
    %c0_20 = arith.constant 0 : index
    %c0_21 = arith.constant 0 : index
    %82 = vector.load %arg5[%c0_20, %c0_21] : memref<1x96xf32, #tpu.memory_space<vmem>>, vector<1x96xf32>
    %83 = vector.shape_cast %82 : vector<1x96xf32> to vector<1x1x96xf32>
    %84 = vector.broadcast %83 : vector<1x1x96xf32> to vector<16x16x96xf32>
    %85 = arith.addf %81, %84 : vector<16x16x96xf32>
    %cst_22 = arith.constant 0.000000e+00 : f32
    %86 = vector.broadcast %cst_22 : f32 to vector<16x16x96xf32>
    %87 = arith.maximumf %85, %86 : vector<16x16x96xf32>
    %cst_23 = arith.constant 6.000000e+00 : f32
    %88 = vector.broadcast %cst_23 : f32 to vector<16x16x96xf32>
    %89 = arith.minimumf %87, %88 : vector<16x16x96xf32>
    %90 = vector.shape_cast %89 : vector<16x16x96xf32> to vector<256x96xf32>
    %c0_24 = arith.constant 0 : index
    %c0_25 = arith.constant 0 : index
    %91 = vector.load %arg6[%c0_24, %c0_25] : memref<96x24xf32, #tpu.memory_space<vmem>>, vector<96x24xf32>
    %cst_26 = arith.constant dense<0.000000e+00> : vector<256x24xf32>
    %92 = tpu.matmul %90, %91, %cst_26 {dimension_numbers = #tpu.dot_dimension_numbers<[1], [0], [0], [1], [0, 0, 1, 1], [], []>} : vector<256x96xf32>, vector<96x24xf32>, vector<256x24xf32> -> vector<256x24xf32>
    %c0_27 = arith.constant 0 : index
    %c0_28 = arith.constant 0 : index
    %93 = vector.load %arg7[%c0_27, %c0_28] : memref<1x24xf32, #tpu.memory_space<vmem>>, vector<1x24xf32>
    %94 = vector.broadcast %93 : vector<1x24xf32> to vector<256x24xf32>
    %95 = arith.addf %92, %94 : vector<256x24xf32>
    %96 = vector.shape_cast %95 : vector<256x24xf32> to vector<16x16x24xf32>
    %c0_29 = arith.constant 0 : index
    %c0_30 = arith.constant 0 : index
    %c0_31 = arith.constant 0 : index
    %c0_32 = arith.constant 0 : index
    %97 = vector.load %arg8[%c0_29, %c0_30, %c0_31, %c0_32] : memref<1x16x16x24xf32, #tpu.memory_space<vmem>>, vector<1x16x16x24xf32>
    %98 = vector.shape_cast %97 : vector<1x16x16x24xf32> to vector<16x16x24xf32>
    %99 = vector.shape_cast %96 : vector<16x16x24xf32> to vector<1x16x16x24xf32>
    tpu.vector_store %arg8[%c0_29, %c0_30, %c0_31, %c0_32], %99 {strides = array<i32>} : memref<1x16x16x24xf32, #tpu.memory_space<vmem>>, vector<1x16x16x24xf32>,
    return
  }
  func.func @transform_0(%arg0: i32) -> (i32, i32, i32, i32) {
    %c0_i32 = arith.constant 0 : i32
    %c0_i32_0 = arith.constant 0 : i32
    %c0_i32_1 = arith.constant 0 : i32
    %c0_i32_2 = arith.constant 0 : i32
    return %arg0, %c0_i32, %c0_i32_0, %c0_i32_1 : i32, i32, i32, i32
  }
  func.func @transform_1(%arg0: i32) -> (i32, i32) {
    %c0_i32 = arith.constant 0 : i32
    %c0_i32_0 = arith.constant 0 : i32
    %c0_i32_1 = arith.constant 0 : i32
    return %c0_i32, %c0_i32_0 : i32, i32
  }
  func.func @transform_2(%arg0: i32) -> (i32, i32) {
    %c0_i32 = arith.constant 0 : i32
    %c0_i32_0 = arith.constant 0 : i32
    %c0_i32_1 = arith.constant 0 : i32
    return %c0_i32, %c0_i32_0 : i32, i32
  }
  func.func @transform_3(%arg0: i32) -> (i32, i32) {
    %c0_i32 = arith.constant 0 : i32
    %c0_i32_0 = arith.constant 0 : i32
    %c0_i32_1 = arith.constant 0 : i32
    return %c0_i32, %c0_i32_0 : i32, i32
  }
  func.func @transform_4(%arg0: i32) -> (i32, i32) {
    %c0_i32 = arith.constant 0 : i32
    %c0_i32_0 = arith.constant 0 : i32
    %c0_i32_1 = arith.constant 0 : i32
    return %c0_i32, %c0_i32_0 : i32, i32
  }
  func.func @transform_5(%arg0: i32) -> (i32, i32) {
    %c0_i32 = arith.constant 0 : i32
    %c0_i32_0 = arith.constant 0 : i32
    %c0_i32_1 = arith.constant 0 : i32
    return %c0_i32, %c0_i32_0 : i32, i32
  }
  func.func @transform_6(%arg0: i32) -> (i32, i32) {
    %c0_i32 = arith.constant 0 : i32
    %c0_i32_0 = arith.constant 0 : i32
    %c0_i32_1 = arith.constant 0 : i32
    return %c0_i32, %c0_i32_0 : i32, i32
  }
  func.func @transform_7(%arg0: i32) -> (i32, i32, i32, i32) {
    %c0_i32 = arith.constant 0 : i32
    %c0_i32_0 = arith.constant 0 : i32
    %c0_i32_1 = arith.constant 0 : i32
    %c0_i32_2 = arith.constant 0 : i32
    return %arg0, %c0_i32, %c0_i32_0, %c0_i32_1 : i32, i32, i32, i32
  }
}

module attributes {stable_mosaic.version = 11 : i64} {
  func.func @_fused_block_kernel(%arg0: i32, %arg1: memref<1x16x16x8xf32, #tpu.memory_space<vmem>>, %arg2: memref<9x8xf32, #tpu.memory_space<vmem>>, %arg3: memref<1x8xf32, #tpu.memory_space<vmem>>, %arg4: memref<8x16xf32, #tpu.memory_space<vmem>>, %arg5: memref<1x16xf32, #tpu.memory_space<vmem>>, %arg6: memref<1x16x16x16xf32, #tpu.memory_space<vmem>>, %arg7: memref<18x32x8xf32, #tpu.memory_space<vmem>>) attributes {dimension_semantics = [#tpu.dimension_semantics<parallel>], iteration_bounds = array<i64: 2>, scalar_prefetch = 0 : i64, scratch_operands = 1 : i64, tpu.core_type = #tpu.core_type<tc>, window_params = [{transform_indices = @transform_0, window_bounds = array<i64: 1, 16, 16, 8>}, {pipeline_mode = #tpu.pipeline_mode<synchronous>, transform_indices = @transform_1, window_bounds = array<i64: 9, 8>}, {pipeline_mode = #tpu.pipeline_mode<synchronous>, transform_indices = @transform_2, window_bounds = array<i64: 1, 8>}, {pipeline_mode = #tpu.pipeline_mode<synchronous>, transform_indices = @transform_3, window_bounds = array<i64: 8, 16>}, {pipeline_mode = #tpu.pipeline_mode<synchronous>, transform_indices = @transform_4, window_bounds = array<i64: 1, 16>}, {transform_indices = @transform_5, window_bounds = array<i64: 1, 16, 16, 16>}]} {
    %c0 = arith.constant 0 : index
    %c0_0 = arith.constant 0 : index
    %c0_1 = arith.constant 0 : index
    %c0_2 = arith.constant 0 : index
    %0 = vector.load %arg1[%c0, %c0_0, %c0_1, %c0_2] : memref<1x16x16x8xf32, #tpu.memory_space<vmem>>, vector<1x16x16x8xf32>
    %1 = vector.shape_cast %0 : vector<1x16x16x8xf32> to vector<16x16x8xf32>
    %cst = arith.constant 0.000000e+00 : f32
    %2 = vector.broadcast %cst : f32 to vector<18x32x8xf32>
    %c0_3 = arith.constant 0 : index
    %c0_4 = arith.constant 0 : index
    %c0_5 = arith.constant 0 : index
    %3 = vector.load %arg7[%c0_3, %c0_4, %c0_5] : memref<18x32x8xf32, #tpu.memory_space<vmem>>, vector<18x32x8xf32>
    tpu.vector_store %arg7[%c0_3, %c0_4, %c0_5], %2 {strides = array<i32>} : memref<18x32x8xf32, #tpu.memory_space<vmem>>, vector<18x32x8xf32>,
    %c1 = arith.constant 1 : index
    %c8 = arith.constant 8 : index
    %c0_6 = arith.constant 0 : index
    %4 = vector.load %arg7[%c1, %c8, %c0_6] : memref<18x32x8xf32, #tpu.memory_space<vmem>>, vector<16x16x8xf32>
    tpu.vector_store %arg7[%c1, %c8, %c0_6], %1 {strides = array<i32>} : memref<18x32x8xf32, #tpu.memory_space<vmem>>, vector<16x16x8xf32>,
    %c0_7 = arith.constant 0 : index
    %c0_8 = arith.constant 0 : index
    %c0_9 = arith.constant 0 : index
    %5 = vector.load %arg7[%c0_7, %c0_8, %c0_9] : memref<18x32x8xf32, #tpu.memory_space<vmem>>, vector<18x32x8xf32>
    %c0_10 = arith.constant 0 : index
    %c0_11 = arith.constant 0 : index
    %6 = vector.load %arg2[%c0_10, %c0_11] : memref<9x8xf32, #tpu.memory_space<vmem>>, vector<9x8xf32>
    %cst_12 = arith.constant 0.000000e+00 : f32
    %7 = vector.broadcast %cst_12 : f32 to vector<16x16x8xf32>
    %8 = vector.extract_strided_slice %5 {offsets = [0, 7, 0], sizes = [16, 16, 8], strides = [1, 1, 1]} : vector<18x32x8xf32> to vector<16x16x8xf32>
    %9 = vector.extract_strided_slice %6 {offsets = [0, 0], sizes = [1, 8], strides = [1, 1]} : vector<9x8xf32> to vector<1x8xf32>
    %10 = vector.shape_cast %9 : vector<1x8xf32> to vector<8xf32>
    %11 = vector.shape_cast %10 : vector<8xf32> to vector<1x1x8xf32>
    %12 = vector.broadcast %11 : vector<1x1x8xf32> to vector<16x16x8xf32>
    %13 = arith.mulf %8, %12 : vector<16x16x8xf32>
    %14 = arith.addf %7, %13 : vector<16x16x8xf32>
    %15 = vector.extract_strided_slice %5 {offsets = [0, 8, 0], sizes = [16, 16, 8], strides = [1, 1, 1]} : vector<18x32x8xf32> to vector<16x16x8xf32>
    %16 = vector.extract_strided_slice %6 {offsets = [1, 0], sizes = [1, 8], strides = [1, 1]} : vector<9x8xf32> to vector<1x8xf32>
    %17 = vector.shape_cast %16 : vector<1x8xf32> to vector<8xf32>
    %18 = vector.shape_cast %17 : vector<8xf32> to vector<1x1x8xf32>
    %19 = vector.broadcast %18 : vector<1x1x8xf32> to vector<16x16x8xf32>
    %20 = arith.mulf %15, %19 : vector<16x16x8xf32>
    %21 = arith.addf %14, %20 : vector<16x16x8xf32>
    %22 = vector.extract_strided_slice %5 {offsets = [0, 9, 0], sizes = [16, 16, 8], strides = [1, 1, 1]} : vector<18x32x8xf32> to vector<16x16x8xf32>
    %23 = vector.extract_strided_slice %6 {offsets = [2, 0], sizes = [1, 8], strides = [1, 1]} : vector<9x8xf32> to vector<1x8xf32>
    %24 = vector.shape_cast %23 : vector<1x8xf32> to vector<8xf32>
    %25 = vector.shape_cast %24 : vector<8xf32> to vector<1x1x8xf32>
    %26 = vector.broadcast %25 : vector<1x1x8xf32> to vector<16x16x8xf32>
    %27 = arith.mulf %22, %26 : vector<16x16x8xf32>
    %28 = arith.addf %21, %27 : vector<16x16x8xf32>
    %29 = vector.extract_strided_slice %5 {offsets = [1, 7, 0], sizes = [16, 16, 8], strides = [1, 1, 1]} : vector<18x32x8xf32> to vector<16x16x8xf32>
    %30 = vector.extract_strided_slice %6 {offsets = [3, 0], sizes = [1, 8], strides = [1, 1]} : vector<9x8xf32> to vector<1x8xf32>
    %31 = vector.shape_cast %30 : vector<1x8xf32> to vector<8xf32>
    %32 = vector.shape_cast %31 : vector<8xf32> to vector<1x1x8xf32>
    %33 = vector.broadcast %32 : vector<1x1x8xf32> to vector<16x16x8xf32>
    %34 = arith.mulf %29, %33 : vector<16x16x8xf32>
    %35 = arith.addf %28, %34 : vector<16x16x8xf32>
    %36 = vector.extract_strided_slice %5 {offsets = [1, 8, 0], sizes = [16, 16, 8], strides = [1, 1, 1]} : vector<18x32x8xf32> to vector<16x16x8xf32>
    %37 = vector.extract_strided_slice %6 {offsets = [4, 0], sizes = [1, 8], strides = [1, 1]} : vector<9x8xf32> to vector<1x8xf32>
    %38 = vector.shape_cast %37 : vector<1x8xf32> to vector<8xf32>
    %39 = vector.shape_cast %38 : vector<8xf32> to vector<1x1x8xf32>
    %40 = vector.broadcast %39 : vector<1x1x8xf32> to vector<16x16x8xf32>
    %41 = arith.mulf %36, %40 : vector<16x16x8xf32>
    %42 = arith.addf %35, %41 : vector<16x16x8xf32>
    %43 = vector.extract_strided_slice %5 {offsets = [1, 9, 0], sizes = [16, 16, 8], strides = [1, 1, 1]} : vector<18x32x8xf32> to vector<16x16x8xf32>
    %44 = vector.extract_strided_slice %6 {offsets = [5, 0], sizes = [1, 8], strides = [1, 1]} : vector<9x8xf32> to vector<1x8xf32>
    %45 = vector.shape_cast %44 : vector<1x8xf32> to vector<8xf32>
    %46 = vector.shape_cast %45 : vector<8xf32> to vector<1x1x8xf32>
    %47 = vector.broadcast %46 : vector<1x1x8xf32> to vector<16x16x8xf32>
    %48 = arith.mulf %43, %47 : vector<16x16x8xf32>
    %49 = arith.addf %42, %48 : vector<16x16x8xf32>
    %50 = vector.extract_strided_slice %5 {offsets = [2, 7, 0], sizes = [16, 16, 8], strides = [1, 1, 1]} : vector<18x32x8xf32> to vector<16x16x8xf32>
    %51 = vector.extract_strided_slice %6 {offsets = [6, 0], sizes = [1, 8], strides = [1, 1]} : vector<9x8xf32> to vector<1x8xf32>
    %52 = vector.shape_cast %51 : vector<1x8xf32> to vector<8xf32>
    %53 = vector.shape_cast %52 : vector<8xf32> to vector<1x1x8xf32>
    %54 = vector.broadcast %53 : vector<1x1x8xf32> to vector<16x16x8xf32>
    %55 = arith.mulf %50, %54 : vector<16x16x8xf32>
    %56 = arith.addf %49, %55 : vector<16x16x8xf32>
    %57 = vector.extract_strided_slice %5 {offsets = [2, 8, 0], sizes = [16, 16, 8], strides = [1, 1, 1]} : vector<18x32x8xf32> to vector<16x16x8xf32>
    %58 = vector.extract_strided_slice %6 {offsets = [7, 0], sizes = [1, 8], strides = [1, 1]} : vector<9x8xf32> to vector<1x8xf32>
    %59 = vector.shape_cast %58 : vector<1x8xf32> to vector<8xf32>
    %60 = vector.shape_cast %59 : vector<8xf32> to vector<1x1x8xf32>
    %61 = vector.broadcast %60 : vector<1x1x8xf32> to vector<16x16x8xf32>
    %62 = arith.mulf %57, %61 : vector<16x16x8xf32>
    %63 = arith.addf %56, %62 : vector<16x16x8xf32>
    %64 = vector.extract_strided_slice %5 {offsets = [2, 9, 0], sizes = [16, 16, 8], strides = [1, 1, 1]} : vector<18x32x8xf32> to vector<16x16x8xf32>
    %65 = vector.extract_strided_slice %6 {offsets = [8, 0], sizes = [1, 8], strides = [1, 1]} : vector<9x8xf32> to vector<1x8xf32>
    %66 = vector.shape_cast %65 : vector<1x8xf32> to vector<8xf32>
    %67 = vector.shape_cast %66 : vector<8xf32> to vector<1x1x8xf32>
    %68 = vector.broadcast %67 : vector<1x1x8xf32> to vector<16x16x8xf32>
    %69 = arith.mulf %64, %68 : vector<16x16x8xf32>
    %70 = arith.addf %63, %69 : vector<16x16x8xf32>
    %c0_13 = arith.constant 0 : index
    %c0_14 = arith.constant 0 : index
    %71 = vector.load %arg3[%c0_13, %c0_14] : memref<1x8xf32, #tpu.memory_space<vmem>>, vector<1x8xf32>
    %72 = vector.shape_cast %71 : vector<1x8xf32> to vector<1x1x8xf32>
    %73 = vector.broadcast %72 : vector<1x1x8xf32> to vector<16x16x8xf32>
    %74 = arith.addf %70, %73 : vector<16x16x8xf32>
    %cst_15 = arith.constant 0.000000e+00 : f32
    %75 = vector.broadcast %cst_15 : f32 to vector<16x16x8xf32>
    %76 = arith.maximumf %74, %75 : vector<16x16x8xf32>
    %cst_16 = arith.constant 6.000000e+00 : f32
    %77 = vector.broadcast %cst_16 : f32 to vector<16x16x8xf32>
    %78 = arith.minimumf %76, %77 : vector<16x16x8xf32>
    %79 = vector.shape_cast %78 : vector<16x16x8xf32> to vector<256x8xf32>
    %c0_17 = arith.constant 0 : index
    %c0_18 = arith.constant 0 : index
    %80 = vector.load %arg4[%c0_17, %c0_18] : memref<8x16xf32, #tpu.memory_space<vmem>>, vector<8x16xf32>
    %cst_19 = arith.constant dense<0.000000e+00> : vector<256x16xf32>
    %81 = tpu.matmul %79, %80, %cst_19 {dimension_numbers = #tpu.dot_dimension_numbers<[1], [0], [0], [1], [0, 0, 1, 1], [], []>} : vector<256x8xf32>, vector<8x16xf32>, vector<256x16xf32> -> vector<256x16xf32>
    %c0_20 = arith.constant 0 : index
    %c0_21 = arith.constant 0 : index
    %82 = vector.load %arg5[%c0_20, %c0_21] : memref<1x16xf32, #tpu.memory_space<vmem>>, vector<1x16xf32>
    %83 = vector.broadcast %82 : vector<1x16xf32> to vector<256x16xf32>
    %84 = arith.addf %81, %83 : vector<256x16xf32>
    %85 = vector.shape_cast %84 : vector<256x16xf32> to vector<16x16x16xf32>
    %c0_22 = arith.constant 0 : index
    %c0_23 = arith.constant 0 : index
    %c0_24 = arith.constant 0 : index
    %c0_25 = arith.constant 0 : index
    %86 = vector.load %arg6[%c0_22, %c0_23, %c0_24, %c0_25] : memref<1x16x16x16xf32, #tpu.memory_space<vmem>>, vector<1x16x16x16xf32>
    %87 = vector.shape_cast %86 : vector<1x16x16x16xf32> to vector<16x16x16xf32>
    %88 = vector.shape_cast %85 : vector<16x16x16xf32> to vector<1x16x16x16xf32>
    tpu.vector_store %arg6[%c0_22, %c0_23, %c0_24, %c0_25], %88 {strides = array<i32>} : memref<1x16x16x16xf32, #tpu.memory_space<vmem>>, vector<1x16x16x16xf32>,
    return
  }
  func.func @transform_0(%arg0: i32) -> (i32, i32, i32, i32) {
    %c0_i32 = arith.constant 0 : i32
    %c0_i32_0 = arith.constant 0 : i32
    %c0_i32_1 = arith.constant 0 : i32
    %c0_i32_2 = arith.constant 0 : i32
    return %arg0, %c0_i32, %c0_i32_0, %c0_i32_1 : i32, i32, i32, i32
  }
  func.func @transform_1(%arg0: i32) -> (i32, i32) {
    %c0_i32 = arith.constant 0 : i32
    %c0_i32_0 = arith.constant 0 : i32
    %c0_i32_1 = arith.constant 0 : i32
    return %c0_i32, %c0_i32_0 : i32, i32
  }
  func.func @transform_2(%arg0: i32) -> (i32, i32) {
    %c0_i32 = arith.constant 0 : i32
    %c0_i32_0 = arith.constant 0 : i32
    %c0_i32_1 = arith.constant 0 : i32
    return %c0_i32, %c0_i32_0 : i32, i32
  }
  func.func @transform_3(%arg0: i32) -> (i32, i32) {
    %c0_i32 = arith.constant 0 : i32
    %c0_i32_0 = arith.constant 0 : i32
    %c0_i32_1 = arith.constant 0 : i32
    return %c0_i32, %c0_i32_0 : i32, i32
  }
  func.func @transform_4(%arg0: i32) -> (i32, i32) {
    %c0_i32 = arith.constant 0 : i32
    %c0_i32_0 = arith.constant 0 : i32
    %c0_i32_1 = arith.constant 0 : i32
    return %c0_i32, %c0_i32_0 : i32, i32
  }
  func.func @transform_5(%arg0: i32) -> (i32, i32, i32, i32) {
    %c0_i32 = arith.constant 0 : i32
    %c0_i32_0 = arith.constant 0 : i32
    %c0_i32_1 = arith.constant 0 : i32
    %c0_i32_2 = arith.constant 0 : i32
    return %arg0, %c0_i32, %c0_i32_0, %c0_i32_1 : i32, i32, i32, i32
  }
}

module attributes {stable_mosaic.version = 11 : i64} {
  func.func @_fused_block_kernel(%arg0: i32, %arg1: memref<1x8x8x24xf32, #tpu.memory_space<vmem>>, %arg2: memref<24x144xf32, #tpu.memory_space<vmem>>, %arg3: memref<1x144xf32, #tpu.memory_space<vmem>>, %arg4: memref<9x144xf32, #tpu.memory_space<vmem>>, %arg5: memref<1x144xf32, #tpu.memory_space<vmem>>, %arg6: memref<144x24xf32, #tpu.memory_space<vmem>>, %arg7: memref<1x24xf32, #tpu.memory_space<vmem>>, %arg8: memref<1x8x8x24xf32, #tpu.memory_space<vmem>>, %arg9: memref<10x24x144xf32, #tpu.memory_space<vmem>>) attributes {dimension_semantics = [#tpu.dimension_semantics<parallel>], iteration_bounds = array<i64: 2>, scalar_prefetch = 0 : i64, scratch_operands = 1 : i64, tpu.core_type = #tpu.core_type<tc>, window_params = [{transform_indices = @transform_0, window_bounds = array<i64: 1, 8, 8, 24>}, {pipeline_mode = #tpu.pipeline_mode<synchronous>, transform_indices = @transform_1, window_bounds = array<i64: 24, 144>}, {pipeline_mode = #tpu.pipeline_mode<synchronous>, transform_indices = @transform_2, window_bounds = array<i64: 1, 144>}, {pipeline_mode = #tpu.pipeline_mode<synchronous>, transform_indices = @transform_3, window_bounds = array<i64: 9, 144>}, {pipeline_mode = #tpu.pipeline_mode<synchronous>, transform_indices = @transform_4, window_bounds = array<i64: 1, 144>}, {pipeline_mode = #tpu.pipeline_mode<synchronous>, transform_indices = @transform_5, window_bounds = array<i64: 144, 24>}, {pipeline_mode = #tpu.pipeline_mode<synchronous>, transform_indices = @transform_6, window_bounds = array<i64: 1, 24>}, {transform_indices = @transform_7, window_bounds = array<i64: 1, 8, 8, 24>}]} {
    %c0 = arith.constant 0 : index
    %c0_0 = arith.constant 0 : index
    %c0_1 = arith.constant 0 : index
    %c0_2 = arith.constant 0 : index
    %0 = vector.load %arg1[%c0, %c0_0, %c0_1, %c0_2] : memref<1x8x8x24xf32, #tpu.memory_space<vmem>>, vector<1x8x8x24xf32>
    %1 = vector.shape_cast %0 : vector<1x8x8x24xf32> to vector<8x8x24xf32>
    %2 = vector.shape_cast %1 : vector<8x8x24xf32> to vector<64x24xf32>
    %c0_3 = arith.constant 0 : index
    %c0_4 = arith.constant 0 : index
    %3 = vector.load %arg2[%c0_3, %c0_4] : memref<24x144xf32, #tpu.memory_space<vmem>>, vector<24x144xf32>
    %cst = arith.constant dense<0.000000e+00> : vector<64x144xf32>
    %4 = tpu.matmul %2, %3, %cst {dimension_numbers = #tpu.dot_dimension_numbers<[1], [0], [0], [1], [0, 0, 1, 1], [], []>} : vector<64x24xf32>, vector<24x144xf32>, vector<64x144xf32> -> vector<64x144xf32>
    %c0_5 = arith.constant 0 : index
    %c0_6 = arith.constant 0 : index
    %5 = vector.load %arg3[%c0_5, %c0_6] : memref<1x144xf32, #tpu.memory_space<vmem>>, vector<1x144xf32>
    %6 = vector.broadcast %5 : vector<1x144xf32> to vector<64x144xf32>
    %7 = arith.addf %4, %6 : vector<64x144xf32>
    %cst_7 = arith.constant 0.000000e+00 : f32
    %8 = vector.broadcast %cst_7 : f32 to vector<64x144xf32>
    %9 = arith.maximumf %7, %8 : vector<64x144xf32>
    %cst_8 = arith.constant 6.000000e+00 : f32
    %10 = vector.broadcast %cst_8 : f32 to vector<64x144xf32>
    %11 = arith.minimumf %9, %10 : vector<64x144xf32>
    %12 = vector.shape_cast %11 : vector<64x144xf32> to vector<8x8x144xf32>
    %cst_9 = arith.constant 0.000000e+00 : f32
    %13 = vector.broadcast %cst_9 : f32 to vector<10x24x144xf32>
    %c0_10 = arith.constant 0 : index
    %c0_11 = arith.constant 0 : index
    %c0_12 = arith.constant 0 : index
    %14 = vector.load %arg9[%c0_10, %c0_11, %c0_12] : memref<10x24x144xf32, #tpu.memory_space<vmem>>, vector<10x24x144xf32>
    tpu.vector_store %arg9[%c0_10, %c0_11, %c0_12], %13 {strides = array<i32>} : memref<10x24x144xf32, #tpu.memory_space<vmem>>, vector<10x24x144xf32>,
    %c1 = arith.constant 1 : index
    %c8 = arith.constant 8 : index
    %c0_13 = arith.constant 0 : index
    %15 = vector.load %arg9[%c1, %c8, %c0_13] : memref<10x24x144xf32, #tpu.memory_space<vmem>>, vector<8x8x144xf32>
    tpu.vector_store %arg9[%c1, %c8, %c0_13], %12 {strides = array<i32>} : memref<10x24x144xf32, #tpu.memory_space<vmem>>, vector<8x8x144xf32>,
    %c0_14 = arith.constant 0 : index
    %c0_15 = arith.constant 0 : index
    %c0_16 = arith.constant 0 : index
    %16 = vector.load %arg9[%c0_14, %c0_15, %c0_16] : memref<10x24x144xf32, #tpu.memory_space<vmem>>, vector<10x24x144xf32>
    %c0_17 = arith.constant 0 : index
    %c0_18 = arith.constant 0 : index
    %17 = vector.load %arg4[%c0_17, %c0_18] : memref<9x144xf32, #tpu.memory_space<vmem>>, vector<9x144xf32>
    %cst_19 = arith.constant 0.000000e+00 : f32
    %18 = vector.broadcast %cst_19 : f32 to vector<8x8x144xf32>
    %19 = vector.extract_strided_slice %16 {offsets = [0, 7, 0], sizes = [8, 8, 144], strides = [1, 1, 1]} : vector<10x24x144xf32> to vector<8x8x144xf32>
    %20 = vector.extract_strided_slice %17 {offsets = [0, 0], sizes = [1, 144], strides = [1, 1]} : vector<9x144xf32> to vector<1x144xf32>
    %21 = vector.shape_cast %20 : vector<1x144xf32> to vector<144xf32>
    %22 = vector.shape_cast %21 : vector<144xf32> to vector<1x1x144xf32>
    %23 = vector.broadcast %22 : vector<1x1x144xf32> to vector<8x8x144xf32>
    %24 = arith.mulf %19, %23 : vector<8x8x144xf32>
    %25 = arith.addf %18, %24 : vector<8x8x144xf32>
    %26 = vector.extract_strided_slice %16 {offsets = [0, 8, 0], sizes = [8, 8, 144], strides = [1, 1, 1]} : vector<10x24x144xf32> to vector<8x8x144xf32>
    %27 = vector.extract_strided_slice %17 {offsets = [1, 0], sizes = [1, 144], strides = [1, 1]} : vector<9x144xf32> to vector<1x144xf32>
    %28 = vector.shape_cast %27 : vector<1x144xf32> to vector<144xf32>
    %29 = vector.shape_cast %28 : vector<144xf32> to vector<1x1x144xf32>
    %30 = vector.broadcast %29 : vector<1x1x144xf32> to vector<8x8x144xf32>
    %31 = arith.mulf %26, %30 : vector<8x8x144xf32>
    %32 = arith.addf %25, %31 : vector<8x8x144xf32>
    %33 = vector.extract_strided_slice %16 {offsets = [0, 9, 0], sizes = [8, 8, 144], strides = [1, 1, 1]} : vector<10x24x144xf32> to vector<8x8x144xf32>
    %34 = vector.extract_strided_slice %17 {offsets = [2, 0], sizes = [1, 144], strides = [1, 1]} : vector<9x144xf32> to vector<1x144xf32>
    %35 = vector.shape_cast %34 : vector<1x144xf32> to vector<144xf32>
    %36 = vector.shape_cast %35 : vector<144xf32> to vector<1x1x144xf32>
    %37 = vector.broadcast %36 : vector<1x1x144xf32> to vector<8x8x144xf32>
    %38 = arith.mulf %33, %37 : vector<8x8x144xf32>
    %39 = arith.addf %32, %38 : vector<8x8x144xf32>
    %40 = vector.extract_strided_slice %16 {offsets = [1, 7, 0], sizes = [8, 8, 144], strides = [1, 1, 1]} : vector<10x24x144xf32> to vector<8x8x144xf32>
    %41 = vector.extract_strided_slice %17 {offsets = [3, 0], sizes = [1, 144], strides = [1, 1]} : vector<9x144xf32> to vector<1x144xf32>
    %42 = vector.shape_cast %41 : vector<1x144xf32> to vector<144xf32>
    %43 = vector.shape_cast %42 : vector<144xf32> to vector<1x1x144xf32>
    %44 = vector.broadcast %43 : vector<1x1x144xf32> to vector<8x8x144xf32>
    %45 = arith.mulf %40, %44 : vector<8x8x144xf32>
    %46 = arith.addf %39, %45 : vector<8x8x144xf32>
    %47 = vector.extract_strided_slice %16 {offsets = [1, 8, 0], sizes = [8, 8, 144], strides = [1, 1, 1]} : vector<10x24x144xf32> to vector<8x8x144xf32>
    %48 = vector.extract_strided_slice %17 {offsets = [4, 0], sizes = [1, 144], strides = [1, 1]} : vector<9x144xf32> to vector<1x144xf32>
    %49 = vector.shape_cast %48 : vector<1x144xf32> to vector<144xf32>
    %50 = vector.shape_cast %49 : vector<144xf32> to vector<1x1x144xf32>
    %51 = vector.broadcast %50 : vector<1x1x144xf32> to vector<8x8x144xf32>
    %52 = arith.mulf %47, %51 : vector<8x8x144xf32>
    %53 = arith.addf %46, %52 : vector<8x8x144xf32>
    %54 = vector.extract_strided_slice %16 {offsets = [1, 9, 0], sizes = [8, 8, 144], strides = [1, 1, 1]} : vector<10x24x144xf32> to vector<8x8x144xf32>
    %55 = vector.extract_strided_slice %17 {offsets = [5, 0], sizes = [1, 144], strides = [1, 1]} : vector<9x144xf32> to vector<1x144xf32>
    %56 = vector.shape_cast %55 : vector<1x144xf32> to vector<144xf32>
    %57 = vector.shape_cast %56 : vector<144xf32> to vector<1x1x144xf32>
    %58 = vector.broadcast %57 : vector<1x1x144xf32> to vector<8x8x144xf32>
    %59 = arith.mulf %54, %58 : vector<8x8x144xf32>
    %60 = arith.addf %53, %59 : vector<8x8x144xf32>
    %61 = vector.extract_strided_slice %16 {offsets = [2, 7, 0], sizes = [8, 8, 144], strides = [1, 1, 1]} : vector<10x24x144xf32> to vector<8x8x144xf32>
    %62 = vector.extract_strided_slice %17 {offsets = [6, 0], sizes = [1, 144], strides = [1, 1]} : vector<9x144xf32> to vector<1x144xf32>
    %63 = vector.shape_cast %62 : vector<1x144xf32> to vector<144xf32>
    %64 = vector.shape_cast %63 : vector<144xf32> to vector<1x1x144xf32>
    %65 = vector.broadcast %64 : vector<1x1x144xf32> to vector<8x8x144xf32>
    %66 = arith.mulf %61, %65 : vector<8x8x144xf32>
    %67 = arith.addf %60, %66 : vector<8x8x144xf32>
    %68 = vector.extract_strided_slice %16 {offsets = [2, 8, 0], sizes = [8, 8, 144], strides = [1, 1, 1]} : vector<10x24x144xf32> to vector<8x8x144xf32>
    %69 = vector.extract_strided_slice %17 {offsets = [7, 0], sizes = [1, 144], strides = [1, 1]} : vector<9x144xf32> to vector<1x144xf32>
    %70 = vector.shape_cast %69 : vector<1x144xf32> to vector<144xf32>
    %71 = vector.shape_cast %70 : vector<144xf32> to vector<1x1x144xf32>
    %72 = vector.broadcast %71 : vector<1x1x144xf32> to vector<8x8x144xf32>
    %73 = arith.mulf %68, %72 : vector<8x8x144xf32>
    %74 = arith.addf %67, %73 : vector<8x8x144xf32>
    %75 = vector.extract_strided_slice %16 {offsets = [2, 9, 0], sizes = [8, 8, 144], strides = [1, 1, 1]} : vector<10x24x144xf32> to vector<8x8x144xf32>
    %76 = vector.extract_strided_slice %17 {offsets = [8, 0], sizes = [1, 144], strides = [1, 1]} : vector<9x144xf32> to vector<1x144xf32>
    %77 = vector.shape_cast %76 : vector<1x144xf32> to vector<144xf32>
    %78 = vector.shape_cast %77 : vector<144xf32> to vector<1x1x144xf32>
    %79 = vector.broadcast %78 : vector<1x1x144xf32> to vector<8x8x144xf32>
    %80 = arith.mulf %75, %79 : vector<8x8x144xf32>
    %81 = arith.addf %74, %80 : vector<8x8x144xf32>
    %c0_20 = arith.constant 0 : index
    %c0_21 = arith.constant 0 : index
    %82 = vector.load %arg5[%c0_20, %c0_21] : memref<1x144xf32, #tpu.memory_space<vmem>>, vector<1x144xf32>
    %83 = vector.shape_cast %82 : vector<1x144xf32> to vector<1x1x144xf32>
    %84 = vector.broadcast %83 : vector<1x1x144xf32> to vector<8x8x144xf32>
    %85 = arith.addf %81, %84 : vector<8x8x144xf32>
    %cst_22 = arith.constant 0.000000e+00 : f32
    %86 = vector.broadcast %cst_22 : f32 to vector<8x8x144xf32>
    %87 = arith.maximumf %85, %86 : vector<8x8x144xf32>
    %cst_23 = arith.constant 6.000000e+00 : f32
    %88 = vector.broadcast %cst_23 : f32 to vector<8x8x144xf32>
    %89 = arith.minimumf %87, %88 : vector<8x8x144xf32>
    %90 = vector.shape_cast %89 : vector<8x8x144xf32> to vector<64x144xf32>
    %c0_24 = arith.constant 0 : index
    %c0_25 = arith.constant 0 : index
    %91 = vector.load %arg6[%c0_24, %c0_25] : memref<144x24xf32, #tpu.memory_space<vmem>>, vector<144x24xf32>
    %cst_26 = arith.constant dense<0.000000e+00> : vector<64x24xf32>
    %92 = tpu.matmul %90, %91, %cst_26 {dimension_numbers = #tpu.dot_dimension_numbers<[1], [0], [0], [1], [0, 0, 1, 1], [], []>} : vector<64x144xf32>, vector<144x24xf32>, vector<64x24xf32> -> vector<64x24xf32>
    %c0_27 = arith.constant 0 : index
    %c0_28 = arith.constant 0 : index
    %93 = vector.load %arg7[%c0_27, %c0_28] : memref<1x24xf32, #tpu.memory_space<vmem>>, vector<1x24xf32>
    %94 = vector.broadcast %93 : vector<1x24xf32> to vector<64x24xf32>
    %95 = arith.addf %92, %94 : vector<64x24xf32>
    %96 = vector.shape_cast %1 : vector<8x8x24xf32> to vector<64x24xf32>
    %97 = arith.addf %95, %96 : vector<64x24xf32>
    %98 = vector.shape_cast %97 : vector<64x24xf32> to vector<8x8x24xf32>
    %c0_29 = arith.constant 0 : index
    %c0_30 = arith.constant 0 : index
    %c0_31 = arith.constant 0 : index
    %c0_32 = arith.constant 0 : index
    %99 = vector.load %arg8[%c0_29, %c0_30, %c0_31, %c0_32] : memref<1x8x8x24xf32, #tpu.memory_space<vmem>>, vector<1x8x8x24xf32>
    %100 = vector.shape_cast %99 : vector<1x8x8x24xf32> to vector<8x8x24xf32>
    %101 = vector.shape_cast %98 : vector<8x8x24xf32> to vector<1x8x8x24xf32>
    tpu.vector_store %arg8[%c0_29, %c0_30, %c0_31, %c0_32], %101 {strides = array<i32>} : memref<1x8x8x24xf32, #tpu.memory_space<vmem>>, vector<1x8x8x24xf32>,
    return
  }
  func.func @transform_0(%arg0: i32) -> (i32, i32, i32, i32) {
    %c0_i32 = arith.constant 0 : i32
    %c0_i32_0 = arith.constant 0 : i32
    %c0_i32_1 = arith.constant 0 : i32
    %c0_i32_2 = arith.constant 0 : i32
    return %arg0, %c0_i32, %c0_i32_0, %c0_i32_1 : i32, i32, i32, i32
  }
  func.func @transform_1(%arg0: i32) -> (i32, i32) {
    %c0_i32 = arith.constant 0 : i32
    %c0_i32_0 = arith.constant 0 : i32
    %c0_i32_1 = arith.constant 0 : i32
    return %c0_i32, %c0_i32_0 : i32, i32
  }
  func.func @transform_2(%arg0: i32) -> (i32, i32) {
    %c0_i32 = arith.constant 0 : i32
    %c0_i32_0 = arith.constant 0 : i32
    %c0_i32_1 = arith.constant 0 : i32
    return %c0_i32, %c0_i32_0 : i32, i32
  }
  func.func @transform_3(%arg0: i32) -> (i32, i32) {
    %c0_i32 = arith.constant 0 : i32
    %c0_i32_0 = arith.constant 0 : i32
    %c0_i32_1 = arith.constant 0 : i32
    return %c0_i32, %c0_i32_0 : i32, i32
  }
  func.func @transform_4(%arg0: i32) -> (i32, i32) {
    %c0_i32 = arith.constant 0 : i32
    %c0_i32_0 = arith.constant 0 : i32
    %c0_i32_1 = arith.constant 0 : i32
    return %c0_i32, %c0_i32_0 : i32, i32
  }
  func.func @transform_5(%arg0: i32) -> (i32, i32) {
    %c0_i32 = arith.constant 0 : i32
    %c0_i32_0 = arith.constant 0 : i32
    %c0_i32_1 = arith.constant 0 : i32
    return %c0_i32, %c0_i32_0 : i32, i32
  }
  func.func @transform_6(%arg0: i32) -> (i32, i32) {
    %c0_i32 = arith.constant 0 : i32
    %c0_i32_0 = arith.constant 0 : i32
    %c0_i32_1 = arith.constant 0 : i32
    return %c0_i32, %c0_i32_0 : i32, i32
  }
  func.func @transform_7(%arg0: i32) -> (i32, i32, i32, i32) {
    %c0_i32 = arith.constant 0 : i32
    %c0_i32_0 = arith.constant 0 : i32
    %c0_i32_1 = arith.constant 0 : i32
    %c0_i32_2 = arith.constant 0 : i32
    return %arg0, %c0_i32, %c0_i32_0, %c0_i32_1 : i32, i32, i32, i32
  }
}

</mosaic_0001>

<llo_original>
// kernel: branch_forward.5
$region0: #{branch_forward.5}
  #allocation0 [shape = 'u32[]', space=smem, size = 0x4, offset = 0x4, fixed_abs, tag = 'smem constant byte address 0x4 - core index']
  #allocation1 [shape = 'u32[72,128]{1,0:T(1,128)}', space=vmem, size = 0x9000, scoped, tag = 'internal scratch']
  #allocation2 [shape = 'f32[10,24,144]{2,1,0:T(8,128)}', space=vmem, size = 0x3c000, scoped, tag = 'scratch operand']
  %s0 = inlined_call_operand.vmem [shape: f32[2,8,8,24], index: 0, kind: input, shape index: {}]
  %s1 = inlined_call_operand.vmem [shape: f32[24,144], index: 1, kind: input, shape index: {}]
  %s2 = inlined_call_operand.vmem [shape: f32[1,144], index: 2, kind: input, shape index: {}]
  %s3 = inlined_call_operand.vmem [shape: f32[9,144], index: 3, kind: input, shape index: {}]
  %s4 = inlined_call_operand.vmem [shape: f32[1,144], index: 4, kind: input, shape index: {}]
  %s5 = inlined_call_operand.vmem [shape: f32[144,24], index: 5, kind: input, shape index: {}]
  %s6 = inlined_call_operand.vmem [shape: f32[1,24], index: 6, kind: input, shape index: {}]
  %s7 = inlined_call_operand.hbm [shape: f32[2,8,8,24], index: 7, kind: output, shape index: {}]
  %s8 = sld [smem:[#allocation0]]
  $region61: #{branch_forward.5} parent=0
    _
  %s10 = ssub.s32 1, %s8
  %s11 = scalar_select 0, %s10, %s8
  $region1: #{branch_forward.5} parent=0
    #allocation3 [shape = 'u8[65536]{0}', space=vmem, size = 0x10000, scoped, tag = 'output window, operand 0']
    #allocation4 [shape = 's32[2]{0}', space=sflag, size = 0x8, scoped, tag = 'scoped memory for branch_forward.5']
    %12 = vsyncpa [#allocation4], 0
    %s13 = scalar_lea.sflag [#allocation4], 1
    %14 = vsyncpa %s13, 0
    loop: start=0, step=1, limit=4
    $region2: #{branch_forward.5} parent=1 // loop_pre_header
      _
    $region3: #{branch_forward.5} parent=1 // loop_header
      %s16 = sphi 0, %s20
      %p17 = scmp.ge.s32.totalorder %s16, 4
      %s26 = sphi 0, %s28
      %s29 = sphi 0, %s26
      %s30 = sphi 0, %s29
      %s46 = sphi 0, %s30
      %s50 = sphi 0, %s50
      %s52 = sphi 0, %s50
      %s53 = sphi 0, %s52
      %s67 = sphi 0, %s53
      %s71 = sphi 0, %s71
      %s73 = sphi 0, %s71
      %s74 = sphi 0, %s73
      %s88 = sphi 0, %s74
      %s92 = sphi 0, %s92
      %s94 = sphi 0, %s92
      %s95 = sphi 0, %s94
      %s109 = sphi 0, %s95
      %s113 = sphi 0, %s113
      %s115 = sphi 0, %s113
      %s116 = sphi 0, %s115
      %s130 = sphi 0, %s116
      %s134 = sphi 0, %s134
      %s136 = sphi 0, %s134
      %s137 = sphi 0, %s136
      %s151 = sphi 0, %s137
      %s155 = sphi 0, %s155
      %s157 = sphi 0, %s155
      %s158 = sphi 0, %s157
      %s172 = sphi 0, %s158
      %s178 = sphi 0, %s180
      %s181 = sphi 0, %s178
      %s182 = sphi 0, %s181
      %s198 = sphi 0, %s182
    $region4: #{branch_forward.5} parent=1 // loop_header_branch
      %19 = sbr.rel (%p17) target = $region8
    $region5: #{branch_forward.5} parent=1 // loop_body
      %s21 = ssub.s32 %s16, 1
      %s22 = ssub.s32 %s16, 2
      %s23 = sadd.s32 %s16, 1
      %s24 = ssub.s32 %s16, %s23
      %p25 = scmp.eq.s32.totalorder %s24, 0
      %s27 = sadd.s32 %s26, 1
      %s28 = scalar_select %p25, %s26, %s27
      %p31 = pneg %p25
      %p32 = scmp.eq.s32.totalorder %s16, 1
      %p33 = por %p31, %p32
      %p34 = scmp.ne.s32.totalorder %s26, %s29
      %p35 = scmp.eq.s32.totalorder %s16, 0
      %p36 = por %p34, %p35
      %p37 = scmp.ne.s32.totalorder %s26, %s29
      %p38 = scmp.eq.s32.totalorder %s21, 1
      %p39 = por %p37, %p38
      %p40 = scmp.ne.s32.totalorder %s29, %s30
      %p41 = scmp.eq.s32.totalorder %s21, 0
      %p42 = por %p40, %p41
      %p43 = scmp.ne.s32.totalorder %s29, %s30
      %p44 = scmp.eq.s32.totalorder %s22, 1
      %p45 = por %p43, %p44
      %p47 = scmp.ne.s32.totalorder %s30, %s46
      %p48 = scmp.eq.s32.totalorder %s22, 0
      %p49 = por %p47, %p48
      %s51 = sadd.s32 %s50, 1
      %p54 = scmp.eq.s32.totalorder %s16, 1
      %p55 = scmp.ne.s32.totalorder %s50, %s52
      %p56 = scmp.eq.s32.totalorder %s16, 0
      %p57 = por %p55, %p56
      %p58 = scmp.ne.s32.totalorder %s50, %s52
      %p59 = scmp.eq.s32.totalorder %s21, 1
      %p60 = por %p58, %p59
      %p61 = scmp.ne.s32.totalorder %s52, %s53
      %p62 = scmp.eq.s32.totalorder %s21, 0
      %p63 = por %p61, %p62
      %p64 = scmp.ne.s32.totalorder %s52, %s53
      %p65 = scmp.eq.s32.totalorder %s22, 1
      %p66 = por %p64, %p65
      %p68 = scmp.ne.s32.totalorder %s53, %s67
      %p69 = scmp.eq.s32.totalorder %s22, 0
      %p70 = por %p68, %p69
      %s72 = sadd.s32 %s71, 1
      %p75 = scmp.eq.s32.totalorder %s16, 1
      %p76 = scmp.ne.s32.totalorder %s71, %s73
      %p77 = scmp.eq.s32.totalorder %s16, 0
      %p78 = por %p76, %p77
      %p79 = scmp.ne.s32.totalorder %s71, %s73
      %p80 = scmp.eq.s32.totalorder %s21, 1
      %p81 = por %p79, %p80
      %p82 = scmp.ne.s32.totalorder %s73, %s74
      %p83 = scmp.eq.s32.totalorder %s21, 0
      %p84 = por %p82, %p83
      %p85 = scmp.ne.s32.totalorder %s73, %s74
      %p86 = scmp.eq.s32.totalorder %s22, 1
      %p87 = por %p85, %p86
      %p89 = scmp.ne.s32.totalorder %s74, %s88
      %p90 = scmp.eq.s32.totalorder %s22, 0
      %p91 = por %p89, %p90
      %s93 = sadd.s32 %s92, 1
      %p96 = scmp.eq.s32.totalorder %s16, 1
      %p97 = scmp.ne.s32.totalorder %s92, %s94
      %p98 = scmp.eq.s32.totalorder %s16, 0
      %p99 = por %p97, %p98
      %p100 = scmp.ne.s32.totalorder %s92, %s94
      %p101 = scmp.eq.s32.totalorder %s21, 1
      %p102 = por %p100, %p101
      %p103 = scmp.ne.s32.totalorder %s94, %s95
      %p104 = scmp.eq.s32.totalorder %s21, 0
      %p105 = por %p103, %p104
      %p106 = scmp.ne.s32.totalorder %s94, %s95
      %p107 = scmp.eq.s32.totalorder %s22, 1
      %p108 = por %p106, %p107
      %p110 = scmp.ne.s32.totalorder %s95, %s109
      %p111 = scmp.eq.s32.totalorder %s22, 0
      %p112 = por %p110, %p111
      %s114 = sadd.s32 %s113, 1
      %p117 = scmp.eq.s32.totalorder %s16, 1
      %p118 = scmp.ne.s32.totalorder %s113, %s115
      %p119 = scmp.eq.s32.totalorder %s16, 0
      %p120 = por %p118, %p119
      %p121 = scmp.ne.s32.totalorder %s113, %s115
      %p122 = scmp.eq.s32.totalorder %s21, 1
      %p123 = por %p121, %p122
      %p124 = scmp.ne.s32.totalorder %s115, %s116
      %p125 = scmp.eq.s32.totalorder %s21, 0
      %p126 = por %p124, %p125
      %p127 = scmp.ne.s32.totalorder %s115, %s116
      %p128 = scmp.eq.s32.totalorder %s22, 1
      %p129 = por %p127, %p128
      %p131 = scmp.ne.s32.totalorder %s116, %s130
      %p132 = scmp.eq.s32.totalorder %s22, 0
      %p133 = por %p131, %p132
      %s135 = sadd.s32 %s134, 1
      %p138 = scmp.eq.s32.totalorder %s16, 1
      %p139 = scmp.ne.s32.totalorder %s134, %s136
      %p140 = scmp.eq.s32.totalorder %s16, 0
      %p141 = por %p139, %p140
      %p142 = scmp.ne.s32.totalorder %s134, %s136
      %p143 = scmp.eq.s32.totalorder %s21, 1
      %p144 = por %p142, %p143
      %p145 = scmp.ne.s32.totalorder %s136, %s137
      %p146 = scmp.eq.s32.totalorder %s21, 0
      %p147 = por %p145, %p146
      %p148 = scmp.ne.s32.totalorder %s136, %s137
      %p149 = scmp.eq.s32.totalorder %s22, 1
      %p150 = por %p148, %p149
      %p152 = scmp.ne.s32.totalorder %s137, %s151
      %p153 = scmp.eq.s32.totalorder %s22, 0
      %p154 = por %p152, %p153
      %s156 = sadd.s32 %s155, 1
      %p159 = scmp.eq.s32.totalorder %s16, 1
      %p160 = scmp.ne.s32.totalorder %s155, %s157
      %p161 = scmp.eq.s32.totalorder %s16, 0
      %p162 = por %p160, %p161
      %p163 = scmp.ne.s32.totalorder %s155, %s157
      %p164 = scmp.eq.s32.totalorder %s21, 1
      %p165 = por %p163, %p164
      %p166 = scmp.ne.s32.totalorder %s157, %s158
      %p167 = scmp.eq.s32.totalorder %s21, 0
      %p168 = por %p166, %p167
      %p169 = scmp.ne.s32.totalorder %s157, %s158
      %p170 = scmp.eq.s32.totalorder %s22, 1
      %p171 = por %p169, %p170
      %p173 = scmp.ne.s32.totalorder %s158, %s172
      %p174 = scmp.eq.s32.totalorder %s22, 0
      %p175 = por %p173, %p174
      %s176 = ssub.s32 %s16, %s23
      %p177 = scmp.eq.s32.totalorder %s176, 0
      %s179 = sadd.s32 %s178, 1
      %s180 = scalar_select %p177, %s178, %s179
      %p183 = pneg %p177
      %p184 = scmp.eq.s32.totalorder %s16, 1
      %p185 = por %p183, %p184
      %p186 = scmp.ne.s32.totalorder %s178, %s181
      %p187 = scmp.eq.s32.totalorder %s16, 0
      %p188 = por %p186, %p187
      %p189 = scmp.ne.s32.totalorder %s178, %s181
      %p190 = scmp.eq.s32.totalorder %s21, 1
      %p191 = por %p189, %p190
      %p192 = scmp.ne.s32.totalorder %s181, %s182
      %p193 = scmp.eq.s32.totalorder %s21, 0
      %p194 = por %p192, %p193
      %p195 = scmp.ne.s32.totalorder %s181, %s182
      %p196 = scmp.eq.s32.totalorder %s22, 1
      %p197 = por %p195, %p196
      %p199 = scmp.ne.s32.totalorder %s182, %s198
      %p200 = scmp.eq.s32.totalorder %s22, 0
      %p201 = por %p199, %p200
      %p202 = scmp.le.s32.totalorder 1, %s16
      %p203 = scmp.lt.s32.totalorder %s16, 3
      %p204 = pnand %p202, %p203
      %p205 = pneg %p204
      // Predicated region
      $region9: #{branch_forward.5} parent=5 // pred_check
        _
      $region10: #{branch_forward.5} parent=5 // pred_check_branch
        %207 = sbr.rel (%p204) target = $region12
      $region11: #{branch_forward.5} parent=5 // pred_region
        %s208 = ssub.s32 %s16, 1
        // Predicated region
        $region13: #{branch_forward.5} parent=11 // pred_check
          %p209 = pneg %p63
        $region14: #{branch_forward.5} parent=11 // pred_check_branch
          %211 = sbr.rel (%p209) target = $region16
        $region15: #{branch_forward.5} parent=11 // pred_region
          _
        $region16: #{branch_forward.5} parent=11 // pred_fallthru
          _
        // Predicated region
        $region17: #{branch_forward.5} parent=11 // pred_check
          %p212 = pneg %p84
        $region18: #{branch_forward.5} parent=11 // pred_check_branch
          %214 = sbr.rel (%p212) target = $region20
        $region19: #{branch_forward.5} parent=11 // pred_region
          _
        $region20: #{branch_forward.5} parent=11 // pred_fallthru
          _
        // Predicated region
        $region21: #{branch_forward.5} parent=11 // pred_check
          %p215 = pneg %p105
        $region22: #{branch_forward.5} parent=11 // pred_check_branch
          %217 = sbr.rel (%p215) target = $region24
        $region23: #{branch_forward.5} parent=11 // pred_region
          _
        $region24: #{branch_forward.5} parent=11 // pred_fallthru
          _
        // Predicated region
        $region25: #{branch_forward.5} parent=11 // pred_check
          %p218 = pneg %p126
        $region26: #{branch_forward.5} parent=11 // pred_check_branch
          %220 = sbr.rel (%p218) target = $region28
        $region27: #{branch_forward.5} parent=11 // pred_region
          _
        $region28: #{branch_forward.5} parent=11 // pred_fallthru
          _
        // Predicated region
        $region29: #{branch_forward.5} parent=11 // pred_check
          %p221 = pneg %p147
        $region30: #{branch_forward.5} parent=11 // pred_check_branch
          %223 = sbr.rel (%p221) target = $region32
        $region31: #{branch_forward.5} parent=11 // pred_region
          _
        $region32: #{branch_forward.5} parent=11 // pred_fallthru
          _
        // Predicated region
        $region33: #{branch_forward.5} parent=11 // pred_check
          %p224 = pneg %p168
        $region34: #{branch_forward.5} parent=11 // pred_check_branch
          %226 = sbr.rel (%p224) target = $region36
        $region35: #{branch_forward.5} parent=11 // pred_region
          _
        $region36: #{branch_forward.5} parent=11 // pred_fallthru
          _
      $region12: #{branch_forward.5} parent=5 // pred_fallthru
        _
      %p227 = scmp.lt.s32.totalorder %s16, 2
      // Predicated region
      $region37: #{branch_forward.5} parent=5 // pred_check
        %p228 = pneg %p227
      $region38: #{branch_forward.5} parent=5 // pred_check_branch
        %230 = sbr.rel (%p228) target = $region40
      $region39: #{branch_forward.5} parent=5 // pred_region
        // Predicated region
        $region41: #{branch_forward.5} parent=39 // pred_check
          %p231 = pneg %p36
        $region42: #{branch_forward.5} parent=39 // pred_check_branch
          %233 = sbr.rel (%p231) target = $region44
        $region43: #{branch_forward.5} parent=39 // pred_region
          %p234 = scmp.lt.s32.totalorder %s16, 1
          %s235 = scalar_select %p234, %s16, 1
          %s236 = smul.addr %s235, 8
          %s237 = smul.addr %s236, 8
          %s238 = scalar_lea.vmem %s0, %s237
        $region44: #{branch_forward.5} parent=39 // pred_fallthru
          _
      $region40: #{branch_forward.5} parent=5 // pred_fallthru
        _
      %p239 = scmp.le.s32.totalorder 1, %s16
      %p240 = scmp.lt.s32.totalorder %s16, 3
      %p241 = pnand %p239, %p240
      %p242 = pneg %p241
      // Predicated region
      $region45: #{branch_forward.5} parent=5 // pred_check
        _
      $region46: #{branch_forward.5} parent=5 // pred_check_branch
        %244 = sbr.rel (%p241) target = $region48
      $region47: #{branch_forward.5} parent=5 // pred_region
        %s245 = ssub.s32 %s16, 1
        %p246 = scmp.lt.s32.totalorder %s21, 1
        %s247 = scalar_select %p246, %s21, 1
        %s248 = smul.addr %s247, 8
        %s249 = smul.addr %s248, 8
        %s250 = scalar_lea.vmem %s0, %s249
        %p251 = pneg %p42
        %p252 = pneg %p39
        %p253 = pneg %p63
        %p254 = pneg %p60
        %p255 = pneg %p84
        %p256 = pneg %p81
        %p257 = pneg %p105
        %p258 = pneg %p102
        %p259 = pneg %p126
        %p260 = pneg %p123
        %p261 = pneg %p147
        %p262 = pneg %p144
        %p263 = pneg %p168
        %p264 = pneg %p165
        %p265 = pneg %p194
        %p266 = pneg %p191
        %s267 = sand.u32 %s181, 1
        %s268 = scalar_lea.sflag [#allocation4], %s267
        %s269 = sand.u32 %s181, 1
        %s270 = smul.addr %s269, 64
        %s271 = scalar_lea.vmem [#allocation3], %s270
        %p272 = scmp.lt.s32.totalorder %s21, 1
        %s273 = scalar_select %p272, %s21, 1
        %s274 = smul.addr %s273, 8
        %s275 = smul.addr %s274, 8
        %s276 = scalar_lea.vmem %s0, %s275
        %v277 = vld [vmem:[%s276] sm:$0xff]
        %v278 = vld [vmem:[%s276 + $0x8] sm:$0xff]
        %v279 = vld [vmem:[%s276 + $0x10] sm:$0xff]
        %v280 = vld [vmem:[%s276 + $0x18] sm:$0xff]
        %v281 = vld [vmem:[%s276 + $0x20] sm:$0xff]
        %v282 = vld [vmem:[%s276 + $0x28] sm:$0xff]
        %v283 = vld [vmem:[%s276 + $0x30] sm:$0xff]
        %v284 = vld [vmem:[%s276 + $0x38] sm:$0xff]
        %v285 = vld [vmem:[%s1] sm:$0xff]
        %v286 = vld [vmem:[%s1 + $0x8] sm:$0xff]
        %v287 = vld [vmem:[%s1 + $0x10] sm:$0xff]
        %v288 = vld [vmem:[%s1 + $0x18] sm:$0xff]
        %v289 = vld [vmem:[%s1 + $0x20] sm:$0xff]
        %v290 = vld [vmem:[%s1 + $0x28] sm:$0xff]
        %v291 = vld [vmem:[%s2] sm:$0x3]
        %v293 = vperm.slane %v291, 0
        %v294 = vperm.slane %v291, 1
        %vm297 = vcmask 195584
        %v299 = vsel %vm297, %v277, 0
        %v302 = vsel %vm297, %v278, 0
        %v305 = vsel %vm297, %v279, 0
        %v308 = vsel %vm297, %v280, 0
        %v311 = vsel %vm297, %v281, 0
        %v314 = vsel %vm297, %v282, 0
        %v317 = vsel %vm297, %v283, 0
        %v320 = vsel %vm297, %v284, 0
        %322 = vmatpush.msra.mxu0 0.0
        %323 = vmatpush.msra.mxu0 0.0
        %324 = vmatpush.msra.mxu0 0.0
        %325 = vmatpush.msra.mxu0 0.0
        %326 = vmatpush.msra.mxu0 0.0
        %327 = vmatpush.msra.mxu0 0.0
        %328 = vmatpush.msra.mxu0 0.0
        %329 = vmatpush.msra.mxu0 0.0
        %330 = vmatpush.msra.mxu0 0.0
        %331 = vmatpush.msra.mxu0 0.0
        %332 = vmatpush.msra.mxu0 0.0
        %333 = vmatpush.msra.mxu0 0.0
        %334 = vmatpush.msra.mxu0 0.0
        %335 = vmatpush.msra.mxu0 %v289
        %336 = vmatpush.msra.mxu0 %v287
        %337 = vmatpush.msra.mxu0 %v285
        %338 = vmatmul.f32.gmra.mxu0 %v299
        %v339 = vpop.f32.mrf.mxu0
        %v340 = vadd.f32 %v293, %v339
        %341 = vmatmul.f32.gmra.mxu0 %v302
        %v342 = vpop.f32.mrf.mxu0
        %v343 = vadd.f32 %v293, %v342
        %344 = vmatmul.f32.gmra.mxu0 %v305
        %v345 = vpop.f32.mrf.mxu0
        %v346 = vadd.f32 %v293, %v345
        %347 = vmatmul.f32.gmra.mxu0 %v308
        %v348 = vpop.f32.mrf.mxu0
        %v349 = vadd.f32 %v293, %v348
        %350 = vmatmul.f32.gmra.mxu0 %v311
        %v351 = vpop.f32.mrf.mxu0
        %v352 = vadd.f32 %v293, %v351
        %353 = vmatmul.f32.gmra.mxu0 %v314
        %v354 = vpop.f32.mrf.mxu0
        %v355 = vadd.f32 %v293, %v354
        %356 = vmatmul.f32.gmra.mxu0 %v317
        %v357 = vpop.f32.mrf.mxu0
        %v358 = vadd.f32 %v293, %v357
        %359 = vmatmul.f32.gmra.mxu0 %v320
        %v360 = vpop.f32.mrf.mxu0
        %v361 = vadd.f32 %v293, %v360
        %362 = vdwg.mxu0
        %363 = vmatpush.msra.mxu0 0.0
        %364 = vmatpush.msra.mxu0 0.0
        %365 = vmatpush.msra.mxu0 0.0
        %366 = vmatpush.msra.mxu0 0.0
        %367 = vmatpush.msra.mxu0 0.0
        %368 = vmatpush.msra.mxu0 0.0
        %369 = vmatpush.msra.mxu0 0.0
        %370 = vmatpush.msra.mxu0 0.0
        %371 = vmatpush.msra.mxu0 0.0
        %372 = vmatpush.msra.mxu0 0.0
        %373 = vmatpush.msra.mxu0 0.0
        %374 = vmatpush.msra.mxu0 0.0
        %375 = vmatpush.msra.mxu0 0.0
        %376 = vmatpush.msra.mxu0 %v290
        %377 = vmatpush.msra.mxu0 %v288
        %378 = vmatpush.msra.mxu0 %v286
        %379 = vmatmul.f32.gmra.mxu0 %v299
        %v380 = vpop.f32.mrf.mxu0
        %v381 = vadd.f32 %v294, %v380
        %382 = vmatmul.f32.gmra.mxu0 %v302
        %v383 = vpop.f32.mrf.mxu0
        %v384 = vadd.f32 %v294, %v383
        %385 = vmatmul.f32.gmra.mxu0 %v305
        %v386 = vpop.f32.mrf.mxu0
        %v387 = vadd.f32 %v294, %v386
        %388 = vmatmul.f32.gmra.mxu0 %v308
        %v389 = vpop.f32.mrf.mxu0
        %v390 = vadd.f32 %v294, %v389
        %391 = vmatmul.f32.gmra.mxu0 %v311
        %v392 = vpop.f32.mrf.mxu0
        %v393 = vadd.f32 %v294, %v392
        %394 = vmatmul.f32.gmra.mxu0 %v314
        %v395 = vpop.f32.mrf.mxu0
        %v396 = vadd.f32 %v294, %v395
        %397 = vmatmul.f32.gmra.mxu0 %v317
        %v398 = vpop.f32.mrf.mxu0
        %v399 = vadd.f32 %v294, %v398
        %400 = vmatmul.f32.gmra.mxu0 %v320
        %v401 = vpop.f32.mrf.mxu0
        %v402 = vadd.f32 %v294, %v401
        %403 = vdwg.mxu0
        %v404 = vmax.f32 %v340, 0.0
        %v405 = vmax.f32 %v381, 0.0
        %v406 = vmax.f32 %v343, 0.0
        %v407 = vmax.f32 %v384, 0.0
        %v408 = vmax.f32 %v346, 0.0
        %v409 = vmax.f32 %v387, 0.0
        %v410 = vmax.f32 %v349, 0.0
        %v411 = vmax.f32 %v390, 0.0
        %v412 = vmax.f32 %v352, 0.0
        %v413 = vmax.f32 %v393, 0.0
        %v414 = vmax.f32 %v355, 0.0
        %v415 = vmax.f32 %v396, 0.0
        %v416 = vmax.f32 %v358, 0.0
        %v417 = vmax.f32 %v399, 0.0
        %v418 = vmax.f32 %v361, 0.0
        %v419 = vmax.f32 %v402, 0.0
        %v420 = vmin.f32 %v404, 6.0
        %v421 = vmin.f32 %v405, 6.0
        %v422 = vmin.f32 %v406, 6.0
        %v423 = vmin.f32 %v407, 6.0
        %v424 = vmin.f32 %v408, 6.0
        %v425 = vmin.f32 %v409, 6.0
        %v426 = vmin.f32 %v410, 6.0
        %v427 = vmin.f32 %v411, 6.0
        %v428 = vmin.f32 %v412, 6.0
        %v429 = vmin.f32 %v413, 6.0
        %v430 = vmin.f32 %v414, 6.0
        %v431 = vmin.f32 %v415, 6.0
        %v432 = vmin.f32 %v416, 6.0
        %v433 = vmin.f32 %v417, 6.0
        %v434 = vmin.f32 %v418, 6.0
        %v435 = vmin.f32 %v419, 6.0
        %436 = vst [vmem:[#allocation2] sm:$0xff] 0.0
        %vm437 = vcmask 130048
        %438 = vst.msk [vmem:[#allocation2 + $0x8] sm:$0xff] %vm437, 0.0
        %439 = vst [vmem:[#allocation2 + $0x10] sm:$0xff] 0.0
        %440 = vst.msk [vmem:[#allocation2 + $0x18] sm:$0xff] %vm437, 0.0
        %441 = vst [vmem:[#allocation2 + $0x20] sm:$0xff] 0.0
        %442 = vst.msk [vmem:[#allocation2 + $0x28] sm:$0xff] %vm437, 0.0
        %443 = vst [vmem:[#allocation2 + $0x30] sm:$0xff] 0.0
        %444 = vst.msk [vmem:[#allocation2 + $0x38] sm:$0xff] %vm437, 0.0
        %445 = vst [vmem:[#allocation2 + $0x40] sm:$0xff] 0.0
        %446 = vst.msk [vmem:[#allocation2 + $0x48] sm:$0xff] %vm437, 0.0
        %447 = vst [vmem:[#allocation2 + $0x50] sm:$0xff] 0.0
        %448 = vst.msk [vmem:[#allocation2 + $0x58] sm:$0xff] %vm437, 0.0
        %449 = vst [vmem:[#allocation2 + $0x60] sm:$0xff] 0.0
        %450 = vst.msk [vmem:[#allocation2 + $0x68] sm:$0xff] %vm437, 0.0
        %451 = vst [vmem:[#allocation2 + $0x70] sm:$0xff] 0.0
        %452 = vst.msk [vmem:[#allocation2 + $0x78] sm:$0xff] %vm437, 0.0
        %453 = vst [vmem:[#allocation2 + $0x80] sm:$0xff] 0.0
        %454 = vst.msk [vmem:[#allocation2 + $0x88] sm:$0xff] %vm437, 0.0
        %455 = vst [vmem:[#allocation2 + $0x90] sm:$0xff] 0.0
        %456 = vst.msk [vmem:[#allocation2 + $0x98] sm:$0xff] %vm437, 0.0
        %457 = vst [vmem:[#allocation2 + $0xa0] sm:$0xff] 0.0
        %458 = vst.msk [vmem:[#allocation2 + $0xa8] sm:$0xff] %vm437, 0.0
        %459 = vst [vmem:[#allocation2 + $0xb0] sm:$0xff] 0.0
        %460 = vst.msk [vmem:[#allocation2 + $0xb8] sm:$0xff] %vm437, 0.0
        %461 = vst [vmem:[#allocation2 + $0xc0] sm:$0xff] 0.0
        %462 = vst.msk [vmem:[#allocation2 + $0xc8] sm:$0xff] %vm437, 0.0
        %463 = vst [vmem:[#allocation2 + $0xd0] sm:$0xff] 0.0
        %464 = vst.msk [vmem:[#allocation2 + $0xd8] sm:$0xff] %vm437, 0.0
        %465 = vst [vmem:[#allocation2 + $0xe0] sm:$0xff] 0.0
        %466 = vst.msk [vmem:[#allocation2 + $0xe8] sm:$0xff] %vm437, 0.0
        %467 = vst [vmem:[#allocation2 + $0xf0] sm:$0xff] 0.0
        %468 = vst.msk [vmem:[#allocation2 + $0xf8] sm:$0xff] %vm437, 0.0
        %469 = vst [vmem:[#allocation2 + $0x100] sm:$0xff] 0.0
        %470 = vst.msk [vmem:[#allocation2 + $0x108] sm:$0xff] %vm437, 0.0
        %471 = vst [vmem:[#allocation2 + $0x110] sm:$0xff] 0.0
        %472 = vst.msk [vmem:[#allocation2 + $0x118] sm:$0xff] %vm437, 0.0
        %473 = vst [vmem:[#allocation2 + $0x120] sm:$0xff] 0.0
        %474 = vst.msk [vmem:[#allocation2 + $0x128] sm:$0xff] %vm437, 0.0
        %475 = vst [vmem:[#allocation2 + $0x130] sm:$0xff] 0.0
        %476 = vst.msk [vmem:[#allocation2 + $0x138] sm:$0xff] %vm437, 0.0
        %477 = vst [vmem:[#allocation2 + $0x140] sm:$0xff] 0.0
        %478 = vst.msk [vmem:[#allocation2 + $0x148] sm:$0xff] %vm437, 0.0
        %479 = vst [vmem:[#allocation2 + $0x150] sm:$0xff] 0.0
        %480 = vst.msk [vmem:[#allocation2 + $0x158] sm:$0xff] %vm437, 0.0
        %481 = vst [vmem:[#allocation2 + $0x160] sm:$0xff] 0.0
        %482 = vst.msk [vmem:[#allocation2 + $0x168] sm:$0xff] %vm437, 0.0
        %483 = vst [vmem:[#allocation2 + $0x170] sm:$0xff] 0.0
        %484 = vst.msk [vmem:[#allocation2 + $0x178] sm:$0xff] %vm437, 0.0
        %485 = vst [vmem:[#allocation2 + $0x180] sm:$0xff] 0.0
        %486 = vst.msk [vmem:[#allocation2 + $0x188] sm:$0xff] %vm437, 0.0
        %487 = vst [vmem:[#allocation2 + $0x190] sm:$0xff] 0.0
        %488 = vst.msk [vmem:[#allocation2 + $0x198] sm:$0xff] %vm437, 0.0
        %489 = vst [vmem:[#allocation2 + $0x1a0] sm:$0xff] 0.0
        %490 = vst.msk [vmem:[#allocation2 + $0x1a8] sm:$0xff] %vm437, 0.0
        %491 = vst [vmem:[#allocation2 + $0x1b0] sm:$0xff] 0.0
        %492 = vst.msk [vmem:[#allocation2 + $0x1b8] sm:$0xff] %vm437, 0.0
        %493 = vst [vmem:[#allocation2 + $0x1c0] sm:$0xff] 0.0
        %494 = vst.msk [vmem:[#allocation2 + $0x1c8] sm:$0xff] %vm437, 0.0
        %495 = vst [vmem:[#allocation2 + $0x1d0] sm:$0xff] 0.0
        %496 = vst.msk [vmem:[#allocation2 + $0x1d8] sm:$0xff] %vm437, 0.0
        %s497 = scalar_lea.vmem [#allocation2], 48
        %498 = vst [vmem:[%s497 + $0x10] sm:$0xff] %v420
        %499 = vst.msk [vmem:[%s497 + $0x18] sm:$0xff] %vm437, %v421
        %500 = vst [vmem:[%s497 + $0x40] sm:$0xff] %v422
        %501 = vst.msk [vmem:[%s497 + $0x48] sm:$0xff] %vm437, %v423
        %502 = vst [vmem:[%s497 + $0x70] sm:$0xff] %v424
        %503 = vst.msk [vmem:[%s497 + $0x78] sm:$0xff] %vm437, %v425
        %504 = vst [vmem:[%s497 + $0xa0] sm:$0xff] %v426
        %505 = vst.msk [vmem:[%s497 + $0xa8] sm:$0xff] %vm437, %v427
        %506 = vst [vmem:[%s497 + $0xd0] sm:$0xff] %v428
        %507 = vst.msk [vmem:[%s497 + $0xd8] sm:$0xff] %vm437, %v429
        %508 = vst [vmem:[%s497 + $0x100] sm:$0xff] %v430
        %509 = vst.msk [vmem:[%s497 + $0x108] sm:$0xff] %vm437, %v431
        %510 = vst [vmem:[%s497 + $0x130] sm:$0xff] %v432
        %511 = vst.msk [vmem:[%s497 + $0x138] sm:$0xff] %vm437, %v433
        %512 = vst [vmem:[%s497 + $0x160] sm:$0xff] %v434
        %513 = vst.msk [vmem:[%s497 + $0x168] sm:$0xff] %vm437, %v435
        %v514 = vld [vmem:[#allocation2] sm:$0xff]
        %v515 = vld [vmem:[#allocation2 + $0x8] sm:$0xff]
        %v516 = vld [vmem:[#allocation2 + $0x10] sm:$0xff]
        %v517 = vld [vmem:[#allocation2 + $0x18] sm:$0xff]
        %v518 = vld [vmem:[#allocation2 + $0x20] sm:$0xff]
        %v519 = vld [vmem:[#allocation2 + $0x28] sm:$0xff]
        %v520 = vld [vmem:[#allocation2 + $0x30] sm:$0xff]
        %v521 = vld [vmem:[#allocation2 + $0x38] sm:$0xff]
        %v522 = vld [vmem:[#allocation2 + $0x40] sm:$0xff]
        %v523 = vld [vmem:[#allocation2 + $0x48] sm:$0xff]
        %v524 = vld [vmem:[#allocation2 + $0x50] sm:$0xff]
        %v525 = vld [vmem:[#allocation2 + $0x58] sm:$0xff]
        %v526 = vld [vmem:[#allocation2 + $0x60] sm:$0xff]
        %v527 = vld [vmem:[#allocation2 + $0x68] sm:$0xff]
        %v528 = vld [vmem:[#allocation2 + $0x70] sm:$0xff]
        %v529 = vld [vmem:[#allocation2 + $0x78] sm:$0xff]
        %v530 = vld [vmem:[#allocation2 + $0x80] sm:$0xff]
        %v531 = vld [vmem:[#allocation2 + $0x88] sm:$0xff]
        %v532 = vld [vmem:[#allocation2 + $0x90] sm:$0xff]
        %v533 = vld [vmem:[#allocation2 + $0x98] sm:$0xff]
        %v534 = vld [vmem:[#allocation2 + $0xa0] sm:$0xff]
        %v535 = vld [vmem:[#allocation2 + $0xa8] sm:$0xff]
        %v536 = vld [vmem:[#allocation2 + $0xb0] sm:$0xff]
        %v537 = vld [vmem:[#allocation2 + $0xb8] sm:$0xff]
        %v538 = vld [vmem:[#allocation2 + $0xc0] sm:$0xff]
        %v539 = vld [vmem:[#allocation2 + $0xc8] sm:$0xff]
        %v540 = vld [vmem:[#allocation2 + $0xd0] sm:$0xff]
        %v541 = vld [vmem:[#allocation2 + $0xd8] sm:$0xff]
        %v542 = vld [vmem:[#allocation2 + $0xe0] sm:$0xff]
        %v543 = vld [vmem:[#allocation2 + $0xe8] sm:$0xff]
        %v544 = vld [vmem:[#allocation2 + $0xf0] sm:$0xff]
        %v545 = vld [vmem:[#allocation2 + $0xf8] sm:$0xff]
        %v546 = vld [vmem:[#allocation2 + $0x100] sm:$0xff]
        %v547 = vld [vmem:[#allocation2 + $0x108] sm:$0xff]
        %v548 = vld [vmem:[#allocation2 + $0x110] sm:$0xff]
        %v549 = vld [vmem:[#allocation2 + $0x118] sm:$0xff]
        %v550 = vld [vmem:[#allocation2 + $0x120] sm:$0xff]
        %v551 = vld [vmem:[#allocation2 + $0x128] sm:$0xff]
        %v552 = vld [vmem:[#allocation2 + $0x130] sm:$0xff]
        %v553 = vld [vmem:[#allocation2 + $0x138] sm:$0xff]
        %v554 = vld [vmem:[#allocation2 + $0x140] sm:$0xff]
        %v555 = vld [vmem:[#allocation2 + $0x148] sm:$0xff]
        %v556 = vld [vmem:[#allocation2 + $0x150] sm:$0xff]
        %v557 = vld [vmem:[#allocation2 + $0x158] sm:$0xff]
        %v558 = vld [vmem:[#allocation2 + $0x160] sm:$0xff]
        %v559 = vld [vmem:[#allocation2 + $0x168] sm:$0xff]
        %v560 = vld [vmem:[#allocation2 + $0x170] sm:$0xff]
        %v561 = vld [vmem:[#allocation2 + $0x178] sm:$0xff]
        %v562 = vld [vmem:[#allocation2 + $0x180] sm:$0xff]
        %v563 = vld [vmem:[#allocation2 + $0x188] sm:$0xff]
        %v564 = vld [vmem:[#allocation2 + $0x190] sm:$0xff]
        %v565 = vld [vmem:[#allocation2 + $0x198] sm:$0xff]
        %v566 = vld [vmem:[#allocation2 + $0x1a0] sm:$0xff]
        %v567 = vld [vmem:[#allocation2 + $0x1a8] sm:$0xff]
        %v568 = vld [vmem:[#allocation2 + $0x1b0] sm:$0xff]
        %v569 = vld [vmem:[#allocation2 + $0x1b8] sm:$0xff]
        %v570 = vld [vmem:[#allocation2 + $0x1c0] sm:$0xff]
        %v571 = vld [vmem:[#allocation2 + $0x1c8] sm:$0xff]
        %v572 = vld [vmem:[#allocation2 + $0x1d0] sm:$0xff]
        %v573 = vld [vmem:[#allocation2 + $0x1d8] sm:$0xff]
        %v574 = vld [vmem:[%s3] sm:$0xff]
        %v575 = vld [vmem:[%s3 + $0x8] sm:$0xff]
        %v576 = vld [vmem:[%s3 + $0x10] sm:$0x1]
        %v577 = vld [vmem:[%s3 + $0x18] sm:$0x1]
        %v578 = vperm.slane %v574, 0
        %v579 = vperm.slane %v575, 0
        %v580 = vmul.f32 %v514, %v578
        %v581 = vmul.f32 %v515, %v579
        %v582 = vmul.f32 %v516, %v578
        %v583 = vmul.f32 %v517, %v579
        %v584 = vmul.f32 %v520, %v578
        %v585 = vmul.f32 %v521, %v579
        %v586 = vmul.f32 %v522, %v578
        %v587 = vmul.f32 %v523, %v579
        %v588 = vmul.f32 %v526, %v578
        %v589 = vmul.f32 %v527, %v579
        %v590 = vmul.f32 %v528, %v578
        %v591 = vmul.f32 %v529, %v579
        %v592 = vmul.f32 %v532, %v578
        %v593 = vmul.f32 %v533, %v579
        %v594 = vmul.f32 %v534, %v578
        %v595 = vmul.f32 %v535, %v579
        %v596 = vmul.f32 %v538, %v578
        %v597 = vmul.f32 %v539, %v579
        %v598 = vmul.f32 %v540, %v578
        %v599 = vmul.f32 %v541, %v579
        %v600 = vmul.f32 %v544, %v578
        %v601 = vmul.f32 %v545, %v579
        %v602 = vmul.f32 %v546, %v578
        %v603 = vmul.f32 %v547, %v579
        %v604 = vmul.f32 %v550, %v578
        %v605 = vmul.f32 %v551, %v579
        %v606 = vmul.f32 %v552, %v578
        %v607 = vmul.f32 %v553, %v579
        %v608 = vmul.f32 %v556, %v578
        %v609 = vmul.f32 %v557, %v579
        %v610 = vmul.f32 %v558, %v578
        %v611 = vmul.f32 %v559, %v579
        %v612 = vadd.f32 %v580, 0.0
        %v613 = vadd.f32 %v581, 0.0
        %v614 = vadd.f32 %v582, 0.0
        %v615 = vadd.f32 %v583, 0.0
        %v616 = vadd.f32 %v584, 0.0
        %v617 = vadd.f32 %v585, 0.0
        %v618 = vadd.f32 %v586, 0.0
        %v619 = vadd.f32 %v587, 0.0
        %v620 = vadd.f32 %v588, 0.0
        %v621 = vadd.f32 %v589, 0.0
        %v622 = vadd.f32 %v590, 0.0
        %v623 = vadd.f32 %v591, 0.0
        %v624 = vadd.f32 %v592, 0.0
        %v625 = vadd.f32 %v593, 0.0
        %v626 = vadd.f32 %v594, 0.0
        %v627 = vadd.f32 %v595, 0.0
        %v628 = vadd.f32 %v596, 0.0
        %v629 = vadd.f32 %v597, 0.0
        %v630 = vadd.f32 %v598, 0.0
        %v631 = vadd.f32 %v599, 0.0
        %v632 = vadd.f32 %v600, 0.0
        %v633 = vadd.f32 %v601, 0.0
        %v634 = vadd.f32 %v602, 0.0
        %v635 = vadd.f32 %v603, 0.0
        %v636 = vadd.f32 %v604, 0.0
        %v637 = vadd.f32 %v605, 0.0
        %v638 = vadd.f32 %v606, 0.0
        %v639 = vadd.f32 %v607, 0.0
        %v640 = vadd.f32 %v608, 0.0
        %v641 = vadd.f32 %v609, 0.0
        %v642 = vadd.f32 %v610, 0.0
        %v643 = vadd.f32 %v611, 0.0
        %v644 = vperm.slane %v574, 1
        %v645 = vperm.slane %v575, 1
        %v646 = vmul.f32 %v516, %v644
        %v647 = vmul.f32 %v517, %v645
        %v648 = vmul.f32 %v522, %v644
        %v649 = vmul.f32 %v523, %v645
        %v650 = vmul.f32 %v528, %v644
        %v651 = vmul.f32 %v529, %v645
        %v652 = vmul.f32 %v534, %v644
        %v653 = vmul.f32 %v535, %v645
        %v654 = vmul.f32 %v540, %v644
        %v655 = vmul.f32 %v541, %v645
        %v656 = vmul.f32 %v546, %v644
        %v657 = vmul.f32 %v547, %v645
        %v658 = vmul.f32 %v552, %v644
        %v659 = vmul.f32 %v553, %v645
        %v660 = vmul.f32 %v558, %v644
        %v661 = vmul.f32 %v559, %v645
        %v678 = vrot.slane %v646, 1
        %v679 = vrot.slane %v647, 1
        %v680 = vrot.slane %v648, 1
        %v681 = vrot.slane %v649, 1
        %v682 = vrot.slane %v650, 1
        %v683 = vrot.slane %v651, 1
        %v684 = vrot.slane %v652, 1
        %v685 = vrot.slane %v653, 1
        %v686 = vrot.slane %v654, 1
        %v687 = vrot.slane %v655, 1
        %v688 = vrot.slane %v656, 1
        %v689 = vrot.slane %v657, 1
        %v690 = vrot.slane %v658, 1
        %v691 = vrot.slane %v659, 1
        %v692 = vrot.slane %v660, 1
        %v693 = vrot.slane %v661, 1
        %v710 = vadd.f32 %v612, %v678
        %v711 = vadd.f32 %v613, %v679
        %v712 = vadd.f32 %v614, %v678
        %v713 = vadd.f32 %v615, %v679
        %v714 = vadd.f32 %v616, %v680
        %v715 = vadd.f32 %v617, %v681
        %v716 = vadd.f32 %v618, %v680
        %v717 = vadd.f32 %v619, %v681
        %v718 = vadd.f32 %v620, %v682
        %v719 = vadd.f32 %v621, %v683
        %v720 = vadd.f32 %v622, %v682
        %v721 = vadd.f32 %v623, %v683
        %v722 = vadd.f32 %v624, %v684
        %v723 = vadd.f32 %v625, %v685
        %v724 = vadd.f32 %v626, %v684
        %v725 = vadd.f32 %v627, %v685
        %v726 = vadd.f32 %v628, %v686
        %v727 = vadd.f32 %v629, %v687
        %v728 = vadd.f32 %v630, %v686
        %v729 = vadd.f32 %v631, %v687
        %v730 = vadd.f32 %v632, %v688
        %v731 = vadd.f32 %v633, %v689
        %v732 = vadd.f32 %v634, %v688
        %v733 = vadd.f32 %v635, %v689
        %v734 = vadd.f32 %v636, %v690
        %v735 = vadd.f32 %v637, %v691
        %v736 = vadd.f32 %v638, %v690
        %v737 = vadd.f32 %v639, %v691
        %v738 = vadd.f32 %v640, %v692
        %v739 = vadd.f32 %v641, %v693
        %v740 = vadd.f32 %v642, %v692
        %v741 = vadd.f32 %v643, %v693
        %v742 = vperm.slane %v574, 2
        %v743 = vperm.slane %v575, 2
        %v744 = vmul.f32 %v516, %v742
        %v745 = vmul.f32 %v517, %v743
        %v746 = vmul.f32 %v518, %v742
        %v747 = vmul.f32 %v519, %v743
        %v748 = vmul.f32 %v522, %v742
        %v749 = vmul.f32 %v523, %v743
        %v750 = vmul.f32 %v524, %v742
        %v751 = vmul.f32 %v525, %v743
        %v752 = vmul.f32 %v528, %v742
        %v753 = vmul.f32 %v529, %v743
        %v754 = vmul.f32 %v530, %v742
        %v755 = vmul.f32 %v531, %v743
        %v756 = vmul.f32 %v534, %v742
        %v757 = vmul.f32 %v535, %v743
        %v758 = vmul.f32 %v536, %v742
        %v759 = vmul.f32 %v537, %v743
        %v760 = vmul.f32 %v540, %v742
        %v761 = vmul.f32 %v541, %v743
        %v762 = vmul.f32 %v542, %v742
        %v763 = vmul.f32 %v543, %v743
        %v764 = vmul.f32 %v546, %v742
        %v765 = vmul.f32 %v547, %v743
        %v766 = vmul.f32 %v548, %v742
        %v767 = vmul.f32 %v549, %v743
        %v768 = vmul.f32 %v552, %v742
        %v769 = vmul.f32 %v553, %v743
        %v770 = vmul.f32 %v554, %v742
        %v771 = vmul.f32 %v555, %v743
        %v772 = vmul.f32 %v558, %v742
        %v773 = vmul.f32 %v559, %v743
        %v774 = vmul.f32 %v560, %v742
        %v775 = vmul.f32 %v561, %v743
        %vm808 = vcmask 1045504
        %v809 = vrot.slane %v744, 2
        %v810 = vrot.slane %v745, 2
        %v811 = vrot.slane %v746, 2
        %v812 = vsel %vm808, %v809, %v811
        %v813 = vrot.slane %v747, 2
        %v814 = vsel %vm808, %v810, %v813
        %v815 = vrot.slane %v748, 2
        %v816 = vrot.slane %v749, 2
        %v817 = vrot.slane %v750, 2
        %v818 = vsel %vm808, %v815, %v817
        %v819 = vrot.slane %v751, 2
        %v820 = vsel %vm808, %v816, %v819
        %v821 = vrot.slane %v752, 2
        %v822 = vrot.slane %v753, 2
        %v823 = vrot.slane %v754, 2
        %v824 = vsel %vm808, %v821, %v823
        %v825 = vrot.slane %v755, 2
        %v826 = vsel %vm808, %v822, %v825
        %v827 = vrot.slane %v756, 2
        %v828 = vrot.slane %v757, 2
        %v829 = vrot.slane %v758, 2
        %v830 = vsel %vm808, %v827, %v829
        %v831 = vrot.slane %v759, 2
        %v832 = vsel %vm808, %v828, %v831
        %v833 = vrot.slane %v760, 2
        %v834 = vrot.slane %v761, 2
        %v835 = vrot.slane %v762, 2
        %v836 = vsel %vm808, %v833, %v835
        %v837 = vrot.slane %v763, 2
        %v838 = vsel %vm808, %v834, %v837
        %v839 = vrot.slane %v764, 2
        %v840 = vrot.slane %v765, 2
        %v841 = vrot.slane %v766, 2
        %v842 = vsel %vm808, %v839, %v841
        %v843 = vrot.slane %v767, 2
        %v844 = vsel %vm808, %v840, %v843
        %v845 = vrot.slane %v768, 2
        %v846 = vrot.slane %v769, 2
        %v847 = vrot.slane %v770, 2
        %v848 = vsel %vm808, %v845, %v847
        %v849 = vrot.slane %v771, 2
        %v850 = vsel %vm808, %v846, %v849
        %v851 = vrot.slane %v772, 2
        %v852 = vrot.slane %v773, 2
        %v853 = vrot.slane %v774, 2
        %v854 = vsel %vm808, %v851, %v853
        %v855 = vrot.slane %v775, 2
        %v856 = vsel %vm808, %v852, %v855
        %v889 = vadd.f32 %v710, %v809
        %v890 = vadd.f32 %v711, %v810
        %v891 = vadd.f32 %v712, %v812
        %v892 = vadd.f32 %v713, %v814
        %v893 = vadd.f32 %v714, %v815
        %v894 = vadd.f32 %v715, %v816
        %v895 = vadd.f32 %v716, %v818
        %v896 = vadd.f32 %v717, %v820
        %v897 = vadd.f32 %v718, %v821
        %v898 = vadd.f32 %v719, %v822
        %v899 = vadd.f32 %v720, %v824
        %v900 = vadd.f32 %v721, %v826
        %v901 = vadd.f32 %v722, %v827
        %v902 = vadd.f32 %v723, %v828
        %v903 = vadd.f32 %v724, %v830
        %v904 = vadd.f32 %v725, %v832
        %v905 = vadd.f32 %v726, %v833
        %v906 = vadd.f32 %v727, %v834
        %v907 = vadd.f32 %v728, %v836
        %v908 = vadd.f32 %v729, %v838
        %v909 = vadd.f32 %v730, %v839
        %v910 = vadd.f32 %v731, %v840
        %v911 = vadd.f32 %v732, %v842
        %v912 = vadd.f32 %v733, %v844
        %v913 = vadd.f32 %v734, %v845
        %v914 = vadd.f32 %v735, %v846
        %v915 = vadd.f32 %v736, %v848
        %v916 = vadd.f32 %v737, %v850
        %v917 = vadd.f32 %v738, %v851
        %v918 = vadd.f32 %v739, %v852
        %v919 = vadd.f32 %v740, %v854
        %v920 = vadd.f32 %v741, %v856
        %v921 = vperm.slane %v574, 3
        %v922 = vperm.slane %v575, 3
        %v923 = vmul.f32 %v520, %v921
        %v924 = vmul.f32 %v521, %v922
        %v925 = vmul.f32 %v522, %v921
        %v926 = vmul.f32 %v523, %v922
        %v927 = vmul.f32 %v526, %v921
        %v928 = vmul.f32 %v527, %v922
        %v929 = vmul.f32 %v528, %v921
        %v930 = vmul.f32 %v529, %v922
        %v931 = vmul.f32 %v532, %v921
        %v932 = vmul.f32 %v533, %v922
        %v933 = vmul.f32 %v534, %v921
        %v934 = vmul.f32 %v535, %v922
        %v935 = vmul.f32 %v538, %v921
        %v936 = vmul.f32 %v539, %v922
        %v937 = vmul.f32 %v540, %v921
        %v938 = vmul.f32 %v541, %v922
        %v939 = vmul.f32 %v544, %v921
        %v940 = vmul.f32 %v545, %v922
        %v941 = vmul.f32 %v546, %v921
        %v942 = vmul.f32 %v547, %v922
        %v943 = vmul.f32 %v550, %v921
        %v944 = vmul.f32 %v551, %v922
        %v945 = vmul.f32 %v552, %v921
        %v946 = vmul.f32 %v553, %v922
        %v947 = vmul.f32 %v556, %v921
        %v948 = vmul.f32 %v557, %v922
        %v949 = vmul.f32 %v558, %v921
        %v950 = vmul.f32 %v559, %v922
        %v951 = vmul.f32 %v562, %v921
        %v952 = vmul.f32 %v563, %v922
        %v953 = vmul.f32 %v564, %v921
        %v954 = vmul.f32 %v565, %v922
        %v955 = vadd.f32 %v889, %v923
        %v956 = vadd.f32 %v890, %v924
        %v957 = vadd.f32 %v891, %v925
        %v958 = vadd.f32 %v892, %v926
        %v959 = vadd.f32 %v893, %v927
        %v960 = vadd.f32 %v894, %v928
        %v961 = vadd.f32 %v895, %v929
        %v962 = vadd.f32 %v896, %v930
        %v963 = vadd.f32 %v897, %v931
        %v964 = vadd.f32 %v898, %v932
        %v965 = vadd.f32 %v899, %v933
        %v966 = vadd.f32 %v900, %v934
        %v967 = vadd.f32 %v901, %v935
        %v968 = vadd.f32 %v902, %v936
        %v969 = vadd.f32 %v903, %v937
        %v970 = vadd.f32 %v904, %v938
        %v971 = vadd.f32 %v905, %v939
        %v972 = vadd.f32 %v906, %v940
        %v973 = vadd.f32 %v907, %v941
        %v974 = vadd.f32 %v908, %v942
        %v975 = vadd.f32 %v909, %v943
        %v976 = vadd.f32 %v910, %v944
        %v977 = vadd.f32 %v911, %v945
        %v978 = vadd.f32 %v912, %v946
        %v979 = vadd.f32 %v913, %v947
        %v980 = vadd.f32 %v914, %v948
        %v981 = vadd.f32 %v915, %v949
        %v982 = vadd.f32 %v916, %v950
        %v983 = vadd.f32 %v917, %v951
        %v984 = vadd.f32 %v918, %v952
        %v985 = vadd.f32 %v919, %v953
        %v986 = vadd.f32 %v920, %v954
        %v987 = vperm.slane %v574, 4
        %v988 = vperm.slane %v575, 4
        %v989 = vmul.f32 %v522, %v987
        %v990 = vmul.f32 %v523, %v988
        %v991 = vmul.f32 %v528, %v987
        %v992 = vmul.f32 %v529, %v988
        %v993 = vmul.f32 %v534, %v987
        %v994 = vmul.f32 %v535, %v988
        %v995 = vmul.f32 %v540, %v987
        %v996 = vmul.f32 %v541, %v988
        %v997 = vmul.f32 %v546, %v987
        %v998 = vmul.f32 %v547, %v988
        %v999 = vmul.f32 %v552, %v987
        %v1000 = vmul.f32 %v553, %v988
        %v1001 = vmul.f32 %v558, %v987
        %v1002 = vmul.f32 %v559, %v988
        %v1003 = vmul.f32 %v564, %v987
        %v1004 = vmul.f32 %v565, %v988
        %v1021 = vrot.slane %v989, 1
        %v1022 = vrot.slane %v990, 1
        %v1023 = vrot.slane %v991, 1
        %v1024 = vrot.slane %v992, 1
        %v1025 = vrot.slane %v993, 1
        %v1026 = vrot.slane %v994, 1
        %v1027 = vrot.slane %v995, 1
        %v1028 = vrot.slane %v996, 1
        %v1029 = vrot.slane %v997, 1
        %v1030 = vrot.slane %v998, 1
        %v1031 = vrot.slane %v999, 1
        %v1032 = vrot.slane %v1000, 1
        %v1033 = vrot.slane %v1001, 1
        %v1034 = vrot.slane %v1002, 1
        %v1035 = vrot.slane %v1003, 1
        %v1036 = vrot.slane %v1004, 1
        %v1053 = vadd.f32 %v955, %v1021
        %v1054 = vadd.f32 %v956, %v1022
        %v1055 = vadd.f32 %v957, %v1021
        %v1056 = vadd.f32 %v958, %v1022
        %v1057 = vadd.f32 %v959, %v1023
        %v1058 = vadd.f32 %v960, %v1024
        %v1059 = vadd.f32 %v961, %v1023
        %v1060 = vadd.f32 %v962, %v1024
        %v1061 = vadd.f32 %v963, %v1025
        %v1062 = vadd.f32 %v964, %v1026
        %v1063 = vadd.f32 %v965, %v1025
        %v1064 = vadd.f32 %v966, %v1026
        %v1065 = vadd.f32 %v967, %v1027
        %v1066 = vadd.f32 %v968, %v1028
        %v1067 = vadd.f32 %v969, %v1027
        %v1068 = vadd.f32 %v970, %v1028
        %v1069 = vadd.f32 %v971, %v1029
        %v1070 = vadd.f32 %v972, %v1030
        %v1071 = vadd.f32 %v973, %v1029
        %v1072 = vadd.f32 %v974, %v1030
        %v1073 = vadd.f32 %v975, %v1031
        %v1074 = vadd.f32 %v976, %v1032
        %v1075 = vadd.f32 %v977, %v1031
        %v1076 = vadd.f32 %v978, %v1032
        %v1077 = vadd.f32 %v979, %v1033
        %v1078 = vadd.f32 %v980, %v1034
        %v1079 = vadd.f32 %v981, %v1033
        %v1080 = vadd.f32 %v982, %v1034
        %v1081 = vadd.f32 %v983, %v1035
        %v1082 = vadd.f32 %v984, %v1036
        %v1083 = vadd.f32 %v985, %v1035
        %v1084 = vadd.f32 %v986, %v1036
        %v1085 = vperm.slane %v574, 5
        %v1086 = vperm.slane %v575, 5
        %v1087 = vmul.f32 %v522, %v1085
        %v1088 = vmul.f32 %v523, %v1086
        %v1089 = vmul.f32 %v524, %v1085
        %v1090 = vmul.f32 %v525, %v1086
        %v1091 = vmul.f32 %v528, %v1085
        %v1092 = vmul.f32 %v529, %v1086
        %v1093 = vmul.f32 %v530, %v1085
        %v1094 = vmul.f32 %v531, %v1086
        %v1095 = vmul.f32 %v534, %v1085
        %v1096 = vmul.f32 %v535, %v1086
        %v1097 = vmul.f32 %v536, %v1085
        %v1098 = vmul.f32 %v537, %v1086
        %v1099 = vmul.f32 %v540, %v1085
        %v1100 = vmul.f32 %v541, %v1086
        %v1101 = vmul.f32 %v542, %v1085
        %v1102 = vmul.f32 %v543, %v1086
        %v1103 = vmul.f32 %v546, %v1085
        %v1104 = vmul.f32 %v547, %v1086
        %v1105 = vmul.f32 %v548, %v1085
        %v1106 = vmul.f32 %v549, %v1086
        %v1107 = vmul.f32 %v552, %v1085
        %v1108 = vmul.f32 %v553, %v1086
        %v1109 = vmul.f32 %v554, %v1085
        %v1110 = vmul.f32 %v555, %v1086
        %v1111 = vmul.f32 %v558, %v1085
        %v1112 = vmul.f32 %v559, %v1086
        %v1113 = vmul.f32 %v560, %v1085
        %v1114 = vmul.f32 %v561, %v1086
        %v1115 = vmul.f32 %v564, %v1085
        %v1116 = vmul.f32 %v565, %v1086
        %v1117 = vmul.f32 %v566, %v1085
        %v1118 = vmul.f32 %v567, %v1086
        %v1151 = vrot.slane %v1087, 2
        %v1152 = vrot.slane %v1088, 2
        %v1153 = vrot.slane %v1089, 2
        %v1154 = vsel %vm808, %v1151, %v1153
        %v1155 = vrot.slane %v1090, 2
        %v1156 = vsel %vm808, %v1152, %v1155
        %v1157 = vrot.slane %v1091, 2
        %v1158 = vrot.slane %v1092, 2
        %v1159 = vrot.slane %v1093, 2
        %v1160 = vsel %vm808, %v1157, %v1159
        %v1161 = vrot.slane %v1094, 2
        %v1162 = vsel %vm808, %v1158, %v1161
        %v1163 = vrot.slane %v1095, 2
        %v1164 = vrot.slane %v1096, 2
        %v1165 = vrot.slane %v1097, 2
        %v1166 = vsel %vm808, %v1163, %v1165
        %v1167 = vrot.slane %v1098, 2
        %v1168 = vsel %vm808, %v1164, %v1167
        %v1169 = vrot.slane %v1099, 2
        %v1170 = vrot.slane %v1100, 2
        %v1171 = vrot.slane %v1101, 2
        %v1172 = vsel %vm808, %v1169, %v1171
        %v1173 = vrot.slane %v1102, 2
        %v1174 = vsel %vm808, %v1170, %v1173
        %v1175 = vrot.slane %v1103, 2
        %v1176 = vrot.slane %v1104, 2
        %v1177 = vrot.slane %v1105, 2
        %v1178 = vsel %vm808, %v1175, %v1177
        %v1179 = vrot.slane %v1106, 2
        %v1180 = vsel %vm808, %v1176, %v1179
        %v1181 = vrot.slane %v1107, 2
        %v1182 = vrot.slane %v1108, 2
        %v1183 = vrot.slane %v1109, 2
        %v1184 = vsel %vm808, %v1181, %v1183
        %v1185 = vrot.slane %v1110, 2
        %v1186 = vsel %vm808, %v1182, %v1185
        %v1187 = vrot.slane %v1111, 2
        %v1188 = vrot.slane %v1112, 2
        %v1189 = vrot.slane %v1113, 2
        %v1190 = vsel %vm808, %v1187, %v1189
        %v1191 = vrot.slane %v1114, 2
        %v1192 = vsel %vm808, %v1188, %v1191
        %v1193 = vrot.slane %v1115, 2
        %v1194 = vrot.slane %v1116, 2
        %v1195 = vrot.slane %v1117, 2
        %v1196 = vsel %vm808, %v1193, %v1195
        %v1197 = vrot.slane %v1118, 2
        %v1198 = vsel %vm808, %v1194, %v1197
        %v1231 = vadd.f32 %v1053, %v1151
        %v1232 = vadd.f32 %v1054, %v1152
        %v1233 = vadd.f32 %v1055, %v1154
        %v1234 = vadd.f32 %v1056, %v1156
        %v1235 = vadd.f32 %v1057, %v1157
        %v1236 = vadd.f32 %v1058, %v1158
        %v1237 = vadd.f32 %v1059, %v1160
        %v1238 = vadd.f32 %v1060, %v1162
        %v1239 = vadd.f32 %v1061, %v1163
        %v1240 = vadd.f32 %v1062, %v1164
        %v1241 = vadd.f32 %v1063, %v1166
        %v1242 = vadd.f32 %v1064, %v1168
        %v1243 = vadd.f32 %v1065, %v1169
        %v1244 = vadd.f32 %v1066, %v1170
        %v1245 = vadd.f32 %v1067, %v1172
        %v1246 = vadd.f32 %v1068, %v1174
        %v1247 = vadd.f32 %v1069, %v1175
        %v1248 = vadd.f32 %v1070, %v1176
        %v1249 = vadd.f32 %v1071, %v1178
        %v1250 = vadd.f32 %v1072, %v1180
        %v1251 = vadd.f32 %v1073, %v1181
        %v1252 = vadd.f32 %v1074, %v1182
        %v1253 = vadd.f32 %v1075, %v1184
        %v1254 = vadd.f32 %v1076, %v1186
        %v1255 = vadd.f32 %v1077, %v1187
        %v1256 = vadd.f32 %v1078, %v1188
        %v1257 = vadd.f32 %v1079, %v1190
        %v1258 = vadd.f32 %v1080, %v1192
        %v1259 = vadd.f32 %v1081, %v1193
        %v1260 = vadd.f32 %v1082, %v1194
        %v1261 = vadd.f32 %v1083, %v1196
        %v1262 = vadd.f32 %v1084, %v1198
        %v1263 = vperm.slane %v574, 6
        %v1264 = vperm.slane %v575, 6
        %v1265 = vmul.f32 %v526, %v1263
        %v1266 = vmul.f32 %v527, %v1264
        %v1267 = vmul.f32 %v528, %v1263
        %v1268 = vmul.f32 %v529, %v1264
        %v1269 = vmul.f32 %v532, %v1263
        %v1270 = vmul.f32 %v533, %v1264
        %v1271 = vmul.f32 %v534, %v1263
        %v1272 = vmul.f32 %v535, %v1264
        %v1273 = vmul.f32 %v538, %v1263
        %v1274 = vmul.f32 %v539, %v1264
        %v1275 = vmul.f32 %v540, %v1263
        %v1276 = vmul.f32 %v541, %v1264
        %v1277 = vmul.f32 %v544, %v1263
        %v1278 = vmul.f32 %v545, %v1264
        %v1279 = vmul.f32 %v546, %v1263
        %v1280 = vmul.f32 %v547, %v1264
        %v1281 = vmul.f32 %v550, %v1263
        %v1282 = vmul.f32 %v551, %v1264
        %v1283 = vmul.f32 %v552, %v1263
        %v1284 = vmul.f32 %v553, %v1264
        %v1285 = vmul.f32 %v556, %v1263
        %v1286 = vmul.f32 %v557, %v1264
        %v1287 = vmul.f32 %v558, %v1263
        %v1288 = vmul.f32 %v559, %v1264
        %v1289 = vmul.f32 %v562, %v1263
        %v1290 = vmul.f32 %v563, %v1264
        %v1291 = vmul.f32 %v564, %v1263
        %v1292 = vmul.f32 %v565, %v1264
        %v1293 = vmul.f32 %v568, %v1263
        %v1294 = vmul.f32 %v569, %v1264
        %v1295 = vmul.f32 %v570, %v1263
        %v1296 = vmul.f32 %v571, %v1264
        %v1297 = vadd.f32 %v1231, %v1265
        %v1298 = vadd.f32 %v1232, %v1266
        %v1299 = vadd.f32 %v1233, %v1267
        %v1300 = vadd.f32 %v1234, %v1268
        %v1301 = vadd.f32 %v1235, %v1269
        %v1302 = vadd.f32 %v1236, %v1270
        %v1303 = vadd.f32 %v1237, %v1271
        %v1304 = vadd.f32 %v1238, %v1272
        %v1305 = vadd.f32 %v1239, %v1273
        %v1306 = vadd.f32 %v1240, %v1274
        %v1307 = vadd.f32 %v1241, %v1275
        %v1308 = vadd.f32 %v1242, %v1276
        %v1309 = vadd.f32 %v1243, %v1277
        %v1310 = vadd.f32 %v1244, %v1278
        %v1311 = vadd.f32 %v1245, %v1279
        %v1312 = vadd.f32 %v1246, %v1280
        %v1313 = vadd.f32 %v1247, %v1281
        %v1314 = vadd.f32 %v1248, %v1282
        %v1315 = vadd.f32 %v1249, %v1283
        %v1316 = vadd.f32 %v1250, %v1284
        %v1317 = vadd.f32 %v1251, %v1285
        %v1318 = vadd.f32 %v1252, %v1286
        %v1319 = vadd.f32 %v1253, %v1287
        %v1320 = vadd.f32 %v1254, %v1288
        %v1321 = vadd.f32 %v1255, %v1289
        %v1322 = vadd.f32 %v1256, %v1290
        %v1323 = vadd.f32 %v1257, %v1291
        %v1324 = vadd.f32 %v1258, %v1292
        %v1325 = vadd.f32 %v1259, %v1293
        %v1326 = vadd.f32 %v1260, %v1294
        %v1327 = vadd.f32 %v1261, %v1295
        %v1328 = vadd.f32 %v1262, %v1296
        %v1329 = vperm.slane %v574, 7
        %v1330 = vperm.slane %v575, 7
        %v1331 = vmul.f32 %v528, %v1329
        %v1332 = vmul.f32 %v529, %v1330
        %v1333 = vmul.f32 %v534, %v1329
        %v1334 = vmul.f32 %v535, %v1330
        %v1335 = vmul.f32 %v540, %v1329
        %v1336 = vmul.f32 %v541, %v1330
        %v1337 = vmul.f32 %v546, %v1329
        %v1338 = vmul.f32 %v547, %v1330
        %v1339 = vmul.f32 %v552, %v1329
        %v1340 = vmul.f32 %v553, %v1330
        %v1341 = vmul.f32 %v558, %v1329
        %v1342 = vmul.f32 %v559, %v1330
        %v1343 = vmul.f32 %v564, %v1329
        %v1344 = vmul.f32 %v565, %v1330
        %v1345 = vmul.f32 %v570, %v1329
        %v1346 = vmul.f32 %v571, %v1330
        %v1363 = vrot.slane %v1331, 1
        %v1364 = vrot.slane %v1332, 1
        %v1365 = vrot.slane %v1333, 1
        %v1366 = vrot.slane %v1334, 1
        %v1367 = vrot.slane %v1335, 1
        %v1368 = vrot.slane %v1336, 1
        %v1369 = vrot.slane %v1337, 1
        %v1370 = vrot.slane %v1338, 1
        %v1371 = vrot.slane %v1339, 1
        %v1372 = vrot.slane %v1340, 1
        %v1373 = vrot.slane %v1341, 1
        %v1374 = vrot.slane %v1342, 1
        %v1375 = vrot.slane %v1343, 1
        %v1376 = vrot.slane %v1344, 1
        %v1377 = vrot.slane %v1345, 1
        %v1378 = vrot.slane %v1346, 1
        %v1395 = vadd.f32 %v1297, %v1363
        %v1396 = vadd.f32 %v1298, %v1364
        %v1397 = vadd.f32 %v1299, %v1363
        %v1398 = vadd.f32 %v1300, %v1364
        %v1399 = vadd.f32 %v1301, %v1365
        %v1400 = vadd.f32 %v1302, %v1366
        %v1401 = vadd.f32 %v1303, %v1365
        %v1402 = vadd.f32 %v1304, %v1366
        %v1403 = vadd.f32 %v1305, %v1367
        %v1404 = vadd.f32 %v1306, %v1368
        %v1405 = vadd.f32 %v1307, %v1367
        %v1406 = vadd.f32 %v1308, %v1368
        %v1407 = vadd.f32 %v1309, %v1369
        %v1408 = vadd.f32 %v1310, %v1370
        %v1409 = vadd.f32 %v1311, %v1369
        %v1410 = vadd.f32 %v1312, %v1370
        %v1411 = vadd.f32 %v1313, %v1371
        %v1412 = vadd.f32 %v1314, %v1372
        %v1413 = vadd.f32 %v1315, %v1371
        %v1414 = vadd.f32 %v1316, %v1372
        %v1415 = vadd.f32 %v1317, %v1373
        %v1416 = vadd.f32 %v1318, %v1374
        %v1417 = vadd.f32 %v1319, %v1373
        %v1418 = vadd.f32 %v1320, %v1374
        %v1419 = vadd.f32 %v1321, %v1375
        %v1420 = vadd.f32 %v1322, %v1376
        %v1421 = vadd.f32 %v1323, %v1375
        %v1422 = vadd.f32 %v1324, %v1376
        %v1423 = vadd.f32 %v1325, %v1377
        %v1424 = vadd.f32 %v1326, %v1378
        %v1425 = vadd.f32 %v1327, %v1377
        %v1426 = vadd.f32 %v1328, %v1378
        %v1427 = vperm.slane %v576, 0
        %v1428 = vperm.slane %v577, 0
        %v1429 = vmul.f32 %v528, %v1427
        %v1430 = vmul.f32 %v529, %v1428
        %v1431 = vmul.f32 %v530, %v1427
        %v1432 = vmul.f32 %v531, %v1428
        %v1433 = vmul.f32 %v534, %v1427
        %v1434 = vmul.f32 %v535, %v1428
        %v1435 = vmul.f32 %v536, %v1427
        %v1436 = vmul.f32 %v537, %v1428
        %v1437 = vmul.f32 %v540, %v1427
        %v1438 = vmul.f32 %v541, %v1428
        %v1439 = vmul.f32 %v542, %v1427
        %v1440 = vmul.f32 %v543, %v1428
        %v1441 = vmul.f32 %v546, %v1427
        %v1442 = vmul.f32 %v547, %v1428
        %v1443 = vmul.f32 %v548, %v1427
        %v1444 = vmul.f32 %v549, %v1428
        %v1445 = vmul.f32 %v552, %v1427
        %v1446 = vmul.f32 %v553, %v1428
        %v1447 = vmul.f32 %v554, %v1427
        %v1448 = vmul.f32 %v555, %v1428
        %v1449 = vmul.f32 %v558, %v1427
        %v1450 = vmul.f32 %v559, %v1428
        %v1451 = vmul.f32 %v560, %v1427
        %v1452 = vmul.f32 %v561, %v1428
        %v1453 = vmul.f32 %v564, %v1427
        %v1454 = vmul.f32 %v565, %v1428
        %v1455 = vmul.f32 %v566, %v1427
        %v1456 = vmul.f32 %v567, %v1428
        %v1457 = vmul.f32 %v570, %v1427
        %v1458 = vmul.f32 %v571, %v1428
        %v1459 = vmul.f32 %v572, %v1427
        %v1460 = vmul.f32 %v573, %v1428
        %v1493 = vrot.slane %v1429, 2
        %v1494 = vrot.slane %v1430, 2
        %v1495 = vrot.slane %v1431, 2
        %v1496 = vsel %vm808, %v1493, %v1495
        %v1497 = vrot.slane %v1432, 2
        %v1498 = vsel %vm808, %v1494, %v1497
        %v1499 = vrot.slane %v1433, 2
        %v1500 = vrot.slane %v1434, 2
        %v1501 = vrot.slane %v1435, 2
        %v1502 = vsel %vm808, %v1499, %v1501
        %v1503 = vrot.slane %v1436, 2
        %v1504 = vsel %vm808, %v1500, %v1503
        %v1505 = vrot.slane %v1437, 2
        %v1506 = vrot.slane %v1438, 2
        %v1507 = vrot.slane %v1439, 2
        %v1508 = vsel %vm808, %v1505, %v1507
        %v1509 = vrot.slane %v1440, 2
        %v1510 = vsel %vm808, %v1506, %v1509
        %v1511 = vrot.slane %v1441, 2
        %v1512 = vrot.slane %v1442, 2
        %v1513 = vrot.slane %v1443, 2
        %v1514 = vsel %vm808, %v1511, %v1513
        %v1515 = vrot.slane %v1444, 2
        %v1516 = vsel %vm808, %v1512, %v1515
        %v1517 = vrot.slane %v1445, 2
        %v1518 = vrot.slane %v1446, 2
        %v1519 = vrot.slane %v1447, 2
        %v1520 = vsel %vm808, %v1517, %v1519
        %v1521 = vrot.slane %v1448, 2
        %v1522 = vsel %vm808, %v1518, %v1521
        %v1523 = vrot.slane %v1449, 2
        %v1524 = vrot.slane %v1450, 2
        %v1525 = vrot.slane %v1451, 2
        %v1526 = vsel %vm808, %v1523, %v1525
        %v1527 = vrot.slane %v1452, 2
        %v1528 = vsel %vm808, %v1524, %v1527
        %v1529 = vrot.slane %v1453, 2
        %v1530 = vrot.slane %v1454, 2
        %v1531 = vrot.slane %v1455, 2
        %v1532 = vsel %vm808, %v1529, %v1531
        %v1533 = vrot.slane %v1456, 2
        %v1534 = vsel %vm808, %v1530, %v1533
        %v1535 = vrot.slane %v1457, 2
        %v1536 = vrot.slane %v1458, 2
        %v1537 = vrot.slane %v1459, 2
        %v1538 = vsel %vm808, %v1535, %v1537
        %v1539 = vrot.slane %v1460, 2
        %v1540 = vsel %vm808, %v1536, %v1539
        %v1573 = vadd.f32 %v1395, %v1493
        %v1574 = vadd.f32 %v1396, %v1494
        %v1575 = vadd.f32 %v1397, %v1496
        %v1576 = vadd.f32 %v1398, %v1498
        %v1577 = vadd.f32 %v1399, %v1499
        %v1578 = vadd.f32 %v1400, %v1500
        %v1579 = vadd.f32 %v1401, %v1502
        %v1580 = vadd.f32 %v1402, %v1504
        %v1581 = vadd.f32 %v1403, %v1505
        %v1582 = vadd.f32 %v1404, %v1506
        %v1583 = vadd.f32 %v1405, %v1508
        %v1584 = vadd.f32 %v1406, %v1510
        %v1585 = vadd.f32 %v1407, %v1511
        %v1586 = vadd.f32 %v1408, %v1512
        %v1587 = vadd.f32 %v1409, %v1514
        %v1588 = vadd.f32 %v1410, %v1516
        %v1589 = vadd.f32 %v1411, %v1517
        %v1590 = vadd.f32 %v1412, %v1518
        %v1591 = vadd.f32 %v1413, %v1520
        %v1592 = vadd.f32 %v1414, %v1522
        %v1593 = vadd.f32 %v1415, %v1523
        %v1594 = vadd.f32 %v1416, %v1524
        %v1595 = vadd.f32 %v1417, %v1526
        %v1596 = vadd.f32 %v1418, %v1528
        %v1597 = vadd.f32 %v1419, %v1529
        %v1598 = vadd.f32 %v1420, %v1530
        %v1599 = vadd.f32 %v1421, %v1532
        %v1600 = vadd.f32 %v1422, %v1534
        %v1601 = vadd.f32 %v1423, %v1535
        %v1602 = vadd.f32 %v1424, %v1536
        %v1603 = vadd.f32 %v1425, %v1538
        %v1604 = vadd.f32 %v1426, %v1540
        %v1605 = vld [vmem:[%s4] sm:$0x3]
        %v1607 = vperm.slane %v1605, 0
        %v1608 = vperm.slane %v1605, 1
        %v1611 = vadd.f32 %v1573, %v1607
        %v1612 = vadd.f32 %v1574, %v1608
        %v1613 = vadd.f32 %v1575, %v1607
        %v1614 = vadd.f32 %v1576, %v1608
        %v1615 = vadd.f32 %v1577, %v1607
        %v1616 = vadd.f32 %v1578, %v1608
        %v1617 = vadd.f32 %v1579, %v1607
        %v1618 = vadd.f32 %v1580, %v1608
        %v1619 = vadd.f32 %v1581, %v1607
        %v1620 = vadd.f32 %v1582, %v1608
        %v1621 = vadd.f32 %v1583, %v1607
        %v1622 = vadd.f32 %v1584, %v1608
        %v1623 = vadd.f32 %v1585, %v1607
        %v1624 = vadd.f32 %v1586, %v1608
        %v1625 = vadd.f32 %v1587, %v1607
        %v1626 = vadd.f32 %v1588, %v1608
        %v1627 = vadd.f32 %v1589, %v1607
        %v1628 = vadd.f32 %v1590, %v1608
        %v1629 = vadd.f32 %v1591, %v1607
        %v1630 = vadd.f32 %v1592, %v1608
        %v1631 = vadd.f32 %v1593, %v1607
        %v1632 = vadd.f32 %v1594, %v1608
        %v1633 = vadd.f32 %v1595, %v1607
        %v1634 = vadd.f32 %v1596, %v1608
        %v1635 = vadd.f32 %v1597, %v1607
        %v1636 = vadd.f32 %v1598, %v1608
        %v1637 = vadd.f32 %v1599, %v1607
        %v1638 = vadd.f32 %v1600, %v1608
        %v1639 = vadd.f32 %v1601, %v1607
        %v1640 = vadd.f32 %v1602, %v1608
        %v1641 = vadd.f32 %v1603, %v1607
        %v1642 = vadd.f32 %v1604, %v1608
        %v1643 = vmax.f32 %v1611, 0.0
        %v1644 = vmax.f32 %v1612, 0.0
        %v1645 = vmax.f32 %v1613, 0.0
        %v1646 = vmax.f32 %v1614, 0.0
        %v1647 = vmax.f32 %v1615, 0.0
        %v1648 = vmax.f32 %v1616, 0.0
        %v1649 = vmax.f32 %v1617, 0.0
        %v1650 = vmax.f32 %v1618, 0.0
        %v1651 = vmax.f32 %v1619, 0.0
        %v1652 = vmax.f32 %v1620, 0.0
        %v1653 = vmax.f32 %v1621, 0.0
        %v1654 = vmax.f32 %v1622, 0.0
        %v1655 = vmax.f32 %v1623, 0.0
        %v1656 = vmax.f32 %v1624, 0.0
        %v1657 = vmax.f32 %v1625, 0.0
        %v1658 = vmax.f32 %v1626, 0.0
        %v1659 = vmax.f32 %v1627, 0.0
        %v1660 = vmax.f32 %v1628, 0.0
        %v1661 = vmax.f32 %v1629, 0.0
        %v1662 = vmax.f32 %v1630, 0.0
        %v1663 = vmax.f32 %v1631, 0.0
        %v1664 = vmax.f32 %v1632, 0.0
        %v1665 = vmax.f32 %v1633, 0.0
        %v1666 = vmax.f32 %v1634, 0.0
        %v1667 = vmax.f32 %v1635, 0.0
        %v1668 = vmax.f32 %v1636, 0.0
        %v1669 = vmax.f32 %v1637, 0.0
        %v1670 = vmax.f32 %v1638, 0.0
        %v1671 = vmax.f32 %v1639, 0.0
        %v1672 = vmax.f32 %v1640, 0.0
        %v1673 = vmax.f32 %v1641, 0.0
        %v1674 = vmax.f32 %v1642, 0.0
        %v1675 = vmin.f32 %v1643, 6.0
        %v1676 = vmin.f32 %v1644, 6.0
        %v1677 = vmin.f32 %v1645, 6.0
        %v1678 = vmin.f32 %v1646, 6.0
        %v1679 = vmin.f32 %v1647, 6.0
        %v1680 = vmin.f32 %v1648, 6.0
        %v1681 = vmin.f32 %v1649, 6.0
        %v1682 = vmin.f32 %v1650, 6.0
        %v1683 = vmin.f32 %v1651, 6.0
        %v1684 = vmin.f32 %v1652, 6.0
        %v1685 = vmin.f32 %v1653, 6.0
        %v1686 = vmin.f32 %v1654, 6.0
        %v1687 = vmin.f32 %v1655, 6.0
        %v1688 = vmin.f32 %v1656, 6.0
        %v1689 = vmin.f32 %v1657, 6.0
        %v1690 = vmin.f32 %v1658, 6.0
        %v1691 = vmin.f32 %v1659, 6.0
        %v1692 = vmin.f32 %v1660, 6.0
        %v1693 = vmin.f32 %v1661, 6.0
        %v1694 = vmin.f32 %v1662, 6.0
        %v1695 = vmin.f32 %v1663, 6.0
        %v1696 = vmin.f32 %v1664, 6.0
        %v1697 = vmin.f32 %v1665, 6.0
        %v1698 = vmin.f32 %v1666, 6.0
        %v1699 = vmin.f32 %v1667, 6.0
        %v1700 = vmin.f32 %v1668, 6.0
        %v1701 = vmin.f32 %v1669, 6.0
        %v1702 = vmin.f32 %v1670, 6.0
        %v1703 = vmin.f32 %v1671, 6.0
        %v1704 = vmin.f32 %v1672, 6.0
        %v1705 = vmin.f32 %v1673, 6.0
        %v1706 = vmin.f32 %v1674, 6.0
        %vm1739 = vcmask 1040384
        %v1740 = vrot.slane %v1675, 7
        %v1741 = vrot.slane %v1677, 7
        %v1742 = vsel %vm1739, %v1740, %v1741
        %v1743 = vrot.slane %v1676, 7
        %v1744 = vrot.slane %v1678, 7
        %v1745 = vsel %vm1739, %v1743, %v1744
        %v1746 = vrot.slane %v1679, 7
        %v1747 = vrot.slane %v1681, 7
        %v1748 = vsel %vm1739, %v1746, %v1747
        %v1749 = vrot.slane %v1680, 7
        %v1750 = vrot.slane %v1682, 7
        %v1751 = vsel %vm1739, %v1749, %v1750
        %v1752 = vrot.slane %v1683, 7
        %v1753 = vrot.slane %v1685, 7
        %v1754 = vsel %vm1739, %v1752, %v1753
        %v1755 = vrot.slane %v1684, 7
        %v1756 = vrot.slane %v1686, 7
        %v1757 = vsel %vm1739, %v1755, %v1756
        %v1758 = vrot.slane %v1687, 7
        %v1759 = vrot.slane %v1689, 7
        %v1760 = vsel %vm1739, %v1758, %v1759
        %v1761 = vrot.slane %v1688, 7
        %v1762 = vrot.slane %v1690, 7
        %v1763 = vsel %vm1739, %v1761, %v1762
        %v1764 = vrot.slane %v1691, 7
        %v1765 = vrot.slane %v1693, 7
        %v1766 = vsel %vm1739, %v1764, %v1765
        %v1767 = vrot.slane %v1692, 7
        %v1768 = vrot.slane %v1694, 7
        %v1769 = vsel %vm1739, %v1767, %v1768
        %v1770 = vrot.slane %v1695, 7
        %v1771 = vrot.slane %v1697, 7
        %v1772 = vsel %vm1739, %v1770, %v1771
        %v1773 = vrot.slane %v1696, 7
        %v1774 = vrot.slane %v1698, 7
        %v1775 = vsel %vm1739, %v1773, %v1774
        %v1776 = vrot.slane %v1699, 7
        %v1777 = vrot.slane %v1701, 7
        %v1778 = vsel %vm1739, %v1776, %v1777
        %v1779 = vrot.slane %v1700, 7
        %v1780 = vrot.slane %v1702, 7
        %v1781 = vsel %vm1739, %v1779, %v1780
        %v1782 = vrot.slane %v1703, 7
        %v1783 = vrot.slane %v1705, 7
        %v1784 = vsel %vm1739, %v1782, %v1783
        %v1785 = vrot.slane %v1704, 7
        %v1786 = vrot.slane %v1706, 7
        %v1787 = vsel %vm1739, %v1785, %v1786
        %v1796 = vld [vmem:[%s5] sm:$0xff]
        %v1797 = vld [vmem:[%s5 + $0x8] sm:$0xff]
        %v1798 = vld [vmem:[%s5 + $0x10] sm:$0xff]
        %v1799 = vld [vmem:[%s5 + $0x18] sm:$0xff]
        %v1800 = vld [vmem:[%s5 + $0x20] sm:$0xff]
        %v1801 = vld [vmem:[%s5 + $0x28] sm:$0xff]
        %v1802 = vld [vmem:[%s5 + $0x30] sm:$0xff]
        %v1803 = vld [vmem:[%s5 + $0x38] sm:$0xff]
        %v1804 = vld [vmem:[%s5 + $0x40] sm:$0xff]
        %v1805 = vld [vmem:[%s5 + $0x48] sm:$0xff]
        %v1806 = vld [vmem:[%s5 + $0x50] sm:$0xff]
        %v1807 = vld [vmem:[%s5 + $0x58] sm:$0xff]
        %v1808 = vld [vmem:[%s5 + $0x60] sm:$0xff]
        %v1809 = vld [vmem:[%s5 + $0x68] sm:$0xff]
        %v1810 = vld [vmem:[%s5 + $0x70] sm:$0xff]
        %v1811 = vld [vmem:[%s5 + $0x78] sm:$0xff]
        %v1812 = vld [vmem:[%s5 + $0x80] sm:$0xff]
        %v1813 = vld [vmem:[%s5 + $0x88] sm:$0xff]
        %v1814 = vld [vmem:[%s6] sm:$0x1]
        %v1816 = vperm.slane %v1814, 0
        %v1818 = vsel %vm437, %v1745, 0
        %v1820 = vsel %vm437, %v1751, 0
        %v1822 = vsel %vm437, %v1757, 0
        %v1824 = vsel %vm437, %v1763, 0
        %v1826 = vsel %vm437, %v1769, 0
        %v1828 = vsel %vm437, %v1775, 0
        %v1830 = vsel %vm437, %v1781, 0
        %v1832 = vsel %vm437, %v1787, 0
        %1834 = vmatpush.msra.mxu0 %v1811
        %1835 = vmatpush.msra.mxu0 %v1810
        %1836 = vmatpush.msra.mxu0 %v1809
        %1837 = vmatpush.msra.mxu0 %v1808
        %1838 = vmatpush.msra.mxu0 %v1807
        %1839 = vmatpush.msra.mxu0 %v1806
        %1840 = vmatpush.msra.mxu0 %v1805
        %1841 = vmatpush.msra.mxu0 %v1804
        %1842 = vmatpush.msra.mxu0 %v1803
        %1843 = vmatpush.msra.mxu0 %v1802
        %1844 = vmatpush.msra.mxu0 %v1801
        %1845 = vmatpush.msra.mxu0 %v1800
        %1846 = vmatpush.msra.mxu0 %v1799
        %1847 = vmatpush.msra.mxu0 %v1798
        %1848 = vmatpush.msra.mxu0 %v1797
        %1849 = vmatpush.msra.mxu0 %v1796
        %1850 = vmatmul.f32.gmra.mxu0 %v1742
        %v1851 = vpop.f32.mrf.mxu0
        %v1852 = vadd.f32 %v1816, %v1851
        %1853 = vmatmul.f32.gmra.mxu0 %v1748
        %v1854 = vpop.f32.mrf.mxu0
        %v1855 = vadd.f32 %v1816, %v1854
        %1856 = vmatmul.f32.gmra.mxu0 %v1754
        %v1857 = vpop.f32.mrf.mxu0
        %v1858 = vadd.f32 %v1816, %v1857
        %1859 = vmatmul.f32.gmra.mxu0 %v1760
        %v1860 = vpop.f32.mrf.mxu0
        %v1861 = vadd.f32 %v1816, %v1860
        %1862 = vmatmul.f32.gmra.mxu0 %v1766
        %v1863 = vpop.f32.mrf.mxu0
        %v1864 = vadd.f32 %v1816, %v1863
        %1865 = vmatmul.f32.gmra.mxu0 %v1772
        %v1866 = vpop.f32.mrf.mxu0
        %v1867 = vadd.f32 %v1816, %v1866
        %1868 = vmatmul.f32.gmra.mxu0 %v1778
        %v1869 = vpop.f32.mrf.mxu0
        %v1870 = vadd.f32 %v1816, %v1869
        %1871 = vmatmul.f32.gmra.mxu0 %v1784
        %v1872 = vpop.f32.mrf.mxu0
        %v1873 = vadd.f32 %v1816, %v1872
        %1874 = vdwg.mxu0
        %1875 = vmatpush.msra.mxu0 0.0
        %1876 = vmatpush.msra.mxu0 0.0
        %1877 = vmatpush.msra.mxu0 0.0
        %1878 = vmatpush.msra.mxu0 0.0
        %1879 = vmatpush.msra.mxu0 0.0
        %1880 = vmatpush.msra.mxu0 0.0
        %1881 = vmatpush.msra.mxu0 0.0
        %1882 = vmatpush.msra.mxu0 0.0
        %1883 = vmatpush.msra.mxu0 0.0
        %1884 = vmatpush.msra.mxu0 0.0
        %1885 = vmatpush.msra.mxu0 0.0
        %1886 = vmatpush.msra.mxu0 0.0
        %1887 = vmatpush.msra.mxu0 0.0
        %1888 = vmatpush.msra.mxu0 0.0
        %1889 = vmatpush.msra.mxu0 %v1813
        %1890 = vmatpush.msra.mxu0 %v1812
        %1891 = vmatmul.f32.gmra.mxu0 %v1818
        %v1892 = vpop.f32.mrf.mxu0
        %v1893 = vadd.f32 %v1852, %v1892
        %1894 = vmatmul.f32.gmra.mxu0 %v1820
        %v1895 = vpop.f32.mrf.mxu0
        %v1896 = vadd.f32 %v1855, %v1895
        %1897 = vmatmul.f32.gmra.mxu0 %v1822
        %v1898 = vpop.f32.mrf.mxu0
        %v1899 = vadd.f32 %v1858, %v1898
        %1900 = vmatmul.f32.gmra.mxu0 %v1824
        %v1901 = vpop.f32.mrf.mxu0
        %v1902 = vadd.f32 %v1861, %v1901
        %1903 = vmatmul.f32.gmra.mxu0 %v1826
        %v1904 = vpop.f32.mrf.mxu0
        %v1905 = vadd.f32 %v1864, %v1904
        %1906 = vmatmul.f32.gmra.mxu0 %v1828
        %v1907 = vpop.f32.mrf.mxu0
        %v1908 = vadd.f32 %v1867, %v1907
        %1909 = vmatmul.f32.gmra.mxu0 %v1830
        %v1910 = vpop.f32.mrf.mxu0
        %v1911 = vadd.f32 %v1870, %v1910
        %1912 = vmatmul.f32.gmra.mxu0 %v1832
        %v1913 = vpop.f32.mrf.mxu0
        %v1914 = vadd.f32 %v1873, %v1913
        %1915 = vdwg.mxu0
        %v1916 = vadd.f32 %v1893, %v277
        %v1917 = vadd.f32 %v1896, %v278
        %v1918 = vadd.f32 %v1899, %v279
        %v1919 = vadd.f32 %v1902, %v280
        %v1920 = vadd.f32 %v1905, %v281
        %v1921 = vadd.f32 %v1908, %v282
        %v1922 = vadd.f32 %v1911, %v283
        %v1923 = vadd.f32 %v1914, %v284
        %1924 = vst.msk [vmem:[%s271] sm:$0xff] %vm297, %v1916
        %1925 = vst.msk [vmem:[%s271 + $0x8] sm:$0xff] %vm297, %v1917
        %1926 = vst.msk [vmem:[%s271 + $0x10] sm:$0xff] %vm297, %v1918
        %1927 = vst.msk [vmem:[%s271 + $0x18] sm:$0xff] %vm297, %v1919
        %1928 = vst.msk [vmem:[%s271 + $0x20] sm:$0xff] %vm297, %v1920
        %1929 = vst.msk [vmem:[%s271 + $0x28] sm:$0xff] %vm297, %v1921
        %1930 = vst.msk [vmem:[%s271 + $0x30] sm:$0xff] %vm297, %v1922
        %1931 = vst.msk [vmem:[%s271 + $0x38] sm:$0xff] %vm297, %v1923
        %s1932 = sand.u32 %s181, 1
        %s1933 = scalar_lea.sflag [#allocation4], %s1932
        %s1934 = sand.u32 %s181, 1
        %s1935 = smul.addr %s1934, 64
        %s1936 = scalar_lea.vmem [#allocation3], %s1935
        // Predicated region
        $region49: #{branch_forward.5} parent=47 // pred_check
          %p1937 = pneg %p191
        $region50: #{branch_forward.5} parent=47 // pred_check_branch
          %1939 = sbr.rel (%p1937) target = $region52
        $region51: #{branch_forward.5} parent=47 // pred_region
          %1941 = vsyncadd %s1933, 0
          %s1942 = smul.addr %s21, 8
          %s1943 = smul.addr %s1942, 8
          %s1944 = scalar_lea.hbm %s7, %s1943
          %s1945 = sshll.u32 %s1936, 4
          %s1946 = int_to_ptr.vmem [resolvable:$true] %s1945
          %s1947 = sshll.u32 %s1944, 4
          %s1948 = int_to_ptr.hbm [resolvable:$true] %s1947
          %1953 = dma.vmem_to_hbm [thread:$0]  %s1946, 1024, %s1948, %s1933, 128, 128, 8
        $region52: #{branch_forward.5} parent=47 // pred_fallthru
          _
      $region48: #{branch_forward.5} parent=5 // pred_fallthru
        _
      %p1954 = scmp.le.s32.totalorder 2, %s16
      // Predicated region
      $region53: #{branch_forward.5} parent=5 // pred_check
        %p1955 = pneg %p1954
      $region54: #{branch_forward.5} parent=5 // pred_check_branch
        %1957 = sbr.rel (%p1955) target = $region56
      $region55: #{branch_forward.5} parent=5 // pred_region
        %s1958 = ssub.s32 %s16, 2
        // Predicated region
        $region57: #{branch_forward.5} parent=55 // pred_check
          %p1959 = pneg %p197
        $region58: #{branch_forward.5} parent=55 // pred_check_branch
          %1961 = sbr.rel (%p1959) target = $region60
        $region59: #{branch_forward.5} parent=55 // pred_region
          %s1962 = sand.u32 %s182, 1
          %s1963 = scalar_lea.sflag [#allocation4], %s1962
          %s1964 = sand.u32 %s182, 1
          %s1965 = smul.addr %s1964, 64
          %s1966 = scalar_lea.vmem [#allocation3], %s1965
          %1968 = dma.done %s1963, 1024
        $region60: #{branch_forward.5} parent=55 // pred_fallthru
          _
      $region56: #{branch_forward.5} parent=5 // pred_fallthru
        _
    $region6: #{branch_forward.5} parent=1 // loop_footer
      %s20 = sadd.s32 1, %s16
    $region7: #{branch_forward.5} parent=1 // loop_footer_branch
      %15 = sbr.rel target = $region3
    $region8: #{branch_forward.5} parent=1 // loop_exit
      _
    %1969 = vsyncpa [#allocation4], 1
    %s1970 = scalar_lea.sflag [#allocation4], 1
    %1971 = vsyncpa %s1970, 1

// kernel: branch_forward.4
$region0: #{branch_forward.4}
  #allocation0 [shape = 'u32[]', space=smem, size = 0x4, offset = 0x4, fixed_abs, tag = 'smem constant byte address 0x4 - core index']
  #allocation1 [shape = 'u32[72,128]{1,0:T(1,128)}', space=vmem, size = 0x9000, scoped, tag = 'internal scratch']
  #allocation2 [shape = 'f32[18,32,96]{2,1,0:T(8,128)}', space=vmem, size = 0x48000, scoped, tag = 'scratch operand']
  %s0 = inlined_call_operand.vmem [shape: f32[2,16,16,16], index: 0, kind: input, shape index: {}]
  %s1 = inlined_call_operand.vmem [shape: f32[16,96], index: 1, kind: input, shape index: {}]
  %s2 = inlined_call_operand.vmem [shape: f32[1,96], index: 2, kind: input, shape index: {}]
  %s3 = inlined_call_operand.vmem [shape: f32[9,96], index: 3, kind: input, shape index: {}]
  %s4 = inlined_call_operand.vmem [shape: f32[1,96], index: 4, kind: input, shape index: {}]
  %s5 = inlined_call_operand.vmem [shape: f32[96,24], index: 5, kind: input, shape index: {}]
  %s6 = inlined_call_operand.vmem [shape: f32[1,24], index: 6, kind: input, shape index: {}]
  %s7 = inlined_call_operand.vmem [shape: f32[2,16,16,24], index: 7, kind: output, shape index: {}]
  %s8 = sld [smem:[#allocation0]]
  $region61: #{branch_forward.4} parent=0
    _
  %s10 = ssub.s32 1, %s8
  %s11 = scalar_select 0, %s10, %s8
  loop: start=0, step=1, limit=4
  $region2: #{branch_forward.4} parent=0 // loop_pre_header
    _
  $region3: #{branch_forward.4} parent=0 // loop_header
    %s13 = sphi 0, %s17
    %p14 = scmp.ge.s32.totalorder %s13, 4
    %s23 = sphi 0, %s25
    %s26 = sphi 0, %s23
    %s27 = sphi 0, %s26
    %s43 = sphi 0, %s27
    %s47 = sphi 0, %s47
    %s49 = sphi 0, %s47
    %s50 = sphi 0, %s49
    %s64 = sphi 0, %s50
    %s68 = sphi 0, %s68
    %s70 = sphi 0, %s68
    %s71 = sphi 0, %s70
    %s85 = sphi 0, %s71
    %s89 = sphi 0, %s89
    %s91 = sphi 0, %s89
    %s92 = sphi 0, %s91
    %s106 = sphi 0, %s92
    %s110 = sphi 0, %s110
    %s112 = sphi 0, %s110
    %s113 = sphi 0, %s112
    %s127 = sphi 0, %s113
    %s131 = sphi 0, %s131
    %s133 = sphi 0, %s131
    %s134 = sphi 0, %s133
    %s148 = sphi 0, %s134
    %s152 = sphi 0, %s152
    %s154 = sphi 0, %s152
    %s155 = sphi 0, %s154
    %s169 = sphi 0, %s155
    %s175 = sphi 0, %s177
    %s178 = sphi 0, %s175
    %s179 = sphi 0, %s178
    %s195 = sphi 0, %s179
  $region4: #{branch_forward.4} parent=0 // loop_header_branch
    %16 = sbr.rel (%p14) target = $region8
  $region5: #{branch_forward.4} parent=0 // loop_body
    %s18 = ssub.s32 %s13, 1
    %s19 = ssub.s32 %s13, 2
    %s20 = sadd.s32 %s13, 1
    %s21 = ssub.s32 %s13, %s20
    %p22 = scmp.eq.s32.totalorder %s21, 0
    %s24 = sadd.s32 %s23, 1
    %s25 = scalar_select %p22, %s23, %s24
    %p28 = pneg %p22
    %p29 = scmp.eq.s32.totalorder %s13, 1
    %p30 = por %p28, %p29
    %p31 = scmp.ne.s32.totalorder %s23, %s26
    %p32 = scmp.eq.s32.totalorder %s13, 0
    %p33 = por %p31, %p32
    %p34 = scmp.ne.s32.totalorder %s23, %s26
    %p35 = scmp.eq.s32.totalorder %s18, 1
    %p36 = por %p34, %p35
    %p37 = scmp.ne.s32.totalorder %s26, %s27
    %p38 = scmp.eq.s32.totalorder %s18, 0
    %p39 = por %p37, %p38
    %p40 = scmp.ne.s32.totalorder %s26, %s27
    %p41 = scmp.eq.s32.totalorder %s19, 1
    %p42 = por %p40, %p41
    %p44 = scmp.ne.s32.totalorder %s27, %s43
    %p45 = scmp.eq.s32.totalorder %s19, 0
    %p46 = por %p44, %p45
    %s48 = sadd.s32 %s47, 1
    %p51 = scmp.eq.s32.totalorder %s13, 1
    %p52 = scmp.ne.s32.totalorder %s47, %s49
    %p53 = scmp.eq.s32.totalorder %s13, 0
    %p54 = por %p52, %p53
    %p55 = scmp.ne.s32.totalorder %s47, %s49
    %p56 = scmp.eq.s32.totalorder %s18, 1
    %p57 = por %p55, %p56
    %p58 = scmp.ne.s32.totalorder %s49, %s50
    %p59 = scmp.eq.s32.totalorder %s18, 0
    %p60 = por %p58, %p59
    %p61 = scmp.ne.s32.totalorder %s49, %s50
    %p62 = scmp.eq.s32.totalorder %s19, 1
    %p63 = por %p61, %p62
    %p65 = scmp.ne.s32.totalorder %s50, %s64
    %p66 = scmp.eq.s32.totalorder %s19, 0
    %p67 = por %p65, %p66
    %s69 = sadd.s32 %s68, 1
    %p72 = scmp.eq.s32.totalorder %s13, 1
    %p73 = scmp.ne.s32.totalorder %s68, %s70
    %p74 = scmp.eq.s32.totalorder %s13, 0
    %p75 = por %p73, %p74
    %p76 = scmp.ne.s32.totalorder %s68, %s70
    %p77 = scmp.eq.s32.totalorder %s18, 1
    %p78 = por %p76, %p77
    %p79 = scmp.ne.s32.totalorder %s70, %s71
    %p80 = scmp.eq.s32.totalorder %s18, 0
    %p81 = por %p79, %p80
    %p82 = scmp.ne.s32.totalorder %s70, %s71
    %p83 = scmp.eq.s32.totalorder %s19, 1
    %p84 = por %p82, %p83
    %p86 = scmp.ne.s32.totalorder %s71, %s85
    %p87 = scmp.eq.s32.totalorder %s19, 0
    %p88 = por %p86, %p87
    %s90 = sadd.s32 %s89, 1
    %p93 = scmp.eq.s32.totalorder %s13, 1
    %p94 = scmp.ne.s32.totalorder %s89, %s91
    %p95 = scmp.eq.s32.totalorder %s13, 0
    %p96 = por %p94, %p95
    %p97 = scmp.ne.s32.totalorder %s89, %s91
    %p98 = scmp.eq.s32.totalorder %s18, 1
    %p99 = por %p97, %p98
    %p100 = scmp.ne.s32.totalorder %s91, %s92
    %p101 = scmp.eq.s32.totalorder %s18, 0
    %p102 = por %p100, %p101
    %p103 = scmp.ne.s32.totalorder %s91, %s92
    %p104 = scmp.eq.s32.totalorder %s19, 1
    %p105 = por %p103, %p104
    %p107 = scmp.ne.s32.totalorder %s92, %s106
    %p108 = scmp.eq.s32.totalorder %s19, 0
    %p109 = por %p107, %p108
    %s111 = sadd.s32 %s110, 1
    %p114 = scmp.eq.s32.totalorder %s13, 1
    %p115 = scmp.ne.s32.totalorder %s110, %s112
    %p116 = scmp.eq.s32.totalorder %s13, 0
    %p117 = por %p115, %p116
    %p118 = scmp.ne.s32.totalorder %s110, %s112
    %p119 = scmp.eq.s32.totalorder %s18, 1
    %p120 = por %p118, %p119
    %p121 = scmp.ne.s32.totalorder %s112, %s113
    %p122 = scmp.eq.s32.totalorder %s18, 0
    %p123 = por %p121, %p122
    %p124 = scmp.ne.s32.totalorder %s112, %s113
    %p125 = scmp.eq.s32.totalorder %s19, 1
    %p126 = por %p124, %p125
    %p128 = scmp.ne.s32.totalorder %s113, %s127
    %p129 = scmp.eq.s32.totalorder %s19, 0
    %p130 = por %p128, %p129
    %s132 = sadd.s32 %s131, 1
    %p135 = scmp.eq.s32.totalorder %s13, 1
    %p136 = scmp.ne.s32.totalorder %s131, %s133
    %p137 = scmp.eq.s32.totalorder %s13, 0
    %p138 = por %p136, %p137
    %p139 = scmp.ne.s32.totalorder %s131, %s133
    %p140 = scmp.eq.s32.totalorder %s18, 1
    %p141 = por %p139, %p140
    %p142 = scmp.ne.s32.totalorder %s133, %s134
    %p143 = scmp.eq.s32.totalorder %s18, 0
    %p144 = por %p142, %p143
    %p145 = scmp.ne.s32.totalorder %s133, %s134
    %p146 = scmp.eq.s32.totalorder %s19, 1
    %p147 = por %p145, %p146
    %p149 = scmp.ne.s32.totalorder %s134, %s148
    %p150 = scmp.eq.s32.totalorder %s19, 0
    %p151 = por %p149, %p150
    %s153 = sadd.s32 %s152, 1
    %p156 = scmp.eq.s32.totalorder %s13, 1
    %p157 = scmp.ne.s32.totalorder %s152, %s154
    %p158 = scmp.eq.s32.totalorder %s13, 0
    %p159 = por %p157, %p158
    %p160 = scmp.ne.s32.totalorder %s152, %s154
    %p161 = scmp.eq.s32.totalorder %s18, 1
    %p162 = por %p160, %p161
    %p163 = scmp.ne.s32.totalorder %s154, %s155
    %p164 = scmp.eq.s32.totalorder %s18, 0
    %p165 = por %p163, %p164
    %p166 = scmp.ne.s32.totalorder %s154, %s155
    %p167 = scmp.eq.s32.totalorder %s19, 1
    %p168 = por %p166, %p167
    %p170 = scmp.ne.s32.totalorder %s155, %s169
    %p171 = scmp.eq.s32.totalorder %s19, 0
    %p172 = por %p170, %p171
    %s173 = ssub.s32 %s13, %s20
    %p174 = scmp.eq.s32.totalorder %s173, 0
    %s176 = sadd.s32 %s175, 1
    %s177 = scalar_select %p174, %s175, %s176
    %p180 = pneg %p174
    %p181 = scmp.eq.s32.totalorder %s13, 1
    %p182 = por %p180, %p181
    %p183 = scmp.ne.s32.totalorder %s175, %s178
    %p184 = scmp.eq.s32.totalorder %s13, 0
    %p185 = por %p183, %p184
    %p186 = scmp.ne.s32.totalorder %s175, %s178
    %p187 = scmp.eq.s32.totalorder %s18, 1
    %p188 = por %p186, %p187
    %p189 = scmp.ne.s32.totalorder %s178, %s179
    %p190 = scmp.eq.s32.totalorder %s18, 0
    %p191 = por %p189, %p190
    %p192 = scmp.ne.s32.totalorder %s178, %s179
    %p193 = scmp.eq.s32.totalorder %s19, 1
    %p194 = por %p192, %p193
    %p196 = scmp.ne.s32.totalorder %s179, %s195
    %p197 = scmp.eq.s32.totalorder %s19, 0
    %p198 = por %p196, %p197
    %p199 = scmp.le.s32.totalorder 1, %s13
    %p200 = scmp.lt.s32.totalorder %s13, 3
    %p201 = pnand %p199, %p200
    %p202 = pneg %p201
    // Predicated region
    $region9: #{branch_forward.4} parent=5 // pred_check
      _
    $region10: #{branch_forward.4} parent=5 // pred_check_branch
      %204 = sbr.rel (%p201) target = $region12
    $region11: #{branch_forward.4} parent=5 // pred_region
      %s205 = ssub.s32 %s13, 1
      // Predicated region
      $region13: #{branch_forward.4} parent=11 // pred_check
        %p206 = pneg %p60
      $region14: #{branch_forward.4} parent=11 // pred_check_branch
        %208 = sbr.rel (%p206) target = $region16
      $region15: #{branch_forward.4} parent=11 // pred_region
        _
      $region16: #{branch_forward.4} parent=11 // pred_fallthru
        _
      // Predicated region
      $region17: #{branch_forward.4} parent=11 // pred_check
        %p209 = pneg %p81
      $region18: #{branch_forward.4} parent=11 // pred_check_branch
        %211 = sbr.rel (%p209) target = $region20
      $region19: #{branch_forward.4} parent=11 // pred_region
        _
      $region20: #{branch_forward.4} parent=11 // pred_fallthru
        _
      // Predicated region
      $region21: #{branch_forward.4} parent=11 // pred_check
        %p212 = pneg %p102
      $region22: #{branch_forward.4} parent=11 // pred_check_branch
        %214 = sbr.rel (%p212) target = $region24
      $region23: #{branch_forward.4} parent=11 // pred_region
        _
      $region24: #{branch_forward.4} parent=11 // pred_fallthru
        _
      // Predicated region
      $region25: #{branch_forward.4} parent=11 // pred_check
        %p215 = pneg %p123
      $region26: #{branch_forward.4} parent=11 // pred_check_branch
        %217 = sbr.rel (%p215) target = $region28
      $region27: #{branch_forward.4} parent=11 // pred_region
        _
      $region28: #{branch_forward.4} parent=11 // pred_fallthru
        _
      // Predicated region
      $region29: #{branch_forward.4} parent=11 // pred_check
        %p218 = pneg %p144
      $region30: #{branch_forward.4} parent=11 // pred_check_branch
        %220 = sbr.rel (%p218) target = $region32
      $region31: #{branch_forward.4} parent=11 // pred_region
        _
      $region32: #{branch_forward.4} parent=11 // pred_fallthru
        _
      // Predicated region
      $region33: #{branch_forward.4} parent=11 // pred_check
        %p221 = pneg %p165
      $region34: #{branch_forward.4} parent=11 // pred_check_branch
        %223 = sbr.rel (%p221) target = $region36
      $region35: #{branch_forward.4} parent=11 // pred_region
        _
      $region36: #{branch_forward.4} parent=11 // pred_fallthru
        _
    $region12: #{branch_forward.4} parent=5 // pred_fallthru
      _
    %p224 = scmp.lt.s32.totalorder %s13, 2
    // Predicated region
    $region37: #{branch_forward.4} parent=5 // pred_check
      %p225 = pneg %p224
    $region38: #{branch_forward.4} parent=5 // pred_check_branch
      %227 = sbr.rel (%p225) target = $region40
    $region39: #{branch_forward.4} parent=5 // pred_region
      // Predicated region
      $region41: #{branch_forward.4} parent=39 // pred_check
        %p228 = pneg %p33
      $region42: #{branch_forward.4} parent=39 // pred_check_branch
        %230 = sbr.rel (%p228) target = $region44
      $region43: #{branch_forward.4} parent=39 // pred_region
        %p231 = scmp.lt.s32.totalorder %s13, 1
        %s232 = scalar_select %p231, %s13, 1
        %s233 = smul.addr %s232, 32
        %s234 = smul.addr %s233, 8
        %s235 = scalar_lea.vmem %s0, %s234
      $region44: #{branch_forward.4} parent=39 // pred_fallthru
        _
    $region40: #{branch_forward.4} parent=5 // pred_fallthru
      _
    %p236 = scmp.le.s32.totalorder 1, %s13
    %p237 = scmp.lt.s32.totalorder %s13, 3
    %p238 = pnand %p236, %p237
    %p239 = pneg %p238
    // Predicated region
    $region45: #{branch_forward.4} parent=5 // pred_check
      _
    $region46: #{branch_forward.4} parent=5 // pred_check_branch
      %241 = sbr.rel (%p238) target = $region48
    $region47: #{branch_forward.4} parent=5 // pred_region
      %s242 = ssub.s32 %s13, 1
      %p243 = scmp.lt.s32.totalorder %s18, 1
      %s244 = scalar_select %p243, %s18, 1
      %s245 = smul.addr %s244, 32
      %s246 = smul.addr %s245, 8
      %s247 = scalar_lea.vmem %s0, %s246
      %p248 = pneg %p39
      %p249 = pneg %p36
      %p250 = pneg %p60
      %p251 = pneg %p57
      %p252 = pneg %p81
      %p253 = pneg %p78
      %p254 = pneg %p102
      %p255 = pneg %p99
      %p256 = pneg %p123
      %p257 = pneg %p120
      %p258 = pneg %p144
      %p259 = pneg %p141
      %p260 = pneg %p165
      %p261 = pneg %p162
      %p262 = pneg %p191
      %p263 = pneg %p188
      %p264 = scmp.lt.s32.totalorder %s18, 1
      %s265 = scalar_select %p264, %s18, 1
      %s266 = smul.addr %s265, 32
      %s267 = smul.addr %s266, 8
      %s268 = scalar_lea.vmem %s7, %s267
      %p269 = scmp.lt.s32.totalorder %s18, 1
      %s270 = scalar_select %p269, %s18, 1
      %s271 = smul.addr %s270, 32
      %s272 = smul.addr %s271, 8
      %s273 = scalar_lea.vmem %s0, %s272
      %p274 = scmp.lt.s32.totalorder %s18, 1
      %s275 = scalar_select %p274, %s18, 1
      %s276 = smul.addr %s275, 32
      %s277 = smul.addr %s276, 8
      %s278 = scalar_lea.vmem %s7, %s277
      %v279 = vld [vmem:[%s273] sm:$0xff]
      %v280 = vld [vmem:[%s273 + $0x8] sm:$0xff]
      %v281 = vld [vmem:[%s273 + $0x10] sm:$0xff]
      %v282 = vld [vmem:[%s273 + $0x18] sm:$0xff]
      %v283 = vld [vmem:[%s273 + $0x20] sm:$0xff]
      %v284 = vld [vmem:[%s273 + $0x28] sm:$0xff]
      %v285 = vld [vmem:[%s273 + $0x30] sm:$0xff]
      %v286 = vld [vmem:[%s273 + $0x38] sm:$0xff]
      %v287 = vld [vmem:[%s273 + $0x40] sm:$0xff]
      %v288 = vld [vmem:[%s273 + $0x48] sm:$0xff]
      %v289 = vld [vmem:[%s273 + $0x50] sm:$0xff]
      %v290 = vld [vmem:[%s273 + $0x58] sm:$0xff]
      %v291 = vld [vmem:[%s273 + $0x60] sm:$0xff]
      %v292 = vld [vmem:[%s273 + $0x68] sm:$0xff]
      %v293 = vld [vmem:[%s273 + $0x70] sm:$0xff]
      %v294 = vld [vmem:[%s273 + $0x78] sm:$0xff]
      %v295 = vld [vmem:[%s273 + $0x80] sm:$0xff]
      %v296 = vld [vmem:[%s273 + $0x88] sm:$0xff]
      %v297 = vld [vmem:[%s273 + $0x90] sm:$0xff]
      %v298 = vld [vmem:[%s273 + $0x98] sm:$0xff]
      %v299 = vld [vmem:[%s273 + $0xa0] sm:$0xff]
      %v300 = vld [vmem:[%s273 + $0xa8] sm:$0xff]
      %v301 = vld [vmem:[%s273 + $0xb0] sm:$0xff]
      %v302 = vld [vmem:[%s273 + $0xb8] sm:$0xff]
      %v303 = vld [vmem:[%s273 + $0xc0] sm:$0xff]
      %v304 = vld [vmem:[%s273 + $0xc8] sm:$0xff]
      %v305 = vld [vmem:[%s273 + $0xd0] sm:$0xff]
      %v306 = vld [vmem:[%s273 + $0xd8] sm:$0xff]
      %v307 = vld [vmem:[%s273 + $0xe0] sm:$0xff]
      %v308 = vld [vmem:[%s273 + $0xe8] sm:$0xff]
      %v309 = vld [vmem:[%s273 + $0xf0] sm:$0xff]
      %v310 = vld [vmem:[%s273 + $0xf8] sm:$0xff]
      %v311 = vld [vmem:[%s1] sm:$0xff]
      %v312 = vld [vmem:[%s1 + $0x8] sm:$0xff]
      %v313 = vld [vmem:[%s2] sm:$0x1]
      %v315 = vperm.slane %v313, 0
      %vm317 = vcmask 130048
      %v319 = vsel %vm317, %v279, 0
      %v322 = vsel %vm317, %v280, 0
      %v325 = vsel %vm317, %v281, 0
      %v328 = vsel %vm317, %v282, 0
      %v331 = vsel %vm317, %v283, 0
      %v334 = vsel %vm317, %v284, 0
      %v337 = vsel %vm317, %v285, 0
      %v340 = vsel %vm317, %v286, 0
      %v343 = vsel %vm317, %v287, 0
      %v346 = vsel %vm317, %v288, 0
      %v349 = vsel %vm317, %v289, 0
      %v352 = vsel %vm317, %v290, 0
      %v355 = vsel %vm317, %v291, 0
      %v358 = vsel %vm317, %v292, 0
      %v361 = vsel %vm317, %v293, 0
      %v364 = vsel %vm317, %v294, 0
      %v367 = vsel %vm317, %v295, 0
      %v370 = vsel %vm317, %v296, 0
      %v373 = vsel %vm317, %v297, 0
      %v376 = vsel %vm317, %v298, 0
      %v379 = vsel %vm317, %v299, 0
      %v382 = vsel %vm317, %v300, 0
      %v385 = vsel %vm317, %v301, 0
      %v388 = vsel %vm317, %v302, 0
      %v391 = vsel %vm317, %v303, 0
      %v394 = vsel %vm317, %v304, 0
      %v397 = vsel %vm317, %v305, 0
      %v400 = vsel %vm317, %v306, 0
      %v403 = vsel %vm317, %v307, 0
      %v406 = vsel %vm317, %v308, 0
      %v409 = vsel %vm317, %v309, 0
      %v412 = vsel %vm317, %v310, 0
      %414 = vmatpush.msra.mxu0 0.0
      %415 = vmatpush.msra.mxu0 0.0
      %416 = vmatpush.msra.mxu0 0.0
      %417 = vmatpush.msra.mxu0 0.0
      %418 = vmatpush.msra.mxu0 0.0
      %419 = vmatpush.msra.mxu0 0.0
      %420 = vmatpush.msra.mxu0 0.0
      %421 = vmatpush.msra.mxu0 0.0
      %422 = vmatpush.msra.mxu0 0.0
      %423 = vmatpush.msra.mxu0 0.0
      %424 = vmatpush.msra.mxu0 0.0
      %425 = vmatpush.msra.mxu0 0.0
      %426 = vmatpush.msra.mxu0 0.0
      %427 = vmatpush.msra.mxu0 0.0
      %428 = vmatpush.msra.mxu0 %v312
      %429 = vmatpush.msra.mxu0 %v311
      %430 = vmatmul.f32.gmra.mxu0 %v319
      %v431 = vpop.f32.mrf.mxu0
      %v432 = vadd.f32 %v315, %v431
      %433 = vmatmul.f32.gmra.mxu0 %v322
      %v434 = vpop.f32.mrf.mxu0
      %v435 = vadd.f32 %v315, %v434
      %436 = vmatmul.f32.gmra.mxu0 %v325
      %v437 = vpop.f32.mrf.mxu0
      %v438 = vadd.f32 %v315, %v437
      %439 = vmatmul.f32.gmra.mxu0 %v328
      %v440 = vpop.f32.mrf.mxu0
      %v441 = vadd.f32 %v315, %v440
      %442 = vmatmul.f32.gmra.mxu0 %v331
      %v443 = vpop.f32.mrf.mxu0
      %v444 = vadd.f32 %v315, %v443
      %445 = vmatmul.f32.gmra.mxu0 %v334
      %v446 = vpop.f32.mrf.mxu0
      %v447 = vadd.f32 %v315, %v446
      %448 = vmatmul.f32.gmra.mxu0 %v337
      %v449 = vpop.f32.mrf.mxu0
      %v450 = vadd.f32 %v315, %v449
      %451 = vmatmul.f32.gmra.mxu0 %v340
      %v452 = vpop.f32.mrf.mxu0
      %v453 = vadd.f32 %v315, %v452
      %454 = vmatmul.f32.gmra.mxu0 %v343
      %v455 = vpop.f32.mrf.mxu0
      %v456 = vadd.f32 %v315, %v455
      %457 = vmatmul.f32.gmra.mxu0 %v346
      %v458 = vpop.f32.mrf.mxu0
      %v459 = vadd.f32 %v315, %v458
      %460 = vmatmul.f32.gmra.mxu0 %v349
      %v461 = vpop.f32.mrf.mxu0
      %v462 = vadd.f32 %v315, %v461
      %463 = vmatmul.f32.gmra.mxu0 %v352
      %v464 = vpop.f32.mrf.mxu0
      %v465 = vadd.f32 %v315, %v464
      %466 = vmatmul.f32.gmra.mxu0 %v355
      %v467 = vpop.f32.mrf.mxu0
      %v468 = vadd.f32 %v315, %v467
      %469 = vmatmul.f32.gmra.mxu0 %v358
      %v470 = vpop.f32.mrf.mxu0
      %v471 = vadd.f32 %v315, %v470
      %472 = vmatmul.f32.gmra.mxu0 %v361
      %v473 = vpop.f32.mrf.mxu0
      %v474 = vadd.f32 %v315, %v473
      %475 = vmatmul.f32.gmra.mxu0 %v364
      %v476 = vpop.f32.mrf.mxu0
      %v477 = vadd.f32 %v315, %v476
      %478 = vmatmul.f32.gmra.mxu0 %v367
      %v479 = vpop.f32.mrf.mxu0
      %v480 = vadd.f32 %v315, %v479
      %481 = vmatmul.f32.gmra.mxu0 %v370
      %v482 = vpop.f32.mrf.mxu0
      %v483 = vadd.f32 %v315, %v482
      %484 = vmatmul.f32.gmra.mxu0 %v373
      %v485 = vpop.f32.mrf.mxu0
      %v486 = vadd.f32 %v315, %v485
      %487 = vmatmul.f32.gmra.mxu0 %v376
      %v488 = vpop.f32.mrf.mxu0
      %v489 = vadd.f32 %v315, %v488
      %490 = vmatmul.f32.gmra.mxu0 %v379
      %v491 = vpop.f32.mrf.mxu0
      %v492 = vadd.f32 %v315, %v491
      %493 = vmatmul.f32.gmra.mxu0 %v382
      %v494 = vpop.f32.mrf.mxu0
      %v495 = vadd.f32 %v315, %v494
      %496 = vmatmul.f32.gmra.mxu0 %v385
      %v497 = vpop.f32.mrf.mxu0
      %v498 = vadd.f32 %v315, %v497
      %499 = vmatmul.f32.gmra.mxu0 %v388
      %v500 = vpop.f32.mrf.mxu0
      %v501 = vadd.f32 %v315, %v500
      %502 = vmatmul.f32.gmra.mxu0 %v391
      %v503 = vpop.f32.mrf.mxu0
      %v504 = vadd.f32 %v315, %v503
      %505 = vmatmul.f32.gmra.mxu0 %v394
      %v506 = vpop.f32.mrf.mxu0
      %v507 = vadd.f32 %v315, %v506
      %508 = vmatmul.f32.gmra.mxu0 %v397
      %v509 = vpop.f32.mrf.mxu0
      %v510 = vadd.f32 %v315, %v509
      %511 = vmatmul.f32.gmra.mxu0 %v400
      %v512 = vpop.f32.mrf.mxu0
      %v513 = vadd.f32 %v315, %v512
      %514 = vmatmul.f32.gmra.mxu0 %v403
      %v515 = vpop.f32.mrf.mxu0
      %v516 = vadd.f32 %v315, %v515
      %517 = vmatmul.f32.gmra.mxu0 %v406
      %v518 = vpop.f32.mrf.mxu0
      %v519 = vadd.f32 %v315, %v518
      %520 = vmatmul.f32.gmra.mxu0 %v409
      %v521 = vpop.f32.mrf.mxu0
      %v522 = vadd.f32 %v315, %v521
      %523 = vmatmul.f32.gmra.mxu0 %v412
      %v524 = vpop.f32.mrf.mxu0
      %v525 = vadd.f32 %v315, %v524
      %526 = vdwg.mxu0
      %v527 = vmax.f32 %v432, 0.0
      %v528 = vmax.f32 %v435, 0.0
      %v529 = vmax.f32 %v438, 0.0
      %v530 = vmax.f32 %v441, 0.0
      %v531 = vmax.f32 %v444, 0.0
      %v532 = vmax.f32 %v447, 0.0
      %v533 = vmax.f32 %v450, 0.0
      %v534 = vmax.f32 %v453, 0.0
      %v535 = vmax.f32 %v456, 0.0
      %v536 = vmax.f32 %v459, 0.0
      %v537 = vmax.f32 %v462, 0.0
      %v538 = vmax.f32 %v465, 0.0
      %v539 = vmax.f32 %v468, 0.0
      %v540 = vmax.f32 %v471, 0.0
      %v541 = vmax.f32 %v474, 0.0
      %v542 = vmax.f32 %v477, 0.0
      %v543 = vmax.f32 %v480, 0.0
      %v544 = vmax.f32 %v483, 0.0
      %v545 = vmax.f32 %v486, 0.0
      %v546 = vmax.f32 %v489, 0.0
      %v547 = vmax.f32 %v492, 0.0
      %v548 = vmax.f32 %v495, 0.0
      %v549 = vmax.f32 %v498, 0.0
      %v550 = vmax.f32 %v501, 0.0
      %v551 = vmax.f32 %v504, 0.0
      %v552 = vmax.f32 %v507, 0.0
      %v553 = vmax.f32 %v510, 0.0
      %v554 = vmax.f32 %v513, 0.0
      %v555 = vmax.f32 %v516, 0.0
      %v556 = vmax.f32 %v519, 0.0
      %v557 = vmax.f32 %v522, 0.0
      %v558 = vmax.f32 %v525, 0.0
      %v559 = vmin.f32 %v527, 6.0
      %v560 = vmin.f32 %v528, 6.0
      %v561 = vmin.f32 %v529, 6.0
      %v562 = vmin.f32 %v530, 6.0
      %v563 = vmin.f32 %v531, 6.0
      %v564 = vmin.f32 %v532, 6.0
      %v565 = vmin.f32 %v533, 6.0
      %v566 = vmin.f32 %v534, 6.0
      %v567 = vmin.f32 %v535, 6.0
      %v568 = vmin.f32 %v536, 6.0
      %v569 = vmin.f32 %v537, 6.0
      %v570 = vmin.f32 %v538, 6.0
      %v571 = vmin.f32 %v539, 6.0
      %v572 = vmin.f32 %v540, 6.0
      %v573 = vmin.f32 %v541, 6.0
      %v574 = vmin.f32 %v542, 6.0
      %v575 = vmin.f32 %v543, 6.0
      %v576 = vmin.f32 %v544, 6.0
      %v577 = vmin.f32 %v545, 6.0
      %v578 = vmin.f32 %v546, 6.0
      %v579 = vmin.f32 %v547, 6.0
      %v580 = vmin.f32 %v548, 6.0
      %v581 = vmin.f32 %v549, 6.0
      %v582 = vmin.f32 %v550, 6.0
      %v583 = vmin.f32 %v551, 6.0
      %v584 = vmin.f32 %v552, 6.0
      %v585 = vmin.f32 %v553, 6.0
      %v586 = vmin.f32 %v554, 6.0
      %v587 = vmin.f32 %v555, 6.0
      %v588 = vmin.f32 %v556, 6.0
      %v589 = vmin.f32 %v557, 6.0
      %v590 = vmin.f32 %v558, 6.0
      %vm591 = vcmask 785408
      %592 = vst.msk [vmem:[#allocation2] sm:$0xff] %vm591, 0.0
      %593 = vst.msk [vmem:[#allocation2 + $0x8] sm:$0xff] %vm591, 0.0
      %594 = vst.msk [vmem:[#allocation2 + $0x10] sm:$0xff] %vm591, 0.0
      %595 = vst.msk [vmem:[#allocation2 + $0x18] sm:$0xff] %vm591, 0.0
      %596 = vst.msk [vmem:[#allocation2 + $0x20] sm:$0xff] %vm591, 0.0
      %597 = vst.msk [vmem:[#allocation2 + $0x28] sm:$0xff] %vm591, 0.0
      %598 = vst.msk [vmem:[#allocation2 + $0x30] sm:$0xff] %vm591, 0.0
      %599 = vst.msk [vmem:[#allocation2 + $0x38] sm:$0xff] %vm591, 0.0
      %600 = vst.msk [vmem:[#allocation2 + $0x40] sm:$0xff] %vm591, 0.0
      %601 = vst.msk [vmem:[#allocation2 + $0x48] sm:$0xff] %vm591, 0.0
      %602 = vst.msk [vmem:[#allocation2 + $0x50] sm:$0xff] %vm591, 0.0
      %603 = vst.msk [vmem:[#allocation2 + $0x58] sm:$0xff] %vm591, 0.0
      %604 = vst.msk [vmem:[#allocation2 + $0x60] sm:$0xff] %vm591, 0.0
      %605 = vst.msk [vmem:[#allocation2 + $0x68] sm:$0xff] %vm591, 0.0
      %606 = vst.msk [vmem:[#allocation2 + $0x70] sm:$0xff] %vm591, 0.0
      %607 = vst.msk [vmem:[#allocation2 + $0x78] sm:$0xff] %vm591, 0.0
      %608 = vst.msk [vmem:[#allocation2 + $0x80] sm:$0xff] %vm591, 0.0
      %609 = vst.msk [vmem:[#allocation2 + $0x88] sm:$0xff] %vm591, 0.0
      %610 = vst.msk [vmem:[#allocation2 + $0x90] sm:$0xff] %vm591, 0.0
      %611 = vst.msk [vmem:[#allocation2 + $0x98] sm:$0xff] %vm591, 0.0
      %612 = vst.msk [vmem:[#allocation2 + $0xa0] sm:$0xff] %vm591, 0.0
      %613 = vst.msk [vmem:[#allocation2 + $0xa8] sm:$0xff] %vm591, 0.0
      %614 = vst.msk [vmem:[#allocation2 + $0xb0] sm:$0xff] %vm591, 0.0
      %615 = vst.msk [vmem:[#allocation2 + $0xb8] sm:$0xff] %vm591, 0.0
      %616 = vst.msk [vmem:[#allocation2 + $0xc0] sm:$0xff] %vm591, 0.0
      %617 = vst.msk [vmem:[#allocation2 + $0xc8] sm:$0xff] %vm591, 0.0
      %618 = vst.msk [vmem:[#allocation2 + $0xd0] sm:$0xff] %vm591, 0.0
      %619 = vst.msk [vmem:[#allocation2 + $0xd8] sm:$0xff] %vm591, 0.0
      %620 = vst.msk [vmem:[#allocation2 + $0xe0] sm:$0xff] %vm591, 0.0
      %621 = vst.msk [vmem:[#allocation2 + $0xe8] sm:$0xff] %vm591, 0.0
      %622 = vst.msk [vmem:[#allocation2 + $0xf0] sm:$0xff] %vm591, 0.0
      %623 = vst.msk [vmem:[#allocation2 + $0xf8] sm:$0xff] %vm591, 0.0
      %624 = vst.msk [vmem:[#allocation2 + $0x100] sm:$0xff] %vm591, 0.0
      %625 = vst.msk [vmem:[#allocation2 + $0x108] sm:$0xff] %vm591, 0.0
      %626 = vst.msk [vmem:[#allocation2 + $0x110] sm:$0xff] %vm591, 0.0
      %627 = vst.msk [vmem:[#allocation2 + $0x118] sm:$0xff] %vm591, 0.0
      %628 = vst.msk [vmem:[#allocation2 + $0x120] sm:$0xff] %vm591, 0.0
      %629 = vst.msk [vmem:[#allocation2 + $0x128] sm:$0xff] %vm591, 0.0
      %630 = vst.msk [vmem:[#allocation2 + $0x130] sm:$0xff] %vm591, 0.0
      %631 = vst.msk [vmem:[#allocation2 + $0x138] sm:$0xff] %vm591, 0.0
      %632 = vst.msk [vmem:[#allocation2 + $0x140] sm:$0xff] %vm591, 0.0
      %633 = vst.msk [vmem:[#allocation2 + $0x148] sm:$0xff] %vm591, 0.0
      %634 = vst.msk [vmem:[#allocation2 + $0x150] sm:$0xff] %vm591, 0.0
      %635 = vst.msk [vmem:[#allocation2 + $0x158] sm:$0xff] %vm591, 0.0
      %636 = vst.msk [vmem:[#allocation2 + $0x160] sm:$0xff] %vm591, 0.0
      %637 = vst.msk [vmem:[#allocation2 + $0x168] sm:$0xff] %vm591, 0.0
      %638 = vst.msk [vmem:[#allocation2 + $0x170] sm:$0xff] %vm591, 0.0
      %639 = vst.msk [vmem:[#allocation2 + $0x178] sm:$0xff] %vm591, 0.0
      %640 = vst.msk [vmem:[#allocation2 + $0x180] sm:$0xff] %vm591, 0.0
      %641 = vst.msk [vmem:[#allocation2 + $0x188] sm:$0xff] %vm591, 0.0
      %642 = vst.msk [vmem:[#allocation2 + $0x190] sm:$0xff] %vm591, 0.0
      %643 = vst.msk [vmem:[#allocation2 + $0x198] sm:$0xff] %vm591, 0.0
      %644 = vst.msk [vmem:[#allocation2 + $0x1a0] sm:$0xff] %vm591, 0.0
      %645 = vst.msk [vmem:[#allocation2 + $0x1a8] sm:$0xff] %vm591, 0.0
      %646 = vst.msk [vmem:[#allocation2 + $0x1b0] sm:$0xff] %vm591, 0.0
      %647 = vst.msk [vmem:[#allocation2 + $0x1b8] sm:$0xff] %vm591, 0.0
      %648 = vst.msk [vmem:[#allocation2 + $0x1c0] sm:$0xff] %vm591, 0.0
      %649 = vst.msk [vmem:[#allocation2 + $0x1c8] sm:$0xff] %vm591, 0.0
      %650 = vst.msk [vmem:[#allocation2 + $0x1d0] sm:$0xff] %vm591, 0.0
      %651 = vst.msk [vmem:[#allocation2 + $0x1d8] sm:$0xff] %vm591, 0.0
      %652 = vst.msk [vmem:[#allocation2 + $0x1e0] sm:$0xff] %vm591, 0.0
      %653 = vst.msk [vmem:[#allocation2 + $0x1e8] sm:$0xff] %vm591, 0.0
      %654 = vst.msk [vmem:[#allocation2 + $0x1f0] sm:$0xff] %vm591, 0.0
      %655 = vst.msk [vmem:[#allocation2 + $0x1f8] sm:$0xff] %vm591, 0.0
      %656 = vst.msk [vmem:[#allocation2 + $0x200] sm:$0xff] %vm591, 0.0
      %657 = vst.msk [vmem:[#allocation2 + $0x208] sm:$0xff] %vm591, 0.0
      %658 = vst.msk [vmem:[#allocation2 + $0x210] sm:$0xff] %vm591, 0.0
      %659 = vst.msk [vmem:[#allocation2 + $0x218] sm:$0xff] %vm591, 0.0
      %660 = vst.msk [vmem:[#allocation2 + $0x220] sm:$0xff] %vm591, 0.0
      %661 = vst.msk [vmem:[#allocation2 + $0x228] sm:$0xff] %vm591, 0.0
      %662 = vst.msk [vmem:[#allocation2 + $0x230] sm:$0xff] %vm591, 0.0
      %663 = vst.msk [vmem:[#allocation2 + $0x238] sm:$0xff] %vm591, 0.0
      %s664 = scalar_lea.vmem [#allocation2], 32
      %665 = vst.msk [vmem:[%s664 + $0x8] sm:$0xff] %vm591, %v559
      %666 = vst.msk [vmem:[%s664 + $0x10] sm:$0xff] %vm591, %v560
      %667 = vst.msk [vmem:[%s664 + $0x28] sm:$0xff] %vm591, %v561
      %668 = vst.msk [vmem:[%s664 + $0x30] sm:$0xff] %vm591, %v562
      %669 = vst.msk [vmem:[%s664 + $0x48] sm:$0xff] %vm591, %v563
      %670 = vst.msk [vmem:[%s664 + $0x50] sm:$0xff] %vm591, %v564
      %671 = vst.msk [vmem:[%s664 + $0x68] sm:$0xff] %vm591, %v565
      %672 = vst.msk [vmem:[%s664 + $0x70] sm:$0xff] %vm591, %v566
      %673 = vst.msk [vmem:[%s664 + $0x88] sm:$0xff] %vm591, %v567
      %674 = vst.msk [vmem:[%s664 + $0x90] sm:$0xff] %vm591, %v568
      %675 = vst.msk [vmem:[%s664 + $0xa8] sm:$0xff] %vm591, %v569
      %676 = vst.msk [vmem:[%s664 + $0xb0] sm:$0xff] %vm591, %v570
      %677 = vst.msk [vmem:[%s664 + $0xc8] sm:$0xff] %vm591, %v571
      %678 = vst.msk [vmem:[%s664 + $0xd0] sm:$0xff] %vm591, %v572
      %679 = vst.msk [vmem:[%s664 + $0xe8] sm:$0xff] %vm591, %v573
      %680 = vst.msk [vmem:[%s664 + $0xf0] sm:$0xff] %vm591, %v574
      %681 = vst.msk [vmem:[%s664 + $0x108] sm:$0xff] %vm591, %v575
      %682 = vst.msk [vmem:[%s664 + $0x110] sm:$0xff] %vm591, %v576
      %683 = vst.msk [vmem:[%s664 + $0x128] sm:$0xff] %vm591, %v577
      %684 = vst.msk [vmem:[%s664 + $0x130] sm:$0xff] %vm591, %v578
      %685 = vst.msk [vmem:[%s664 + $0x148] sm:$0xff] %vm591, %v579
      %686 = vst.msk [vmem:[%s664 + $0x150] sm:$0xff] %vm591, %v580
      %687 = vst.msk [vmem:[%s664 + $0x168] sm:$0xff] %vm591, %v581
      %688 = vst.msk [vmem:[%s664 + $0x170] sm:$0xff] %vm591, %v582
      %689 = vst.msk [vmem:[%s664 + $0x188] sm:$0xff] %vm591, %v583
      %690 = vst.msk [vmem:[%s664 + $0x190] sm:$0xff] %vm591, %v584
      %691 = vst.msk [vmem:[%s664 + $0x1a8] sm:$0xff] %vm591, %v585
      %692 = vst.msk [vmem:[%s664 + $0x1b0] sm:$0xff] %vm591, %v586
      %693 = vst.msk [vmem:[%s664 + $0x1c8] sm:$0xff] %vm591, %v587
      %694 = vst.msk [vmem:[%s664 + $0x1d0] sm:$0xff] %vm591, %v588
      %695 = vst.msk [vmem:[%s664 + $0x1e8] sm:$0xff] %vm591, %v589
      %696 = vst.msk [vmem:[%s664 + $0x1f0] sm:$0xff] %vm591, %v590
      %v697 = vld [vmem:[#allocation2] sm:$0xff]
      %v698 = vld [vmem:[#allocation2 + $0x8] sm:$0xff]
      %v699 = vld [vmem:[#allocation2 + $0x10] sm:$0xff]
      %v700 = vld [vmem:[#allocation2 + $0x18] sm:$0xff]
      %v701 = vld [vmem:[#allocation2 + $0x20] sm:$0xff]
      %v702 = vld [vmem:[#allocation2 + $0x28] sm:$0xff]
      %v703 = vld [vmem:[#allocation2 + $0x30] sm:$0xff]
      %v704 = vld [vmem:[#allocation2 + $0x38] sm:$0xff]
      %v705 = vld [vmem:[#allocation2 + $0x40] sm:$0xff]
      %v706 = vld [vmem:[#allocation2 + $0x48] sm:$0xff]
      %v707 = vld [vmem:[#allocation2 + $0x50] sm:$0xff]
      %v708 = vld [vmem:[#allocation2 + $0x58] sm:$0xff]
      %v709 = vld [vmem:[#allocation2 + $0x60] sm:$0xff]
      %v710 = vld [vmem:[#allocation2 + $0x68] sm:$0xff]
      %v711 = vld [vmem:[#allocation2 + $0x70] sm:$0xff]
      %v712 = vld [vmem:[#allocation2 + $0x78] sm:$0xff]
      %v713 = vld [vmem:[#allocation2 + $0x80] sm:$0xff]
      %v714 = vld [vmem:[#allocation2 + $0x88] sm:$0xff]
      %v715 = vld [vmem:[#allocation2 + $0x90] sm:$0xff]
      %v716 = vld [vmem:[#allocation2 + $0x98] sm:$0xff]
      %v717 = vld [vmem:[#allocation2 + $0xa0] sm:$0xff]
      %v718 = vld [vmem:[#allocation2 + $0xa8] sm:$0xff]
      %v719 = vld [vmem:[#allocation2 + $0xb0] sm:$0xff]
      %v720 = vld [vmem:[#allocation2 + $0xb8] sm:$0xff]
      %v721 = vld [vmem:[#allocation2 + $0xc0] sm:$0xff]
      %v722 = vld [vmem:[#allocation2 + $0xc8] sm:$0xff]
      %v723 = vld [vmem:[#allocation2 + $0xd0] sm:$0xff]
      %v724 = vld [vmem:[#allocation2 + $0xd8] sm:$0xff]
      %v725 = vld [vmem:[#allocation2 + $0xe0] sm:$0xff]
      %v726 = vld [vmem:[#allocation2 + $0xe8] sm:$0xff]
      %v727 = vld [vmem:[#allocation2 + $0xf0] sm:$0xff]
      %v728 = vld [vmem:[#allocation2 + $0xf8] sm:$0xff]
      %v729 = vld [vmem:[#allocation2 + $0x100] sm:$0xff]
      %v730 = vld [vmem:[#allocation2 + $0x108] sm:$0xff]
      %v731 = vld [vmem:[#allocation2 + $0x110] sm:$0xff]
      %v732 = vld [vmem:[#allocation2 + $0x118] sm:$0xff]
      %v733 = vld [vmem:[#allocation2 + $0x120] sm:$0xff]
      %v734 = vld [vmem:[#allocation2 + $0x128] sm:$0xff]
      %v735 = vld [vmem:[#allocation2 + $0x130] sm:$0xff]
      %v736 = vld [vmem:[#allocation2 + $0x138] sm:$0xff]
      %v737 = vld [vmem:[#allocation2 + $0x140] sm:$0xff]
      %v738 = vld [vmem:[#allocation2 + $0x148] sm:$0xff]
      %v739 = vld [vmem:[#allocation2 + $0x150] sm:$0xff]
      %v740 = vld [vmem:[#allocation2 + $0x158] sm:$0xff]
      %v741 = vld [vmem:[#allocation2 + $0x160] sm:$0xff]
      %v742 = vld [vmem:[#allocation2 + $0x168] sm:$0xff]
      %v743 = vld [vmem:[#allocation2 + $0x170] sm:$0xff]
      %v744 = vld [vmem:[#allocation2 + $0x178] sm:$0xff]
      %v745 = vld [vmem:[#allocation2 + $0x180] sm:$0xff]
      %v746 = vld [vmem:[#allocation2 + $0x188] sm:$0xff]
      %v747 = vld [vmem:[#allocation2 + $0x190] sm:$0xff]
      %v748 = vld [vmem:[#allocation2 + $0x198] sm:$0xff]
      %v749 = vld [vmem:[#allocation2 + $0x1a0] sm:$0xff]
      %v750 = vld [vmem:[#allocation2 + $0x1a8] sm:$0xff]
      %v751 = vld [vmem:[#allocation2 + $0x1b0] sm:$0xff]
      %v752 = vld [vmem:[#allocation2 + $0x1b8] sm:$0xff]
      %v753 = vld [vmem:[#allocation2 + $0x1c0] sm:$0xff]
      %v754 = vld [vmem:[#allocation2 + $0x1c8] sm:$0xff]
      %v755 = vld [vmem:[#allocation2 + $0x1d0] sm:$0xff]
      %v756 = vld [vmem:[#allocation2 + $0x1d8] sm:$0xff]
      %v757 = vld [vmem:[#allocation2 + $0x1e0] sm:$0xff]
      %v758 = vld [vmem:[#allocation2 + $0x1e8] sm:$0xff]
      %v759 = vld [vmem:[#allocation2 + $0x1f0] sm:$0xff]
      %v760 = vld [vmem:[#allocation2 + $0x1f8] sm:$0xff]
      %v761 = vld [vmem:[#allocation2 + $0x200] sm:$0xff]
      %v762 = vld [vmem:[#allocation2 + $0x208] sm:$0xff]
      %v763 = vld [vmem:[#allocation2 + $0x210] sm:$0xff]
      %v764 = vld [vmem:[#allocation2 + $0x218] sm:$0xff]
      %v765 = vld [vmem:[#allocation2 + $0x220] sm:$0xff]
      %v766 = vld [vmem:[#allocation2 + $0x228] sm:$0xff]
      %v767 = vld [vmem:[#allocation2 + $0x230] sm:$0xff]
      %v768 = vld [vmem:[#allocation2 + $0x238] sm:$0xff]
      %v769 = vld [vmem:[%s3] sm:$0xff]
      %v770 = vld [vmem:[%s3 + $0x8] sm:$0x1]
      %v771 = vperm.slane %v769, 0
      %v772 = vmul.f32 %v697, %v771
      %v773 = vmul.f32 %v698, %v771
      %v774 = vmul.f32 %v699, %v771
      %v775 = vmul.f32 %v701, %v771
      %v776 = vmul.f32 %v702, %v771
      %v777 = vmul.f32 %v703, %v771
      %v778 = vmul.f32 %v705, %v771
      %v779 = vmul.f32 %v706, %v771
      %v780 = vmul.f32 %v707, %v771
      %v781 = vmul.f32 %v709, %v771
      %v782 = vmul.f32 %v710, %v771
      %v783 = vmul.f32 %v711, %v771
      %v784 = vmul.f32 %v713, %v771
      %v785 = vmul.f32 %v714, %v771
      %v786 = vmul.f32 %v715, %v771
      %v787 = vmul.f32 %v717, %v771
      %v788 = vmul.f32 %v718, %v771
      %v789 = vmul.f32 %v719, %v771
      %v790 = vmul.f32 %v721, %v771
      %v791 = vmul.f32 %v722, %v771
      %v792 = vmul.f32 %v723, %v771
      %v793 = vmul.f32 %v725, %v771
      %v794 = vmul.f32 %v726, %v771
      %v795 = vmul.f32 %v727, %v771
      %v796 = vmul.f32 %v729, %v771
      %v797 = vmul.f32 %v730, %v771
      %v798 = vmul.f32 %v731, %v771
      %v799 = vmul.f32 %v733, %v771
      %v800 = vmul.f32 %v734, %v771
      %v801 = vmul.f32 %v735, %v771
      %v802 = vmul.f32 %v737, %v771
      %v803 = vmul.f32 %v738, %v771
      %v804 = vmul.f32 %v739, %v771
      %v805 = vmul.f32 %v741, %v771
      %v806 = vmul.f32 %v742, %v771
      %v807 = vmul.f32 %v743, %v771
      %v808 = vmul.f32 %v745, %v771
      %v809 = vmul.f32 %v746, %v771
      %v810 = vmul.f32 %v747, %v771
      %v811 = vmul.f32 %v749, %v771
      %v812 = vmul.f32 %v750, %v771
      %v813 = vmul.f32 %v751, %v771
      %v814 = vmul.f32 %v753, %v771
      %v815 = vmul.f32 %v754, %v771
      %v816 = vmul.f32 %v755, %v771
      %v817 = vmul.f32 %v757, %v771
      %v818 = vmul.f32 %v758, %v771
      %v819 = vmul.f32 %v759, %v771
      %v820 = vadd.f32 %v772, 0.0
      %v821 = vadd.f32 %v773, 0.0
      %v822 = vadd.f32 %v774, 0.0
      %v823 = vadd.f32 %v775, 0.0
      %v824 = vadd.f32 %v776, 0.0
      %v825 = vadd.f32 %v777, 0.0
      %v826 = vadd.f32 %v778, 0.0
      %v827 = vadd.f32 %v779, 0.0
      %v828 = vadd.f32 %v780, 0.0
      %v829 = vadd.f32 %v781, 0.0
      %v830 = vadd.f32 %v782, 0.0
      %v831 = vadd.f32 %v783, 0.0
      %v832 = vadd.f32 %v784, 0.0
      %v833 = vadd.f32 %v785, 0.0
      %v834 = vadd.f32 %v786, 0.0
      %v835 = vadd.f32 %v787, 0.0
      %v836 = vadd.f32 %v788, 0.0
      %v837 = vadd.f32 %v789, 0.0
      %v838 = vadd.f32 %v790, 0.0
      %v839 = vadd.f32 %v791, 0.0
      %v840 = vadd.f32 %v792, 0.0
      %v841 = vadd.f32 %v793, 0.0
      %v842 = vadd.f32 %v794, 0.0
      %v843 = vadd.f32 %v795, 0.0
      %v844 = vadd.f32 %v796, 0.0
      %v845 = vadd.f32 %v797, 0.0
      %v846 = vadd.f32 %v798, 0.0
      %v847 = vadd.f32 %v799, 0.0
      %v848 = vadd.f32 %v800, 0.0
      %v849 = vadd.f32 %v801, 0.0
      %v850 = vadd.f32 %v802, 0.0
      %v851 = vadd.f32 %v803, 0.0
      %v852 = vadd.f32 %v804, 0.0
      %v853 = vadd.f32 %v805, 0.0
      %v854 = vadd.f32 %v806, 0.0
      %v855 = vadd.f32 %v807, 0.0
      %v856 = vadd.f32 %v808, 0.0
      %v857 = vadd.f32 %v809, 0.0
      %v858 = vadd.f32 %v810, 0.0
      %v859 = vadd.f32 %v811, 0.0
      %v860 = vadd.f32 %v812, 0.0
      %v861 = vadd.f32 %v813, 0.0
      %v862 = vadd.f32 %v814, 0.0
      %v863 = vadd.f32 %v815, 0.0
      %v864 = vadd.f32 %v816, 0.0
      %v865 = vadd.f32 %v817, 0.0
      %v866 = vadd.f32 %v818, 0.0
      %v867 = vadd.f32 %v819, 0.0
      %v868 = vperm.slane %v769, 1
      %v869 = vmul.f32 %v698, %v868
      %v870 = vmul.f32 %v699, %v868
      %v871 = vmul.f32 %v702, %v868
      %v872 = vmul.f32 %v703, %v868
      %v873 = vmul.f32 %v706, %v868
      %v874 = vmul.f32 %v707, %v868
      %v875 = vmul.f32 %v710, %v868
      %v876 = vmul.f32 %v711, %v868
      %v877 = vmul.f32 %v714, %v868
      %v878 = vmul.f32 %v715, %v868
      %v879 = vmul.f32 %v718, %v868
      %v880 = vmul.f32 %v719, %v868
      %v881 = vmul.f32 %v722, %v868
      %v882 = vmul.f32 %v723, %v868
      %v883 = vmul.f32 %v726, %v868
      %v884 = vmul.f32 %v727, %v868
      %v885 = vmul.f32 %v730, %v868
      %v886 = vmul.f32 %v731, %v868
      %v887 = vmul.f32 %v734, %v868
      %v888 = vmul.f32 %v735, %v868
      %v889 = vmul.f32 %v738, %v868
      %v890 = vmul.f32 %v739, %v868
      %v891 = vmul.f32 %v742, %v868
      %v892 = vmul.f32 %v743, %v868
      %v893 = vmul.f32 %v746, %v868
      %v894 = vmul.f32 %v747, %v868
      %v895 = vmul.f32 %v750, %v868
      %v896 = vmul.f32 %v751, %v868
      %v897 = vmul.f32 %v754, %v868
      %v898 = vmul.f32 %v755, %v868
      %v899 = vmul.f32 %v758, %v868
      %v900 = vmul.f32 %v759, %v868
      %vm933 = vcmask 1046528
      %v934 = vrot.slane %v869, 1
      %v935 = vrot.slane %v870, 1
      %v936 = vsel %vm933, %v934, %v935
      %v937 = vrot.slane %v871, 1
      %v938 = vrot.slane %v872, 1
      %v939 = vsel %vm933, %v937, %v938
      %v940 = vrot.slane %v873, 1
      %v941 = vrot.slane %v874, 1
      %v942 = vsel %vm933, %v940, %v941
      %v943 = vrot.slane %v875, 1
      %v944 = vrot.slane %v876, 1
      %v945 = vsel %vm933, %v943, %v944
      %v946 = vrot.slane %v877, 1
      %v947 = vrot.slane %v878, 1
      %v948 = vsel %vm933, %v946, %v947
      %v949 = vrot.slane %v879, 1
      %v950 = vrot.slane %v880, 1
      %v951 = vsel %vm933, %v949, %v950
      %v952 = vrot.slane %v881, 1
      %v953 = vrot.slane %v882, 1
      %v954 = vsel %vm933, %v952, %v953
      %v955 = vrot.slane %v883, 1
      %v956 = vrot.slane %v884, 1
      %v957 = vsel %vm933, %v955, %v956
      %v958 = vrot.slane %v885, 1
      %v959 = vrot.slane %v886, 1
      %v960 = vsel %vm933, %v958, %v959
      %v961 = vrot.slane %v887, 1
      %v962 = vrot.slane %v888, 1
      %v963 = vsel %vm933, %v961, %v962
      %v964 = vrot.slane %v889, 1
      %v965 = vrot.slane %v890, 1
      %v966 = vsel %vm933, %v964, %v965
      %v967 = vrot.slane %v891, 1
      %v968 = vrot.slane %v892, 1
      %v969 = vsel %vm933, %v967, %v968
      %v970 = vrot.slane %v893, 1
      %v971 = vrot.slane %v894, 1
      %v972 = vsel %vm933, %v970, %v971
      %v973 = vrot.slane %v895, 1
      %v974 = vrot.slane %v896, 1
      %v975 = vsel %vm933, %v973, %v974
      %v976 = vrot.slane %v897, 1
      %v977 = vrot.slane %v898, 1
      %v978 = vsel %vm933, %v976, %v977
      %v979 = vrot.slane %v899, 1
      %v980 = vrot.slane %v900, 1
      %v981 = vsel %vm933, %v979, %v980
      %v1030 = vadd.f32 %v820, %v934
      %v1031 = vadd.f32 %v821, %v936
      %v1032 = vadd.f32 %v822, %v935
      %v1033 = vadd.f32 %v823, %v937
      %v1034 = vadd.f32 %v824, %v939
      %v1035 = vadd.f32 %v825, %v938
      %v1036 = vadd.f32 %v826, %v940
      %v1037 = vadd.f32 %v827, %v942
      %v1038 = vadd.f32 %v828, %v941
      %v1039 = vadd.f32 %v829, %v943
      %v1040 = vadd.f32 %v830, %v945
      %v1041 = vadd.f32 %v831, %v944
      %v1042 = vadd.f32 %v832, %v946
      %v1043 = vadd.f32 %v833, %v948
      %v1044 = vadd.f32 %v834, %v947
      %v1045 = vadd.f32 %v835, %v949
      %v1046 = vadd.f32 %v836, %v951
      %v1047 = vadd.f32 %v837, %v950
      %v1048 = vadd.f32 %v838, %v952
      %v1049 = vadd.f32 %v839, %v954
      %v1050 = vadd.f32 %v840, %v953
      %v1051 = vadd.f32 %v841, %v955
      %v1052 = vadd.f32 %v842, %v957
      %v1053 = vadd.f32 %v843, %v956
      %v1054 = vadd.f32 %v844, %v958
      %v1055 = vadd.f32 %v845, %v960
      %v1056 = vadd.f32 %v846, %v959
      %v1057 = vadd.f32 %v847, %v961
      %v1058 = vadd.f32 %v848, %v963
      %v1059 = vadd.f32 %v849, %v962
      %v1060 = vadd.f32 %v850, %v964
      %v1061 = vadd.f32 %v851, %v966
      %v1062 = vadd.f32 %v852, %v965
      %v1063 = vadd.f32 %v853, %v967
      %v1064 = vadd.f32 %v854, %v969
      %v1065 = vadd.f32 %v855, %v968
      %v1066 = vadd.f32 %v856, %v970
      %v1067 = vadd.f32 %v857, %v972
      %v1068 = vadd.f32 %v858, %v971
      %v1069 = vadd.f32 %v859, %v973
      %v1070 = vadd.f32 %v860, %v975
      %v1071 = vadd.f32 %v861, %v974
      %v1072 = vadd.f32 %v862, %v976
      %v1073 = vadd.f32 %v863, %v978
      %v1074 = vadd.f32 %v864, %v977
      %v1075 = vadd.f32 %v865, %v979
      %v1076 = vadd.f32 %v866, %v981
      %v1077 = vadd.f32 %v867, %v980
      %v1078 = vperm.slane %v769, 2
      %v1079 = vmul.f32 %v698, %v1078
      %v1080 = vmul.f32 %v699, %v1078
      %v1081 = vmul.f32 %v700, %v1078
      %v1082 = vmul.f32 %v702, %v1078
      %v1083 = vmul.f32 %v703, %v1078
      %v1084 = vmul.f32 %v704, %v1078
      %v1085 = vmul.f32 %v706, %v1078
      %v1086 = vmul.f32 %v707, %v1078
      %v1087 = vmul.f32 %v708, %v1078
      %v1088 = vmul.f32 %v710, %v1078
      %v1089 = vmul.f32 %v711, %v1078
      %v1090 = vmul.f32 %v712, %v1078
      %v1091 = vmul.f32 %v714, %v1078
      %v1092 = vmul.f32 %v715, %v1078
      %v1093 = vmul.f32 %v716, %v1078
      %v1094 = vmul.f32 %v718, %v1078
      %v1095 = vmul.f32 %v719, %v1078
      %v1096 = vmul.f32 %v720, %v1078
      %v1097 = vmul.f32 %v722, %v1078
      %v1098 = vmul.f32 %v723, %v1078
      %v1099 = vmul.f32 %v724, %v1078
      %v1100 = vmul.f32 %v726, %v1078
      %v1101 = vmul.f32 %v727, %v1078
      %v1102 = vmul.f32 %v728, %v1078
      %v1103 = vmul.f32 %v730, %v1078
      %v1104 = vmul.f32 %v731, %v1078
      %v1105 = vmul.f32 %v732, %v1078
      %v1106 = vmul.f32 %v734, %v1078
      %v1107 = vmul.f32 %v735, %v1078
      %v1108 = vmul.f32 %v736, %v1078
      %v1109 = vmul.f32 %v738, %v1078
      %v1110 = vmul.f32 %v739, %v1078
      %v1111 = vmul.f32 %v740, %v1078
      %v1112 = vmul.f32 %v742, %v1078
      %v1113 = vmul.f32 %v743, %v1078
      %v1114 = vmul.f32 %v744, %v1078
      %v1115 = vmul.f32 %v746, %v1078
      %v1116 = vmul.f32 %v747, %v1078
      %v1117 = vmul.f32 %v748, %v1078
      %v1118 = vmul.f32 %v750, %v1078
      %v1119 = vmul.f32 %v751, %v1078
      %v1120 = vmul.f32 %v752, %v1078
      %v1121 = vmul.f32 %v754, %v1078
      %v1122 = vmul.f32 %v755, %v1078
      %v1123 = vmul.f32 %v756, %v1078
      %v1124 = vmul.f32 %v758, %v1078
      %v1125 = vmul.f32 %v759, %v1078
      %v1126 = vmul.f32 %v760, %v1078
      %vm1175 = vcmask 1045504
      %v1176 = vrot.slane %v1079, 2
      %v1177 = vrot.slane %v1080, 2
      %v1178 = vsel %vm1175, %v1176, %v1177
      %v1179 = vrot.slane %v1081, 2
      %v1180 = vsel %vm1175, %v1177, %v1179
      %v1181 = vrot.slane %v1082, 2
      %v1182 = vrot.slane %v1083, 2
      %v1183 = vsel %vm1175, %v1181, %v1182
      %v1184 = vrot.slane %v1084, 2
      %v1185 = vsel %vm1175, %v1182, %v1184
      %v1186 = vrot.slane %v1085, 2
      %v1187 = vrot.slane %v1086, 2
      %v1188 = vsel %vm1175, %v1186, %v1187
      %v1189 = vrot.slane %v1087, 2
      %v1190 = vsel %vm1175, %v1187, %v1189
      %v1191 = vrot.slane %v1088, 2
      %v1192 = vrot.slane %v1089, 2
      %v1193 = vsel %vm1175, %v1191, %v1192
      %v1194 = vrot.slane %v1090, 2
      %v1195 = vsel %vm1175, %v1192, %v1194
      %v1196 = vrot.slane %v1091, 2
      %v1197 = vrot.slane %v1092, 2
      %v1198 = vsel %vm1175, %v1196, %v1197
      %v1199 = vrot.slane %v1093, 2
      %v1200 = vsel %vm1175, %v1197, %v1199
      %v1201 = vrot.slane %v1094, 2
      %v1202 = vrot.slane %v1095, 2
      %v1203 = vsel %vm1175, %v1201, %v1202
      %v1204 = vrot.slane %v1096, 2
      %v1205 = vsel %vm1175, %v1202, %v1204
      %v1206 = vrot.slane %v1097, 2
      %v1207 = vrot.slane %v1098, 2
      %v1208 = vsel %vm1175, %v1206, %v1207
      %v1209 = vrot.slane %v1099, 2
      %v1210 = vsel %vm1175, %v1207, %v1209
      %v1211 = vrot.slane %v1100, 2
      %v1212 = vrot.slane %v1101, 2
      %v1213 = vsel %vm1175, %v1211, %v1212
      %v1214 = vrot.slane %v1102, 2
      %v1215 = vsel %vm1175, %v1212, %v1214
      %v1216 = vrot.slane %v1103, 2
      %v1217 = vrot.slane %v1104, 2
      %v1218 = vsel %vm1175, %v1216, %v1217
      %v1219 = vrot.slane %v1105, 2
      %v1220 = vsel %vm1175, %v1217, %v1219
      %v1221 = vrot.slane %v1106, 2
      %v1222 = vrot.slane %v1107, 2
      %v1223 = vsel %vm1175, %v1221, %v1222
      %v1224 = vrot.slane %v1108, 2
      %v1225 = vsel %vm1175, %v1222, %v1224
      %v1226 = vrot.slane %v1109, 2
      %v1227 = vrot.slane %v1110, 2
      %v1228 = vsel %vm1175, %v1226, %v1227
      %v1229 = vrot.slane %v1111, 2
      %v1230 = vsel %vm1175, %v1227, %v1229
      %v1231 = vrot.slane %v1112, 2
      %v1232 = vrot.slane %v1113, 2
      %v1233 = vsel %vm1175, %v1231, %v1232
      %v1234 = vrot.slane %v1114, 2
      %v1235 = vsel %vm1175, %v1232, %v1234
      %v1236 = vrot.slane %v1115, 2
      %v1237 = vrot.slane %v1116, 2
      %v1238 = vsel %vm1175, %v1236, %v1237
      %v1239 = vrot.slane %v1117, 2
      %v1240 = vsel %vm1175, %v1237, %v1239
      %v1241 = vrot.slane %v1118, 2
      %v1242 = vrot.slane %v1119, 2
      %v1243 = vsel %vm1175, %v1241, %v1242
      %v1244 = vrot.slane %v1120, 2
      %v1245 = vsel %vm1175, %v1242, %v1244
      %v1246 = vrot.slane %v1121, 2
      %v1247 = vrot.slane %v1122, 2
      %v1248 = vsel %vm1175, %v1246, %v1247
      %v1249 = vrot.slane %v1123, 2
      %v1250 = vsel %vm1175, %v1247, %v1249
      %v1251 = vrot.slane %v1124, 2
      %v1252 = vrot.slane %v1125, 2
      %v1253 = vsel %vm1175, %v1251, %v1252
      %v1254 = vrot.slane %v1126, 2
      %v1255 = vsel %vm1175, %v1252, %v1254
      %v1304 = vadd.f32 %v1030, %v1176
      %v1305 = vadd.f32 %v1031, %v1178
      %v1306 = vadd.f32 %v1032, %v1180
      %v1307 = vadd.f32 %v1033, %v1181
      %v1308 = vadd.f32 %v1034, %v1183
      %v1309 = vadd.f32 %v1035, %v1185
      %v1310 = vadd.f32 %v1036, %v1186
      %v1311 = vadd.f32 %v1037, %v1188
      %v1312 = vadd.f32 %v1038, %v1190
      %v1313 = vadd.f32 %v1039, %v1191
      %v1314 = vadd.f32 %v1040, %v1193
      %v1315 = vadd.f32 %v1041, %v1195
      %v1316 = vadd.f32 %v1042, %v1196
      %v1317 = vadd.f32 %v1043, %v1198
      %v1318 = vadd.f32 %v1044, %v1200
      %v1319 = vadd.f32 %v1045, %v1201
      %v1320 = vadd.f32 %v1046, %v1203
      %v1321 = vadd.f32 %v1047, %v1205
      %v1322 = vadd.f32 %v1048, %v1206
      %v1323 = vadd.f32 %v1049, %v1208
      %v1324 = vadd.f32 %v1050, %v1210
      %v1325 = vadd.f32 %v1051, %v1211
      %v1326 = vadd.f32 %v1052, %v1213
      %v1327 = vadd.f32 %v1053, %v1215
      %v1328 = vadd.f32 %v1054, %v1216
      %v1329 = vadd.f32 %v1055, %v1218
      %v1330 = vadd.f32 %v1056, %v1220
      %v1331 = vadd.f32 %v1057, %v1221
      %v1332 = vadd.f32 %v1058, %v1223
      %v1333 = vadd.f32 %v1059, %v1225
      %v1334 = vadd.f32 %v1060, %v1226
      %v1335 = vadd.f32 %v1061, %v1228
      %v1336 = vadd.f32 %v1062, %v1230
      %v1337 = vadd.f32 %v1063, %v1231
      %v1338 = vadd.f32 %v1064, %v1233
      %v1339 = vadd.f32 %v1065, %v1235
      %v1340 = vadd.f32 %v1066, %v1236
      %v1341 = vadd.f32 %v1067, %v1238
      %v1342 = vadd.f32 %v1068, %v1240
      %v1343 = vadd.f32 %v1069, %v1241
      %v1344 = vadd.f32 %v1070, %v1243
      %v1345 = vadd.f32 %v1071, %v1245
      %v1346 = vadd.f32 %v1072, %v1246
      %v1347 = vadd.f32 %v1073, %v1248
      %v1348 = vadd.f32 %v1074, %v1250
      %v1349 = vadd.f32 %v1075, %v1251
      %v1350 = vadd.f32 %v1076, %v1253
      %v1351 = vadd.f32 %v1077, %v1255
      %v1352 = vperm.slane %v769, 3
      %v1353 = vmul.f32 %v701, %v1352
      %v1354 = vmul.f32 %v702, %v1352
      %v1355 = vmul.f32 %v703, %v1352
      %v1356 = vmul.f32 %v705, %v1352
      %v1357 = vmul.f32 %v706, %v1352
      %v1358 = vmul.f32 %v707, %v1352
      %v1359 = vmul.f32 %v709, %v1352
      %v1360 = vmul.f32 %v710, %v1352
      %v1361 = vmul.f32 %v711, %v1352
      %v1362 = vmul.f32 %v713, %v1352
      %v1363 = vmul.f32 %v714, %v1352
      %v1364 = vmul.f32 %v715, %v1352
      %v1365 = vmul.f32 %v717, %v1352
      %v1366 = vmul.f32 %v718, %v1352
      %v1367 = vmul.f32 %v719, %v1352
      %v1368 = vmul.f32 %v721, %v1352
      %v1369 = vmul.f32 %v722, %v1352
      %v1370 = vmul.f32 %v723, %v1352
      %v1371 = vmul.f32 %v725, %v1352
      %v1372 = vmul.f32 %v726, %v1352
      %v1373 = vmul.f32 %v727, %v1352
      %v1374 = vmul.f32 %v729, %v1352
      %v1375 = vmul.f32 %v730, %v1352
      %v1376 = vmul.f32 %v731, %v1352
      %v1377 = vmul.f32 %v733, %v1352
      %v1378 = vmul.f32 %v734, %v1352
      %v1379 = vmul.f32 %v735, %v1352
      %v1380 = vmul.f32 %v737, %v1352
      %v1381 = vmul.f32 %v738, %v1352
      %v1382 = vmul.f32 %v739, %v1352
      %v1383 = vmul.f32 %v741, %v1352
      %v1384 = vmul.f32 %v742, %v1352
      %v1385 = vmul.f32 %v743, %v1352
      %v1386 = vmul.f32 %v745, %v1352
      %v1387 = vmul.f32 %v746, %v1352
      %v1388 = vmul.f32 %v747, %v1352
      %v1389 = vmul.f32 %v749, %v1352
      %v1390 = vmul.f32 %v750, %v1352
      %v1391 = vmul.f32 %v751, %v1352
      %v1392 = vmul.f32 %v753, %v1352
      %v1393 = vmul.f32 %v754, %v1352
      %v1394 = vmul.f32 %v755, %v1352
      %v1395 = vmul.f32 %v757, %v1352
      %v1396 = vmul.f32 %v758, %v1352
      %v1397 = vmul.f32 %v759, %v1352
      %v1398 = vmul.f32 %v761, %v1352
      %v1399 = vmul.f32 %v762, %v1352
      %v1400 = vmul.f32 %v763, %v1352
      %v1401 = vadd.f32 %v1304, %v1353
      %v1402 = vadd.f32 %v1305, %v1354
      %v1403 = vadd.f32 %v1306, %v1355
      %v1404 = vadd.f32 %v1307, %v1356
      %v1405 = vadd.f32 %v1308, %v1357
      %v1406 = vadd.f32 %v1309, %v1358
      %v1407 = vadd.f32 %v1310, %v1359
      %v1408 = vadd.f32 %v1311, %v1360
      %v1409 = vadd.f32 %v1312, %v1361
      %v1410 = vadd.f32 %v1313, %v1362
      %v1411 = vadd.f32 %v1314, %v1363
      %v1412 = vadd.f32 %v1315, %v1364
      %v1413 = vadd.f32 %v1316, %v1365
      %v1414 = vadd.f32 %v1317, %v1366
      %v1415 = vadd.f32 %v1318, %v1367
      %v1416 = vadd.f32 %v1319, %v1368
      %v1417 = vadd.f32 %v1320, %v1369
      %v1418 = vadd.f32 %v1321, %v1370
      %v1419 = vadd.f32 %v1322, %v1371
      %v1420 = vadd.f32 %v1323, %v1372
      %v1421 = vadd.f32 %v1324, %v1373
      %v1422 = vadd.f32 %v1325, %v1374
      %v1423 = vadd.f32 %v1326, %v1375
      %v1424 = vadd.f32 %v1327, %v1376
      %v1425 = vadd.f32 %v1328, %v1377
      %v1426 = vadd.f32 %v1329, %v1378
      %v1427 = vadd.f32 %v1330, %v1379
      %v1428 = vadd.f32 %v1331, %v1380
      %v1429 = vadd.f32 %v1332, %v1381
      %v1430 = vadd.f32 %v1333, %v1382
      %v1431 = vadd.f32 %v1334, %v1383
      %v1432 = vadd.f32 %v1335, %v1384
      %v1433 = vadd.f32 %v1336, %v1385
      %v1434 = vadd.f32 %v1337, %v1386
      %v1435 = vadd.f32 %v1338, %v1387
      %v1436 = vadd.f32 %v1339, %v1388
      %v1437 = vadd.f32 %v1340, %v1389
      %v1438 = vadd.f32 %v1341, %v1390
      %v1439 = vadd.f32 %v1342, %v1391
      %v1440 = vadd.f32 %v1343, %v1392
      %v1441 = vadd.f32 %v1344, %v1393
      %v1442 = vadd.f32 %v1345, %v1394
      %v1443 = vadd.f32 %v1346, %v1395
      %v1444 = vadd.f32 %v1347, %v1396
      %v1445 = vadd.f32 %v1348, %v1397
      %v1446 = vadd.f32 %v1349, %v1398
      %v1447 = vadd.f32 %v1350, %v1399
      %v1448 = vadd.f32 %v1351, %v1400
      %v1449 = vperm.slane %v769, 4
      %v1450 = vmul.f32 %v702, %v1449
      %v1451 = vmul.f32 %v703, %v1449
      %v1452 = vmul.f32 %v706, %v1449
      %v1453 = vmul.f32 %v707, %v1449
      %v1454 = vmul.f32 %v710, %v1449
      %v1455 = vmul.f32 %v711, %v1449
      %v1456 = vmul.f32 %v714, %v1449
      %v1457 = vmul.f32 %v715, %v1449
      %v1458 = vmul.f32 %v718, %v1449
      %v1459 = vmul.f32 %v719, %v1449
      %v1460 = vmul.f32 %v722, %v1449
      %v1461 = vmul.f32 %v723, %v1449
      %v1462 = vmul.f32 %v726, %v1449
      %v1463 = vmul.f32 %v727, %v1449
      %v1464 = vmul.f32 %v730, %v1449
      %v1465 = vmul.f32 %v731, %v1449
      %v1466 = vmul.f32 %v734, %v1449
      %v1467 = vmul.f32 %v735, %v1449
      %v1468 = vmul.f32 %v738, %v1449
      %v1469 = vmul.f32 %v739, %v1449
      %v1470 = vmul.f32 %v742, %v1449
      %v1471 = vmul.f32 %v743, %v1449
      %v1472 = vmul.f32 %v746, %v1449
      %v1473 = vmul.f32 %v747, %v1449
      %v1474 = vmul.f32 %v750, %v1449
      %v1475 = vmul.f32 %v751, %v1449
      %v1476 = vmul.f32 %v754, %v1449
      %v1477 = vmul.f32 %v755, %v1449
      %v1478 = vmul.f32 %v758, %v1449
      %v1479 = vmul.f32 %v759, %v1449
      %v1480 = vmul.f32 %v762, %v1449
      %v1481 = vmul.f32 %v763, %v1449
      %v1514 = vrot.slane %v1450, 1
      %v1515 = vrot.slane %v1451, 1
      %v1516 = vsel %vm933, %v1514, %v1515
      %v1517 = vrot.slane %v1452, 1
      %v1518 = vrot.slane %v1453, 1
      %v1519 = vsel %vm933, %v1517, %v1518
      %v1520 = vrot.slane %v1454, 1
      %v1521 = vrot.slane %v1455, 1
      %v1522 = vsel %vm933, %v1520, %v1521
      %v1523 = vrot.slane %v1456, 1
      %v1524 = vrot.slane %v1457, 1
      %v1525 = vsel %vm933, %v1523, %v1524
      %v1526 = vrot.slane %v1458, 1
      %v1527 = vrot.slane %v1459, 1
      %v1528 = vsel %vm933, %v1526, %v1527
      %v1529 = vrot.slane %v1460, 1
      %v1530 = vrot.slane %v1461, 1
      %v1531 = vsel %vm933, %v1529, %v1530
      %v1532 = vrot.slane %v1462, 1
      %v1533 = vrot.slane %v1463, 1
      %v1534 = vsel %vm933, %v1532, %v1533
      %v1535 = vrot.slane %v1464, 1
      %v1536 = vrot.slane %v1465, 1
      %v1537 = vsel %vm933, %v1535, %v1536
      %v1538 = vrot.slane %v1466, 1
      %v1539 = vrot.slane %v1467, 1
      %v1540 = vsel %vm933, %v1538, %v1539
      %v1541 = vrot.slane %v1468, 1
      %v1542 = vrot.slane %v1469, 1
      %v1543 = vsel %vm933, %v1541, %v1542
      %v1544 = vrot.slane %v1470, 1
      %v1545 = vrot.slane %v1471, 1
      %v1546 = vsel %vm933, %v1544, %v1545
      %v1547 = vrot.slane %v1472, 1
      %v1548 = vrot.slane %v1473, 1
      %v1549 = vsel %vm933, %v1547, %v1548
      %v1550 = vrot.slane %v1474, 1
      %v1551 = vrot.slane %v1475, 1
      %v1552 = vsel %vm933, %v1550, %v1551
      %v1553 = vrot.slane %v1476, 1
      %v1554 = vrot.slane %v1477, 1
      %v1555 = vsel %vm933, %v1553, %v1554
      %v1556 = vrot.slane %v1478, 1
      %v1557 = vrot.slane %v1479, 1
      %v1558 = vsel %vm933, %v1556, %v1557
      %v1559 = vrot.slane %v1480, 1
      %v1560 = vrot.slane %v1481, 1
      %v1561 = vsel %vm933, %v1559, %v1560
      %v1610 = vadd.f32 %v1401, %v1514
      %v1611 = vadd.f32 %v1402, %v1516
      %v1612 = vadd.f32 %v1403, %v1515
      %v1613 = vadd.f32 %v1404, %v1517
      %v1614 = vadd.f32 %v1405, %v1519
      %v1615 = vadd.f32 %v1406, %v1518
      %v1616 = vadd.f32 %v1407, %v1520
      %v1617 = vadd.f32 %v1408, %v1522
      %v1618 = vadd.f32 %v1409, %v1521
      %v1619 = vadd.f32 %v1410, %v1523
      %v1620 = vadd.f32 %v1411, %v1525
      %v1621 = vadd.f32 %v1412, %v1524
      %v1622 = vadd.f32 %v1413, %v1526
      %v1623 = vadd.f32 %v1414, %v1528
      %v1624 = vadd.f32 %v1415, %v1527
      %v1625 = vadd.f32 %v1416, %v1529
      %v1626 = vadd.f32 %v1417, %v1531
      %v1627 = vadd.f32 %v1418, %v1530
      %v1628 = vadd.f32 %v1419, %v1532
      %v1629 = vadd.f32 %v1420, %v1534
      %v1630 = vadd.f32 %v1421, %v1533
      %v1631 = vadd.f32 %v1422, %v1535
      %v1632 = vadd.f32 %v1423, %v1537
      %v1633 = vadd.f32 %v1424, %v1536
      %v1634 = vadd.f32 %v1425, %v1538
      %v1635 = vadd.f32 %v1426, %v1540
      %v1636 = vadd.f32 %v1427, %v1539
      %v1637 = vadd.f32 %v1428, %v1541
      %v1638 = vadd.f32 %v1429, %v1543
      %v1639 = vadd.f32 %v1430, %v1542
      %v1640 = vadd.f32 %v1431, %v1544
      %v1641 = vadd.f32 %v1432, %v1546
      %v1642 = vadd.f32 %v1433, %v1545
      %v1643 = vadd.f32 %v1434, %v1547
      %v1644 = vadd.f32 %v1435, %v1549
      %v1645 = vadd.f32 %v1436, %v1548
      %v1646 = vadd.f32 %v1437, %v1550
      %v1647 = vadd.f32 %v1438, %v1552
      %v1648 = vadd.f32 %v1439, %v1551
      %v1649 = vadd.f32 %v1440, %v1553
      %v1650 = vadd.f32 %v1441, %v1555
      %v1651 = vadd.f32 %v1442, %v1554
      %v1652 = vadd.f32 %v1443, %v1556
      %v1653 = vadd.f32 %v1444, %v1558
      %v1654 = vadd.f32 %v1445, %v1557
      %v1655 = vadd.f32 %v1446, %v1559
      %v1656 = vadd.f32 %v1447, %v1561
      %v1657 = vadd.f32 %v1448, %v1560
      %v1658 = vperm.slane %v769, 5
      %v1659 = vmul.f32 %v702, %v1658
      %v1660 = vmul.f32 %v703, %v1658
      %v1661 = vmul.f32 %v704, %v1658
      %v1662 = vmul.f32 %v706, %v1658
      %v1663 = vmul.f32 %v707, %v1658
      %v1664 = vmul.f32 %v708, %v1658
      %v1665 = vmul.f32 %v710, %v1658
      %v1666 = vmul.f32 %v711, %v1658
      %v1667 = vmul.f32 %v712, %v1658
      %v1668 = vmul.f32 %v714, %v1658
      %v1669 = vmul.f32 %v715, %v1658
      %v1670 = vmul.f32 %v716, %v1658
      %v1671 = vmul.f32 %v718, %v1658
      %v1672 = vmul.f32 %v719, %v1658
      %v1673 = vmul.f32 %v720, %v1658
      %v1674 = vmul.f32 %v722, %v1658
      %v1675 = vmul.f32 %v723, %v1658
      %v1676 = vmul.f32 %v724, %v1658
      %v1677 = vmul.f32 %v726, %v1658
      %v1678 = vmul.f32 %v727, %v1658
      %v1679 = vmul.f32 %v728, %v1658
      %v1680 = vmul.f32 %v730, %v1658
      %v1681 = vmul.f32 %v731, %v1658
      %v1682 = vmul.f32 %v732, %v1658
      %v1683 = vmul.f32 %v734, %v1658
      %v1684 = vmul.f32 %v735, %v1658
      %v1685 = vmul.f32 %v736, %v1658
      %v1686 = vmul.f32 %v738, %v1658
      %v1687 = vmul.f32 %v739, %v1658
      %v1688 = vmul.f32 %v740, %v1658
      %v1689 = vmul.f32 %v742, %v1658
      %v1690 = vmul.f32 %v743, %v1658
      %v1691 = vmul.f32 %v744, %v1658
      %v1692 = vmul.f32 %v746, %v1658
      %v1693 = vmul.f32 %v747, %v1658
      %v1694 = vmul.f32 %v748, %v1658
      %v1695 = vmul.f32 %v750, %v1658
      %v1696 = vmul.f32 %v751, %v1658
      %v1697 = vmul.f32 %v752, %v1658
      %v1698 = vmul.f32 %v754, %v1658
      %v1699 = vmul.f32 %v755, %v1658
      %v1700 = vmul.f32 %v756, %v1658
      %v1701 = vmul.f32 %v758, %v1658
      %v1702 = vmul.f32 %v759, %v1658
      %v1703 = vmul.f32 %v760, %v1658
      %v1704 = vmul.f32 %v762, %v1658
      %v1705 = vmul.f32 %v763, %v1658
      %v1706 = vmul.f32 %v764, %v1658
      %v1755 = vrot.slane %v1659, 2
      %v1756 = vrot.slane %v1660, 2
      %v1757 = vsel %vm1175, %v1755, %v1756
      %v1758 = vrot.slane %v1661, 2
      %v1759 = vsel %vm1175, %v1756, %v1758
      %v1760 = vrot.slane %v1662, 2
      %v1761 = vrot.slane %v1663, 2
      %v1762 = vsel %vm1175, %v1760, %v1761
      %v1763 = vrot.slane %v1664, 2
      %v1764 = vsel %vm1175, %v1761, %v1763
      %v1765 = vrot.slane %v1665, 2
      %v1766 = vrot.slane %v1666, 2
      %v1767 = vsel %vm1175, %v1765, %v1766
      %v1768 = vrot.slane %v1667, 2
      %v1769 = vsel %vm1175, %v1766, %v1768
      %v1770 = vrot.slane %v1668, 2
      %v1771 = vrot.slane %v1669, 2
      %v1772 = vsel %vm1175, %v1770, %v1771
      %v1773 = vrot.slane %v1670, 2
      %v1774 = vsel %vm1175, %v1771, %v1773
      %v1775 = vrot.slane %v1671, 2
      %v1776 = vrot.slane %v1672, 2
      %v1777 = vsel %vm1175, %v1775, %v1776
      %v1778 = vrot.slane %v1673, 2
      %v1779 = vsel %vm1175, %v1776, %v1778
      %v1780 = vrot.slane %v1674, 2
      %v1781 = vrot.slane %v1675, 2
      %v1782 = vsel %vm1175, %v1780, %v1781
      %v1783 = vrot.slane %v1676, 2
      %v1784 = vsel %vm1175, %v1781, %v1783
      %v1785 = vrot.slane %v1677, 2
      %v1786 = vrot.slane %v1678, 2
      %v1787 = vsel %vm1175, %v1785, %v1786
      %v1788 = vrot.slane %v1679, 2
      %v1789 = vsel %vm1175, %v1786, %v1788
      %v1790 = vrot.slane %v1680, 2
      %v1791 = vrot.slane %v1681, 2
      %v1792 = vsel %vm1175, %v1790, %v1791
      %v1793 = vrot.slane %v1682, 2
      %v1794 = vsel %vm1175, %v1791, %v1793
      %v1795 = vrot.slane %v1683, 2
      %v1796 = vrot.slane %v1684, 2
      %v1797 = vsel %vm1175, %v1795, %v1796
      %v1798 = vrot.slane %v1685, 2
      %v1799 = vsel %vm1175, %v1796, %v1798
      %v1800 = vrot.slane %v1686, 2
      %v1801 = vrot.slane %v1687, 2
      %v1802 = vsel %vm1175, %v1800, %v1801
      %v1803 = vrot.slane %v1688, 2
      %v1804 = vsel %vm1175, %v1801, %v1803
      %v1805 = vrot.slane %v1689, 2
      %v1806 = vrot.slane %v1690, 2
      %v1807 = vsel %vm1175, %v1805, %v1806
      %v1808 = vrot.slane %v1691, 2
      %v1809 = vsel %vm1175, %v1806, %v1808
      %v1810 = vrot.slane %v1692, 2
      %v1811 = vrot.slane %v1693, 2
      %v1812 = vsel %vm1175, %v1810, %v1811
      %v1813 = vrot.slane %v1694, 2
      %v1814 = vsel %vm1175, %v1811, %v1813
      %v1815 = vrot.slane %v1695, 2
      %v1816 = vrot.slane %v1696, 2
      %v1817 = vsel %vm1175, %v1815, %v1816
      %v1818 = vrot.slane %v1697, 2
      %v1819 = vsel %vm1175, %v1816, %v1818
      %v1820 = vrot.slane %v1698, 2
      %v1821 = vrot.slane %v1699, 2
      %v1822 = vsel %vm1175, %v1820, %v1821
      %v1823 = vrot.slane %v1700, 2
      %v1824 = vsel %vm1175, %v1821, %v1823
      %v1825 = vrot.slane %v1701, 2
      %v1826 = vrot.slane %v1702, 2
      %v1827 = vsel %vm1175, %v1825, %v1826
      %v1828 = vrot.slane %v1703, 2
      %v1829 = vsel %vm1175, %v1826, %v1828
      %v1830 = vrot.slane %v1704, 2
      %v1831 = vrot.slane %v1705, 2
      %v1832 = vsel %vm1175, %v1830, %v1831
      %v1833 = vrot.slane %v1706, 2
      %v1834 = vsel %vm1175, %v1831, %v1833
      %v1883 = vadd.f32 %v1610, %v1755
      %v1884 = vadd.f32 %v1611, %v1757
      %v1885 = vadd.f32 %v1612, %v1759
      %v1886 = vadd.f32 %v1613, %v1760
      %v1887 = vadd.f32 %v1614, %v1762
      %v1888 = vadd.f32 %v1615, %v1764
      %v1889 = vadd.f32 %v1616, %v1765
      %v1890 = vadd.f32 %v1617, %v1767
      %v1891 = vadd.f32 %v1618, %v1769
      %v1892 = vadd.f32 %v1619, %v1770
      %v1893 = vadd.f32 %v1620, %v1772
      %v1894 = vadd.f32 %v1621, %v1774
      %v1895 = vadd.f32 %v1622, %v1775
      %v1896 = vadd.f32 %v1623, %v1777
      %v1897 = vadd.f32 %v1624, %v1779
      %v1898 = vadd.f32 %v1625, %v1780
      %v1899 = vadd.f32 %v1626, %v1782
      %v1900 = vadd.f32 %v1627, %v1784
      %v1901 = vadd.f32 %v1628, %v1785
      %v1902 = vadd.f32 %v1629, %v1787
      %v1903 = vadd.f32 %v1630, %v1789
      %v1904 = vadd.f32 %v1631, %v1790
      %v1905 = vadd.f32 %v1632, %v1792
      %v1906 = vadd.f32 %v1633, %v1794
      %v1907 = vadd.f32 %v1634, %v1795
      %v1908 = vadd.f32 %v1635, %v1797
      %v1909 = vadd.f32 %v1636, %v1799
      %v1910 = vadd.f32 %v1637, %v1800
      %v1911 = vadd.f32 %v1638, %v1802
      %v1912 = vadd.f32 %v1639, %v1804
      %v1913 = vadd.f32 %v1640, %v1805
      %v1914 = vadd.f32 %v1641, %v1807
      %v1915 = vadd.f32 %v1642, %v1809
      %v1916 = vadd.f32 %v1643, %v1810
      %v1917 = vadd.f32 %v1644, %v1812
      %v1918 = vadd.f32 %v1645, %v1814
      %v1919 = vadd.f32 %v1646, %v1815
      %v1920 = vadd.f32 %v1647, %v1817
      %v1921 = vadd.f32 %v1648, %v1819
      %v1922 = vadd.f32 %v1649, %v1820
      %v1923 = vadd.f32 %v1650, %v1822
      %v1924 = vadd.f32 %v1651, %v1824
      %v1925 = vadd.f32 %v1652, %v1825
      %v1926 = vadd.f32 %v1653, %v1827
      %v1927 = vadd.f32 %v1654, %v1829
      %v1928 = vadd.f32 %v1655, %v1830
      %v1929 = vadd.f32 %v1656, %v1832
      %v1930 = vadd.f32 %v1657, %v1834
      %v1931 = vperm.slane %v769, 6
      %v1932 = vmul.f32 %v705, %v1931
      %v1933 = vmul.f32 %v706, %v1931
      %v1934 = vmul.f32 %v707, %v1931
      %v1935 = vmul.f32 %v709, %v1931
      %v1936 = vmul.f32 %v710, %v1931
      %v1937 = vmul.f32 %v711, %v1931
      %v1938 = vmul.f32 %v713, %v1931
      %v1939 = vmul.f32 %v714, %v1931
      %v1940 = vmul.f32 %v715, %v1931
      %v1941 = vmul.f32 %v717, %v1931
      %v1942 = vmul.f32 %v718, %v1931
      %v1943 = vmul.f32 %v719, %v1931
      %v1944 = vmul.f32 %v721, %v1931
      %v1945 = vmul.f32 %v722, %v1931
      %v1946 = vmul.f32 %v723, %v1931
      %v1947 = vmul.f32 %v725, %v1931
      %v1948 = vmul.f32 %v726, %v1931
      %v1949 = vmul.f32 %v727, %v1931
      %v1950 = vmul.f32 %v729, %v1931
      %v1951 = vmul.f32 %v730, %v1931
      %v1952 = vmul.f32 %v731, %v1931
      %v1953 = vmul.f32 %v733, %v1931
      %v1954 = vmul.f32 %v734, %v1931
      %v1955 = vmul.f32 %v735, %v1931
      %v1956 = vmul.f32 %v737, %v1931
      %v1957 = vmul.f32 %v738, %v1931
      %v1958 = vmul.f32 %v739, %v1931
      %v1959 = vmul.f32 %v741, %v1931
      %v1960 = vmul.f32 %v742, %v1931
      %v1961 = vmul.f32 %v743, %v1931
      %v1962 = vmul.f32 %v745, %v1931
      %v1963 = vmul.f32 %v746, %v1931
      %v1964 = vmul.f32 %v747, %v1931
      %v1965 = vmul.f32 %v749, %v1931
      %v1966 = vmul.f32 %v750, %v1931
      %v1967 = vmul.f32 %v751, %v1931
      %v1968 = vmul.f32 %v753, %v1931
      %v1969 = vmul.f32 %v754, %v1931
      %v1970 = vmul.f32 %v755, %v1931
      %v1971 = vmul.f32 %v757, %v1931
      %v1972 = vmul.f32 %v758, %v1931
      %v1973 = vmul.f32 %v759, %v1931
      %v1974 = vmul.f32 %v761, %v1931
      %v1975 = vmul.f32 %v762, %v1931
      %v1976 = vmul.f32 %v763, %v1931
      %v1977 = vmul.f32 %v765, %v1931
      %v1978 = vmul.f32 %v766, %v1931
      %v1979 = vmul.f32 %v767, %v1931
      %v1980 = vadd.f32 %v1883, %v1932
      %v1981 = vadd.f32 %v1884, %v1933
      %v1982 = vadd.f32 %v1885, %v1934
      %v1983 = vadd.f32 %v1886, %v1935
      %v1984 = vadd.f32 %v1887, %v1936
      %v1985 = vadd.f32 %v1888, %v1937
      %v1986 = vadd.f32 %v1889, %v1938
      %v1987 = vadd.f32 %v1890, %v1939
      %v1988 = vadd.f32 %v1891, %v1940
      %v1989 = vadd.f32 %v1892, %v1941
      %v1990 = vadd.f32 %v1893, %v1942
      %v1991 = vadd.f32 %v1894, %v1943
      %v1992 = vadd.f32 %v1895, %v1944
      %v1993 = vadd.f32 %v1896, %v1945
      %v1994 = vadd.f32 %v1897, %v1946
      %v1995 = vadd.f32 %v1898, %v1947
      %v1996 = vadd.f32 %v1899, %v1948
      %v1997 = vadd.f32 %v1900, %v1949
      %v1998 = vadd.f32 %v1901, %v1950
      %v1999 = vadd.f32 %v1902, %v1951
      %v2000 = vadd.f32 %v1903, %v1952
      %v2001 = vadd.f32 %v1904, %v1953
      %v2002 = vadd.f32 %v1905, %v1954
      %v2003 = vadd.f32 %v1906, %v1955
      %v2004 = vadd.f32 %v1907, %v1956
      %v2005 = vadd.f32 %v1908, %v1957
      %v2006 = vadd.f32 %v1909, %v1958
      %v2007 = vadd.f32 %v1910, %v1959
      %v2008 = vadd.f32 %v1911, %v1960
      %v2009 = vadd.f32 %v1912, %v1961
      %v2010 = vadd.f32 %v1913, %v1962
      %v2011 = vadd.f32 %v1914, %v1963
      %v2012 = vadd.f32 %v1915, %v1964
      %v2013 = vadd.f32 %v1916, %v1965
      %v2014 = vadd.f32 %v1917, %v1966
      %v2015 = vadd.f32 %v1918, %v1967
      %v2016 = vadd.f32 %v1919, %v1968
      %v2017 = vadd.f32 %v1920, %v1969
      %v2018 = vadd.f32 %v1921, %v1970
      %v2019 = vadd.f32 %v1922, %v1971
      %v2020 = vadd.f32 %v1923, %v1972
      %v2021 = vadd.f32 %v1924, %v1973
      %v2022 = vadd.f32 %v1925, %v1974
      %v2023 = vadd.f32 %v1926, %v1975
      %v2024 = vadd.f32 %v1927, %v1976
      %v2025 = vadd.f32 %v1928, %v1977
      %v2026 = vadd.f32 %v1929, %v1978
      %v2027 = vadd.f32 %v1930, %v1979
      %v2028 = vperm.slane %v769, 7
      %v2029 = vmul.f32 %v706, %v2028
      %v2030 = vmul.f32 %v707, %v2028
      %v2031 = vmul.f32 %v710, %v2028
      %v2032 = vmul.f32 %v711, %v2028
      %v2033 = vmul.f32 %v714, %v2028
      %v2034 = vmul.f32 %v715, %v2028
      %v2035 = vmul.f32 %v718, %v2028
      %v2036 = vmul.f32 %v719, %v2028
      %v2037 = vmul.f32 %v722, %v2028
      %v2038 = vmul.f32 %v723, %v2028
      %v2039 = vmul.f32 %v726, %v2028
      %v2040 = vmul.f32 %v727, %v2028
      %v2041 = vmul.f32 %v730, %v2028
      %v2042 = vmul.f32 %v731, %v2028
      %v2043 = vmul.f32 %v734, %v2028
      %v2044 = vmul.f32 %v735, %v2028
      %v2045 = vmul.f32 %v738, %v2028
      %v2046 = vmul.f32 %v739, %v2028
      %v2047 = vmul.f32 %v742, %v2028
      %v2048 = vmul.f32 %v743, %v2028
      %v2049 = vmul.f32 %v746, %v2028
      %v2050 = vmul.f32 %v747, %v2028
      %v2051 = vmul.f32 %v750, %v2028
      %v2052 = vmul.f32 %v751, %v2028
      %v2053 = vmul.f32 %v754, %v2028
      %v2054 = vmul.f32 %v755, %v2028
      %v2055 = vmul.f32 %v758, %v2028
      %v2056 = vmul.f32 %v759, %v2028
      %v2057 = vmul.f32 %v762, %v2028
      %v2058 = vmul.f32 %v763, %v2028
      %v2059 = vmul.f32 %v766, %v2028
      %v2060 = vmul.f32 %v767, %v2028
      %v2093 = vrot.slane %v2029, 1
      %v2094 = vrot.slane %v2030, 1
      %v2095 = vsel %vm933, %v2093, %v2094
      %v2096 = vrot.slane %v2031, 1
      %v2097 = vrot.slane %v2032, 1
      %v2098 = vsel %vm933, %v2096, %v2097
      %v2099 = vrot.slane %v2033, 1
      %v2100 = vrot.slane %v2034, 1
      %v2101 = vsel %vm933, %v2099, %v2100
      %v2102 = vrot.slane %v2035, 1
      %v2103 = vrot.slane %v2036, 1
      %v2104 = vsel %vm933, %v2102, %v2103
      %v2105 = vrot.slane %v2037, 1
      %v2106 = vrot.slane %v2038, 1
      %v2107 = vsel %vm933, %v2105, %v2106
      %v2108 = vrot.slane %v2039, 1
      %v2109 = vrot.slane %v2040, 1
      %v2110 = vsel %vm933, %v2108, %v2109
      %v2111 = vrot.slane %v2041, 1
      %v2112 = vrot.slane %v2042, 1
      %v2113 = vsel %vm933, %v2111, %v2112
      %v2114 = vrot.slane %v2043, 1
      %v2115 = vrot.slane %v2044, 1
      %v2116 = vsel %vm933, %v2114, %v2115
      %v2117 = vrot.slane %v2045, 1
      %v2118 = vrot.slane %v2046, 1
      %v2119 = vsel %vm933, %v2117, %v2118
      %v2120 = vrot.slane %v2047, 1
      %v2121 = vrot.slane %v2048, 1
      %v2122 = vsel %vm933, %v2120, %v2121
      %v2123 = vrot.slane %v2049, 1
      %v2124 = vrot.slane %v2050, 1
      %v2125 = vsel %vm933, %v2123, %v2124
      %v2126 = vrot.slane %v2051, 1
      %v2127 = vrot.slane %v2052, 1
      %v2128 = vsel %vm933, %v2126, %v2127
      %v2129 = vrot.slane %v2053, 1
      %v2130 = vrot.slane %v2054, 1
      %v2131 = vsel %vm933, %v2129, %v2130
      %v2132 = vrot.slane %v2055, 1
      %v2133 = vrot.slane %v2056, 1
      %v2134 = vsel %vm933, %v2132, %v2133
      %v2135 = vrot.slane %v2057, 1
      %v2136 = vrot.slane %v2058, 1
      %v2137 = vsel %vm933, %v2135, %v2136
      %v2138 = vrot.slane %v2059, 1
      %v2139 = vrot.slane %v2060, 1
      %v2140 = vsel %vm933, %v2138, %v2139
      %v2189 = vadd.f32 %v1980, %v2093
      %v2190 = vadd.f32 %v1981, %v2095
      %v2191 = vadd.f32 %v1982, %v2094
      %v2192 = vadd.f32 %v1983, %v2096
      %v2193 = vadd.f32 %v1984, %v2098
      %v2194 = vadd.f32 %v1985, %v2097
      %v2195 = vadd.f32 %v1986, %v2099
      %v2196 = vadd.f32 %v1987, %v2101
      %v2197 = vadd.f32 %v1988, %v2100
      %v2198 = vadd.f32 %v1989, %v2102
      %v2199 = vadd.f32 %v1990, %v2104
      %v2200 = vadd.f32 %v1991, %v2103
      %v2201 = vadd.f32 %v1992, %v2105
      %v2202 = vadd.f32 %v1993, %v2107
      %v2203 = vadd.f32 %v1994, %v2106
      %v2204 = vadd.f32 %v1995, %v2108
      %v2205 = vadd.f32 %v1996, %v2110
      %v2206 = vadd.f32 %v1997, %v2109
      %v2207 = vadd.f32 %v1998, %v2111
      %v2208 = vadd.f32 %v1999, %v2113
      %v2209 = vadd.f32 %v2000, %v2112
      %v2210 = vadd.f32 %v2001, %v2114
      %v2211 = vadd.f32 %v2002, %v2116
      %v2212 = vadd.f32 %v2003, %v2115
      %v2213 = vadd.f32 %v2004, %v2117
      %v2214 = vadd.f32 %v2005, %v2119
      %v2215 = vadd.f32 %v2006, %v2118
      %v2216 = vadd.f32 %v2007, %v2120
      %v2217 = vadd.f32 %v2008, %v2122
      %v2218 = vadd.f32 %v2009, %v2121
      %v2219 = vadd.f32 %v2010, %v2123
      %v2220 = vadd.f32 %v2011, %v2125
      %v2221 = vadd.f32 %v2012, %v2124
      %v2222 = vadd.f32 %v2013, %v2126
      %v2223 = vadd.f32 %v2014, %v2128
      %v2224 = vadd.f32 %v2015, %v2127
      %v2225 = vadd.f32 %v2016, %v2129
      %v2226 = vadd.f32 %v2017, %v2131
      %v2227 = vadd.f32 %v2018, %v2130
      %v2228 = vadd.f32 %v2019, %v2132
      %v2229 = vadd.f32 %v2020, %v2134
      %v2230 = vadd.f32 %v2021, %v2133
      %v2231 = vadd.f32 %v2022, %v2135
      %v2232 = vadd.f32 %v2023, %v2137
      %v2233 = vadd.f32 %v2024, %v2136
      %v2234 = vadd.f32 %v2025, %v2138
      %v2235 = vadd.f32 %v2026, %v2140
      %v2236 = vadd.f32 %v2027, %v2139
      %v2237 = vperm.slane %v770, 0
      %v2238 = vmul.f32 %v706, %v2237
      %v2239 = vmul.f32 %v707, %v2237
      %v2240 = vmul.f32 %v708, %v2237
      %v2241 = vmul.f32 %v710, %v2237
      %v2242 = vmul.f32 %v711, %v2237
      %v2243 = vmul.f32 %v712, %v2237
      %v2244 = vmul.f32 %v714, %v2237
      %v2245 = vmul.f32 %v715, %v2237
      %v2246 = vmul.f32 %v716, %v2237
      %v2247 = vmul.f32 %v718, %v2237
      %v2248 = vmul.f32 %v719, %v2237
      %v2249 = vmul.f32 %v720, %v2237
      %v2250 = vmul.f32 %v722, %v2237
      %v2251 = vmul.f32 %v723, %v2237
      %v2252 = vmul.f32 %v724, %v2237
      %v2253 = vmul.f32 %v726, %v2237
      %v2254 = vmul.f32 %v727, %v2237
      %v2255 = vmul.f32 %v728, %v2237
      %v2256 = vmul.f32 %v730, %v2237
      %v2257 = vmul.f32 %v731, %v2237
      %v2258 = vmul.f32 %v732, %v2237
      %v2259 = vmul.f32 %v734, %v2237
      %v2260 = vmul.f32 %v735, %v2237
      %v2261 = vmul.f32 %v736, %v2237
      %v2262 = vmul.f32 %v738, %v2237
      %v2263 = vmul.f32 %v739, %v2237
      %v2264 = vmul.f32 %v740, %v2237
      %v2265 = vmul.f32 %v742, %v2237
      %v2266 = vmul.f32 %v743, %v2237
      %v2267 = vmul.f32 %v744, %v2237
      %v2268 = vmul.f32 %v746, %v2237
      %v2269 = vmul.f32 %v747, %v2237
      %v2270 = vmul.f32 %v748, %v2237
      %v2271 = vmul.f32 %v750, %v2237
      %v2272 = vmul.f32 %v751, %v2237
      %v2273 = vmul.f32 %v752, %v2237
      %v2274 = vmul.f32 %v754, %v2237
      %v2275 = vmul.f32 %v755, %v2237
      %v2276 = vmul.f32 %v756, %v2237
      %v2277 = vmul.f32 %v758, %v2237
      %v2278 = vmul.f32 %v759, %v2237
      %v2279 = vmul.f32 %v760, %v2237
      %v2280 = vmul.f32 %v762, %v2237
      %v2281 = vmul.f32 %v763, %v2237
      %v2282 = vmul.f32 %v764, %v2237
      %v2283 = vmul.f32 %v766, %v2237
      %v2284 = vmul.f32 %v767, %v2237
      %v2285 = vmul.f32 %v768, %v2237
      %v2334 = vrot.slane %v2238, 2
      %v2335 = vrot.slane %v2239, 2
      %v2336 = vsel %vm1175, %v2334, %v2335
      %v2337 = vrot.slane %v2240, 2
      %v2338 = vsel %vm1175, %v2335, %v2337
      %v2339 = vrot.slane %v2241, 2
      %v2340 = vrot.slane %v2242, 2
      %v2341 = vsel %vm1175, %v2339, %v2340
      %v2342 = vrot.slane %v2243, 2
      %v2343 = vsel %vm1175, %v2340, %v2342
      %v2344 = vrot.slane %v2244, 2
      %v2345 = vrot.slane %v2245, 2
      %v2346 = vsel %vm1175, %v2344, %v2345
      %v2347 = vrot.slane %v2246, 2
      %v2348 = vsel %vm1175, %v2345, %v2347
      %v2349 = vrot.slane %v2247, 2
      %v2350 = vrot.slane %v2248, 2
      %v2351 = vsel %vm1175, %v2349, %v2350
      %v2352 = vrot.slane %v2249, 2
      %v2353 = vsel %vm1175, %v2350, %v2352
      %v2354 = vrot.slane %v2250, 2
      %v2355 = vrot.slane %v2251, 2
      %v2356 = vsel %vm1175, %v2354, %v2355
      %v2357 = vrot.slane %v2252, 2
      %v2358 = vsel %vm1175, %v2355, %v2357
      %v2359 = vrot.slane %v2253, 2
      %v2360 = vrot.slane %v2254, 2
      %v2361 = vsel %vm1175, %v2359, %v2360
      %v2362 = vrot.slane %v2255, 2
      %v2363 = vsel %vm1175, %v2360, %v2362
      %v2364 = vrot.slane %v2256, 2
      %v2365 = vrot.slane %v2257, 2
      %v2366 = vsel %vm1175, %v2364, %v2365
      %v2367 = vrot.slane %v2258, 2
      %v2368 = vsel %vm1175, %v2365, %v2367
      %v2369 = vrot.slane %v2259, 2
      %v2370 = vrot.slane %v2260, 2
      %v2371 = vsel %vm1175, %v2369, %v2370
      %v2372 = vrot.slane %v2261, 2
      %v2373 = vsel %vm1175, %v2370, %v2372
      %v2374 = vrot.slane %v2262, 2
      %v2375 = vrot.slane %v2263, 2
      %v2376 = vsel %vm1175, %v2374, %v2375
      %v2377 = vrot.slane %v2264, 2
      %v2378 = vsel %vm1175, %v2375, %v2377
      %v2379 = vrot.slane %v2265, 2
      %v2380 = vrot.slane %v2266, 2
      %v2381 = vsel %vm1175, %v2379, %v2380
      %v2382 = vrot.slane %v2267, 2
      %v2383 = vsel %vm1175, %v2380, %v2382
      %v2384 = vrot.slane %v2268, 2
      %v2385 = vrot.slane %v2269, 2
      %v2386 = vsel %vm1175, %v2384, %v2385
      %v2387 = vrot.slane %v2270, 2
      %v2388 = vsel %vm1175, %v2385, %v2387
      %v2389 = vrot.slane %v2271, 2
      %v2390 = vrot.slane %v2272, 2
      %v2391 = vsel %vm1175, %v2389, %v2390
      %v2392 = vrot.slane %v2273, 2
      %v2393 = vsel %vm1175, %v2390, %v2392
      %v2394 = vrot.slane %v2274, 2
      %v2395 = vrot.slane %v2275, 2
      %v2396 = vsel %vm1175, %v2394, %v2395
      %v2397 = vrot.slane %v2276, 2
      %v2398 = vsel %vm1175, %v2395, %v2397
      %v2399 = vrot.slane %v2277, 2
      %v2400 = vrot.slane %v2278, 2
      %v2401 = vsel %vm1175, %v2399, %v2400
      %v2402 = vrot.slane %v2279, 2
      %v2403 = vsel %vm1175, %v2400, %v2402
      %v2404 = vrot.slane %v2280, 2
      %v2405 = vrot.slane %v2281, 2
      %v2406 = vsel %vm1175, %v2404, %v2405
      %v2407 = vrot.slane %v2282, 2
      %v2408 = vsel %vm1175, %v2405, %v2407
      %v2409 = vrot.slane %v2283, 2
      %v2410 = vrot.slane %v2284, 2
      %v2411 = vsel %vm1175, %v2409, %v2410
      %v2412 = vrot.slane %v2285, 2
      %v2413 = vsel %vm1175, %v2410, %v2412
      %v2462 = vadd.f32 %v2189, %v2334
      %v2463 = vadd.f32 %v2190, %v2336
      %v2464 = vadd.f32 %v2191, %v2338
      %v2465 = vadd.f32 %v2192, %v2339
      %v2466 = vadd.f32 %v2193, %v2341
      %v2467 = vadd.f32 %v2194, %v2343
      %v2468 = vadd.f32 %v2195, %v2344
      %v2469 = vadd.f32 %v2196, %v2346
      %v2470 = vadd.f32 %v2197, %v2348
      %v2471 = vadd.f32 %v2198, %v2349
      %v2472 = vadd.f32 %v2199, %v2351
      %v2473 = vadd.f32 %v2200, %v2353
      %v2474 = vadd.f32 %v2201, %v2354
      %v2475 = vadd.f32 %v2202, %v2356
      %v2476 = vadd.f32 %v2203, %v2358
      %v2477 = vadd.f32 %v2204, %v2359
      %v2478 = vadd.f32 %v2205, %v2361
      %v2479 = vadd.f32 %v2206, %v2363
      %v2480 = vadd.f32 %v2207, %v2364
      %v2481 = vadd.f32 %v2208, %v2366
      %v2482 = vadd.f32 %v2209, %v2368
      %v2483 = vadd.f32 %v2210, %v2369
      %v2484 = vadd.f32 %v2211, %v2371
      %v2485 = vadd.f32 %v2212, %v2373
      %v2486 = vadd.f32 %v2213, %v2374
      %v2487 = vadd.f32 %v2214, %v2376
      %v2488 = vadd.f32 %v2215, %v2378
      %v2489 = vadd.f32 %v2216, %v2379
      %v2490 = vadd.f32 %v2217, %v2381
      %v2491 = vadd.f32 %v2218, %v2383
      %v2492 = vadd.f32 %v2219, %v2384
      %v2493 = vadd.f32 %v2220, %v2386
      %v2494 = vadd.f32 %v2221, %v2388
      %v2495 = vadd.f32 %v2222, %v2389
      %v2496 = vadd.f32 %v2223, %v2391
      %v2497 = vadd.f32 %v2224, %v2393
      %v2498 = vadd.f32 %v2225, %v2394
      %v2499 = vadd.f32 %v2226, %v2396
      %v2500 = vadd.f32 %v2227, %v2398
      %v2501 = vadd.f32 %v2228, %v2399
      %v2502 = vadd.f32 %v2229, %v2401
      %v2503 = vadd.f32 %v2230, %v2403
      %v2504 = vadd.f32 %v2231, %v2404
      %v2505 = vadd.f32 %v2232, %v2406
      %v2506 = vadd.f32 %v2233, %v2408
      %v2507 = vadd.f32 %v2234, %v2409
      %v2508 = vadd.f32 %v2235, %v2411
      %v2509 = vadd.f32 %v2236, %v2413
      %v2510 = vld [vmem:[%s4] sm:$0x1]
      %v2512 = vperm.slane %v2510, 0
      %v2514 = vadd.f32 %v2462, %v2512
      %v2515 = vadd.f32 %v2463, %v2512
      %v2516 = vadd.f32 %v2464, %v2512
      %v2517 = vadd.f32 %v2465, %v2512
      %v2518 = vadd.f32 %v2466, %v2512
      %v2519 = vadd.f32 %v2467, %v2512
      %v2520 = vadd.f32 %v2468, %v2512
      %v2521 = vadd.f32 %v2469, %v2512
      %v2522 = vadd.f32 %v2470, %v2512
      %v2523 = vadd.f32 %v2471, %v2512
      %v2524 = vadd.f32 %v2472, %v2512
      %v2525 = vadd.f32 %v2473, %v2512
      %v2526 = vadd.f32 %v2474, %v2512
      %v2527 = vadd.f32 %v2475, %v2512
      %v2528 = vadd.f32 %v2476, %v2512
      %v2529 = vadd.f32 %v2477, %v2512
      %v2530 = vadd.f32 %v2478, %v2512
      %v2531 = vadd.f32 %v2479, %v2512
      %v2532 = vadd.f32 %v2480, %v2512
      %v2533 = vadd.f32 %v2481, %v2512
      %v2534 = vadd.f32 %v2482, %v2512
      %v2535 = vadd.f32 %v2483, %v2512
      %v2536 = vadd.f32 %v2484, %v2512
      %v2537 = vadd.f32 %v2485, %v2512
      %v2538 = vadd.f32 %v2486, %v2512
      %v2539 = vadd.f32 %v2487, %v2512
      %v2540 = vadd.f32 %v2488, %v2512
      %v2541 = vadd.f32 %v2489, %v2512
      %v2542 = vadd.f32 %v2490, %v2512
      %v2543 = vadd.f32 %v2491, %v2512
      %v2544 = vadd.f32 %v2492, %v2512
      %v2545 = vadd.f32 %v2493, %v2512
      %v2546 = vadd.f32 %v2494, %v2512
      %v2547 = vadd.f32 %v2495, %v2512
      %v2548 = vadd.f32 %v2496, %v2512
      %v2549 = vadd.f32 %v2497, %v2512
      %v2550 = vadd.f32 %v2498, %v2512
      %v2551 = vadd.f32 %v2499, %v2512
      %v2552 = vadd.f32 %v2500, %v2512
      %v2553 = vadd.f32 %v2501, %v2512
      %v2554 = vadd.f32 %v2502, %v2512
      %v2555 = vadd.f32 %v2503, %v2512
      %v2556 = vadd.f32 %v2504, %v2512
      %v2557 = vadd.f32 %v2505, %v2512
      %v2558 = vadd.f32 %v2506, %v2512
      %v2559 = vadd.f32 %v2507, %v2512
      %v2560 = vadd.f32 %v2508, %v2512
      %v2561 = vadd.f32 %v2509, %v2512
      %v2562 = vmax.f32 %v2514, 0.0
      %v2563 = vmax.f32 %v2515, 0.0
      %v2564 = vmax.f32 %v2516, 0.0
      %v2565 = vmax.f32 %v2517, 0.0
      %v2566 = vmax.f32 %v2518, 0.0
      %v2567 = vmax.f32 %v2519, 0.0
      %v2568 = vmax.f32 %v2520, 0.0
      %v2569 = vmax.f32 %v2521, 0.0
      %v2570 = vmax.f32 %v2522, 0.0
      %v2571 = vmax.f32 %v2523, 0.0
      %v2572 = vmax.f32 %v2524, 0.0
      %v2573 = vmax.f32 %v2525, 0.0
      %v2574 = vmax.f32 %v2526, 0.0
      %v2575 = vmax.f32 %v2527, 0.0
      %v2576 = vmax.f32 %v2528, 0.0
      %v2577 = vmax.f32 %v2529, 0.0
      %v2578 = vmax.f32 %v2530, 0.0
      %v2579 = vmax.f32 %v2531, 0.0
      %v2580 = vmax.f32 %v2532, 0.0
      %v2581 = vmax.f32 %v2533, 0.0
      %v2582 = vmax.f32 %v2534, 0.0
      %v2583 = vmax.f32 %v2535, 0.0
      %v2584 = vmax.f32 %v2536, 0.0
      %v2585 = vmax.f32 %v2537, 0.0
      %v2586 = vmax.f32 %v2538, 0.0
      %v2587 = vmax.f32 %v2539, 0.0
      %v2588 = vmax.f32 %v2540, 0.0
      %v2589 = vmax.f32 %v2541, 0.0
      %v2590 = vmax.f32 %v2542, 0.0
      %v2591 = vmax.f32 %v2543, 0.0
      %v2592 = vmax.f32 %v2544, 0.0
      %v2593 = vmax.f32 %v2545, 0.0
      %v2594 = vmax.f32 %v2546, 0.0
      %v2595 = vmax.f32 %v2547, 0.0
      %v2596 = vmax.f32 %v2548, 0.0
      %v2597 = vmax.f32 %v2549, 0.0
      %v2598 = vmax.f32 %v2550, 0.0
      %v2599 = vmax.f32 %v2551, 0.0
      %v2600 = vmax.f32 %v2552, 0.0
      %v2601 = vmax.f32 %v2553, 0.0
      %v2602 = vmax.f32 %v2554, 0.0
      %v2603 = vmax.f32 %v2555, 0.0
      %v2604 = vmax.f32 %v2556, 0.0
      %v2605 = vmax.f32 %v2557, 0.0
      %v2606 = vmax.f32 %v2558, 0.0
      %v2607 = vmax.f32 %v2559, 0.0
      %v2608 = vmax.f32 %v2560, 0.0
      %v2609 = vmax.f32 %v2561, 0.0
      %v2610 = vmin.f32 %v2562, 6.0
      %v2611 = vmin.f32 %v2563, 6.0
      %v2612 = vmin.f32 %v2564, 6.0
      %v2613 = vmin.f32 %v2565, 6.0
      %v2614 = vmin.f32 %v2566, 6.0
      %v2615 = vmin.f32 %v2567, 6.0
      %v2616 = vmin.f32 %v2568, 6.0
      %v2617 = vmin.f32 %v2569, 6.0
      %v2618 = vmin.f32 %v2570, 6.0
      %v2619 = vmin.f32 %v2571, 6.0
      %v2620 = vmin.f32 %v2572, 6.0
      %v2621 = vmin.f32 %v2573, 6.0
      %v2622 = vmin.f32 %v2574, 6.0
      %v2623 = vmin.f32 %v2575, 6.0
      %v2624 = vmin.f32 %v2576, 6.0
      %v2625 = vmin.f32 %v2577, 6.0
      %v2626 = vmin.f32 %v2578, 6.0
      %v2627 = vmin.f32 %v2579, 6.0
      %v2628 = vmin.f32 %v2580, 6.0
      %v2629 = vmin.f32 %v2581, 6.0
      %v2630 = vmin.f32 %v2582, 6.0
      %v2631 = vmin.f32 %v2583, 6.0
      %v2632 = vmin.f32 %v2584, 6.0
      %v2633 = vmin.f32 %v2585, 6.0
      %v2634 = vmin.f32 %v2586, 6.0
      %v2635 = vmin.f32 %v2587, 6.0
      %v2636 = vmin.f32 %v2588, 6.0
      %v2637 = vmin.f32 %v2589, 6.0
      %v2638 = vmin.f32 %v2590, 6.0
      %v2639 = vmin.f32 %v2591, 6.0
      %v2640 = vmin.f32 %v2592, 6.0
      %v2641 = vmin.f32 %v2593, 6.0
      %v2642 = vmin.f32 %v2594, 6.0
      %v2643 = vmin.f32 %v2595, 6.0
      %v2644 = vmin.f32 %v2596, 6.0
      %v2645 = vmin.f32 %v2597, 6.0
      %v2646 = vmin.f32 %v2598, 6.0
      %v2647 = vmin.f32 %v2599, 6.0
      %v2648 = vmin.f32 %v2600, 6.0
      %v2649 = vmin.f32 %v2601, 6.0
      %v2650 = vmin.f32 %v2602, 6.0
      %v2651 = vmin.f32 %v2603, 6.0
      %v2652 = vmin.f32 %v2604, 6.0
      %v2653 = vmin.f32 %v2605, 6.0
      %v2654 = vmin.f32 %v2606, 6.0
      %v2655 = vmin.f32 %v2607, 6.0
      %v2656 = vmin.f32 %v2608, 6.0
      %v2657 = vmin.f32 %v2609, 6.0
      %vm2706 = vcmask 1040384
      %v2707 = vrot.slane %v2610, 7
      %v2708 = vrot.slane %v2611, 7
      %v2709 = vsel %vm2706, %v2707, %v2708
      %v2710 = vrot.slane %v2612, 7
      %v2711 = vsel %vm2706, %v2708, %v2710
      %v2712 = vrot.slane %v2613, 7
      %v2713 = vrot.slane %v2614, 7
      %v2714 = vsel %vm2706, %v2712, %v2713
      %v2715 = vrot.slane %v2615, 7
      %v2716 = vsel %vm2706, %v2713, %v2715
      %v2717 = vrot.slane %v2616, 7
      %v2718 = vrot.slane %v2617, 7
      %v2719 = vsel %vm2706, %v2717, %v2718
      %v2720 = vrot.slane %v2618, 7
      %v2721 = vsel %vm2706, %v2718, %v2720
      %v2722 = vrot.slane %v2619, 7
      %v2723 = vrot.slane %v2620, 7
      %v2724 = vsel %vm2706, %v2722, %v2723
      %v2725 = vrot.slane %v2621, 7
      %v2726 = vsel %vm2706, %v2723, %v2725
      %v2727 = vrot.slane %v2622, 7
      %v2728 = vrot.slane %v2623, 7
      %v2729 = vsel %vm2706, %v2727, %v2728
      %v2730 = vrot.slane %v2624, 7
      %v2731 = vsel %vm2706, %v2728, %v2730
      %v2732 = vrot.slane %v2625, 7
      %v2733 = vrot.slane %v2626, 7
      %v2734 = vsel %vm2706, %v2732, %v2733
      %v2735 = vrot.slane %v2627, 7
      %v2736 = vsel %vm2706, %v2733, %v2735
      %v2737 = vrot.slane %v2628, 7
      %v2738 = vrot.slane %v2629, 7
      %v2739 = vsel %vm2706, %v2737, %v2738
      %v2740 = vrot.slane %v2630, 7
      %v2741 = vsel %vm2706, %v2738, %v2740
      %v2742 = vrot.slane %v2631, 7
      %v2743 = vrot.slane %v2632, 7
      %v2744 = vsel %vm2706, %v2742, %v2743
      %v2745 = vrot.slane %v2633, 7
      %v2746 = vsel %vm2706, %v2743, %v2745
      %v2747 = vrot.slane %v2634, 7
      %v2748 = vrot.slane %v2635, 7
      %v2749 = vsel %vm2706, %v2747, %v2748
      %v2750 = vrot.slane %v2636, 7
      %v2751 = vsel %vm2706, %v2748, %v2750
      %v2752 = vrot.slane %v2637, 7
      %v2753 = vrot.slane %v2638, 7
      %v2754 = vsel %vm2706, %v2752, %v2753
      %v2755 = vrot.slane %v2639, 7
      %v2756 = vsel %vm2706, %v2753, %v2755
      %v2757 = vrot.slane %v2640, 7
      %v2758 = vrot.slane %v2641, 7
      %v2759 = vsel %vm2706, %v2757, %v2758
      %v2760 = vrot.slane %v2642, 7
      %v2761 = vsel %vm2706, %v2758, %v2760
      %v2762 = vrot.slane %v2643, 7
      %v2763 = vrot.slane %v2644, 7
      %v2764 = vsel %vm2706, %v2762, %v2763
      %v2765 = vrot.slane %v2645, 7
      %v2766 = vsel %vm2706, %v2763, %v2765
      %v2767 = vrot.slane %v2646, 7
      %v2768 = vrot.slane %v2647, 7
      %v2769 = vsel %vm2706, %v2767, %v2768
      %v2770 = vrot.slane %v2648, 7
      %v2771 = vsel %vm2706, %v2768, %v2770
      %v2772 = vrot.slane %v2649, 7
      %v2773 = vrot.slane %v2650, 7
      %v2774 = vsel %vm2706, %v2772, %v2773
      %v2775 = vrot.slane %v2651, 7
      %v2776 = vsel %vm2706, %v2773, %v2775
      %v2777 = vrot.slane %v2652, 7
      %v2778 = vrot.slane %v2653, 7
      %v2779 = vsel %vm2706, %v2777, %v2778
      %v2780 = vrot.slane %v2654, 7
      %v2781 = vsel %vm2706, %v2778, %v2780
      %v2782 = vrot.slane %v2655, 7
      %v2783 = vrot.slane %v2656, 7
      %v2784 = vsel %vm2706, %v2782, %v2783
      %v2785 = vrot.slane %v2657, 7
      %v2786 = vsel %vm2706, %v2783, %v2785
      %v2787 = vld [vmem:[%s5] sm:$0xff]
      %v2788 = vld [vmem:[%s5 + $0x8] sm:$0xff]
      %v2789 = vld [vmem:[%s5 + $0x10] sm:$0xff]
      %v2790 = vld [vmem:[%s5 + $0x18] sm:$0xff]
      %v2791 = vld [vmem:[%s5 + $0x20] sm:$0xff]
      %v2792 = vld [vmem:[%s5 + $0x28] sm:$0xff]
      %v2793 = vld [vmem:[%s5 + $0x30] sm:$0xff]
      %v2794 = vld [vmem:[%s5 + $0x38] sm:$0xff]
      %v2795 = vld [vmem:[%s5 + $0x40] sm:$0xff]
      %v2796 = vld [vmem:[%s5 + $0x48] sm:$0xff]
      %v2797 = vld [vmem:[%s5 + $0x50] sm:$0xff]
      %v2798 = vld [vmem:[%s5 + $0x58] sm:$0xff]
      %v2799 = vld [vmem:[%s6] sm:$0x1]
      %v2801 = vperm.slane %v2799, 0
      %v2803 = vsel %vm591, %v2709, 0
      %v2805 = vsel %vm591, %v2711, 0
      %v2807 = vsel %vm591, %v2714, 0
      %v2809 = vsel %vm591, %v2716, 0
      %v2811 = vsel %vm591, %v2719, 0
      %v2813 = vsel %vm591, %v2721, 0
      %v2815 = vsel %vm591, %v2724, 0
      %v2817 = vsel %vm591, %v2726, 0
      %v2819 = vsel %vm591, %v2729, 0
      %v2821 = vsel %vm591, %v2731, 0
      %v2823 = vsel %vm591, %v2734, 0
      %v2825 = vsel %vm591, %v2736, 0
      %v2827 = vsel %vm591, %v2739, 0
      %v2829 = vsel %vm591, %v2741, 0
      %v2831 = vsel %vm591, %v2744, 0
      %v2833 = vsel %vm591, %v2746, 0
      %v2835 = vsel %vm591, %v2749, 0
      %v2837 = vsel %vm591, %v2751, 0
      %v2839 = vsel %vm591, %v2754, 0
      %v2841 = vsel %vm591, %v2756, 0
      %v2843 = vsel %vm591, %v2759, 0
      %v2845 = vsel %vm591, %v2761, 0
      %v2847 = vsel %vm591, %v2764, 0
      %v2849 = vsel %vm591, %v2766, 0
      %v2851 = vsel %vm591, %v2769, 0
      %v2853 = vsel %vm591, %v2771, 0
      %v2855 = vsel %vm591, %v2774, 0
      %v2857 = vsel %vm591, %v2776, 0
      %v2859 = vsel %vm591, %v2779, 0
      %v2861 = vsel %vm591, %v2781, 0
      %v2863 = vsel %vm591, %v2784, 0
      %v2865 = vsel %vm591, %v2786, 0
      %2867 = vmatpush.msra.mxu0 0.0
      %2868 = vmatpush.msra.mxu0 0.0
      %2869 = vmatpush.msra.mxu0 0.0
      %2870 = vmatpush.msra.mxu0 0.0
      %2871 = vmatpush.msra.mxu0 %v2798
      %2872 = vmatpush.msra.mxu0 %v2797
      %2873 = vmatpush.msra.mxu0 %v2796
      %2874 = vmatpush.msra.mxu0 %v2795
      %2875 = vmatpush.msra.mxu0 %v2794
      %2876 = vmatpush.msra.mxu0 %v2793
      %2877 = vmatpush.msra.mxu0 %v2792
      %2878 = vmatpush.msra.mxu0 %v2791
      %2879 = vmatpush.msra.mxu0 %v2790
      %2880 = vmatpush.msra.mxu0 %v2789
      %2881 = vmatpush.msra.mxu0 %v2788
      %2882 = vmatpush.msra.mxu0 %v2787
      %2883 = vmatmul.f32.gmra.mxu0 %v2803
      %v2884 = vpop.f32.mrf.mxu0
      %v2885 = vadd.f32 %v2801, %v2884
      %2886 = vmatmul.f32.gmra.mxu0 %v2805
      %v2887 = vpop.f32.mrf.mxu0
      %v2888 = vadd.f32 %v2801, %v2887
      %2889 = vmatmul.f32.gmra.mxu0 %v2807
      %v2890 = vpop.f32.mrf.mxu0
      %v2891 = vadd.f32 %v2801, %v2890
      %2892 = vmatmul.f32.gmra.mxu0 %v2809
      %v2893 = vpop.f32.mrf.mxu0
      %v2894 = vadd.f32 %v2801, %v2893
      %2895 = vmatmul.f32.gmra.mxu0 %v2811
      %v2896 = vpop.f32.mrf.mxu0
      %v2897 = vadd.f32 %v2801, %v2896
      %2898 = vmatmul.f32.gmra.mxu0 %v2813
      %v2899 = vpop.f32.mrf.mxu0
      %v2900 = vadd.f32 %v2801, %v2899
      %2901 = vmatmul.f32.gmra.mxu0 %v2815
      %v2902 = vpop.f32.mrf.mxu0
      %v2903 = vadd.f32 %v2801, %v2902
      %2904 = vmatmul.f32.gmra.mxu0 %v2817
      %v2905 = vpop.f32.mrf.mxu0
      %v2906 = vadd.f32 %v2801, %v2905
      %2907 = vmatmul.f32.gmra.mxu0 %v2819
      %v2908 = vpop.f32.mrf.mxu0
      %v2909 = vadd.f32 %v2801, %v2908
      %2910 = vmatmul.f32.gmra.mxu0 %v2821
      %v2911 = vpop.f32.mrf.mxu0
      %v2912 = vadd.f32 %v2801, %v2911
      %2913 = vmatmul.f32.gmra.mxu0 %v2823
      %v2914 = vpop.f32.mrf.mxu0
      %v2915 = vadd.f32 %v2801, %v2914
      %2916 = vmatmul.f32.gmra.mxu0 %v2825
      %v2917 = vpop.f32.mrf.mxu0
      %v2918 = vadd.f32 %v2801, %v2917
      %2919 = vmatmul.f32.gmra.mxu0 %v2827
      %v2920 = vpop.f32.mrf.mxu0
      %v2921 = vadd.f32 %v2801, %v2920
      %2922 = vmatmul.f32.gmra.mxu0 %v2829
      %v2923 = vpop.f32.mrf.mxu0
      %v2924 = vadd.f32 %v2801, %v2923
      %2925 = vmatmul.f32.gmra.mxu0 %v2831
      %v2926 = vpop.f32.mrf.mxu0
      %v2927 = vadd.f32 %v2801, %v2926
      %2928 = vmatmul.f32.gmra.mxu0 %v2833
      %v2929 = vpop.f32.mrf.mxu0
      %v2930 = vadd.f32 %v2801, %v2929
      %2931 = vmatmul.f32.gmra.mxu0 %v2835
      %v2932 = vpop.f32.mrf.mxu0
      %v2933 = vadd.f32 %v2801, %v2932
      %2934 = vmatmul.f32.gmra.mxu0 %v2837
      %v2935 = vpop.f32.mrf.mxu0
      %v2936 = vadd.f32 %v2801, %v2935
      %2937 = vmatmul.f32.gmra.mxu0 %v2839
      %v2938 = vpop.f32.mrf.mxu0
      %v2939 = vadd.f32 %v2801, %v2938
      %2940 = vmatmul.f32.gmra.mxu0 %v2841
      %v2941 = vpop.f32.mrf.mxu0
      %v2942 = vadd.f32 %v2801, %v2941
      %2943 = vmatmul.f32.gmra.mxu0 %v2843
      %v2944 = vpop.f32.mrf.mxu0
      %v2945 = vadd.f32 %v2801, %v2944
      %2946 = vmatmul.f32.gmra.mxu0 %v2845
      %v2947 = vpop.f32.mrf.mxu0
      %v2948 = vadd.f32 %v2801, %v2947
      %2949 = vmatmul.f32.gmra.mxu0 %v2847
      %v2950 = vpop.f32.mrf.mxu0
      %v2951 = vadd.f32 %v2801, %v2950
      %2952 = vmatmul.f32.gmra.mxu0 %v2849
      %v2953 = vpop.f32.mrf.mxu0
      %v2954 = vadd.f32 %v2801, %v2953
      %2955 = vmatmul.f32.gmra.mxu0 %v2851
      %v2956 = vpop.f32.mrf.mxu0
      %v2957 = vadd.f32 %v2801, %v2956
      %2958 = vmatmul.f32.gmra.mxu0 %v2853
      %v2959 = vpop.f32.mrf.mxu0
      %v2960 = vadd.f32 %v2801, %v2959
      %2961 = vmatmul.f32.gmra.mxu0 %v2855
      %v2962 = vpop.f32.mrf.mxu0
      %v2963 = vadd.f32 %v2801, %v2962
      %2964 = vmatmul.f32.gmra.mxu0 %v2857
      %v2965 = vpop.f32.mrf.mxu0
      %v2966 = vadd.f32 %v2801, %v2965
      %2967 = vmatmul.f32.gmra.mxu0 %v2859
      %v2968 = vpop.f32.mrf.mxu0
      %v2969 = vadd.f32 %v2801, %v2968
      %2970 = vmatmul.f32.gmra.mxu0 %v2861
      %v2971 = vpop.f32.mrf.mxu0
      %v2972 = vadd.f32 %v2801, %v2971
      %2973 = vmatmul.f32.gmra.mxu0 %v2863
      %v2974 = vpop.f32.mrf.mxu0
      %v2975 = vadd.f32 %v2801, %v2974
      %2976 = vmatmul.f32.gmra.mxu0 %v2865
      %v2977 = vpop.f32.mrf.mxu0
      %v2978 = vadd.f32 %v2801, %v2977
      %2979 = vdwg.mxu0
      %vm2980 = vcmask 195584
      %2981 = vst.msk [vmem:[%s278] sm:$0xff] %vm2980, %v2885
      %2982 = vst.msk [vmem:[%s278 + $0x8] sm:$0xff] %vm2980, %v2888
      %2983 = vst.msk [vmem:[%s278 + $0x10] sm:$0xff] %vm2980, %v2891
      %2984 = vst.msk [vmem:[%s278 + $0x18] sm:$0xff] %vm2980, %v2894
      %2985 = vst.msk [vmem:[%s278 + $0x20] sm:$0xff] %vm2980, %v2897
      %2986 = vst.msk [vmem:[%s278 + $0x28] sm:$0xff] %vm2980, %v2900
      %2987 = vst.msk [vmem:[%s278 + $0x30] sm:$0xff] %vm2980, %v2903
      %2988 = vst.msk [vmem:[%s278 + $0x38] sm:$0xff] %vm2980, %v2906
      %2989 = vst.msk [vmem:[%s278 + $0x40] sm:$0xff] %vm2980, %v2909
      %2990 = vst.msk [vmem:[%s278 + $0x48] sm:$0xff] %vm2980, %v2912
      %2991 = vst.msk [vmem:[%s278 + $0x50] sm:$0xff] %vm2980, %v2915
      %2992 = vst.msk [vmem:[%s278 + $0x58] sm:$0xff] %vm2980, %v2918
      %2993 = vst.msk [vmem:[%s278 + $0x60] sm:$0xff] %vm2980, %v2921
      %2994 = vst.msk [vmem:[%s278 + $0x68] sm:$0xff] %vm2980, %v2924
      %2995 = vst.msk [vmem:[%s278 + $0x70] sm:$0xff] %vm2980, %v2927
      %2996 = vst.msk [vmem:[%s278 + $0x78] sm:$0xff] %vm2980, %v2930
      %2997 = vst.msk [vmem:[%s278 + $0x80] sm:$0xff] %vm2980, %v2933
      %2998 = vst.msk [vmem:[%s278 + $0x88] sm:$0xff] %vm2980, %v2936
      %2999 = vst.msk [vmem:[%s278 + $0x90] sm:$0xff] %vm2980, %v2939
      %3000 = vst.msk [vmem:[%s278 + $0x98] sm:$0xff] %vm2980, %v2942
      %3001 = vst.msk [vmem:[%s278 + $0xa0] sm:$0xff] %vm2980, %v2945
      %3002 = vst.msk [vmem:[%s278 + $0xa8] sm:$0xff] %vm2980, %v2948
      %3003 = vst.msk [vmem:[%s278 + $0xb0] sm:$0xff] %vm2980, %v2951
      %3004 = vst.msk [vmem:[%s278 + $0xb8] sm:$0xff] %vm2980, %v2954
      %3005 = vst.msk [vmem:[%s278 + $0xc0] sm:$0xff] %vm2980, %v2957
      %3006 = vst.msk [vmem:[%s278 + $0xc8] sm:$0xff] %vm2980, %v2960
      %3007 = vst.msk [vmem:[%s278 + $0xd0] sm:$0xff] %vm2980, %v2963
      %3008 = vst.msk [vmem:[%s278 + $0xd8] sm:$0xff] %vm2980, %v2966
      %3009 = vst.msk [vmem:[%s278 + $0xe0] sm:$0xff] %vm2980, %v2969
      %3010 = vst.msk [vmem:[%s278 + $0xe8] sm:$0xff] %vm2980, %v2972
      %3011 = vst.msk [vmem:[%s278 + $0xf0] sm:$0xff] %vm2980, %v2975
      %3012 = vst.msk [vmem:[%s278 + $0xf8] sm:$0xff] %vm2980, %v2978
      %p3013 = scmp.lt.s32.totalorder %s18, 1
      %s3014 = scalar_select %p3013, %s18, 1
      %s3015 = smul.addr %s3014, 32
      %s3016 = smul.addr %s3015, 8
      %s3017 = scalar_lea.vmem %s7, %s3016
      // Predicated region
      $region49: #{branch_forward.4} parent=47 // pred_check
        %p3018 = pneg %p188
      $region50: #{branch_forward.4} parent=47 // pred_check_branch
        %3020 = sbr.rel (%p3018) target = $region52
      $region51: #{branch_forward.4} parent=47 // pred_region
        _
      $region52: #{branch_forward.4} parent=47 // pred_fallthru
        _
    $region48: #{branch_forward.4} parent=5 // pred_fallthru
      _
    %p3021 = scmp.le.s32.totalorder 2, %s13
    // Predicated region
    $region53: #{branch_forward.4} parent=5 // pred_check
      %p3022 = pneg %p3021
    $region54: #{branch_forward.4} parent=5 // pred_check_branch
      %3024 = sbr.rel (%p3022) target = $region56
    $region55: #{branch_forward.4} parent=5 // pred_region
      %s3025 = ssub.s32 %s13, 2
      // Predicated region
      $region57: #{branch_forward.4} parent=55 // pred_check
        %p3026 = pneg %p194
      $region58: #{branch_forward.4} parent=55 // pred_check_branch
        %3028 = sbr.rel (%p3026) target = $region60
      $region59: #{branch_forward.4} parent=55 // pred_region
        %p3029 = scmp.lt.s32.totalorder %s19, 1
        %s3030 = scalar_select %p3029, %s19, 1
        %s3031 = smul.addr %s3030, 32
        %s3032 = smul.addr %s3031, 8
        %s3033 = scalar_lea.vmem %s7, %s3032
      $region60: #{branch_forward.4} parent=55 // pred_fallthru
        _
    $region56: #{branch_forward.4} parent=5 // pred_fallthru
      _
  $region6: #{branch_forward.4} parent=0 // loop_footer
    %s17 = sadd.s32 1, %s13
  $region7: #{branch_forward.4} parent=0 // loop_footer_branch
    %12 = sbr.rel target = $region3
  $region8: #{branch_forward.4} parent=0 // loop_exit
    _

// kernel: branch_forward.3
$region0: #{branch_forward.3}
  #allocation0 [shape = 'u32[]', space=smem, size = 0x4, offset = 0x4, fixed_abs, tag = 'smem constant byte address 0x4 - core index']
  #allocation1 [shape = 'u32[72,128]{1,0:T(1,128)}', space=vmem, size = 0x9000, scoped, tag = 'internal scratch']
  #allocation2 [shape = 'f32[18,32,8]{2,1,0:T(8,128)}', space=vmem, size = 0x48000, scoped, tag = 'scratch operand']
  %s0 = inlined_call_operand.vmem [shape: f32[2,16,16,8], index: 0, kind: input, shape index: {}]
  %s1 = inlined_call_operand.vmem [shape: f32[9,8], index: 1, kind: input, shape index: {}]
  %s2 = inlined_call_operand.vmem [shape: f32[1,8], index: 2, kind: input, shape index: {}]
  %s3 = inlined_call_operand.vmem [shape: f32[8,16], index: 3, kind: input, shape index: {}]
  %s4 = inlined_call_operand.vmem [shape: f32[1,16], index: 4, kind: input, shape index: {}]
  %s5 = inlined_call_operand.vmem [shape: f32[2,16,16,16], index: 5, kind: output, shape index: {}]
  %s6 = sld [smem:[#allocation0]]
  $region53: #{branch_forward.3} parent=0
    _
  %s8 = ssub.s32 1, %s6
  %s9 = scalar_select 0, %s8, %s6
  loop: start=0, step=1, limit=4
  $region2: #{branch_forward.3} parent=0 // loop_pre_header
    _
  $region3: #{branch_forward.3} parent=0 // loop_header
    %s11 = sphi 0, %s15
    %p12 = scmp.ge.s32.totalorder %s11, 4
    %s21 = sphi 0, %s23
    %s24 = sphi 0, %s21
    %s25 = sphi 0, %s24
    %s41 = sphi 0, %s25
    %s45 = sphi 0, %s45
    %s47 = sphi 0, %s45
    %s48 = sphi 0, %s47
    %s62 = sphi 0, %s48
    %s66 = sphi 0, %s66
    %s68 = sphi 0, %s66
    %s69 = sphi 0, %s68
    %s83 = sphi 0, %s69
    %s87 = sphi 0, %s87
    %s89 = sphi 0, %s87
    %s90 = sphi 0, %s89
    %s104 = sphi 0, %s90
    %s108 = sphi 0, %s108
    %s110 = sphi 0, %s108
    %s111 = sphi 0, %s110
    %s125 = sphi 0, %s111
    %s131 = sphi 0, %s133
    %s134 = sphi 0, %s131
    %s135 = sphi 0, %s134
    %s151 = sphi 0, %s135
  $region4: #{branch_forward.3} parent=0 // loop_header_branch
    %14 = sbr.rel (%p12) target = $region8
  $region5: #{branch_forward.3} parent=0 // loop_body
    %s16 = ssub.s32 %s11, 1
    %s17 = ssub.s32 %s11, 2
    %s18 = sadd.s32 %s11, 1
    %s19 = ssub.s32 %s11, %s18
    %p20 = scmp.eq.s32.totalorder %s19, 0
    %s22 = sadd.s32 %s21, 1
    %s23 = scalar_select %p20, %s21, %s22
    %p26 = pneg %p20
    %p27 = scmp.eq.s32.totalorder %s11, 1
    %p28 = por %p26, %p27
    %p29 = scmp.ne.s32.totalorder %s21, %s24
    %p30 = scmp.eq.s32.totalorder %s11, 0
    %p31 = por %p29, %p30
    %p32 = scmp.ne.s32.totalorder %s21, %s24
    %p33 = scmp.eq.s32.totalorder %s16, 1
    %p34 = por %p32, %p33
    %p35 = scmp.ne.s32.totalorder %s24, %s25
    %p36 = scmp.eq.s32.totalorder %s16, 0
    %p37 = por %p35, %p36
    %p38 = scmp.ne.s32.totalorder %s24, %s25
    %p39 = scmp.eq.s32.totalorder %s17, 1
    %p40 = por %p38, %p39
    %p42 = scmp.ne.s32.totalorder %s25, %s41
    %p43 = scmp.eq.s32.totalorder %s17, 0
    %p44 = por %p42, %p43
    %s46 = sadd.s32 %s45, 1
    %p49 = scmp.eq.s32.totalorder %s11, 1
    %p50 = scmp.ne.s32.totalorder %s45, %s47
    %p51 = scmp.eq.s32.totalorder %s11, 0
    %p52 = por %p50, %p51
    %p53 = scmp.ne.s32.totalorder %s45, %s47
    %p54 = scmp.eq.s32.totalorder %s16, 1
    %p55 = por %p53, %p54
    %p56 = scmp.ne.s32.totalorder %s47, %s48
    %p57 = scmp.eq.s32.totalorder %s16, 0
    %p58 = por %p56, %p57
    %p59 = scmp.ne.s32.totalorder %s47, %s48
    %p60 = scmp.eq.s32.totalorder %s17, 1
    %p61 = por %p59, %p60
    %p63 = scmp.ne.s32.totalorder %s48, %s62
    %p64 = scmp.eq.s32.totalorder %s17, 0
    %p65 = por %p63, %p64
    %s67 = sadd.s32 %s66, 1
    %p70 = scmp.eq.s32.totalorder %s11, 1
    %p71 = scmp.ne.s32.totalorder %s66, %s68
    %p72 = scmp.eq.s32.totalorder %s11, 0
    %p73 = por %p71, %p72
    %p74 = scmp.ne.s32.totalorder %s66, %s68
    %p75 = scmp.eq.s32.totalorder %s16, 1
    %p76 = por %p74, %p75
    %p77 = scmp.ne.s32.totalorder %s68, %s69
    %p78 = scmp.eq.s32.totalorder %s16, 0
    %p79 = por %p77, %p78
    %p80 = scmp.ne.s32.totalorder %s68, %s69
    %p81 = scmp.eq.s32.totalorder %s17, 1
    %p82 = por %p80, %p81
    %p84 = scmp.ne.s32.totalorder %s69, %s83
    %p85 = scmp.eq.s32.totalorder %s17, 0
    %p86 = por %p84, %p85
    %s88 = sadd.s32 %s87, 1
    %p91 = scmp.eq.s32.totalorder %s11, 1
    %p92 = scmp.ne.s32.totalorder %s87, %s89
    %p93 = scmp.eq.s32.totalorder %s11, 0
    %p94 = por %p92, %p93
    %p95 = scmp.ne.s32.totalorder %s87, %s89
    %p96 = scmp.eq.s32.totalorder %s16, 1
    %p97 = por %p95, %p96
    %p98 = scmp.ne.s32.totalorder %s89, %s90
    %p99 = scmp.eq.s32.totalorder %s16, 0
    %p100 = por %p98, %p99
    %p101 = scmp.ne.s32.totalorder %s89, %s90
    %p102 = scmp.eq.s32.totalorder %s17, 1
    %p103 = por %p101, %p102
    %p105 = scmp.ne.s32.totalorder %s90, %s104
    %p106 = scmp.eq.s32.totalorder %s17, 0
    %p107 = por %p105, %p106
    %s109 = sadd.s32 %s108, 1
    %p112 = scmp.eq.s32.totalorder %s11, 1
    %p113 = scmp.ne.s32.totalorder %s108, %s110
    %p114 = scmp.eq.s32.totalorder %s11, 0
    %p115 = por %p113, %p114
    %p116 = scmp.ne.s32.totalorder %s108, %s110
    %p117 = scmp.eq.s32.totalorder %s16, 1
    %p118 = por %p116, %p117
    %p119 = scmp.ne.s32.totalorder %s110, %s111
    %p120 = scmp.eq.s32.totalorder %s16, 0
    %p121 = por %p119, %p120
    %p122 = scmp.ne.s32.totalorder %s110, %s111
    %p123 = scmp.eq.s32.totalorder %s17, 1
    %p124 = por %p122, %p123
    %p126 = scmp.ne.s32.totalorder %s111, %s125
    %p127 = scmp.eq.s32.totalorder %s17, 0
    %p128 = por %p126, %p127
    %s129 = ssub.s32 %s11, %s18
    %p130 = scmp.eq.s32.totalorder %s129, 0
    %s132 = sadd.s32 %s131, 1
    %s133 = scalar_select %p130, %s131, %s132
    %p136 = pneg %p130
    %p137 = scmp.eq.s32.totalorder %s11, 1
    %p138 = por %p136, %p137
    %p139 = scmp.ne.s32.totalorder %s131, %s134
    %p140 = scmp.eq.s32.totalorder %s11, 0
    %p141 = por %p139, %p140
    %p142 = scmp.ne.s32.totalorder %s131, %s134
    %p143 = scmp.eq.s32.totalorder %s16, 1
    %p144 = por %p142, %p143
    %p145 = scmp.ne.s32.totalorder %s134, %s135
    %p146 = scmp.eq.s32.totalorder %s16, 0
    %p147 = por %p145, %p146
    %p148 = scmp.ne.s32.totalorder %s134, %s135
    %p149 = scmp.eq.s32.totalorder %s17, 1
    %p150 = por %p148, %p149
    %p152 = scmp.ne.s32.totalorder %s135, %s151
    %p153 = scmp.eq.s32.totalorder %s17, 0
    %p154 = por %p152, %p153
    %p155 = scmp.le.s32.totalorder 1, %s11
    %p156 = scmp.lt.s32.totalorder %s11, 3
    %p157 = pnand %p155, %p156
    %p158 = pneg %p157
    // Predicated region
    $region9: #{branch_forward.3} parent=5 // pred_check
      _
    $region10: #{branch_forward.3} parent=5 // pred_check_branch
      %160 = sbr.rel (%p157) target = $region12
    $region11: #{branch_forward.3} parent=5 // pred_region
      %s161 = ssub.s32 %s11, 1
      // Predicated region
      $region13: #{branch_forward.3} parent=11 // pred_check
        %p162 = pneg %p58
      $region14: #{branch_forward.3} parent=11 // pred_check_branch
        %164 = sbr.rel (%p162) target = $region16
      $region15: #{branch_forward.3} parent=11 // pred_region
        _
      $region16: #{branch_forward.3} parent=11 // pred_fallthru
        _
      // Predicated region
      $region17: #{branch_forward.3} parent=11 // pred_check
        %p165 = pneg %p79
      $region18: #{branch_forward.3} parent=11 // pred_check_branch
        %167 = sbr.rel (%p165) target = $region20
      $region19: #{branch_forward.3} parent=11 // pred_region
        _
      $region20: #{branch_forward.3} parent=11 // pred_fallthru
        _
      // Predicated region
      $region21: #{branch_forward.3} parent=11 // pred_check
        %p168 = pneg %p100
      $region22: #{branch_forward.3} parent=11 // pred_check_branch
        %170 = sbr.rel (%p168) target = $region24
      $region23: #{branch_forward.3} parent=11 // pred_region
        _
      $region24: #{branch_forward.3} parent=11 // pred_fallthru
        _
      // Predicated region
      $region25: #{branch_forward.3} parent=11 // pred_check
        %p171 = pneg %p121
      $region26: #{branch_forward.3} parent=11 // pred_check_branch
        %173 = sbr.rel (%p171) target = $region28
      $region27: #{branch_forward.3} parent=11 // pred_region
        _
      $region28: #{branch_forward.3} parent=11 // pred_fallthru
        _
    $region12: #{branch_forward.3} parent=5 // pred_fallthru
      _
    %p174 = scmp.lt.s32.totalorder %s11, 2
    // Predicated region
    $region29: #{branch_forward.3} parent=5 // pred_check
      %p175 = pneg %p174
    $region30: #{branch_forward.3} parent=5 // pred_check_branch
      %177 = sbr.rel (%p175) target = $region32
    $region31: #{branch_forward.3} parent=5 // pred_region
      // Predicated region
      $region33: #{branch_forward.3} parent=31 // pred_check
        %p178 = pneg %p31
      $region34: #{branch_forward.3} parent=31 // pred_check_branch
        %180 = sbr.rel (%p178) target = $region36
      $region35: #{branch_forward.3} parent=31 // pred_region
        %p181 = scmp.lt.s32.totalorder %s11, 1
        %s182 = scalar_select %p181, %s11, 1
        %s183 = smul.addr %s182, 32
        %s184 = smul.addr %s183, 8
        %s185 = scalar_lea.vmem %s0, %s184
      $region36: #{branch_forward.3} parent=31 // pred_fallthru
        _
    $region32: #{branch_forward.3} parent=5 // pred_fallthru
      _
    %p186 = scmp.le.s32.totalorder 1, %s11
    %p187 = scmp.lt.s32.totalorder %s11, 3
    %p188 = pnand %p186, %p187
    %p189 = pneg %p188
    // Predicated region
    $region37: #{branch_forward.3} parent=5 // pred_check
      _
    $region38: #{branch_forward.3} parent=5 // pred_check_branch
      %191 = sbr.rel (%p188) target = $region40
    $region39: #{branch_forward.3} parent=5 // pred_region
      %s192 = ssub.s32 %s11, 1
      %p193 = scmp.lt.s32.totalorder %s16, 1
      %s194 = scalar_select %p193, %s16, 1
      %s195 = smul.addr %s194, 32
      %s196 = smul.addr %s195, 8
      %s197 = scalar_lea.vmem %s0, %s196
      %p198 = pneg %p37
      %p199 = pneg %p34
      %p200 = pneg %p58
      %p201 = pneg %p55
      %p202 = pneg %p79
      %p203 = pneg %p76
      %p204 = pneg %p100
      %p205 = pneg %p97
      %p206 = pneg %p121
      %p207 = pneg %p118
      %p208 = pneg %p147
      %p209 = pneg %p144
      %p210 = scmp.lt.s32.totalorder %s16, 1
      %s211 = scalar_select %p210, %s16, 1
      %s212 = smul.addr %s211, 32
      %s213 = smul.addr %s212, 8
      %s214 = scalar_lea.vmem %s5, %s213
      %p215 = scmp.lt.s32.totalorder %s16, 1
      %s216 = scalar_select %p215, %s16, 1
      %s217 = smul.addr %s216, 32
      %s218 = smul.addr %s217, 8
      %s219 = scalar_lea.vmem %s0, %s218
      %p220 = scmp.lt.s32.totalorder %s16, 1
      %s221 = scalar_select %p220, %s16, 1
      %s222 = smul.addr %s221, 32
      %s223 = smul.addr %s222, 8
      %s224 = scalar_lea.vmem %s5, %s223
      %v225 = vld [vmem:[%s219] sm:$0xff]
      %v226 = vld [vmem:[%s219 + $0x8] sm:$0xff]
      %v227 = vld [vmem:[%s219 + $0x10] sm:$0xff]
      %v228 = vld [vmem:[%s219 + $0x18] sm:$0xff]
      %v229 = vld [vmem:[%s219 + $0x20] sm:$0xff]
      %v230 = vld [vmem:[%s219 + $0x28] sm:$0xff]
      %v231 = vld [vmem:[%s219 + $0x30] sm:$0xff]
      %v232 = vld [vmem:[%s219 + $0x38] sm:$0xff]
      %v233 = vld [vmem:[%s219 + $0x40] sm:$0xff]
      %v234 = vld [vmem:[%s219 + $0x48] sm:$0xff]
      %v235 = vld [vmem:[%s219 + $0x50] sm:$0xff]
      %v236 = vld [vmem:[%s219 + $0x58] sm:$0xff]
      %v237 = vld [vmem:[%s219 + $0x60] sm:$0xff]
      %v238 = vld [vmem:[%s219 + $0x68] sm:$0xff]
      %v239 = vld [vmem:[%s219 + $0x70] sm:$0xff]
      %v240 = vld [vmem:[%s219 + $0x78] sm:$0xff]
      %v241 = vld [vmem:[%s219 + $0x80] sm:$0xff]
      %v242 = vld [vmem:[%s219 + $0x88] sm:$0xff]
      %v243 = vld [vmem:[%s219 + $0x90] sm:$0xff]
      %v244 = vld [vmem:[%s219 + $0x98] sm:$0xff]
      %v245 = vld [vmem:[%s219 + $0xa0] sm:$0xff]
      %v246 = vld [vmem:[%s219 + $0xa8] sm:$0xff]
      %v247 = vld [vmem:[%s219 + $0xb0] sm:$0xff]
      %v248 = vld [vmem:[%s219 + $0xb8] sm:$0xff]
      %v249 = vld [vmem:[%s219 + $0xc0] sm:$0xff]
      %v250 = vld [vmem:[%s219 + $0xc8] sm:$0xff]
      %v251 = vld [vmem:[%s219 + $0xd0] sm:$0xff]
      %v252 = vld [vmem:[%s219 + $0xd8] sm:$0xff]
      %v253 = vld [vmem:[%s219 + $0xe0] sm:$0xff]
      %v254 = vld [vmem:[%s219 + $0xe8] sm:$0xff]
      %v255 = vld [vmem:[%s219 + $0xf0] sm:$0xff]
      %v256 = vld [vmem:[%s219 + $0xf8] sm:$0xff]
      %vm257 = vcmask 64512
      %258 = vst.msk [vmem:[#allocation2] sm:$0xff] %vm257, 0.0
      %259 = vst.msk [vmem:[#allocation2 + $0x8] sm:$0xff] %vm257, 0.0
      %260 = vst.msk [vmem:[#allocation2 + $0x10] sm:$0xff] %vm257, 0.0
      %261 = vst.msk [vmem:[#allocation2 + $0x18] sm:$0xff] %vm257, 0.0
      %262 = vst.msk [vmem:[#allocation2 + $0x20] sm:$0xff] %vm257, 0.0
      %263 = vst.msk [vmem:[#allocation2 + $0x28] sm:$0xff] %vm257, 0.0
      %264 = vst.msk [vmem:[#allocation2 + $0x30] sm:$0xff] %vm257, 0.0
      %265 = vst.msk [vmem:[#allocation2 + $0x38] sm:$0xff] %vm257, 0.0
      %266 = vst.msk [vmem:[#allocation2 + $0x40] sm:$0xff] %vm257, 0.0
      %267 = vst.msk [vmem:[#allocation2 + $0x48] sm:$0xff] %vm257, 0.0
      %268 = vst.msk [vmem:[#allocation2 + $0x50] sm:$0xff] %vm257, 0.0
      %269 = vst.msk [vmem:[#allocation2 + $0x58] sm:$0xff] %vm257, 0.0
      %270 = vst.msk [vmem:[#allocation2 + $0x60] sm:$0xff] %vm257, 0.0
      %271 = vst.msk [vmem:[#allocation2 + $0x68] sm:$0xff] %vm257, 0.0
      %272 = vst.msk [vmem:[#allocation2 + $0x70] sm:$0xff] %vm257, 0.0
      %273 = vst.msk [vmem:[#allocation2 + $0x78] sm:$0xff] %vm257, 0.0
      %274 = vst.msk [vmem:[#allocation2 + $0x80] sm:$0xff] %vm257, 0.0
      %275 = vst.msk [vmem:[#allocation2 + $0x88] sm:$0xff] %vm257, 0.0
      %276 = vst.msk [vmem:[#allocation2 + $0x90] sm:$0xff] %vm257, 0.0
      %277 = vst.msk [vmem:[#allocation2 + $0x98] sm:$0xff] %vm257, 0.0
      %278 = vst.msk [vmem:[#allocation2 + $0xa0] sm:$0xff] %vm257, 0.0
      %279 = vst.msk [vmem:[#allocation2 + $0xa8] sm:$0xff] %vm257, 0.0
      %280 = vst.msk [vmem:[#allocation2 + $0xb0] sm:$0xff] %vm257, 0.0
      %281 = vst.msk [vmem:[#allocation2 + $0xb8] sm:$0xff] %vm257, 0.0
      %282 = vst.msk [vmem:[#allocation2 + $0xc0] sm:$0xff] %vm257, 0.0
      %283 = vst.msk [vmem:[#allocation2 + $0xc8] sm:$0xff] %vm257, 0.0
      %284 = vst.msk [vmem:[#allocation2 + $0xd0] sm:$0xff] %vm257, 0.0
      %285 = vst.msk [vmem:[#allocation2 + $0xd8] sm:$0xff] %vm257, 0.0
      %286 = vst.msk [vmem:[#allocation2 + $0xe0] sm:$0xff] %vm257, 0.0
      %287 = vst.msk [vmem:[#allocation2 + $0xe8] sm:$0xff] %vm257, 0.0
      %288 = vst.msk [vmem:[#allocation2 + $0xf0] sm:$0xff] %vm257, 0.0
      %289 = vst.msk [vmem:[#allocation2 + $0xf8] sm:$0xff] %vm257, 0.0
      %290 = vst.msk [vmem:[#allocation2 + $0x100] sm:$0xff] %vm257, 0.0
      %291 = vst.msk [vmem:[#allocation2 + $0x108] sm:$0xff] %vm257, 0.0
      %292 = vst.msk [vmem:[#allocation2 + $0x110] sm:$0xff] %vm257, 0.0
      %293 = vst.msk [vmem:[#allocation2 + $0x118] sm:$0xff] %vm257, 0.0
      %294 = vst.msk [vmem:[#allocation2 + $0x120] sm:$0xff] %vm257, 0.0
      %295 = vst.msk [vmem:[#allocation2 + $0x128] sm:$0xff] %vm257, 0.0
      %296 = vst.msk [vmem:[#allocation2 + $0x130] sm:$0xff] %vm257, 0.0
      %297 = vst.msk [vmem:[#allocation2 + $0x138] sm:$0xff] %vm257, 0.0
      %298 = vst.msk [vmem:[#allocation2 + $0x140] sm:$0xff] %vm257, 0.0
      %299 = vst.msk [vmem:[#allocation2 + $0x148] sm:$0xff] %vm257, 0.0
      %300 = vst.msk [vmem:[#allocation2 + $0x150] sm:$0xff] %vm257, 0.0
      %301 = vst.msk [vmem:[#allocation2 + $0x158] sm:$0xff] %vm257, 0.0
      %302 = vst.msk [vmem:[#allocation2 + $0x160] sm:$0xff] %vm257, 0.0
      %303 = vst.msk [vmem:[#allocation2 + $0x168] sm:$0xff] %vm257, 0.0
      %304 = vst.msk [vmem:[#allocation2 + $0x170] sm:$0xff] %vm257, 0.0
      %305 = vst.msk [vmem:[#allocation2 + $0x178] sm:$0xff] %vm257, 0.0
      %306 = vst.msk [vmem:[#allocation2 + $0x180] sm:$0xff] %vm257, 0.0
      %307 = vst.msk [vmem:[#allocation2 + $0x188] sm:$0xff] %vm257, 0.0
      %308 = vst.msk [vmem:[#allocation2 + $0x190] sm:$0xff] %vm257, 0.0
      %309 = vst.msk [vmem:[#allocation2 + $0x198] sm:$0xff] %vm257, 0.0
      %310 = vst.msk [vmem:[#allocation2 + $0x1a0] sm:$0xff] %vm257, 0.0
      %311 = vst.msk [vmem:[#allocation2 + $0x1a8] sm:$0xff] %vm257, 0.0
      %312 = vst.msk [vmem:[#allocation2 + $0x1b0] sm:$0xff] %vm257, 0.0
      %313 = vst.msk [vmem:[#allocation2 + $0x1b8] sm:$0xff] %vm257, 0.0
      %314 = vst.msk [vmem:[#allocation2 + $0x1c0] sm:$0xff] %vm257, 0.0
      %315 = vst.msk [vmem:[#allocation2 + $0x1c8] sm:$0xff] %vm257, 0.0
      %316 = vst.msk [vmem:[#allocation2 + $0x1d0] sm:$0xff] %vm257, 0.0
      %317 = vst.msk [vmem:[#allocation2 + $0x1d8] sm:$0xff] %vm257, 0.0
      %318 = vst.msk [vmem:[#allocation2 + $0x1e0] sm:$0xff] %vm257, 0.0
      %319 = vst.msk [vmem:[#allocation2 + $0x1e8] sm:$0xff] %vm257, 0.0
      %320 = vst.msk [vmem:[#allocation2 + $0x1f0] sm:$0xff] %vm257, 0.0
      %321 = vst.msk [vmem:[#allocation2 + $0x1f8] sm:$0xff] %vm257, 0.0
      %322 = vst.msk [vmem:[#allocation2 + $0x200] sm:$0xff] %vm257, 0.0
      %323 = vst.msk [vmem:[#allocation2 + $0x208] sm:$0xff] %vm257, 0.0
      %324 = vst.msk [vmem:[#allocation2 + $0x210] sm:$0xff] %vm257, 0.0
      %325 = vst.msk [vmem:[#allocation2 + $0x218] sm:$0xff] %vm257, 0.0
      %326 = vst.msk [vmem:[#allocation2 + $0x220] sm:$0xff] %vm257, 0.0
      %327 = vst.msk [vmem:[#allocation2 + $0x228] sm:$0xff] %vm257, 0.0
      %328 = vst.msk [vmem:[#allocation2 + $0x230] sm:$0xff] %vm257, 0.0
      %329 = vst.msk [vmem:[#allocation2 + $0x238] sm:$0xff] %vm257, 0.0
      %s330 = scalar_lea.vmem [#allocation2], 32
      %331 = vst.msk [vmem:[%s330 + $0x8] sm:$0xff] %vm257, %v225
      %332 = vst.msk [vmem:[%s330 + $0x10] sm:$0xff] %vm257, %v226
      %333 = vst.msk [vmem:[%s330 + $0x28] sm:$0xff] %vm257, %v227
      %334 = vst.msk [vmem:[%s330 + $0x30] sm:$0xff] %vm257, %v228
      %335 = vst.msk [vmem:[%s330 + $0x48] sm:$0xff] %vm257, %v229
      %336 = vst.msk [vmem:[%s330 + $0x50] sm:$0xff] %vm257, %v230
      %337 = vst.msk [vmem:[%s330 + $0x68] sm:$0xff] %vm257, %v231
      %338 = vst.msk [vmem:[%s330 + $0x70] sm:$0xff] %vm257, %v232
      %339 = vst.msk [vmem:[%s330 + $0x88] sm:$0xff] %vm257, %v233
      %340 = vst.msk [vmem:[%s330 + $0x90] sm:$0xff] %vm257, %v234
      %341 = vst.msk [vmem:[%s330 + $0xa8] sm:$0xff] %vm257, %v235
      %342 = vst.msk [vmem:[%s330 + $0xb0] sm:$0xff] %vm257, %v236
      %343 = vst.msk [vmem:[%s330 + $0xc8] sm:$0xff] %vm257, %v237
      %344 = vst.msk [vmem:[%s330 + $0xd0] sm:$0xff] %vm257, %v238
      %345 = vst.msk [vmem:[%s330 + $0xe8] sm:$0xff] %vm257, %v239
      %346 = vst.msk [vmem:[%s330 + $0xf0] sm:$0xff] %vm257, %v240
      %347 = vst.msk [vmem:[%s330 + $0x108] sm:$0xff] %vm257, %v241
      %348 = vst.msk [vmem:[%s330 + $0x110] sm:$0xff] %vm257, %v242
      %349 = vst.msk [vmem:[%s330 + $0x128] sm:$0xff] %vm257, %v243
      %350 = vst.msk [vmem:[%s330 + $0x130] sm:$0xff] %vm257, %v244
      %351 = vst.msk [vmem:[%s330 + $0x148] sm:$0xff] %vm257, %v245
      %352 = vst.msk [vmem:[%s330 + $0x150] sm:$0xff] %vm257, %v246
      %353 = vst.msk [vmem:[%s330 + $0x168] sm:$0xff] %vm257, %v247
      %354 = vst.msk [vmem:[%s330 + $0x170] sm:$0xff] %vm257, %v248
      %355 = vst.msk [vmem:[%s330 + $0x188] sm:$0xff] %vm257, %v249
      %356 = vst.msk [vmem:[%s330 + $0x190] sm:$0xff] %vm257, %v250
      %357 = vst.msk [vmem:[%s330 + $0x1a8] sm:$0xff] %vm257, %v251
      %358 = vst.msk [vmem:[%s330 + $0x1b0] sm:$0xff] %vm257, %v252
      %359 = vst.msk [vmem:[%s330 + $0x1c8] sm:$0xff] %vm257, %v253
      %360 = vst.msk [vmem:[%s330 + $0x1d0] sm:$0xff] %vm257, %v254
      %361 = vst.msk [vmem:[%s330 + $0x1e8] sm:$0xff] %vm257, %v255
      %362 = vst.msk [vmem:[%s330 + $0x1f0] sm:$0xff] %vm257, %v256
      %v363 = vld [vmem:[#allocation2] sm:$0xff]
      %v364 = vld [vmem:[#allocation2 + $0x8] sm:$0xff]
      %v365 = vld [vmem:[#allocation2 + $0x10] sm:$0xff]
      %v366 = vld [vmem:[#allocation2 + $0x18] sm:$0xff]
      %v367 = vld [vmem:[#allocation2 + $0x20] sm:$0xff]
      %v368 = vld [vmem:[#allocation2 + $0x28] sm:$0xff]
      %v369 = vld [vmem:[#allocation2 + $0x30] sm:$0xff]
      %v370 = vld [vmem:[#allocation2 + $0x38] sm:$0xff]
      %v371 = vld [vmem:[#allocation2 + $0x40] sm:$0xff]
      %v372 = vld [vmem:[#allocation2 + $0x48] sm:$0xff]
      %v373 = vld [vmem:[#allocation2 + $0x50] sm:$0xff]
      %v374 = vld [vmem:[#allocation2 + $0x58] sm:$0xff]
      %v375 = vld [vmem:[#allocation2 + $0x60] sm:$0xff]
      %v376 = vld [vmem:[#allocation2 + $0x68] sm:$0xff]
      %v377 = vld [vmem:[#allocation2 + $0x70] sm:$0xff]
      %v378 = vld [vmem:[#allocation2 + $0x78] sm:$0xff]
      %v379 = vld [vmem:[#allocation2 + $0x80] sm:$0xff]
      %v380 = vld [vmem:[#allocation2 + $0x88] sm:$0xff]
      %v381 = vld [vmem:[#allocation2 + $0x90] sm:$0xff]
      %v382 = vld [vmem:[#allocation2 + $0x98] sm:$0xff]
      %v383 = vld [vmem:[#allocation2 + $0xa0] sm:$0xff]
      %v384 = vld [vmem:[#allocation2 + $0xa8] sm:$0xff]
      %v385 = vld [vmem:[#allocation2 + $0xb0] sm:$0xff]
      %v386 = vld [vmem:[#allocation2 + $0xb8] sm:$0xff]
      %v387 = vld [vmem:[#allocation2 + $0xc0] sm:$0xff]
      %v388 = vld [vmem:[#allocation2 + $0xc8] sm:$0xff]
      %v389 = vld [vmem:[#allocation2 + $0xd0] sm:$0xff]
      %v390 = vld [vmem:[#allocation2 + $0xd8] sm:$0xff]
      %v391 = vld [vmem:[#allocation2 + $0xe0] sm:$0xff]
      %v392 = vld [vmem:[#allocation2 + $0xe8] sm:$0xff]
      %v393 = vld [vmem:[#allocation2 + $0xf0] sm:$0xff]
      %v394 = vld [vmem:[#allocation2 + $0xf8] sm:$0xff]
      %v395 = vld [vmem:[#allocation2 + $0x100] sm:$0xff]
      %v396 = vld [vmem:[#allocation2 + $0x108] sm:$0xff]
      %v397 = vld [vmem:[#allocation2 + $0x110] sm:$0xff]
      %v398 = vld [vmem:[#allocation2 + $0x118] sm:$0xff]
      %v399 = vld [vmem:[#allocation2 + $0x120] sm:$0xff]
      %v400 = vld [vmem:[#allocation2 + $0x128] sm:$0xff]
      %v401 = vld [vmem:[#allocation2 + $0x130] sm:$0xff]
      %v402 = vld [vmem:[#allocation2 + $0x138] sm:$0xff]
      %v403 = vld [vmem:[#allocation2 + $0x140] sm:$0xff]
      %v404 = vld [vmem:[#allocation2 + $0x148] sm:$0xff]
      %v405 = vld [vmem:[#allocation2 + $0x150] sm:$0xff]
      %v406 = vld [vmem:[#allocation2 + $0x158] sm:$0xff]
      %v407 = vld [vmem:[#allocation2 + $0x160] sm:$0xff]
      %v408 = vld [vmem:[#allocation2 + $0x168] sm:$0xff]
      %v409 = vld [vmem:[#allocation2 + $0x170] sm:$0xff]
      %v410 = vld [vmem:[#allocation2 + $0x178] sm:$0xff]
      %v411 = vld [vmem:[#allocation2 + $0x180] sm:$0xff]
      %v412 = vld [vmem:[#allocation2 + $0x188] sm:$0xff]
      %v413 = vld [vmem:[#allocation2 + $0x190] sm:$0xff]
      %v414 = vld [vmem:[#allocation2 + $0x198] sm:$0xff]
      %v415 = vld [vmem:[#allocation2 + $0x1a0] sm:$0xff]
      %v416 = vld [vmem:[#allocation2 + $0x1a8] sm:$0xff]
      %v417 = vld [vmem:[#allocation2 + $0x1b0] sm:$0xff]
      %v418 = vld [vmem:[#allocation2 + $0x1b8] sm:$0xff]
      %v419 = vld [vmem:[#allocation2 + $0x1c0] sm:$0xff]
      %v420 = vld [vmem:[#allocation2 + $0x1c8] sm:$0xff]
      %v421 = vld [vmem:[#allocation2 + $0x1d0] sm:$0xff]
      %v422 = vld [vmem:[#allocation2 + $0x1d8] sm:$0xff]
      %v423 = vld [vmem:[#allocation2 + $0x1e0] sm:$0xff]
      %v424 = vld [vmem:[#allocation2 + $0x1e8] sm:$0xff]
      %v425 = vld [vmem:[#allocation2 + $0x1f0] sm:$0xff]
      %v426 = vld [vmem:[#allocation2 + $0x1f8] sm:$0xff]
      %v427 = vld [vmem:[#allocation2 + $0x200] sm:$0xff]
      %v428 = vld [vmem:[#allocation2 + $0x208] sm:$0xff]
      %v429 = vld [vmem:[#allocation2 + $0x210] sm:$0xff]
      %v430 = vld [vmem:[#allocation2 + $0x218] sm:$0xff]
      %v431 = vld [vmem:[#allocation2 + $0x220] sm:$0xff]
      %v432 = vld [vmem:[#allocation2 + $0x228] sm:$0xff]
      %v433 = vld [vmem:[#allocation2 + $0x230] sm:$0xff]
      %v434 = vld [vmem:[#allocation2 + $0x238] sm:$0xff]
      %v435 = vld [vmem:[%s1] sm:$0xff]
      %v436 = vld [vmem:[%s1 + $0x8] sm:$0x1]
      %v437 = vperm.slane %v435, 0
      %v438 = vmul.f32 %v363, %v437
      %v439 = vmul.f32 %v364, %v437
      %v440 = vmul.f32 %v365, %v437
      %v441 = vmul.f32 %v367, %v437
      %v442 = vmul.f32 %v368, %v437
      %v443 = vmul.f32 %v369, %v437
      %v444 = vmul.f32 %v371, %v437
      %v445 = vmul.f32 %v372, %v437
      %v446 = vmul.f32 %v373, %v437
      %v447 = vmul.f32 %v375, %v437
      %v448 = vmul.f32 %v376, %v437
      %v449 = vmul.f32 %v377, %v437
      %v450 = vmul.f32 %v379, %v437
      %v451 = vmul.f32 %v380, %v437
      %v452 = vmul.f32 %v381, %v437
      %v453 = vmul.f32 %v383, %v437
      %v454 = vmul.f32 %v384, %v437
      %v455 = vmul.f32 %v385, %v437
      %v456 = vmul.f32 %v387, %v437
      %v457 = vmul.f32 %v388, %v437
      %v458 = vmul.f32 %v389, %v437
      %v459 = vmul.f32 %v391, %v437
      %v460 = vmul.f32 %v392, %v437
      %v461 = vmul.f32 %v393, %v437
      %v462 = vmul.f32 %v395, %v437
      %v463 = vmul.f32 %v396, %v437
      %v464 = vmul.f32 %v397, %v437
      %v465 = vmul.f32 %v399, %v437
      %v466 = vmul.f32 %v400, %v437
      %v467 = vmul.f32 %v401, %v437
      %v468 = vmul.f32 %v403, %v437
      %v469 = vmul.f32 %v404, %v437
      %v470 = vmul.f32 %v405, %v437
      %v471 = vmul.f32 %v407, %v437
      %v472 = vmul.f32 %v408, %v437
      %v473 = vmul.f32 %v409, %v437
      %v474 = vmul.f32 %v411, %v437
      %v475 = vmul.f32 %v412, %v437
      %v476 = vmul.f32 %v413, %v437
      %v477 = vmul.f32 %v415, %v437
      %v478 = vmul.f32 %v416, %v437
      %v479 = vmul.f32 %v417, %v437
      %v480 = vmul.f32 %v419, %v437
      %v481 = vmul.f32 %v420, %v437
      %v482 = vmul.f32 %v421, %v437
      %v483 = vmul.f32 %v423, %v437
      %v484 = vmul.f32 %v424, %v437
      %v485 = vmul.f32 %v425, %v437
      %v486 = vadd.f32 %v438, 0.0
      %v487 = vadd.f32 %v439, 0.0
      %v488 = vadd.f32 %v440, 0.0
      %v489 = vadd.f32 %v441, 0.0
      %v490 = vadd.f32 %v442, 0.0
      %v491 = vadd.f32 %v443, 0.0
      %v492 = vadd.f32 %v444, 0.0
      %v493 = vadd.f32 %v445, 0.0
      %v494 = vadd.f32 %v446, 0.0
      %v495 = vadd.f32 %v447, 0.0
      %v496 = vadd.f32 %v448, 0.0
      %v497 = vadd.f32 %v449, 0.0
      %v498 = vadd.f32 %v450, 0.0
      %v499 = vadd.f32 %v451, 0.0
      %v500 = vadd.f32 %v452, 0.0
      %v501 = vadd.f32 %v453, 0.0
      %v502 = vadd.f32 %v454, 0.0
      %v503 = vadd.f32 %v455, 0.0
      %v504 = vadd.f32 %v456, 0.0
      %v505 = vadd.f32 %v457, 0.0
      %v506 = vadd.f32 %v458, 0.0
      %v507 = vadd.f32 %v459, 0.0
      %v508 = vadd.f32 %v460, 0.0
      %v509 = vadd.f32 %v461, 0.0
      %v510 = vadd.f32 %v462, 0.0
      %v511 = vadd.f32 %v463, 0.0
      %v512 = vadd.f32 %v464, 0.0
      %v513 = vadd.f32 %v465, 0.0
      %v514 = vadd.f32 %v466, 0.0
      %v515 = vadd.f32 %v467, 0.0
      %v516 = vadd.f32 %v468, 0.0
      %v517 = vadd.f32 %v469, 0.0
      %v518 = vadd.f32 %v470, 0.0
      %v519 = vadd.f32 %v471, 0.0
      %v520 = vadd.f32 %v472, 0.0
      %v521 = vadd.f32 %v473, 0.0
      %v522 = vadd.f32 %v474, 0.0
      %v523 = vadd.f32 %v475, 0.0
      %v524 = vadd.f32 %v476, 0.0
      %v525 = vadd.f32 %v477, 0.0
      %v526 = vadd.f32 %v478, 0.0
      %v527 = vadd.f32 %v479, 0.0
      %v528 = vadd.f32 %v480, 0.0
      %v529 = vadd.f32 %v481, 0.0
      %v530 = vadd.f32 %v482, 0.0
      %v531 = vadd.f32 %v483, 0.0
      %v532 = vadd.f32 %v484, 0.0
      %v533 = vadd.f32 %v485, 0.0
      %v534 = vperm.slane %v435, 1
      %v535 = vmul.f32 %v364, %v534
      %v536 = vmul.f32 %v365, %v534
      %v537 = vmul.f32 %v368, %v534
      %v538 = vmul.f32 %v369, %v534
      %v539 = vmul.f32 %v372, %v534
      %v540 = vmul.f32 %v373, %v534
      %v541 = vmul.f32 %v376, %v534
      %v542 = vmul.f32 %v377, %v534
      %v543 = vmul.f32 %v380, %v534
      %v544 = vmul.f32 %v381, %v534
      %v545 = vmul.f32 %v384, %v534
      %v546 = vmul.f32 %v385, %v534
      %v547 = vmul.f32 %v388, %v534
      %v548 = vmul.f32 %v389, %v534
      %v549 = vmul.f32 %v392, %v534
      %v550 = vmul.f32 %v393, %v534
      %v551 = vmul.f32 %v396, %v534
      %v552 = vmul.f32 %v397, %v534
      %v553 = vmul.f32 %v400, %v534
      %v554 = vmul.f32 %v401, %v534
      %v555 = vmul.f32 %v404, %v534
      %v556 = vmul.f32 %v405, %v534
      %v557 = vmul.f32 %v408, %v534
      %v558 = vmul.f32 %v409, %v534
      %v559 = vmul.f32 %v412, %v534
      %v560 = vmul.f32 %v413, %v534
      %v561 = vmul.f32 %v416, %v534
      %v562 = vmul.f32 %v417, %v534
      %v563 = vmul.f32 %v420, %v534
      %v564 = vmul.f32 %v421, %v534
      %v565 = vmul.f32 %v424, %v534
      %v566 = vmul.f32 %v425, %v534
      %vm599 = vcmask 1046528
      %v600 = vrot.slane %v535, 1
      %v601 = vrot.slane %v536, 1
      %v602 = vsel %vm599, %v600, %v601
      %v603 = vrot.slane %v537, 1
      %v604 = vrot.slane %v538, 1
      %v605 = vsel %vm599, %v603, %v604
      %v606 = vrot.slane %v539, 1
      %v607 = vrot.slane %v540, 1
      %v608 = vsel %vm599, %v606, %v607
      %v609 = vrot.slane %v541, 1
      %v610 = vrot.slane %v542, 1
      %v611 = vsel %vm599, %v609, %v610
      %v612 = vrot.slane %v543, 1
      %v613 = vrot.slane %v544, 1
      %v614 = vsel %vm599, %v612, %v613
      %v615 = vrot.slane %v545, 1
      %v616 = vrot.slane %v546, 1
      %v617 = vsel %vm599, %v615, %v616
      %v618 = vrot.slane %v547, 1
      %v619 = vrot.slane %v548, 1
      %v620 = vsel %vm599, %v618, %v619
      %v621 = vrot.slane %v549, 1
      %v622 = vrot.slane %v550, 1
      %v623 = vsel %vm599, %v621, %v622
      %v624 = vrot.slane %v551, 1
      %v625 = vrot.slane %v552, 1
      %v626 = vsel %vm599, %v624, %v625
      %v627 = vrot.slane %v553, 1
      %v628 = vrot.slane %v554, 1
      %v629 = vsel %vm599, %v627, %v628
      %v630 = vrot.slane %v555, 1
      %v631 = vrot.slane %v556, 1
      %v632 = vsel %vm599, %v630, %v631
      %v633 = vrot.slane %v557, 1
      %v634 = vrot.slane %v558, 1
      %v635 = vsel %vm599, %v633, %v634
      %v636 = vrot.slane %v559, 1
      %v637 = vrot.slane %v560, 1
      %v638 = vsel %vm599, %v636, %v637
      %v639 = vrot.slane %v561, 1
      %v640 = vrot.slane %v562, 1
      %v641 = vsel %vm599, %v639, %v640
      %v642 = vrot.slane %v563, 1
      %v643 = vrot.slane %v564, 1
      %v644 = vsel %vm599, %v642, %v643
      %v645 = vrot.slane %v565, 1
      %v646 = vrot.slane %v566, 1
      %v647 = vsel %vm599, %v645, %v646
      %v696 = vadd.f32 %v486, %v600
      %v697 = vadd.f32 %v487, %v602
      %v698 = vadd.f32 %v488, %v601
      %v699 = vadd.f32 %v489, %v603
      %v700 = vadd.f32 %v490, %v605
      %v701 = vadd.f32 %v491, %v604
      %v702 = vadd.f32 %v492, %v606
      %v703 = vadd.f32 %v493, %v608
      %v704 = vadd.f32 %v494, %v607
      %v705 = vadd.f32 %v495, %v609
      %v706 = vadd.f32 %v496, %v611
      %v707 = vadd.f32 %v497, %v610
      %v708 = vadd.f32 %v498, %v612
      %v709 = vadd.f32 %v499, %v614
      %v710 = vadd.f32 %v500, %v613
      %v711 = vadd.f32 %v501, %v615
      %v712 = vadd.f32 %v502, %v617
      %v713 = vadd.f32 %v503, %v616
      %v714 = vadd.f32 %v504, %v618
      %v715 = vadd.f32 %v505, %v620
      %v716 = vadd.f32 %v506, %v619
      %v717 = vadd.f32 %v507, %v621
      %v718 = vadd.f32 %v508, %v623
      %v719 = vadd.f32 %v509, %v622
      %v720 = vadd.f32 %v510, %v624
      %v721 = vadd.f32 %v511, %v626
      %v722 = vadd.f32 %v512, %v625
      %v723 = vadd.f32 %v513, %v627
      %v724 = vadd.f32 %v514, %v629
      %v725 = vadd.f32 %v515, %v628
      %v726 = vadd.f32 %v516, %v630
      %v727 = vadd.f32 %v517, %v632
      %v728 = vadd.f32 %v518, %v631
      %v729 = vadd.f32 %v519, %v633
      %v730 = vadd.f32 %v520, %v635
      %v731 = vadd.f32 %v521, %v634
      %v732 = vadd.f32 %v522, %v636
      %v733 = vadd.f32 %v523, %v638
      %v734 = vadd.f32 %v524, %v637
      %v735 = vadd.f32 %v525, %v639
      %v736 = vadd.f32 %v526, %v641
      %v737 = vadd.f32 %v527, %v640
      %v738 = vadd.f32 %v528, %v642
      %v739 = vadd.f32 %v529, %v644
      %v740 = vadd.f32 %v530, %v643
      %v741 = vadd.f32 %v531, %v645
      %v742 = vadd.f32 %v532, %v647
      %v743 = vadd.f32 %v533, %v646
      %v744 = vperm.slane %v435, 2
      %v745 = vmul.f32 %v364, %v744
      %v746 = vmul.f32 %v365, %v744
      %v747 = vmul.f32 %v366, %v744
      %v748 = vmul.f32 %v368, %v744
      %v749 = vmul.f32 %v369, %v744
      %v750 = vmul.f32 %v370, %v744
      %v751 = vmul.f32 %v372, %v744
      %v752 = vmul.f32 %v373, %v744
      %v753 = vmul.f32 %v374, %v744
      %v754 = vmul.f32 %v376, %v744
      %v755 = vmul.f32 %v377, %v744
      %v756 = vmul.f32 %v378, %v744
      %v757 = vmul.f32 %v380, %v744
      %v758 = vmul.f32 %v381, %v744
      %v759 = vmul.f32 %v382, %v744
      %v760 = vmul.f32 %v384, %v744
      %v761 = vmul.f32 %v385, %v744
      %v762 = vmul.f32 %v386, %v744
      %v763 = vmul.f32 %v388, %v744
      %v764 = vmul.f32 %v389, %v744
      %v765 = vmul.f32 %v390, %v744
      %v766 = vmul.f32 %v392, %v744
      %v767 = vmul.f32 %v393, %v744
      %v768 = vmul.f32 %v394, %v744
      %v769 = vmul.f32 %v396, %v744
      %v770 = vmul.f32 %v397, %v744
      %v771 = vmul.f32 %v398, %v744
      %v772 = vmul.f32 %v400, %v744
      %v773 = vmul.f32 %v401, %v744
      %v774 = vmul.f32 %v402, %v744
      %v775 = vmul.f32 %v404, %v744
      %v776 = vmul.f32 %v405, %v744
      %v777 = vmul.f32 %v406, %v744
      %v778 = vmul.f32 %v408, %v744
      %v779 = vmul.f32 %v409, %v744
      %v780 = vmul.f32 %v410, %v744
      %v781 = vmul.f32 %v412, %v744
      %v782 = vmul.f32 %v413, %v744
      %v783 = vmul.f32 %v414, %v744
      %v784 = vmul.f32 %v416, %v744
      %v785 = vmul.f32 %v417, %v744
      %v786 = vmul.f32 %v418, %v744
      %v787 = vmul.f32 %v420, %v744
      %v788 = vmul.f32 %v421, %v744
      %v789 = vmul.f32 %v422, %v744
      %v790 = vmul.f32 %v424, %v744
      %v791 = vmul.f32 %v425, %v744
      %v792 = vmul.f32 %v426, %v744
      %vm841 = vcmask 1045504
      %v842 = vrot.slane %v745, 2
      %v843 = vrot.slane %v746, 2
      %v844 = vsel %vm841, %v842, %v843
      %v845 = vrot.slane %v747, 2
      %v846 = vsel %vm841, %v843, %v845
      %v847 = vrot.slane %v748, 2
      %v848 = vrot.slane %v749, 2
      %v849 = vsel %vm841, %v847, %v848
      %v850 = vrot.slane %v750, 2
      %v851 = vsel %vm841, %v848, %v850
      %v852 = vrot.slane %v751, 2
      %v853 = vrot.slane %v752, 2
      %v854 = vsel %vm841, %v852, %v853
      %v855 = vrot.slane %v753, 2
      %v856 = vsel %vm841, %v853, %v855
      %v857 = vrot.slane %v754, 2
      %v858 = vrot.slane %v755, 2
      %v859 = vsel %vm841, %v857, %v858
      %v860 = vrot.slane %v756, 2
      %v861 = vsel %vm841, %v858, %v860
      %v862 = vrot.slane %v757, 2
      %v863 = vrot.slane %v758, 2
      %v864 = vsel %vm841, %v862, %v863
      %v865 = vrot.slane %v759, 2
      %v866 = vsel %vm841, %v863, %v865
      %v867 = vrot.slane %v760, 2
      %v868 = vrot.slane %v761, 2
      %v869 = vsel %vm841, %v867, %v868
      %v870 = vrot.slane %v762, 2
      %v871 = vsel %vm841, %v868, %v870
      %v872 = vrot.slane %v763, 2
      %v873 = vrot.slane %v764, 2
      %v874 = vsel %vm841, %v872, %v873
      %v875 = vrot.slane %v765, 2
      %v876 = vsel %vm841, %v873, %v875
      %v877 = vrot.slane %v766, 2
      %v878 = vrot.slane %v767, 2
      %v879 = vsel %vm841, %v877, %v878
      %v880 = vrot.slane %v768, 2
      %v881 = vsel %vm841, %v878, %v880
      %v882 = vrot.slane %v769, 2
      %v883 = vrot.slane %v770, 2
      %v884 = vsel %vm841, %v882, %v883
      %v885 = vrot.slane %v771, 2
      %v886 = vsel %vm841, %v883, %v885
      %v887 = vrot.slane %v772, 2
      %v888 = vrot.slane %v773, 2
      %v889 = vsel %vm841, %v887, %v888
      %v890 = vrot.slane %v774, 2
      %v891 = vsel %vm841, %v888, %v890
      %v892 = vrot.slane %v775, 2
      %v893 = vrot.slane %v776, 2
      %v894 = vsel %vm841, %v892, %v893
      %v895 = vrot.slane %v777, 2
      %v896 = vsel %vm841, %v893, %v895
      %v897 = vrot.slane %v778, 2
      %v898 = vrot.slane %v779, 2
      %v899 = vsel %vm841, %v897, %v898
      %v900 = vrot.slane %v780, 2
      %v901 = vsel %vm841, %v898, %v900
      %v902 = vrot.slane %v781, 2
      %v903 = vrot.slane %v782, 2
      %v904 = vsel %vm841, %v902, %v903
      %v905 = vrot.slane %v783, 2
      %v906 = vsel %vm841, %v903, %v905
      %v907 = vrot.slane %v784, 2
      %v908 = vrot.slane %v785, 2
      %v909 = vsel %vm841, %v907, %v908
      %v910 = vrot.slane %v786, 2
      %v911 = vsel %vm841, %v908, %v910
      %v912 = vrot.slane %v787, 2
      %v913 = vrot.slane %v788, 2
      %v914 = vsel %vm841, %v912, %v913
      %v915 = vrot.slane %v789, 2
      %v916 = vsel %vm841, %v913, %v915
      %v917 = vrot.slane %v790, 2
      %v918 = vrot.slane %v791, 2
      %v919 = vsel %vm841, %v917, %v918
      %v920 = vrot.slane %v792, 2
      %v921 = vsel %vm841, %v918, %v920
      %v970 = vadd.f32 %v696, %v842
      %v971 = vadd.f32 %v697, %v844
      %v972 = vadd.f32 %v698, %v846
      %v973 = vadd.f32 %v699, %v847
      %v974 = vadd.f32 %v700, %v849
      %v975 = vadd.f32 %v701, %v851
      %v976 = vadd.f32 %v702, %v852
      %v977 = vadd.f32 %v703, %v854
      %v978 = vadd.f32 %v704, %v856
      %v979 = vadd.f32 %v705, %v857
      %v980 = vadd.f32 %v706, %v859
      %v981 = vadd.f32 %v707, %v861
      %v982 = vadd.f32 %v708, %v862
      %v983 = vadd.f32 %v709, %v864
      %v984 = vadd.f32 %v710, %v866
      %v985 = vadd.f32 %v711, %v867
      %v986 = vadd.f32 %v712, %v869
      %v987 = vadd.f32 %v713, %v871
      %v988 = vadd.f32 %v714, %v872
      %v989 = vadd.f32 %v715, %v874
      %v990 = vadd.f32 %v716, %v876
      %v991 = vadd.f32 %v717, %v877
      %v992 = vadd.f32 %v718, %v879
      %v993 = vadd.f32 %v719, %v881
      %v994 = vadd.f32 %v720, %v882
      %v995 = vadd.f32 %v721, %v884
      %v996 = vadd.f32 %v722, %v886
      %v997 = vadd.f32 %v723, %v887
      %v998 = vadd.f32 %v724, %v889
      %v999 = vadd.f32 %v725, %v891
      %v1000 = vadd.f32 %v726, %v892
      %v1001 = vadd.f32 %v727, %v894
      %v1002 = vadd.f32 %v728, %v896
      %v1003 = vadd.f32 %v729, %v897
      %v1004 = vadd.f32 %v730, %v899
      %v1005 = vadd.f32 %v731, %v901
      %v1006 = vadd.f32 %v732, %v902
      %v1007 = vadd.f32 %v733, %v904
      %v1008 = vadd.f32 %v734, %v906
      %v1009 = vadd.f32 %v735, %v907
      %v1010 = vadd.f32 %v736, %v909
      %v1011 = vadd.f32 %v737, %v911
      %v1012 = vadd.f32 %v738, %v912
      %v1013 = vadd.f32 %v739, %v914
      %v1014 = vadd.f32 %v740, %v916
      %v1015 = vadd.f32 %v741, %v917
      %v1016 = vadd.f32 %v742, %v919
      %v1017 = vadd.f32 %v743, %v921
      %v1018 = vperm.slane %v435, 3
      %v1019 = vmul.f32 %v367, %v1018
      %v1020 = vmul.f32 %v368, %v1018
      %v1021 = vmul.f32 %v369, %v1018
      %v1022 = vmul.f32 %v371, %v1018
      %v1023 = vmul.f32 %v372, %v1018
      %v1024 = vmul.f32 %v373, %v1018
      %v1025 = vmul.f32 %v375, %v1018
      %v1026 = vmul.f32 %v376, %v1018
      %v1027 = vmul.f32 %v377, %v1018
      %v1028 = vmul.f32 %v379, %v1018
      %v1029 = vmul.f32 %v380, %v1018
      %v1030 = vmul.f32 %v381, %v1018
      %v1031 = vmul.f32 %v383, %v1018
      %v1032 = vmul.f32 %v384, %v1018
      %v1033 = vmul.f32 %v385, %v1018
      %v1034 = vmul.f32 %v387, %v1018
      %v1035 = vmul.f32 %v388, %v1018
      %v1036 = vmul.f32 %v389, %v1018
      %v1037 = vmul.f32 %v391, %v1018
      %v1038 = vmul.f32 %v392, %v1018
      %v1039 = vmul.f32 %v393, %v1018
      %v1040 = vmul.f32 %v395, %v1018
      %v1041 = vmul.f32 %v396, %v1018
      %v1042 = vmul.f32 %v397, %v1018
      %v1043 = vmul.f32 %v399, %v1018
      %v1044 = vmul.f32 %v400, %v1018
      %v1045 = vmul.f32 %v401, %v1018
      %v1046 = vmul.f32 %v403, %v1018
      %v1047 = vmul.f32 %v404, %v1018
      %v1048 = vmul.f32 %v405, %v1018
      %v1049 = vmul.f32 %v407, %v1018
      %v1050 = vmul.f32 %v408, %v1018
      %v1051 = vmul.f32 %v409, %v1018
      %v1052 = vmul.f32 %v411, %v1018
      %v1053 = vmul.f32 %v412, %v1018
      %v1054 = vmul.f32 %v413, %v1018
      %v1055 = vmul.f32 %v415, %v1018
      %v1056 = vmul.f32 %v416, %v1018
      %v1057 = vmul.f32 %v417, %v1018
      %v1058 = vmul.f32 %v419, %v1018
      %v1059 = vmul.f32 %v420, %v1018
      %v1060 = vmul.f32 %v421, %v1018
      %v1061 = vmul.f32 %v423, %v1018
      %v1062 = vmul.f32 %v424, %v1018
      %v1063 = vmul.f32 %v425, %v1018
      %v1064 = vmul.f32 %v427, %v1018
      %v1065 = vmul.f32 %v428, %v1018
      %v1066 = vmul.f32 %v429, %v1018
      %v1067 = vadd.f32 %v970, %v1019
      %v1068 = vadd.f32 %v971, %v1020
      %v1069 = vadd.f32 %v972, %v1021
      %v1070 = vadd.f32 %v973, %v1022
      %v1071 = vadd.f32 %v974, %v1023
      %v1072 = vadd.f32 %v975, %v1024
      %v1073 = vadd.f32 %v976, %v1025
      %v1074 = vadd.f32 %v977, %v1026
      %v1075 = vadd.f32 %v978, %v1027
      %v1076 = vadd.f32 %v979, %v1028
      %v1077 = vadd.f32 %v980, %v1029
      %v1078 = vadd.f32 %v981, %v1030
      %v1079 = vadd.f32 %v982, %v1031
      %v1080 = vadd.f32 %v983, %v1032
      %v1081 = vadd.f32 %v984, %v1033
      %v1082 = vadd.f32 %v985, %v1034
      %v1083 = vadd.f32 %v986, %v1035
      %v1084 = vadd.f32 %v987, %v1036
      %v1085 = vadd.f32 %v988, %v1037
      %v1086 = vadd.f32 %v989, %v1038
      %v1087 = vadd.f32 %v990, %v1039
      %v1088 = vadd.f32 %v991, %v1040
      %v1089 = vadd.f32 %v992, %v1041
      %v1090 = vadd.f32 %v993, %v1042
      %v1091 = vadd.f32 %v994, %v1043
      %v1092 = vadd.f32 %v995, %v1044
      %v1093 = vadd.f32 %v996, %v1045
      %v1094 = vadd.f32 %v997, %v1046
      %v1095 = vadd.f32 %v998, %v1047
      %v1096 = vadd.f32 %v999, %v1048
      %v1097 = vadd.f32 %v1000, %v1049
      %v1098 = vadd.f32 %v1001, %v1050
      %v1099 = vadd.f32 %v1002, %v1051
      %v1100 = vadd.f32 %v1003, %v1052
      %v1101 = vadd.f32 %v1004, %v1053
      %v1102 = vadd.f32 %v1005, %v1054
      %v1103 = vadd.f32 %v1006, %v1055
      %v1104 = vadd.f32 %v1007, %v1056
      %v1105 = vadd.f32 %v1008, %v1057
      %v1106 = vadd.f32 %v1009, %v1058
      %v1107 = vadd.f32 %v1010, %v1059
      %v1108 = vadd.f32 %v1011, %v1060
      %v1109 = vadd.f32 %v1012, %v1061
      %v1110 = vadd.f32 %v1013, %v1062
      %v1111 = vadd.f32 %v1014, %v1063
      %v1112 = vadd.f32 %v1015, %v1064
      %v1113 = vadd.f32 %v1016, %v1065
      %v1114 = vadd.f32 %v1017, %v1066
      %v1115 = vperm.slane %v435, 4
      %v1116 = vmul.f32 %v368, %v1115
      %v1117 = vmul.f32 %v369, %v1115
      %v1118 = vmul.f32 %v372, %v1115
      %v1119 = vmul.f32 %v373, %v1115
      %v1120 = vmul.f32 %v376, %v1115
      %v1121 = vmul.f32 %v377, %v1115
      %v1122 = vmul.f32 %v380, %v1115
      %v1123 = vmul.f32 %v381, %v1115
      %v1124 = vmul.f32 %v384, %v1115
      %v1125 = vmul.f32 %v385, %v1115
      %v1126 = vmul.f32 %v388, %v1115
      %v1127 = vmul.f32 %v389, %v1115
      %v1128 = vmul.f32 %v392, %v1115
      %v1129 = vmul.f32 %v393, %v1115
      %v1130 = vmul.f32 %v396, %v1115
      %v1131 = vmul.f32 %v397, %v1115
      %v1132 = vmul.f32 %v400, %v1115
      %v1133 = vmul.f32 %v401, %v1115
      %v1134 = vmul.f32 %v404, %v1115
      %v1135 = vmul.f32 %v405, %v1115
      %v1136 = vmul.f32 %v408, %v1115
      %v1137 = vmul.f32 %v409, %v1115
      %v1138 = vmul.f32 %v412, %v1115
      %v1139 = vmul.f32 %v413, %v1115
      %v1140 = vmul.f32 %v416, %v1115
      %v1141 = vmul.f32 %v417, %v1115
      %v1142 = vmul.f32 %v420, %v1115
      %v1143 = vmul.f32 %v421, %v1115
      %v1144 = vmul.f32 %v424, %v1115
      %v1145 = vmul.f32 %v425, %v1115
      %v1146 = vmul.f32 %v428, %v1115
      %v1147 = vmul.f32 %v429, %v1115
      %v1180 = vrot.slane %v1116, 1
      %v1181 = vrot.slane %v1117, 1
      %v1182 = vsel %vm599, %v1180, %v1181
      %v1183 = vrot.slane %v1118, 1
      %v1184 = vrot.slane %v1119, 1
      %v1185 = vsel %vm599, %v1183, %v1184
      %v1186 = vrot.slane %v1120, 1
      %v1187 = vrot.slane %v1121, 1
      %v1188 = vsel %vm599, %v1186, %v1187
      %v1189 = vrot.slane %v1122, 1
      %v1190 = vrot.slane %v1123, 1
      %v1191 = vsel %vm599, %v1189, %v1190
      %v1192 = vrot.slane %v1124, 1
      %v1193 = vrot.slane %v1125, 1
      %v1194 = vsel %vm599, %v1192, %v1193
      %v1195 = vrot.slane %v1126, 1
      %v1196 = vrot.slane %v1127, 1
      %v1197 = vsel %vm599, %v1195, %v1196
      %v1198 = vrot.slane %v1128, 1
      %v1199 = vrot.slane %v1129, 1
      %v1200 = vsel %vm599, %v1198, %v1199
      %v1201 = vrot.slane %v1130, 1
      %v1202 = vrot.slane %v1131, 1
      %v1203 = vsel %vm599, %v1201, %v1202
      %v1204 = vrot.slane %v1132, 1
      %v1205 = vrot.slane %v1133, 1
      %v1206 = vsel %vm599, %v1204, %v1205
      %v1207 = vrot.slane %v1134, 1
      %v1208 = vrot.slane %v1135, 1
      %v1209 = vsel %vm599, %v1207, %v1208
      %v1210 = vrot.slane %v1136, 1
      %v1211 = vrot.slane %v1137, 1
      %v1212 = vsel %vm599, %v1210, %v1211
      %v1213 = vrot.slane %v1138, 1
      %v1214 = vrot.slane %v1139, 1
      %v1215 = vsel %vm599, %v1213, %v1214
      %v1216 = vrot.slane %v1140, 1
      %v1217 = vrot.slane %v1141, 1
      %v1218 = vsel %vm599, %v1216, %v1217
      %v1219 = vrot.slane %v1142, 1
      %v1220 = vrot.slane %v1143, 1
      %v1221 = vsel %vm599, %v1219, %v1220
      %v1222 = vrot.slane %v1144, 1
      %v1223 = vrot.slane %v1145, 1
      %v1224 = vsel %vm599, %v1222, %v1223
      %v1225 = vrot.slane %v1146, 1
      %v1226 = vrot.slane %v1147, 1
      %v1227 = vsel %vm599, %v1225, %v1226
      %v1276 = vadd.f32 %v1067, %v1180
      %v1277 = vadd.f32 %v1068, %v1182
      %v1278 = vadd.f32 %v1069, %v1181
      %v1279 = vadd.f32 %v1070, %v1183
      %v1280 = vadd.f32 %v1071, %v1185
      %v1281 = vadd.f32 %v1072, %v1184
      %v1282 = vadd.f32 %v1073, %v1186
      %v1283 = vadd.f32 %v1074, %v1188
      %v1284 = vadd.f32 %v1075, %v1187
      %v1285 = vadd.f32 %v1076, %v1189
      %v1286 = vadd.f32 %v1077, %v1191
      %v1287 = vadd.f32 %v1078, %v1190
      %v1288 = vadd.f32 %v1079, %v1192
      %v1289 = vadd.f32 %v1080, %v1194
      %v1290 = vadd.f32 %v1081, %v1193
      %v1291 = vadd.f32 %v1082, %v1195
      %v1292 = vadd.f32 %v1083, %v1197
      %v1293 = vadd.f32 %v1084, %v1196
      %v1294 = vadd.f32 %v1085, %v1198
      %v1295 = vadd.f32 %v1086, %v1200
      %v1296 = vadd.f32 %v1087, %v1199
      %v1297 = vadd.f32 %v1088, %v1201
      %v1298 = vadd.f32 %v1089, %v1203
      %v1299 = vadd.f32 %v1090, %v1202
      %v1300 = vadd.f32 %v1091, %v1204
      %v1301 = vadd.f32 %v1092, %v1206
      %v1302 = vadd.f32 %v1093, %v1205
      %v1303 = vadd.f32 %v1094, %v1207
      %v1304 = vadd.f32 %v1095, %v1209
      %v1305 = vadd.f32 %v1096, %v1208
      %v1306 = vadd.f32 %v1097, %v1210
      %v1307 = vadd.f32 %v1098, %v1212
      %v1308 = vadd.f32 %v1099, %v1211
      %v1309 = vadd.f32 %v1100, %v1213
      %v1310 = vadd.f32 %v1101, %v1215
      %v1311 = vadd.f32 %v1102, %v1214
      %v1312 = vadd.f32 %v1103, %v1216
      %v1313 = vadd.f32 %v1104, %v1218
      %v1314 = vadd.f32 %v1105, %v1217
      %v1315 = vadd.f32 %v1106, %v1219
      %v1316 = vadd.f32 %v1107, %v1221
      %v1317 = vadd.f32 %v1108, %v1220
      %v1318 = vadd.f32 %v1109, %v1222
      %v1319 = vadd.f32 %v1110, %v1224
      %v1320 = vadd.f32 %v1111, %v1223
      %v1321 = vadd.f32 %v1112, %v1225
      %v1322 = vadd.f32 %v1113, %v1227
      %v1323 = vadd.f32 %v1114, %v1226
      %v1324 = vperm.slane %v435, 5
      %v1325 = vmul.f32 %v368, %v1324
      %v1326 = vmul.f32 %v369, %v1324
      %v1327 = vmul.f32 %v370, %v1324
      %v1328 = vmul.f32 %v372, %v1324
      %v1329 = vmul.f32 %v373, %v1324
      %v1330 = vmul.f32 %v374, %v1324
      %v1331 = vmul.f32 %v376, %v1324
      %v1332 = vmul.f32 %v377, %v1324
      %v1333 = vmul.f32 %v378, %v1324
      %v1334 = vmul.f32 %v380, %v1324
      %v1335 = vmul.f32 %v381, %v1324
      %v1336 = vmul.f32 %v382, %v1324
      %v1337 = vmul.f32 %v384, %v1324
      %v1338 = vmul.f32 %v385, %v1324
      %v1339 = vmul.f32 %v386, %v1324
      %v1340 = vmul.f32 %v388, %v1324
      %v1341 = vmul.f32 %v389, %v1324
      %v1342 = vmul.f32 %v390, %v1324
      %v1343 = vmul.f32 %v392, %v1324
      %v1344 = vmul.f32 %v393, %v1324
      %v1345 = vmul.f32 %v394, %v1324
      %v1346 = vmul.f32 %v396, %v1324
      %v1347 = vmul.f32 %v397, %v1324
      %v1348 = vmul.f32 %v398, %v1324
      %v1349 = vmul.f32 %v400, %v1324
      %v1350 = vmul.f32 %v401, %v1324
      %v1351 = vmul.f32 %v402, %v1324
      %v1352 = vmul.f32 %v404, %v1324
      %v1353 = vmul.f32 %v405, %v1324
      %v1354 = vmul.f32 %v406, %v1324
      %v1355 = vmul.f32 %v408, %v1324
      %v1356 = vmul.f32 %v409, %v1324
      %v1357 = vmul.f32 %v410, %v1324
      %v1358 = vmul.f32 %v412, %v1324
      %v1359 = vmul.f32 %v413, %v1324
      %v1360 = vmul.f32 %v414, %v1324
      %v1361 = vmul.f32 %v416, %v1324
      %v1362 = vmul.f32 %v417, %v1324
      %v1363 = vmul.f32 %v418, %v1324
      %v1364 = vmul.f32 %v420, %v1324
      %v1365 = vmul.f32 %v421, %v1324
      %v1366 = vmul.f32 %v422, %v1324
      %v1367 = vmul.f32 %v424, %v1324
      %v1368 = vmul.f32 %v425, %v1324
      %v1369 = vmul.f32 %v426, %v1324
      %v1370 = vmul.f32 %v428, %v1324
      %v1371 = vmul.f32 %v429, %v1324
      %v1372 = vmul.f32 %v430, %v1324
      %v1421 = vrot.slane %v1325, 2
      %v1422 = vrot.slane %v1326, 2
      %v1423 = vsel %vm841, %v1421, %v1422
      %v1424 = vrot.slane %v1327, 2
      %v1425 = vsel %vm841, %v1422, %v1424
      %v1426 = vrot.slane %v1328, 2
      %v1427 = vrot.slane %v1329, 2
      %v1428 = vsel %vm841, %v1426, %v1427
      %v1429 = vrot.slane %v1330, 2
      %v1430 = vsel %vm841, %v1427, %v1429
      %v1431 = vrot.slane %v1331, 2
      %v1432 = vrot.slane %v1332, 2
      %v1433 = vsel %vm841, %v1431, %v1432
      %v1434 = vrot.slane %v1333, 2
      %v1435 = vsel %vm841, %v1432, %v1434
      %v1436 = vrot.slane %v1334, 2
      %v1437 = vrot.slane %v1335, 2
      %v1438 = vsel %vm841, %v1436, %v1437
      %v1439 = vrot.slane %v1336, 2
      %v1440 = vsel %vm841, %v1437, %v1439
      %v1441 = vrot.slane %v1337, 2
      %v1442 = vrot.slane %v1338, 2
      %v1443 = vsel %vm841, %v1441, %v1442
      %v1444 = vrot.slane %v1339, 2
      %v1445 = vsel %vm841, %v1442, %v1444
      %v1446 = vrot.slane %v1340, 2
      %v1447 = vrot.slane %v1341, 2
      %v1448 = vsel %vm841, %v1446, %v1447
      %v1449 = vrot.slane %v1342, 2
      %v1450 = vsel %vm841, %v1447, %v1449
      %v1451 = vrot.slane %v1343, 2
      %v1452 = vrot.slane %v1344, 2
      %v1453 = vsel %vm841, %v1451, %v1452
      %v1454 = vrot.slane %v1345, 2
      %v1455 = vsel %vm841, %v1452, %v1454
      %v1456 = vrot.slane %v1346, 2
      %v1457 = vrot.slane %v1347, 2
      %v1458 = vsel %vm841, %v1456, %v1457
      %v1459 = vrot.slane %v1348, 2
      %v1460 = vsel %vm841, %v1457, %v1459
      %v1461 = vrot.slane %v1349, 2
      %v1462 = vrot.slane %v1350, 2
      %v1463 = vsel %vm841, %v1461, %v1462
      %v1464 = vrot.slane %v1351, 2
      %v1465 = vsel %vm841, %v1462, %v1464
      %v1466 = vrot.slane %v1352, 2
      %v1467 = vrot.slane %v1353, 2
      %v1468 = vsel %vm841, %v1466, %v1467
      %v1469 = vrot.slane %v1354, 2
      %v1470 = vsel %vm841, %v1467, %v1469
      %v1471 = vrot.slane %v1355, 2
      %v1472 = vrot.slane %v1356, 2
      %v1473 = vsel %vm841, %v1471, %v1472
      %v1474 = vrot.slane %v1357, 2
      %v1475 = vsel %vm841, %v1472, %v1474
      %v1476 = vrot.slane %v1358, 2
      %v1477 = vrot.slane %v1359, 2
      %v1478 = vsel %vm841, %v1476, %v1477
      %v1479 = vrot.slane %v1360, 2
      %v1480 = vsel %vm841, %v1477, %v1479
      %v1481 = vrot.slane %v1361, 2
      %v1482 = vrot.slane %v1362, 2
      %v1483 = vsel %vm841, %v1481, %v1482
      %v1484 = vrot.slane %v1363, 2
      %v1485 = vsel %vm841, %v1482, %v1484
      %v1486 = vrot.slane %v1364, 2
      %v1487 = vrot.slane %v1365, 2
      %v1488 = vsel %vm841, %v1486, %v1487
      %v1489 = vrot.slane %v1366, 2
      %v1490 = vsel %vm841, %v1487, %v1489
      %v1491 = vrot.slane %v1367, 2
      %v1492 = vrot.slane %v1368, 2
      %v1493 = vsel %vm841, %v1491, %v1492
      %v1494 = vrot.slane %v1369, 2
      %v1495 = vsel %vm841, %v1492, %v1494
      %v1496 = vrot.slane %v1370, 2
      %v1497 = vrot.slane %v1371, 2
      %v1498 = vsel %vm841, %v1496, %v1497
      %v1499 = vrot.slane %v1372, 2
      %v1500 = vsel %vm841, %v1497, %v1499
      %v1549 = vadd.f32 %v1276, %v1421
      %v1550 = vadd.f32 %v1277, %v1423
      %v1551 = vadd.f32 %v1278, %v1425
      %v1552 = vadd.f32 %v1279, %v1426
      %v1553 = vadd.f32 %v1280, %v1428
      %v1554 = vadd.f32 %v1281, %v1430
      %v1555 = vadd.f32 %v1282, %v1431
      %v1556 = vadd.f32 %v1283, %v1433
      %v1557 = vadd.f32 %v1284, %v1435
      %v1558 = vadd.f32 %v1285, %v1436
      %v1559 = vadd.f32 %v1286, %v1438
      %v1560 = vadd.f32 %v1287, %v1440
      %v1561 = vadd.f32 %v1288, %v1441
      %v1562 = vadd.f32 %v1289, %v1443
      %v1563 = vadd.f32 %v1290, %v1445
      %v1564 = vadd.f32 %v1291, %v1446
      %v1565 = vadd.f32 %v1292, %v1448
      %v1566 = vadd.f32 %v1293, %v1450
      %v1567 = vadd.f32 %v1294, %v1451
      %v1568 = vadd.f32 %v1295, %v1453
      %v1569 = vadd.f32 %v1296, %v1455
      %v1570 = vadd.f32 %v1297, %v1456
      %v1571 = vadd.f32 %v1298, %v1458
      %v1572 = vadd.f32 %v1299, %v1460
      %v1573 = vadd.f32 %v1300, %v1461
      %v1574 = vadd.f32 %v1301, %v1463
      %v1575 = vadd.f32 %v1302, %v1465
      %v1576 = vadd.f32 %v1303, %v1466
      %v1577 = vadd.f32 %v1304, %v1468
      %v1578 = vadd.f32 %v1305, %v1470
      %v1579 = vadd.f32 %v1306, %v1471
      %v1580 = vadd.f32 %v1307, %v1473
      %v1581 = vadd.f32 %v1308, %v1475
      %v1582 = vadd.f32 %v1309, %v1476
      %v1583 = vadd.f32 %v1310, %v1478
      %v1584 = vadd.f32 %v1311, %v1480
      %v1585 = vadd.f32 %v1312, %v1481
      %v1586 = vadd.f32 %v1313, %v1483
      %v1587 = vadd.f32 %v1314, %v1485
      %v1588 = vadd.f32 %v1315, %v1486
      %v1589 = vadd.f32 %v1316, %v1488
      %v1590 = vadd.f32 %v1317, %v1490
      %v1591 = vadd.f32 %v1318, %v1491
      %v1592 = vadd.f32 %v1319, %v1493
      %v1593 = vadd.f32 %v1320, %v1495
      %v1594 = vadd.f32 %v1321, %v1496
      %v1595 = vadd.f32 %v1322, %v1498
      %v1596 = vadd.f32 %v1323, %v1500
      %v1597 = vperm.slane %v435, 6
      %v1598 = vmul.f32 %v371, %v1597
      %v1599 = vmul.f32 %v372, %v1597
      %v1600 = vmul.f32 %v373, %v1597
      %v1601 = vmul.f32 %v375, %v1597
      %v1602 = vmul.f32 %v376, %v1597
      %v1603 = vmul.f32 %v377, %v1597
      %v1604 = vmul.f32 %v379, %v1597
      %v1605 = vmul.f32 %v380, %v1597
      %v1606 = vmul.f32 %v381, %v1597
      %v1607 = vmul.f32 %v383, %v1597
      %v1608 = vmul.f32 %v384, %v1597
      %v1609 = vmul.f32 %v385, %v1597
      %v1610 = vmul.f32 %v387, %v1597
      %v1611 = vmul.f32 %v388, %v1597
      %v1612 = vmul.f32 %v389, %v1597
      %v1613 = vmul.f32 %v391, %v1597
      %v1614 = vmul.f32 %v392, %v1597
      %v1615 = vmul.f32 %v393, %v1597
      %v1616 = vmul.f32 %v395, %v1597
      %v1617 = vmul.f32 %v396, %v1597
      %v1618 = vmul.f32 %v397, %v1597
      %v1619 = vmul.f32 %v399, %v1597
      %v1620 = vmul.f32 %v400, %v1597
      %v1621 = vmul.f32 %v401, %v1597
      %v1622 = vmul.f32 %v403, %v1597
      %v1623 = vmul.f32 %v404, %v1597
      %v1624 = vmul.f32 %v405, %v1597
      %v1625 = vmul.f32 %v407, %v1597
      %v1626 = vmul.f32 %v408, %v1597
      %v1627 = vmul.f32 %v409, %v1597
      %v1628 = vmul.f32 %v411, %v1597
      %v1629 = vmul.f32 %v412, %v1597
      %v1630 = vmul.f32 %v413, %v1597
      %v1631 = vmul.f32 %v415, %v1597
      %v1632 = vmul.f32 %v416, %v1597
      %v1633 = vmul.f32 %v417, %v1597
      %v1634 = vmul.f32 %v419, %v1597
      %v1635 = vmul.f32 %v420, %v1597
      %v1636 = vmul.f32 %v421, %v1597
      %v1637 = vmul.f32 %v423, %v1597
      %v1638 = vmul.f32 %v424, %v1597
      %v1639 = vmul.f32 %v425, %v1597
      %v1640 = vmul.f32 %v427, %v1597
      %v1641 = vmul.f32 %v428, %v1597
      %v1642 = vmul.f32 %v429, %v1597
      %v1643 = vmul.f32 %v431, %v1597
      %v1644 = vmul.f32 %v432, %v1597
      %v1645 = vmul.f32 %v433, %v1597
      %v1646 = vadd.f32 %v1549, %v1598
      %v1647 = vadd.f32 %v1550, %v1599
      %v1648 = vadd.f32 %v1551, %v1600
      %v1649 = vadd.f32 %v1552, %v1601
      %v1650 = vadd.f32 %v1553, %v1602
      %v1651 = vadd.f32 %v1554, %v1603
      %v1652 = vadd.f32 %v1555, %v1604
      %v1653 = vadd.f32 %v1556, %v1605
      %v1654 = vadd.f32 %v1557, %v1606
      %v1655 = vadd.f32 %v1558, %v1607
      %v1656 = vadd.f32 %v1559, %v1608
      %v1657 = vadd.f32 %v1560, %v1609
      %v1658 = vadd.f32 %v1561, %v1610
      %v1659 = vadd.f32 %v1562, %v1611
      %v1660 = vadd.f32 %v1563, %v1612
      %v1661 = vadd.f32 %v1564, %v1613
      %v1662 = vadd.f32 %v1565, %v1614
      %v1663 = vadd.f32 %v1566, %v1615
      %v1664 = vadd.f32 %v1567, %v1616
      %v1665 = vadd.f32 %v1568, %v1617
      %v1666 = vadd.f32 %v1569, %v1618
      %v1667 = vadd.f32 %v1570, %v1619
      %v1668 = vadd.f32 %v1571, %v1620
      %v1669 = vadd.f32 %v1572, %v1621
      %v1670 = vadd.f32 %v1573, %v1622
      %v1671 = vadd.f32 %v1574, %v1623
      %v1672 = vadd.f32 %v1575, %v1624
      %v1673 = vadd.f32 %v1576, %v1625
      %v1674 = vadd.f32 %v1577, %v1626
      %v1675 = vadd.f32 %v1578, %v1627
      %v1676 = vadd.f32 %v1579, %v1628
      %v1677 = vadd.f32 %v1580, %v1629
      %v1678 = vadd.f32 %v1581, %v1630
      %v1679 = vadd.f32 %v1582, %v1631
      %v1680 = vadd.f32 %v1583, %v1632
      %v1681 = vadd.f32 %v1584, %v1633
      %v1682 = vadd.f32 %v1585, %v1634
      %v1683 = vadd.f32 %v1586, %v1635
      %v1684 = vadd.f32 %v1587, %v1636
      %v1685 = vadd.f32 %v1588, %v1637
      %v1686 = vadd.f32 %v1589, %v1638
      %v1687 = vadd.f32 %v1590, %v1639
      %v1688 = vadd.f32 %v1591, %v1640
      %v1689 = vadd.f32 %v1592, %v1641
      %v1690 = vadd.f32 %v1593, %v1642
      %v1691 = vadd.f32 %v1594, %v1643
      %v1692 = vadd.f32 %v1595, %v1644
      %v1693 = vadd.f32 %v1596, %v1645
      %v1694 = vperm.slane %v435, 7
      %v1695 = vmul.f32 %v372, %v1694
      %v1696 = vmul.f32 %v373, %v1694
      %v1697 = vmul.f32 %v376, %v1694
      %v1698 = vmul.f32 %v377, %v1694
      %v1699 = vmul.f32 %v380, %v1694
      %v1700 = vmul.f32 %v381, %v1694
      %v1701 = vmul.f32 %v384, %v1694
      %v1702 = vmul.f32 %v385, %v1694
      %v1703 = vmul.f32 %v388, %v1694
      %v1704 = vmul.f32 %v389, %v1694
      %v1705 = vmul.f32 %v392, %v1694
      %v1706 = vmul.f32 %v393, %v1694
      %v1707 = vmul.f32 %v396, %v1694
      %v1708 = vmul.f32 %v397, %v1694
      %v1709 = vmul.f32 %v400, %v1694
      %v1710 = vmul.f32 %v401, %v1694
      %v1711 = vmul.f32 %v404, %v1694
      %v1712 = vmul.f32 %v405, %v1694
      %v1713 = vmul.f32 %v408, %v1694
      %v1714 = vmul.f32 %v409, %v1694
      %v1715 = vmul.f32 %v412, %v1694
      %v1716 = vmul.f32 %v413, %v1694
      %v1717 = vmul.f32 %v416, %v1694
      %v1718 = vmul.f32 %v417, %v1694
      %v1719 = vmul.f32 %v420, %v1694
      %v1720 = vmul.f32 %v421, %v1694
      %v1721 = vmul.f32 %v424, %v1694
      %v1722 = vmul.f32 %v425, %v1694
      %v1723 = vmul.f32 %v428, %v1694
      %v1724 = vmul.f32 %v429, %v1694
      %v1725 = vmul.f32 %v432, %v1694
      %v1726 = vmul.f32 %v433, %v1694
      %v1759 = vrot.slane %v1695, 1
      %v1760 = vrot.slane %v1696, 1
      %v1761 = vsel %vm599, %v1759, %v1760
      %v1762 = vrot.slane %v1697, 1
      %v1763 = vrot.slane %v1698, 1
      %v1764 = vsel %vm599, %v1762, %v1763
      %v1765 = vrot.slane %v1699, 1
      %v1766 = vrot.slane %v1700, 1
      %v1767 = vsel %vm599, %v1765, %v1766
      %v1768 = vrot.slane %v1701, 1
      %v1769 = vrot.slane %v1702, 1
      %v1770 = vsel %vm599, %v1768, %v1769
      %v1771 = vrot.slane %v1703, 1
      %v1772 = vrot.slane %v1704, 1
      %v1773 = vsel %vm599, %v1771, %v1772
      %v1774 = vrot.slane %v1705, 1
      %v1775 = vrot.slane %v1706, 1
      %v1776 = vsel %vm599, %v1774, %v1775
      %v1777 = vrot.slane %v1707, 1
      %v1778 = vrot.slane %v1708, 1
      %v1779 = vsel %vm599, %v1777, %v1778
      %v1780 = vrot.slane %v1709, 1
      %v1781 = vrot.slane %v1710, 1
      %v1782 = vsel %vm599, %v1780, %v1781
      %v1783 = vrot.slane %v1711, 1
      %v1784 = vrot.slane %v1712, 1
      %v1785 = vsel %vm599, %v1783, %v1784
      %v1786 = vrot.slane %v1713, 1
      %v1787 = vrot.slane %v1714, 1
      %v1788 = vsel %vm599, %v1786, %v1787
      %v1789 = vrot.slane %v1715, 1
      %v1790 = vrot.slane %v1716, 1
      %v1791 = vsel %vm599, %v1789, %v1790
      %v1792 = vrot.slane %v1717, 1
      %v1793 = vrot.slane %v1718, 1
      %v1794 = vsel %vm599, %v1792, %v1793
      %v1795 = vrot.slane %v1719, 1
      %v1796 = vrot.slane %v1720, 1
      %v1797 = vsel %vm599, %v1795, %v1796
      %v1798 = vrot.slane %v1721, 1
      %v1799 = vrot.slane %v1722, 1
      %v1800 = vsel %vm599, %v1798, %v1799
      %v1801 = vrot.slane %v1723, 1
      %v1802 = vrot.slane %v1724, 1
      %v1803 = vsel %vm599, %v1801, %v1802
      %v1804 = vrot.slane %v1725, 1
      %v1805 = vrot.slane %v1726, 1
      %v1806 = vsel %vm599, %v1804, %v1805
      %v1855 = vadd.f32 %v1646, %v1759
      %v1856 = vadd.f32 %v1647, %v1761
      %v1857 = vadd.f32 %v1648, %v1760
      %v1858 = vadd.f32 %v1649, %v1762
      %v1859 = vadd.f32 %v1650, %v1764
      %v1860 = vadd.f32 %v1651, %v1763
      %v1861 = vadd.f32 %v1652, %v1765
      %v1862 = vadd.f32 %v1653, %v1767
      %v1863 = vadd.f32 %v1654, %v1766
      %v1864 = vadd.f32 %v1655, %v1768
      %v1865 = vadd.f32 %v1656, %v1770
      %v1866 = vadd.f32 %v1657, %v1769
      %v1867 = vadd.f32 %v1658, %v1771
      %v1868 = vadd.f32 %v1659, %v1773
      %v1869 = vadd.f32 %v1660, %v1772
      %v1870 = vadd.f32 %v1661, %v1774
      %v1871 = vadd.f32 %v1662, %v1776
      %v1872 = vadd.f32 %v1663, %v1775
      %v1873 = vadd.f32 %v1664, %v1777
      %v1874 = vadd.f32 %v1665, %v1779
      %v1875 = vadd.f32 %v1666, %v1778
      %v1876 = vadd.f32 %v1667, %v1780
      %v1877 = vadd.f32 %v1668, %v1782
      %v1878 = vadd.f32 %v1669, %v1781
      %v1879 = vadd.f32 %v1670, %v1783
      %v1880 = vadd.f32 %v1671, %v1785
      %v1881 = vadd.f32 %v1672, %v1784
      %v1882 = vadd.f32 %v1673, %v1786
      %v1883 = vadd.f32 %v1674, %v1788
      %v1884 = vadd.f32 %v1675, %v1787
      %v1885 = vadd.f32 %v1676, %v1789
      %v1886 = vadd.f32 %v1677, %v1791
      %v1887 = vadd.f32 %v1678, %v1790
      %v1888 = vadd.f32 %v1679, %v1792
      %v1889 = vadd.f32 %v1680, %v1794
      %v1890 = vadd.f32 %v1681, %v1793
      %v1891 = vadd.f32 %v1682, %v1795
      %v1892 = vadd.f32 %v1683, %v1797
      %v1893 = vadd.f32 %v1684, %v1796
      %v1894 = vadd.f32 %v1685, %v1798
      %v1895 = vadd.f32 %v1686, %v1800
      %v1896 = vadd.f32 %v1687, %v1799
      %v1897 = vadd.f32 %v1688, %v1801
      %v1898 = vadd.f32 %v1689, %v1803
      %v1899 = vadd.f32 %v1690, %v1802
      %v1900 = vadd.f32 %v1691, %v1804
      %v1901 = vadd.f32 %v1692, %v1806
      %v1902 = vadd.f32 %v1693, %v1805
      %v1903 = vperm.slane %v436, 0
      %v1904 = vmul.f32 %v372, %v1903
      %v1905 = vmul.f32 %v373, %v1903
      %v1906 = vmul.f32 %v374, %v1903
      %v1907 = vmul.f32 %v376, %v1903
      %v1908 = vmul.f32 %v377, %v1903
      %v1909 = vmul.f32 %v378, %v1903
      %v1910 = vmul.f32 %v380, %v1903
      %v1911 = vmul.f32 %v381, %v1903
      %v1912 = vmul.f32 %v382, %v1903
      %v1913 = vmul.f32 %v384, %v1903
      %v1914 = vmul.f32 %v385, %v1903
      %v1915 = vmul.f32 %v386, %v1903
      %v1916 = vmul.f32 %v388, %v1903
      %v1917 = vmul.f32 %v389, %v1903
      %v1918 = vmul.f32 %v390, %v1903
      %v1919 = vmul.f32 %v392, %v1903
      %v1920 = vmul.f32 %v393, %v1903
      %v1921 = vmul.f32 %v394, %v1903
      %v1922 = vmul.f32 %v396, %v1903
      %v1923 = vmul.f32 %v397, %v1903
      %v1924 = vmul.f32 %v398, %v1903
      %v1925 = vmul.f32 %v400, %v1903
      %v1926 = vmul.f32 %v401, %v1903
      %v1927 = vmul.f32 %v402, %v1903
      %v1928 = vmul.f32 %v404, %v1903
      %v1929 = vmul.f32 %v405, %v1903
      %v1930 = vmul.f32 %v406, %v1903
      %v1931 = vmul.f32 %v408, %v1903
      %v1932 = vmul.f32 %v409, %v1903
      %v1933 = vmul.f32 %v410, %v1903
      %v1934 = vmul.f32 %v412, %v1903
      %v1935 = vmul.f32 %v413, %v1903
      %v1936 = vmul.f32 %v414, %v1903
      %v1937 = vmul.f32 %v416, %v1903
      %v1938 = vmul.f32 %v417, %v1903
      %v1939 = vmul.f32 %v418, %v1903
      %v1940 = vmul.f32 %v420, %v1903
      %v1941 = vmul.f32 %v421, %v1903
      %v1942 = vmul.f32 %v422, %v1903
      %v1943 = vmul.f32 %v424, %v1903
      %v1944 = vmul.f32 %v425, %v1903
      %v1945 = vmul.f32 %v426, %v1903
      %v1946 = vmul.f32 %v428, %v1903
      %v1947 = vmul.f32 %v429, %v1903
      %v1948 = vmul.f32 %v430, %v1903
      %v1949 = vmul.f32 %v432, %v1903
      %v1950 = vmul.f32 %v433, %v1903
      %v1951 = vmul.f32 %v434, %v1903
      %v2000 = vrot.slane %v1904, 2
      %v2001 = vrot.slane %v1905, 2
      %v2002 = vsel %vm841, %v2000, %v2001
      %v2003 = vrot.slane %v1906, 2
      %v2004 = vsel %vm841, %v2001, %v2003
      %v2005 = vrot.slane %v1907, 2
      %v2006 = vrot.slane %v1908, 2
      %v2007 = vsel %vm841, %v2005, %v2006
      %v2008 = vrot.slane %v1909, 2
      %v2009 = vsel %vm841, %v2006, %v2008
      %v2010 = vrot.slane %v1910, 2
      %v2011 = vrot.slane %v1911, 2
      %v2012 = vsel %vm841, %v2010, %v2011
      %v2013 = vrot.slane %v1912, 2
      %v2014 = vsel %vm841, %v2011, %v2013
      %v2015 = vrot.slane %v1913, 2
      %v2016 = vrot.slane %v1914, 2
      %v2017 = vsel %vm841, %v2015, %v2016
      %v2018 = vrot.slane %v1915, 2
      %v2019 = vsel %vm841, %v2016, %v2018
      %v2020 = vrot.slane %v1916, 2
      %v2021 = vrot.slane %v1917, 2
      %v2022 = vsel %vm841, %v2020, %v2021
      %v2023 = vrot.slane %v1918, 2
      %v2024 = vsel %vm841, %v2021, %v2023
      %v2025 = vrot.slane %v1919, 2
      %v2026 = vrot.slane %v1920, 2
      %v2027 = vsel %vm841, %v2025, %v2026
      %v2028 = vrot.slane %v1921, 2
      %v2029 = vsel %vm841, %v2026, %v2028
      %v2030 = vrot.slane %v1922, 2
      %v2031 = vrot.slane %v1923, 2
      %v2032 = vsel %vm841, %v2030, %v2031
      %v2033 = vrot.slane %v1924, 2
      %v2034 = vsel %vm841, %v2031, %v2033
      %v2035 = vrot.slane %v1925, 2
      %v2036 = vrot.slane %v1926, 2
      %v2037 = vsel %vm841, %v2035, %v2036
      %v2038 = vrot.slane %v1927, 2
      %v2039 = vsel %vm841, %v2036, %v2038
      %v2040 = vrot.slane %v1928, 2
      %v2041 = vrot.slane %v1929, 2
      %v2042 = vsel %vm841, %v2040, %v2041
      %v2043 = vrot.slane %v1930, 2
      %v2044 = vsel %vm841, %v2041, %v2043
      %v2045 = vrot.slane %v1931, 2
      %v2046 = vrot.slane %v1932, 2
      %v2047 = vsel %vm841, %v2045, %v2046
      %v2048 = vrot.slane %v1933, 2
      %v2049 = vsel %vm841, %v2046, %v2048
      %v2050 = vrot.slane %v1934, 2
      %v2051 = vrot.slane %v1935, 2
      %v2052 = vsel %vm841, %v2050, %v2051
      %v2053 = vrot.slane %v1936, 2
      %v2054 = vsel %vm841, %v2051, %v2053
      %v2055 = vrot.slane %v1937, 2
      %v2056 = vrot.slane %v1938, 2
      %v2057 = vsel %vm841, %v2055, %v2056
      %v2058 = vrot.slane %v1939, 2
      %v2059 = vsel %vm841, %v2056, %v2058
      %v2060 = vrot.slane %v1940, 2
      %v2061 = vrot.slane %v1941, 2
      %v2062 = vsel %vm841, %v2060, %v2061
      %v2063 = vrot.slane %v1942, 2
      %v2064 = vsel %vm841, %v2061, %v2063
      %v2065 = vrot.slane %v1943, 2
      %v2066 = vrot.slane %v1944, 2
      %v2067 = vsel %vm841, %v2065, %v2066
      %v2068 = vrot.slane %v1945, 2
      %v2069 = vsel %vm841, %v2066, %v2068
      %v2070 = vrot.slane %v1946, 2
      %v2071 = vrot.slane %v1947, 2
      %v2072 = vsel %vm841, %v2070, %v2071
      %v2073 = vrot.slane %v1948, 2
      %v2074 = vsel %vm841, %v2071, %v2073
      %v2075 = vrot.slane %v1949, 2
      %v2076 = vrot.slane %v1950, 2
      %v2077 = vsel %vm841, %v2075, %v2076
      %v2078 = vrot.slane %v1951, 2
      %v2079 = vsel %vm841, %v2076, %v2078
      %v2128 = vadd.f32 %v1855, %v2000
      %v2129 = vadd.f32 %v1856, %v2002
      %v2130 = vadd.f32 %v1857, %v2004
      %v2131 = vadd.f32 %v1858, %v2005
      %v2132 = vadd.f32 %v1859, %v2007
      %v2133 = vadd.f32 %v1860, %v2009
      %v2134 = vadd.f32 %v1861, %v2010
      %v2135 = vadd.f32 %v1862, %v2012
      %v2136 = vadd.f32 %v1863, %v2014
      %v2137 = vadd.f32 %v1864, %v2015
      %v2138 = vadd.f32 %v1865, %v2017
      %v2139 = vadd.f32 %v1866, %v2019
      %v2140 = vadd.f32 %v1867, %v2020
      %v2141 = vadd.f32 %v1868, %v2022
      %v2142 = vadd.f32 %v1869, %v2024
      %v2143 = vadd.f32 %v1870, %v2025
      %v2144 = vadd.f32 %v1871, %v2027
      %v2145 = vadd.f32 %v1872, %v2029
      %v2146 = vadd.f32 %v1873, %v2030
      %v2147 = vadd.f32 %v1874, %v2032
      %v2148 = vadd.f32 %v1875, %v2034
      %v2149 = vadd.f32 %v1876, %v2035
      %v2150 = vadd.f32 %v1877, %v2037
      %v2151 = vadd.f32 %v1878, %v2039
      %v2152 = vadd.f32 %v1879, %v2040
      %v2153 = vadd.f32 %v1880, %v2042
      %v2154 = vadd.f32 %v1881, %v2044
      %v2155 = vadd.f32 %v1882, %v2045
      %v2156 = vadd.f32 %v1883, %v2047
      %v2157 = vadd.f32 %v1884, %v2049
      %v2158 = vadd.f32 %v1885, %v2050
      %v2159 = vadd.f32 %v1886, %v2052
      %v2160 = vadd.f32 %v1887, %v2054
      %v2161 = vadd.f32 %v1888, %v2055
      %v2162 = vadd.f32 %v1889, %v2057
      %v2163 = vadd.f32 %v1890, %v2059
      %v2164 = vadd.f32 %v1891, %v2060
      %v2165 = vadd.f32 %v1892, %v2062
      %v2166 = vadd.f32 %v1893, %v2064
      %v2167 = vadd.f32 %v1894, %v2065
      %v2168 = vadd.f32 %v1895, %v2067
      %v2169 = vadd.f32 %v1896, %v2069
      %v2170 = vadd.f32 %v1897, %v2070
      %v2171 = vadd.f32 %v1898, %v2072
      %v2172 = vadd.f32 %v1899, %v2074
      %v2173 = vadd.f32 %v1900, %v2075
      %v2174 = vadd.f32 %v1901, %v2077
      %v2175 = vadd.f32 %v1902, %v2079
      %v2176 = vld [vmem:[%s2] sm:$0x1]
      %v2178 = vperm.slane %v2176, 0
      %v2180 = vadd.f32 %v2128, %v2178
      %v2181 = vadd.f32 %v2129, %v2178
      %v2182 = vadd.f32 %v2130, %v2178
      %v2183 = vadd.f32 %v2131, %v2178
      %v2184 = vadd.f32 %v2132, %v2178
      %v2185 = vadd.f32 %v2133, %v2178
      %v2186 = vadd.f32 %v2134, %v2178
      %v2187 = vadd.f32 %v2135, %v2178
      %v2188 = vadd.f32 %v2136, %v2178
      %v2189 = vadd.f32 %v2137, %v2178
      %v2190 = vadd.f32 %v2138, %v2178
      %v2191 = vadd.f32 %v2139, %v2178
      %v2192 = vadd.f32 %v2140, %v2178
      %v2193 = vadd.f32 %v2141, %v2178
      %v2194 = vadd.f32 %v2142, %v2178
      %v2195 = vadd.f32 %v2143, %v2178
      %v2196 = vadd.f32 %v2144, %v2178
      %v2197 = vadd.f32 %v2145, %v2178
      %v2198 = vadd.f32 %v2146, %v2178
      %v2199 = vadd.f32 %v2147, %v2178
      %v2200 = vadd.f32 %v2148, %v2178
      %v2201 = vadd.f32 %v2149, %v2178
      %v2202 = vadd.f32 %v2150, %v2178
      %v2203 = vadd.f32 %v2151, %v2178
      %v2204 = vadd.f32 %v2152, %v2178
      %v2205 = vadd.f32 %v2153, %v2178
      %v2206 = vadd.f32 %v2154, %v2178
      %v2207 = vadd.f32 %v2155, %v2178
      %v2208 = vadd.f32 %v2156, %v2178
      %v2209 = vadd.f32 %v2157, %v2178
      %v2210 = vadd.f32 %v2158, %v2178
      %v2211 = vadd.f32 %v2159, %v2178
      %v2212 = vadd.f32 %v2160, %v2178
      %v2213 = vadd.f32 %v2161, %v2178
      %v2214 = vadd.f32 %v2162, %v2178
      %v2215 = vadd.f32 %v2163, %v2178
      %v2216 = vadd.f32 %v2164, %v2178
      %v2217 = vadd.f32 %v2165, %v2178
      %v2218 = vadd.f32 %v2166, %v2178
      %v2219 = vadd.f32 %v2167, %v2178
      %v2220 = vadd.f32 %v2168, %v2178
      %v2221 = vadd.f32 %v2169, %v2178
      %v2222 = vadd.f32 %v2170, %v2178
      %v2223 = vadd.f32 %v2171, %v2178
      %v2224 = vadd.f32 %v2172, %v2178
      %v2225 = vadd.f32 %v2173, %v2178
      %v2226 = vadd.f32 %v2174, %v2178
      %v2227 = vadd.f32 %v2175, %v2178
      %v2228 = vmax.f32 %v2180, 0.0
      %v2229 = vmax.f32 %v2181, 0.0
      %v2230 = vmax.f32 %v2182, 0.0
      %v2231 = vmax.f32 %v2183, 0.0
      %v2232 = vmax.f32 %v2184, 0.0
      %v2233 = vmax.f32 %v2185, 0.0
      %v2234 = vmax.f32 %v2186, 0.0
      %v2235 = vmax.f32 %v2187, 0.0
      %v2236 = vmax.f32 %v2188, 0.0
      %v2237 = vmax.f32 %v2189, 0.0
      %v2238 = vmax.f32 %v2190, 0.0
      %v2239 = vmax.f32 %v2191, 0.0
      %v2240 = vmax.f32 %v2192, 0.0
      %v2241 = vmax.f32 %v2193, 0.0
      %v2242 = vmax.f32 %v2194, 0.0
      %v2243 = vmax.f32 %v2195, 0.0
      %v2244 = vmax.f32 %v2196, 0.0
      %v2245 = vmax.f32 %v2197, 0.0
      %v2246 = vmax.f32 %v2198, 0.0
      %v2247 = vmax.f32 %v2199, 0.0
      %v2248 = vmax.f32 %v2200, 0.0
      %v2249 = vmax.f32 %v2201, 0.0
      %v2250 = vmax.f32 %v2202, 0.0
      %v2251 = vmax.f32 %v2203, 0.0
      %v2252 = vmax.f32 %v2204, 0.0
      %v2253 = vmax.f32 %v2205, 0.0
      %v2254 = vmax.f32 %v2206, 0.0
      %v2255 = vmax.f32 %v2207, 0.0
      %v2256 = vmax.f32 %v2208, 0.0
      %v2257 = vmax.f32 %v2209, 0.0
      %v2258 = vmax.f32 %v2210, 0.0
      %v2259 = vmax.f32 %v2211, 0.0
      %v2260 = vmax.f32 %v2212, 0.0
      %v2261 = vmax.f32 %v2213, 0.0
      %v2262 = vmax.f32 %v2214, 0.0
      %v2263 = vmax.f32 %v2215, 0.0
      %v2264 = vmax.f32 %v2216, 0.0
      %v2265 = vmax.f32 %v2217, 0.0
      %v2266 = vmax.f32 %v2218, 0.0
      %v2267 = vmax.f32 %v2219, 0.0
      %v2268 = vmax.f32 %v2220, 0.0
      %v2269 = vmax.f32 %v2221, 0.0
      %v2270 = vmax.f32 %v2222, 0.0
      %v2271 = vmax.f32 %v2223, 0.0
      %v2272 = vmax.f32 %v2224, 0.0
      %v2273 = vmax.f32 %v2225, 0.0
      %v2274 = vmax.f32 %v2226, 0.0
      %v2275 = vmax.f32 %v2227, 0.0
      %v2276 = vmin.f32 %v2228, 6.0
      %v2277 = vmin.f32 %v2229, 6.0
      %v2278 = vmin.f32 %v2230, 6.0
      %v2279 = vmin.f32 %v2231, 6.0
      %v2280 = vmin.f32 %v2232, 6.0
      %v2281 = vmin.f32 %v2233, 6.0
      %v2282 = vmin.f32 %v2234, 6.0
      %v2283 = vmin.f32 %v2235, 6.0
      %v2284 = vmin.f32 %v2236, 6.0
      %v2285 = vmin.f32 %v2237, 6.0
      %v2286 = vmin.f32 %v2238, 6.0
      %v2287 = vmin.f32 %v2239, 6.0
      %v2288 = vmin.f32 %v2240, 6.0
      %v2289 = vmin.f32 %v2241, 6.0
      %v2290 = vmin.f32 %v2242, 6.0
      %v2291 = vmin.f32 %v2243, 6.0
      %v2292 = vmin.f32 %v2244, 6.0
      %v2293 = vmin.f32 %v2245, 6.0
      %v2294 = vmin.f32 %v2246, 6.0
      %v2295 = vmin.f32 %v2247, 6.0
      %v2296 = vmin.f32 %v2248, 6.0
      %v2297 = vmin.f32 %v2249, 6.0
      %v2298 = vmin.f32 %v2250, 6.0
      %v2299 = vmin.f32 %v2251, 6.0
      %v2300 = vmin.f32 %v2252, 6.0
      %v2301 = vmin.f32 %v2253, 6.0
      %v2302 = vmin.f32 %v2254, 6.0
      %v2303 = vmin.f32 %v2255, 6.0
      %v2304 = vmin.f32 %v2256, 6.0
      %v2305 = vmin.f32 %v2257, 6.0
      %v2306 = vmin.f32 %v2258, 6.0
      %v2307 = vmin.f32 %v2259, 6.0
      %v2308 = vmin.f32 %v2260, 6.0
      %v2309 = vmin.f32 %v2261, 6.0
      %v2310 = vmin.f32 %v2262, 6.0
      %v2311 = vmin.f32 %v2263, 6.0
      %v2312 = vmin.f32 %v2264, 6.0
      %v2313 = vmin.f32 %v2265, 6.0
      %v2314 = vmin.f32 %v2266, 6.0
      %v2315 = vmin.f32 %v2267, 6.0
      %v2316 = vmin.f32 %v2268, 6.0
      %v2317 = vmin.f32 %v2269, 6.0
      %v2318 = vmin.f32 %v2270, 6.0
      %v2319 = vmin.f32 %v2271, 6.0
      %v2320 = vmin.f32 %v2272, 6.0
      %v2321 = vmin.f32 %v2273, 6.0
      %v2322 = vmin.f32 %v2274, 6.0
      %v2323 = vmin.f32 %v2275, 6.0
      %vm2372 = vcmask 1040384
      %v2373 = vrot.slane %v2276, 7
      %v2374 = vrot.slane %v2277, 7
      %v2375 = vsel %vm2372, %v2373, %v2374
      %v2376 = vrot.slane %v2278, 7
      %v2377 = vsel %vm2372, %v2374, %v2376
      %v2378 = vrot.slane %v2279, 7
      %v2379 = vrot.slane %v2280, 7
      %v2380 = vsel %vm2372, %v2378, %v2379
      %v2381 = vrot.slane %v2281, 7
      %v2382 = vsel %vm2372, %v2379, %v2381
      %v2383 = vrot.slane %v2282, 7
      %v2384 = vrot.slane %v2283, 7
      %v2385 = vsel %vm2372, %v2383, %v2384
      %v2386 = vrot.slane %v2284, 7
      %v2387 = vsel %vm2372, %v2384, %v2386
      %v2388 = vrot.slane %v2285, 7
      %v2389 = vrot.slane %v2286, 7
      %v2390 = vsel %vm2372, %v2388, %v2389
      %v2391 = vrot.slane %v2287, 7
      %v2392 = vsel %vm2372, %v2389, %v2391
      %v2393 = vrot.slane %v2288, 7
      %v2394 = vrot.slane %v2289, 7
      %v2395 = vsel %vm2372, %v2393, %v2394
      %v2396 = vrot.slane %v2290, 7
      %v2397 = vsel %vm2372, %v2394, %v2396
      %v2398 = vrot.slane %v2291, 7
      %v2399 = vrot.slane %v2292, 7
      %v2400 = vsel %vm2372, %v2398, %v2399
      %v2401 = vrot.slane %v2293, 7
      %v2402 = vsel %vm2372, %v2399, %v2401
      %v2403 = vrot.slane %v2294, 7
      %v2404 = vrot.slane %v2295, 7
      %v2405 = vsel %vm2372, %v2403, %v2404
      %v2406 = vrot.slane %v2296, 7
      %v2407 = vsel %vm2372, %v2404, %v2406
      %v2408 = vrot.slane %v2297, 7
      %v2409 = vrot.slane %v2298, 7
      %v2410 = vsel %vm2372, %v2408, %v2409
      %v2411 = vrot.slane %v2299, 7
      %v2412 = vsel %vm2372, %v2409, %v2411
      %v2413 = vrot.slane %v2300, 7
      %v2414 = vrot.slane %v2301, 7
      %v2415 = vsel %vm2372, %v2413, %v2414
      %v2416 = vrot.slane %v2302, 7
      %v2417 = vsel %vm2372, %v2414, %v2416
      %v2418 = vrot.slane %v2303, 7
      %v2419 = vrot.slane %v2304, 7
      %v2420 = vsel %vm2372, %v2418, %v2419
      %v2421 = vrot.slane %v2305, 7
      %v2422 = vsel %vm2372, %v2419, %v2421
      %v2423 = vrot.slane %v2306, 7
      %v2424 = vrot.slane %v2307, 7
      %v2425 = vsel %vm2372, %v2423, %v2424
      %v2426 = vrot.slane %v2308, 7
      %v2427 = vsel %vm2372, %v2424, %v2426
      %v2428 = vrot.slane %v2309, 7
      %v2429 = vrot.slane %v2310, 7
      %v2430 = vsel %vm2372, %v2428, %v2429
      %v2431 = vrot.slane %v2311, 7
      %v2432 = vsel %vm2372, %v2429, %v2431
      %v2433 = vrot.slane %v2312, 7
      %v2434 = vrot.slane %v2313, 7
      %v2435 = vsel %vm2372, %v2433, %v2434
      %v2436 = vrot.slane %v2314, 7
      %v2437 = vsel %vm2372, %v2434, %v2436
      %v2438 = vrot.slane %v2315, 7
      %v2439 = vrot.slane %v2316, 7
      %v2440 = vsel %vm2372, %v2438, %v2439
      %v2441 = vrot.slane %v2317, 7
      %v2442 = vsel %vm2372, %v2439, %v2441
      %v2443 = vrot.slane %v2318, 7
      %v2444 = vrot.slane %v2319, 7
      %v2445 = vsel %vm2372, %v2443, %v2444
      %v2446 = vrot.slane %v2320, 7
      %v2447 = vsel %vm2372, %v2444, %v2446
      %v2448 = vrot.slane %v2321, 7
      %v2449 = vrot.slane %v2322, 7
      %v2450 = vsel %vm2372, %v2448, %v2449
      %v2451 = vrot.slane %v2323, 7
      %v2452 = vsel %vm2372, %v2449, %v2451
      %v2453 = vld [vmem:[%s3] sm:$0xff]
      %v2454 = vld [vmem:[%s4] sm:$0x1]
      %v2456 = vperm.slane %v2454, 0
      %v2458 = vsel %vm257, %v2375, 0
      %v2460 = vsel %vm257, %v2377, 0
      %v2462 = vsel %vm257, %v2380, 0
      %v2464 = vsel %vm257, %v2382, 0
      %v2466 = vsel %vm257, %v2385, 0
      %v2468 = vsel %vm257, %v2387, 0
      %v2470 = vsel %vm257, %v2390, 0
      %v2472 = vsel %vm257, %v2392, 0
      %v2474 = vsel %vm257, %v2395, 0
      %v2476 = vsel %vm257, %v2397, 0
      %v2478 = vsel %vm257, %v2400, 0
      %v2480 = vsel %vm257, %v2402, 0
      %v2482 = vsel %vm257, %v2405, 0
      %v2484 = vsel %vm257, %v2407, 0
      %v2486 = vsel %vm257, %v2410, 0
      %v2488 = vsel %vm257, %v2412, 0
      %v2490 = vsel %vm257, %v2415, 0
      %v2492 = vsel %vm257, %v2417, 0
      %v2494 = vsel %vm257, %v2420, 0
      %v2496 = vsel %vm257, %v2422, 0
      %v2498 = vsel %vm257, %v2425, 0
      %v2500 = vsel %vm257, %v2427, 0
      %v2502 = vsel %vm257, %v2430, 0
      %v2504 = vsel %vm257, %v2432, 0
      %v2506 = vsel %vm257, %v2435, 0
      %v2508 = vsel %vm257, %v2437, 0
      %v2510 = vsel %vm257, %v2440, 0
      %v2512 = vsel %vm257, %v2442, 0
      %v2514 = vsel %vm257, %v2445, 0
      %v2516 = vsel %vm257, %v2447, 0
      %v2518 = vsel %vm257, %v2450, 0
      %v2520 = vsel %vm257, %v2452, 0
      %2522 = vmatpush.msra.mxu0 0.0
      %2523 = vmatpush.msra.mxu0 0.0
      %2524 = vmatpush.msra.mxu0 0.0
      %2525 = vmatpush.msra.mxu0 0.0
      %2526 = vmatpush.msra.mxu0 0.0
      %2527 = vmatpush.msra.mxu0 0.0
      %2528 = vmatpush.msra.mxu0 0.0
      %2529 = vmatpush.msra.mxu0 0.0
      %2530 = vmatpush.msra.mxu0 0.0
      %2531 = vmatpush.msra.mxu0 0.0
      %2532 = vmatpush.msra.mxu0 0.0
      %2533 = vmatpush.msra.mxu0 0.0
      %2534 = vmatpush.msra.mxu0 0.0
      %2535 = vmatpush.msra.mxu0 0.0
      %2536 = vmatpush.msra.mxu0 0.0
      %2537 = vmatpush.msra.mxu0 %v2453
      %2538 = vmatmul.f32.gmra.mxu0 %v2458
      %v2539 = vpop.f32.mrf.mxu0
      %v2540 = vadd.f32 %v2456, %v2539
      %2541 = vmatmul.f32.gmra.mxu0 %v2460
      %v2542 = vpop.f32.mrf.mxu0
      %v2543 = vadd.f32 %v2456, %v2542
      %2544 = vmatmul.f32.gmra.mxu0 %v2462
      %v2545 = vpop.f32.mrf.mxu0
      %v2546 = vadd.f32 %v2456, %v2545
      %2547 = vmatmul.f32.gmra.mxu0 %v2464
      %v2548 = vpop.f32.mrf.mxu0
      %v2549 = vadd.f32 %v2456, %v2548
      %2550 = vmatmul.f32.gmra.mxu0 %v2466
      %v2551 = vpop.f32.mrf.mxu0
      %v2552 = vadd.f32 %v2456, %v2551
      %2553 = vmatmul.f32.gmra.mxu0 %v2468
      %v2554 = vpop.f32.mrf.mxu0
      %v2555 = vadd.f32 %v2456, %v2554
      %2556 = vmatmul.f32.gmra.mxu0 %v2470
      %v2557 = vpop.f32.mrf.mxu0
      %v2558 = vadd.f32 %v2456, %v2557
      %2559 = vmatmul.f32.gmra.mxu0 %v2472
      %v2560 = vpop.f32.mrf.mxu0
      %v2561 = vadd.f32 %v2456, %v2560
      %2562 = vmatmul.f32.gmra.mxu0 %v2474
      %v2563 = vpop.f32.mrf.mxu0
      %v2564 = vadd.f32 %v2456, %v2563
      %2565 = vmatmul.f32.gmra.mxu0 %v2476
      %v2566 = vpop.f32.mrf.mxu0
      %v2567 = vadd.f32 %v2456, %v2566
      %2568 = vmatmul.f32.gmra.mxu0 %v2478
      %v2569 = vpop.f32.mrf.mxu0
      %v2570 = vadd.f32 %v2456, %v2569
      %2571 = vmatmul.f32.gmra.mxu0 %v2480
      %v2572 = vpop.f32.mrf.mxu0
      %v2573 = vadd.f32 %v2456, %v2572
      %2574 = vmatmul.f32.gmra.mxu0 %v2482
      %v2575 = vpop.f32.mrf.mxu0
      %v2576 = vadd.f32 %v2456, %v2575
      %2577 = vmatmul.f32.gmra.mxu0 %v2484
      %v2578 = vpop.f32.mrf.mxu0
      %v2579 = vadd.f32 %v2456, %v2578
      %2580 = vmatmul.f32.gmra.mxu0 %v2486
      %v2581 = vpop.f32.mrf.mxu0
      %v2582 = vadd.f32 %v2456, %v2581
      %2583 = vmatmul.f32.gmra.mxu0 %v2488
      %v2584 = vpop.f32.mrf.mxu0
      %v2585 = vadd.f32 %v2456, %v2584
      %2586 = vmatmul.f32.gmra.mxu0 %v2490
      %v2587 = vpop.f32.mrf.mxu0
      %v2588 = vadd.f32 %v2456, %v2587
      %2589 = vmatmul.f32.gmra.mxu0 %v2492
      %v2590 = vpop.f32.mrf.mxu0
      %v2591 = vadd.f32 %v2456, %v2590
      %2592 = vmatmul.f32.gmra.mxu0 %v2494
      %v2593 = vpop.f32.mrf.mxu0
      %v2594 = vadd.f32 %v2456, %v2593
      %2595 = vmatmul.f32.gmra.mxu0 %v2496
      %v2596 = vpop.f32.mrf.mxu0
      %v2597 = vadd.f32 %v2456, %v2596
      %2598 = vmatmul.f32.gmra.mxu0 %v2498
      %v2599 = vpop.f32.mrf.mxu0
      %v2600 = vadd.f32 %v2456, %v2599
      %2601 = vmatmul.f32.gmra.mxu0 %v2500
      %v2602 = vpop.f32.mrf.mxu0
      %v2603 = vadd.f32 %v2456, %v2602
      %2604 = vmatmul.f32.gmra.mxu0 %v2502
      %v2605 = vpop.f32.mrf.mxu0
      %v2606 = vadd.f32 %v2456, %v2605
      %2607 = vmatmul.f32.gmra.mxu0 %v2504
      %v2608 = vpop.f32.mrf.mxu0
      %v2609 = vadd.f32 %v2456, %v2608
      %2610 = vmatmul.f32.gmra.mxu0 %v2506
      %v2611 = vpop.f32.mrf.mxu0
      %v2612 = vadd.f32 %v2456, %v2611
      %2613 = vmatmul.f32.gmra.mxu0 %v2508
      %v2614 = vpop.f32.mrf.mxu0
      %v2615 = vadd.f32 %v2456, %v2614
      %2616 = vmatmul.f32.gmra.mxu0 %v2510
      %v2617 = vpop.f32.mrf.mxu0
      %v2618 = vadd.f32 %v2456, %v2617
      %2619 = vmatmul.f32.gmra.mxu0 %v2512
      %v2620 = vpop.f32.mrf.mxu0
      %v2621 = vadd.f32 %v2456, %v2620
      %2622 = vmatmul.f32.gmra.mxu0 %v2514
      %v2623 = vpop.f32.mrf.mxu0
      %v2624 = vadd.f32 %v2456, %v2623
      %2625 = vmatmul.f32.gmra.mxu0 %v2516
      %v2626 = vpop.f32.mrf.mxu0
      %v2627 = vadd.f32 %v2456, %v2626
      %2628 = vmatmul.f32.gmra.mxu0 %v2518
      %v2629 = vpop.f32.mrf.mxu0
      %v2630 = vadd.f32 %v2456, %v2629
      %2631 = vmatmul.f32.gmra.mxu0 %v2520
      %v2632 = vpop.f32.mrf.mxu0
      %v2633 = vadd.f32 %v2456, %v2632
      %2634 = vdwg.mxu0
      %vm2635 = vcmask 130048
      %2636 = vst.msk [vmem:[%s224] sm:$0xff] %vm2635, %v2540
      %2637 = vst.msk [vmem:[%s224 + $0x8] sm:$0xff] %vm2635, %v2543
      %2638 = vst.msk [vmem:[%s224 + $0x10] sm:$0xff] %vm2635, %v2546
      %2639 = vst.msk [vmem:[%s224 + $0x18] sm:$0xff] %vm2635, %v2549
      %2640 = vst.msk [vmem:[%s224 + $0x20] sm:$0xff] %vm2635, %v2552
      %2641 = vst.msk [vmem:[%s224 + $0x28] sm:$0xff] %vm2635, %v2555
      %2642 = vst.msk [vmem:[%s224 + $0x30] sm:$0xff] %vm2635, %v2558
      %2643 = vst.msk [vmem:[%s224 + $0x38] sm:$0xff] %vm2635, %v2561
      %2644 = vst.msk [vmem:[%s224 + $0x40] sm:$0xff] %vm2635, %v2564
      %2645 = vst.msk [vmem:[%s224 + $0x48] sm:$0xff] %vm2635, %v2567
      %2646 = vst.msk [vmem:[%s224 + $0x50] sm:$0xff] %vm2635, %v2570
      %2647 = vst.msk [vmem:[%s224 + $0x58] sm:$0xff] %vm2635, %v2573
      %2648 = vst.msk [vmem:[%s224 + $0x60] sm:$0xff] %vm2635, %v2576
      %2649 = vst.msk [vmem:[%s224 + $0x68] sm:$0xff] %vm2635, %v2579
      %2650 = vst.msk [vmem:[%s224 + $0x70] sm:$0xff] %vm2635, %v2582
      %2651 = vst.msk [vmem:[%s224 + $0x78] sm:$0xff] %vm2635, %v2585
      %2652 = vst.msk [vmem:[%s224 + $0x80] sm:$0xff] %vm2635, %v2588
      %2653 = vst.msk [vmem:[%s224 + $0x88] sm:$0xff] %vm2635, %v2591
      %2654 = vst.msk [vmem:[%s224 + $0x90] sm:$0xff] %vm2635, %v2594
      %2655 = vst.msk [vmem:[%s224 + $0x98] sm:$0xff] %vm2635, %v2597
      %2656 = vst.msk [vmem:[%s224 + $0xa0] sm:$0xff] %vm2635, %v2600
      %2657 = vst.msk [vmem:[%s224 + $0xa8] sm:$0xff] %vm2635, %v2603
      %2658 = vst.msk [vmem:[%s224 + $0xb0] sm:$0xff] %vm2635, %v2606
      %2659 = vst.msk [vmem:[%s224 + $0xb8] sm:$0xff] %vm2635, %v2609
      %2660 = vst.msk [vmem:[%s224 + $0xc0] sm:$0xff] %vm2635, %v2612
      %2661 = vst.msk [vmem:[%s224 + $0xc8] sm:$0xff] %vm2635, %v2615
      %2662 = vst.msk [vmem:[%s224 + $0xd0] sm:$0xff] %vm2635, %v2618
      %2663 = vst.msk [vmem:[%s224 + $0xd8] sm:$0xff] %vm2635, %v2621
      %2664 = vst.msk [vmem:[%s224 + $0xe0] sm:$0xff] %vm2635, %v2624
      %2665 = vst.msk [vmem:[%s224 + $0xe8] sm:$0xff] %vm2635, %v2627
      %2666 = vst.msk [vmem:[%s224 + $0xf0] sm:$0xff] %vm2635, %v2630
      %2667 = vst.msk [vmem:[%s224 + $0xf8] sm:$0xff] %vm2635, %v2633
      %p2668 = scmp.lt.s32.totalorder %s16, 1
      %s2669 = scalar_select %p2668, %s16, 1
      %s2670 = smul.addr %s2669, 32
      %s2671 = smul.addr %s2670, 8
      %s2672 = scalar_lea.vmem %s5, %s2671
      // Predicated region
      $region41: #{branch_forward.3} parent=39 // pred_check
        %p2673 = pneg %p144
      $region42: #{branch_forward.3} parent=39 // pred_check_branch
        %2675 = sbr.rel (%p2673) target = $region44
      $region43: #{branch_forward.3} parent=39 // pred_region
        _
      $region44: #{branch_forward.3} parent=39 // pred_fallthru
        _
    $region40: #{branch_forward.3} parent=5 // pred_fallthru
      _
    %p2676 = scmp.le.s32.totalorder 2, %s11
    // Predicated region
    $region45: #{branch_forward.3} parent=5 // pred_check
      %p2677 = pneg %p2676
    $region46: #{branch_forward.3} parent=5 // pred_check_branch
      %2679 = sbr.rel (%p2677) target = $region48
    $region47: #{branch_forward.3} parent=5 // pred_region
      %s2680 = ssub.s32 %s11, 2
      // Predicated region
      $region49: #{branch_forward.3} parent=47 // pred_check
        %p2681 = pneg %p150
      $region50: #{branch_forward.3} parent=47 // pred_check_branch
        %2683 = sbr.rel (%p2681) target = $region52
      $region51: #{branch_forward.3} parent=47 // pred_region
        %p2684 = scmp.lt.s32.totalorder %s17, 1
        %s2685 = scalar_select %p2684, %s17, 1
        %s2686 = smul.addr %s2685, 32
        %s2687 = smul.addr %s2686, 8
        %s2688 = scalar_lea.vmem %s5, %s2687
      $region52: #{branch_forward.3} parent=47 // pred_fallthru
        _
    $region48: #{branch_forward.3} parent=5 // pred_fallthru
      _
  $region6: #{branch_forward.3} parent=0 // loop_footer
    %s15 = sadd.s32 1, %s11
  $region7: #{branch_forward.3} parent=0 // loop_footer_branch
    %10 = sbr.rel target = $region3
  $region8: #{branch_forward.3} parent=0 // loop_exit
    _

</llo_original>
